<compile_context>
chip_gen: v5e
topology: v5e:2x2
jax: 0.10.0
libtpu: 0.0.40
codegen_flags: <defaults>
</compile_context>

<pallas_src>
import math

import jax
import jax.numpy as jnp
from jax.experimental import pallas as pl
from jax.experimental.pallas import tpu as pltpu

TM = 512                          # row tile for the fused 1x1 matmul
VMEM_LIMIT = 32 * 1024 * 1024     # explicit scoped-VMEM budget (safe on v5e/v6e/v7x)


# ----------------------------------------------------------------------------
# Pallas kernels
# ----------------------------------------------------------------------------
def _fused_1x1_kernel(x_ref, w_ref, b_ref, y1_ref, t_ref):
    """relu(x @ w + b) for the three fused 1x1 convs; split outputs at c1."""
    acc = jnp.dot(x_ref[...], w_ref[...], preferred_element_type=jnp.float32)
    acc = jnp.maximum(acc + b_ref[...], 0.0)
    c1 = y1_ref.shape[-1]
    y1_ref[...] = acc[:, :c1].astype(y1_ref.dtype)       # branch-1 output (f32)
    t_ref[...] = acc[:, c1:].astype(t_ref.dtype)         # b2/b3 reduce (bf16)


def _conv3x3_bias_relu_kernel(p0_ref, p1_ref, p2_ref, w_ref, b_ref, o_ref):
    """One output depth-plane of a 3x3x3 conv (pad=1) + folded-BN bias + ReLU.

    p{0,1,2}_ref : (H+2, W+2, Cin)  zero-padded input planes d, d+1, d+2
    w_ref        : (27, Cin, Cout)  taps ordered (kd, kh, kw), BN scale folded
    o_ref        : (H*W, Cout)
    """
    hp, wp, cin = p0_ref.shape
    h, w = hp - 2, wp - 2
    cout = o_ref.shape[-1]
    acc = jnp.zeros((h * w, cout), jnp.float32)
    t = 0
    for p_ref in (p0_ref, p1_ref, p2_ref):               # kd = 0, 1, 2
        plane = p_ref[...]
        for kh in range(3):
            for kw in range(3):
                tap = plane[kh:kh + h, kw:kw + w, :].reshape(h * w, cin)
                acc = acc + jnp.dot(tap, w_ref[t],
                                    preferred_element_type=jnp.float32)
                t += 1
    o_ref[...] = jnp.maximum(acc + b_ref[...], 0.0).astype(o_ref.dtype)


def _maxpool3_conv1x1_kernel(p0_ref, p1_ref, p2_ref, w_ref, b_ref, o_ref):
    """MaxPool3d(3, stride=1, pad=1) fused with 1x1 conv + bias + ReLU.

    p{0,1,2}_ref : (H+2, W+2, Cin)  (-inf)-padded input planes d, d+1, d+2
    w_ref        : (Cin, Cout)
    o_ref        : (H*W, Cout)
    """
    hp, wp, cin = p0_ref.shape
    h, w = hp - 2, wp - 2
    m = None
    for p_ref in (p0_ref, p1_ref, p2_ref):
        plane = p_ref[...]
        for kh in range(3):
            for kw in range(3):
                tap = plane[kh:kh + h, kw:kw + w, :]
                m = tap if m is None else jnp.maximum(m, tap)
    pooled = m.reshape(h * w, cin)
    acc = jnp.dot(pooled, w_ref[...], preferred_element_type=jnp.float32)
    o_ref[...] = jnp.maximum(acc + b_ref[...], 0.0).astype(o_ref.dtype)


# ----------------------------------------------------------------------------
# Pallas wrappers
# ----------------------------------------------------------------------------
def _round_up(x, m):
    return ((x + m - 1) // m) * m


def fused_1x1(x_pc, w_cat, b_cat, c1):
    """x_pc: (P, Cin) bf16, w_cat: (Cin, Ctot) bf16, b_cat: (Ctot,) f32.
    Returns (y1 (P, c1) f32, t (P, Ctot-c1) bf16)."""
    m, cin = x_pc.shape
    ctot = w_cat.shape[1]
    tm = min(TM, _round_up(m, 8))
    mp = _round_up(m, tm)
    if mp != m:
        x_pc = jnp.pad(x_pc, ((0, mp - m), (0, 0)))
    y1, t = pl.pallas_call(
        _fused_1x1_kernel,
        out_shape=(jax.ShapeDtypeStruct((mp, c1), jnp.float32),
                   jax.ShapeDtypeStruct((mp, ctot - c1), jnp.bfloat16)),
        grid=(mp // tm,),
        in_specs=[
            pl.BlockSpec((tm, cin), lambda i: (i, 0)),
            pl.BlockSpec((cin, ctot), lambda i: (0, 0)),
            pl.BlockSpec((1, ctot), lambda i: (0, 0)),
        ],
        out_specs=(pl.BlockSpec((tm, c1), lambda i: (i, 0)),
                   pl.BlockSpec((tm, ctot - c1), lambda i: (i, 0))),
        compiler_params=pltpu.CompilerParams(
            dimension_semantics=("parallel",),
            vmem_limit_bytes=VMEM_LIMIT),
    )(x_pc, w_cat, b_cat.reshape(1, ctot))
    return y1[:m], t[:m]


def _plane_spec(hp, wp, cin, kd):
    # depth-plane d+kd of the padded NDHWC tensor; leading dims squeezed.
    return pl.BlockSpec((None, None, hp, wp, cin),
                        lambda i, j, kd=kd: (i, j + kd, 0, 0, 0))


def conv3x3_bias_relu(x_ndhwc, w, bias, out_dtype=jnp.float32):
    """x: (N, D, H, W, Cin) bf16; w: (27, Cin, Cout) bf16; bias: (Cout,) f32.
    Returns (N, D, H*W, Cout)."""
    n, d, h, wdim, cin = x_ndhwc.shape
    cout = w.shape[-1]
    xp = jnp.pad(x_ndhwc, ((0, 0), (1, 1), (1, 1), (1, 1), (0, 0)))
    hp, wp = h + 2, wdim + 2
    return pl.pallas_call(
        _conv3x3_bias_relu_kernel,
        out_shape=jax.ShapeDtypeStruct((n, d, h * wdim, cout), out_dtype),
        grid=(n, d),
        in_specs=[
            _plane_spec(hp, wp, cin, 0),
            _plane_spec(hp, wp, cin, 1),
            _plane_spec(hp, wp, cin, 2),
            pl.BlockSpec((27, cin, cout), lambda i, j: (0, 0, 0)),
            pl.BlockSpec((1, cout), lambda i, j: (0, 0)),
        ],
        out_specs=pl.BlockSpec((None, None, h * wdim, cout),
                               lambda i, j: (i, j, 0, 0)),
        compiler_params=pltpu.CompilerParams(
            dimension_semantics=("parallel", "parallel"),
            vmem_limit_bytes=VMEM_LIMIT),
    )(xp, xp, xp, w, bias.reshape(1, cout))


def maxpool3_conv1x1(x_ndhwc, w, bias):
    """Fused branch 4: maxpool(3,1,1) -> 1x1 conv + BN + ReLU.
    x: (N, D, H, W, Cin) bf16; w: (Cin, Cout) bf16; bias: (Cout,) f32."""
    n, d, h, wdim, cin = x_ndhwc.shape
    cout = w.shape[-1]
    xp = jnp.pad(x_ndhwc, ((0, 0), (1, 1), (1, 1), (1, 1), (0, 0)),
                 constant_values=-jnp.inf)
    hp, wp = h + 2, wdim + 2
    return pl.pallas_call(
        _maxpool3_conv1x1_kernel,
        out_shape=jax.ShapeDtypeStruct((n, d, h * wdim, cout), jnp.float32),
        grid=(n, d),
        in_specs=[
            _plane_spec(hp, wp, cin, 0),
            _plane_spec(hp, wp, cin, 1),
            _plane_spec(hp, wp, cin, 2),
            pl.BlockSpec((cin, cout), lambda i, j: (0, 0)),
            pl.BlockSpec((1, cout), lambda i, j: (0, 0)),
        ],
        out_specs=pl.BlockSpec((None, None, h * wdim, cout),
                               lambda i, j: (i, j, 0, 0)),
        compiler_params=pltpu.CompilerParams(
            dimension_semantics=("parallel", "parallel"),
            vmem_limit_bytes=VMEM_LIMIT),
    )(xp, xp, xp, w, bias.reshape(1, cout))


# ----------------------------------------------------------------------------
# Parameter init: conv + BatchNorm(eval) folded into bf16 weight + f32 bias
# ----------------------------------------------------------------------------
def _init_conv_bn(key, cin, cout, ksize):
    k1, k2, k3, k4 = jax.random.split(key, 4)
    fan_in = cin * ksize ** 3
    w = jax.random.normal(k1, (cout, cin, ksize, ksize, ksize), jnp.float32)
    w = w * (1.0 / math.sqrt(fan_in))
    conv_b = 0.1 * jax.random.normal(k2, (cout,), jnp.float32)
    gamma = 1.0 + 0.1 * jax.random.normal(k3, (cout,), jnp.float32)
    beta = 0.1 * jax.random.normal(k4, (cout,), jnp.float32)
    mean = jnp.zeros((cout,), jnp.float32)
    var = jnp.ones((cout,), jnp.float32)
    eps = 1e-5
    scale = gamma / jnp.sqrt(var + eps)                   # (Cout,)
    bias = (conv_b - mean) * scale + beta                 # (Cout,) f32
    if ksize == 1:
        wm = (w.reshape(cout, cin).T * scale).astype(jnp.bfloat16)   # (Cin, Cout)
    else:
        # (Cout,Cin,kd,kh,kw) -> (kd,kh,kw,Cin,Cout) -> (27,Cin,Cout), BN folded
        wm = jnp.transpose(w, (2, 3, 4, 1, 0)).reshape(ksize ** 3, cin, cout)
        wm = (wm * scale).astype(jnp.bfloat16)
    return dict(w=wm, bias=bias)


def init_inception_params(key, in_planes, n1x1, n3x3red, n3x3, n5x5red, n5x5,
                          pool_planes):
    ks = jax.random.split(key, 7)
    return dict(
        b1_1=_init_conv_bn(ks[0], in_planes, n1x1, 1),
        b2_1=_init_conv_bn(ks[1], in_planes, n3x3red, 1),
        b2_2=_init_conv_bn(ks[2], n3x3red, n3x3, 3),
        b3_1=_init_conv_bn(ks[3], in_planes, n5x5red, 1),
        b3_2=_init_conv_bn(ks[4], n5x5red, n5x5, 3),
        b3_3=_init_conv_bn(ks[5], n5x5, n5x5, 3),
        b4_1=_init_conv_bn(ks[6], in_planes, pool_planes, 1),
    )


# ----------------------------------------------------------------------------
# Inception_Block forward
# ----------------------------------------------------------------------------
@jax.jit
def inception_forward(x_ncdhw, params):
    n, cin, d, h, w = x_ncdhw.shape
    x_ndhwc = jnp.transpose(x_ncdhw, (0, 2, 3, 4, 1)).astype(jnp.bfloat16)
    x_pc = x_ndhwc.reshape(n * d * h * w, cin)

    p = params
    c1 = p['b1_1']['w'].shape[1]
    c2r = p['b2_1']['w'].shape[1]
    c3r = p['b3_1']['w'].shape[1]

    # Branches 1-3 front-end: single fused 1x1 conv over x (one HBM pass).
    w_cat = jnp.concatenate([p['b1_1']['w'], p['b2_1']['w'], p['b3_1']['w']],
                            axis=1)
    b_cat = jnp.concatenate([p['b1_1']['bias'], p['b2_1']['bias'],
                             p['b3_1']['bias']])
    y1, t23 = fused_1x1(x_pc, w_cat, b_cat, c1)

    t2 = t23[:, :c2r].reshape(n, d, h, w, c2r)
    t3 = t23[:, c2r:].reshape(n, d, h, w, c3r)

    # branch 2: 3x3 conv (im2col fused in-kernel)
    y2 = conv3x3_bias_relu(t2, p['b2_2']['w'], p['b2_2']['bias'])

    # branch 3: 3x3 conv -> 3x3 conv
    t3b = conv3x3_bias_relu(t3, p['b3_2']['w'], p['b3_2']['bias'],
                            out_dtype=jnp.bfloat16)
    c5 = p['b3_2']['w'].shape[-1]
    y3 = conv3x3_bias_relu(t3b.reshape(n, d, h, w, c5),
                           p['b3_3']['w'], p['b3_3']['bias'])

    # branch 4: fused maxpool(3,1,1) + 1x1 conv
    y4 = maxpool3_conv1x1(x_ndhwc, p['b4_1']['w'], p['b4_1']['bias'])

    # concat along channels (PyTorch dim=1 in NCDHW == last dim here)
    y1 = y1.reshape(n, d, h * w, c1)
    y = jnp.concatenate([y1, y2, y3, y4], axis=-1)       # (N, D, H*W, Ctot)
    y = y.reshape(n, d, h, w, y.shape[-1])
    return jnp.transpose(y, (0, 4, 1, 2, 3))             # back to NCDHW, f32


if __name__ == "__main__":
    key = jax.random.PRNGKey(0)
    k_x, k_p = jax.random.split(key)

    # small shapes consistent with the module: NCDHW input
    N, IN_PLANES, D, H, W = 2, 8, 4, 8, 8
    N1x1, N3x3RED, N3x3, N5x5RED, N5x5, POOL = 8, 8, 16, 8, 16, 8

    x = jax.random.normal(k_x, (N, IN_PLANES, D, H, W), jnp.float32)
    params = init_inception_params(k_p, IN_PLANES, N1x1, N3x3RED, N3x3,
                                   N5x5RED, N5x5, POOL)

    out = inception_forward(x, params)
    out = jax.block_until_ready(out)
    assert out.shape == (N, N1x1 + N3x3 + N5x5 + POOL, D, H, W), out.shape
    assert out.dtype == jnp.float32
    print("KERNEL_OK")
</pallas_src>

<mosaic_0001>
module attributes {stable_mosaic.version = 11 : i64} {
  func.func @_fused_1x1_kernel(%arg0: i32, %arg1: memref<512x8xbf16, #tpu.memory_space<vmem>>, %arg2: memref<8x24xbf16, #tpu.memory_space<vmem>>, %arg3: memref<1x24xf32, #tpu.memory_space<vmem>>, %arg4: memref<512x8xf32, #tpu.memory_space<vmem>>, %arg5: memref<512x16xbf16, #tpu.memory_space<vmem>>) attributes {dimension_semantics = [#tpu.dimension_semantics<parallel>], iteration_bounds = array<i64: 1>, scalar_prefetch = 0 : i64, scratch_operands = 0 : i64, tpu.core_type = #tpu.core_type<tc>, window_params = [{transform_indices = @transform_0, window_bounds = array<i64: 512, 8>}, {pipeline_mode = #tpu.pipeline_mode<synchronous>, transform_indices = @transform_1, window_bounds = array<i64: 8, 24>}, {pipeline_mode = #tpu.pipeline_mode<synchronous>, transform_indices = @transform_2, window_bounds = array<i64: 1, 24>}, {transform_indices = @transform_3, window_bounds = array<i64: 512, 8>}, {transform_indices = @transform_4, window_bounds = array<i64: 512, 16>}]} {
    %c0 = arith.constant 0 : index
    %c0_0 = arith.constant 0 : index
    %0 = vector.load %arg1[%c0, %c0_0] : memref<512x8xbf16, #tpu.memory_space<vmem>>, vector<512x8xbf16>
    %c0_1 = arith.constant 0 : index
    %c0_2 = arith.constant 0 : index
    %1 = vector.load %arg2[%c0_1, %c0_2] : memref<8x24xbf16, #tpu.memory_space<vmem>>, vector<8x24xbf16>
    %cst = arith.constant dense<0.000000e+00> : vector<512x24xf32>
    %2 = tpu.matmul %0, %1, %cst {dimension_numbers = #tpu.dot_dimension_numbers<[1], [0], [0], [1], [0, 0, 1, 1], [], []>} : vector<512x8xbf16>, vector<8x24xbf16>, vector<512x24xf32> -> vector<512x24xf32>
    %c0_3 = arith.constant 0 : index
    %c0_4 = arith.constant 0 : index
    %3 = vector.load %arg3[%c0_3, %c0_4] : memref<1x24xf32, #tpu.memory_space<vmem>>, vector<1x24xf32>
    %4 = vector.broadcast %3 : vector<1x24xf32> to vector<512x24xf32>
    %5 = arith.addf %2, %4 : vector<512x24xf32>
    %cst_5 = arith.constant 0.000000e+00 : f32
    %6 = vector.broadcast %cst_5 : f32 to vector<512x24xf32>
    %7 = arith.maximumf %5, %6 : vector<512x24xf32>
    %8 = vector.extract_strided_slice %7 {offsets = [0, 0], sizes = [512, 8], strides = [1, 1]} : vector<512x24xf32> to vector<512x8xf32>
    %c0_6 = arith.constant 0 : index
    %c0_7 = arith.constant 0 : index
    %9 = vector.load %arg4[%c0_6, %c0_7] : memref<512x8xf32, #tpu.memory_space<vmem>>, vector<512x8xf32>
    tpu.vector_store %arg4[%c0_6, %c0_7], %8 {strides = array<i32>} : memref<512x8xf32, #tpu.memory_space<vmem>>, vector<512x8xf32>,
    %10 = vector.extract_strided_slice %7 {offsets = [0, 8], sizes = [512, 16], strides = [1, 1]} : vector<512x24xf32> to vector<512x16xf32>
    %11 = arith.truncf %10 : vector<512x16xf32> to vector<512x16xbf16>
    %c0_8 = arith.constant 0 : index
    %c0_9 = arith.constant 0 : index
    %12 = vector.load %arg5[%c0_8, %c0_9] : memref<512x16xbf16, #tpu.memory_space<vmem>>, vector<512x16xbf16>
    tpu.vector_store %arg5[%c0_8, %c0_9], %11 {strides = array<i32>} : memref<512x16xbf16, #tpu.memory_space<vmem>>, vector<512x16xbf16>,
    return
  }
  func.func @transform_0(%arg0: i32) -> (i32, i32) {
    %c0_i32 = arith.constant 0 : i32
    %c0_i32_0 = arith.constant 0 : i32
    return %arg0, %c0_i32 : i32, i32
  }
  func.func @transform_1(%arg0: i32) -> (i32, i32) {
    %c0_i32 = arith.constant 0 : i32
    %c0_i32_0 = arith.constant 0 : i32
    %c0_i32_1 = arith.constant 0 : i32
    return %c0_i32, %c0_i32_0 : i32, i32
  }
  func.func @transform_2(%arg0: i32) -> (i32, i32) {
    %c0_i32 = arith.constant 0 : i32
    %c0_i32_0 = arith.constant 0 : i32
    %c0_i32_1 = arith.constant 0 : i32
    return %c0_i32, %c0_i32_0 : i32, i32
  }
  func.func @transform_3(%arg0: i32) -> (i32, i32) {
    %c0_i32 = arith.constant 0 : i32
    %c0_i32_0 = arith.constant 0 : i32
    return %arg0, %c0_i32 : i32, i32
  }
  func.func @transform_4(%arg0: i32) -> (i32, i32) {
    %c0_i32 = arith.constant 0 : i32
    %c0_i32_0 = arith.constant 0 : i32
    return %arg0, %c0_i32 : i32, i32
  }
}

module attributes {stable_mosaic.version = 11 : i64} {
  func.func @_conv3x3_bias_relu_kernel(%arg0: i32, %arg1: i32, %arg2: memref<1x1x10x10x8xbf16, #tpu.memory_space<vmem>>, %arg3: memref<1x1x10x10x8xbf16, #tpu.memory_space<vmem>>, %arg4: memref<1x1x10x10x8xbf16, #tpu.memory_space<vmem>>, %arg5: memref<27x8x16xbf16, #tpu.memory_space<vmem>>, %arg6: memref<1x16xf32, #tpu.memory_space<vmem>>, %arg7: memref<1x1x64x16xbf16, #tpu.memory_space<vmem>>) attributes {dimension_semantics = [#tpu.dimension_semantics<parallel>, #tpu.dimension_semantics<parallel>], iteration_bounds = array<i64: 2, 4>, scalar_prefetch = 0 : i64, scratch_operands = 0 : i64, tpu.core_type = #tpu.core_type<tc>, window_params = [{transform_indices = @transform_0, window_bounds = array<i64: 1, 1, 10, 10, 8>}, {transform_indices = @transform_1, window_bounds = array<i64: 1, 1, 10, 10, 8>}, {transform_indices = @transform_2, window_bounds = array<i64: 1, 1, 10, 10, 8>}, {pipeline_mode = #tpu.pipeline_mode<synchronous>, transform_indices = @transform_3, window_bounds = array<i64: 27, 8, 16>}, {pipeline_mode = #tpu.pipeline_mode<synchronous>, transform_indices = @transform_4, window_bounds = array<i64: 1, 16>}, {transform_indices = @transform_5, window_bounds = array<i64: 1, 1, 64, 16>}]} {
    %cst = arith.constant 0.000000e+00 : f32
    %0 = vector.broadcast %cst : f32 to vector<64x16xf32>
    %c0 = arith.constant 0 : index
    %c0_0 = arith.constant 0 : index
    %c0_1 = arith.constant 0 : index
    %c0_2 = arith.constant 0 : index
    %c0_3 = arith.constant 0 : index
    %1 = vector.load %arg2[%c0, %c0_0, %c0_1, %c0_2, %c0_3] : memref<1x1x10x10x8xbf16, #tpu.memory_space<vmem>>, vector<1x1x10x10x8xbf16>
    %2 = vector.shape_cast %1 : vector<1x1x10x10x8xbf16> to vector<10x10x8xbf16>
    %3 = vector.extract_strided_slice %2 {offsets = [0, 0, 0], sizes = [8, 8, 8], strides = [1, 1, 1]} : vector<10x10x8xbf16> to vector<8x8x8xbf16>
    %4 = vector.shape_cast %3 : vector<8x8x8xbf16> to vector<64x8xbf16>
    %c0_4 = arith.constant 0 : index
    %c0_5 = arith.constant 0 : index
    %c0_6 = arith.constant 0 : index
    %5 = vector.load %arg5[%c0_4, %c0_5, %c0_6] : memref<27x8x16xbf16, #tpu.memory_space<vmem>>, vector<1x8x16xbf16>
    %6 = vector.shape_cast %5 : vector<1x8x16xbf16> to vector<8x16xbf16>
    %cst_7 = arith.constant dense<0.000000e+00> : vector<64x16xf32>
    %7 = tpu.matmul %4, %6, %cst_7 {dimension_numbers = #tpu.dot_dimension_numbers<[1], [0], [0], [1], [0, 0, 1, 1], [], []>} : vector<64x8xbf16>, vector<8x16xbf16>, vector<64x16xf32> -> vector<64x16xf32>
    %8 = arith.addf %0, %7 : vector<64x16xf32>
    %9 = vector.extract_strided_slice %2 {offsets = [0, 1, 0], sizes = [8, 8, 8], strides = [1, 1, 1]} : vector<10x10x8xbf16> to vector<8x8x8xbf16>
    %10 = vector.shape_cast %9 : vector<8x8x8xbf16> to vector<64x8xbf16>
    %c1 = arith.constant 1 : index
    %c0_8 = arith.constant 0 : index
    %c0_9 = arith.constant 0 : index
    %11 = vector.load %arg5[%c1, %c0_8, %c0_9] : memref<27x8x16xbf16, #tpu.memory_space<vmem>>, vector<1x8x16xbf16>
    %12 = vector.shape_cast %11 : vector<1x8x16xbf16> to vector<8x16xbf16>
    %cst_10 = arith.constant dense<0.000000e+00> : vector<64x16xf32>
    %13 = tpu.matmul %10, %12, %cst_10 {dimension_numbers = #tpu.dot_dimension_numbers<[1], [0], [0], [1], [0, 0, 1, 1], [], []>} : vector<64x8xbf16>, vector<8x16xbf16>, vector<64x16xf32> -> vector<64x16xf32>
    %14 = arith.addf %8, %13 : vector<64x16xf32>
    %15 = vector.extract_strided_slice %2 {offsets = [0, 2, 0], sizes = [8, 8, 8], strides = [1, 1, 1]} : vector<10x10x8xbf16> to vector<8x8x8xbf16>
    %16 = vector.shape_cast %15 : vector<8x8x8xbf16> to vector<64x8xbf16>
    %c2 = arith.constant 2 : index
    %c0_11 = arith.constant 0 : index
    %c0_12 = arith.constant 0 : index
    %17 = vector.load %arg5[%c2, %c0_11, %c0_12] : memref<27x8x16xbf16, #tpu.memory_space<vmem>>, vector<1x8x16xbf16>
    %18 = vector.shape_cast %17 : vector<1x8x16xbf16> to vector<8x16xbf16>
    %cst_13 = arith.constant dense<0.000000e+00> : vector<64x16xf32>
    %19 = tpu.matmul %16, %18, %cst_13 {dimension_numbers = #tpu.dot_dimension_numbers<[1], [0], [0], [1], [0, 0, 1, 1], [], []>} : vector<64x8xbf16>, vector<8x16xbf16>, vector<64x16xf32> -> vector<64x16xf32>
    %20 = arith.addf %14, %19 : vector<64x16xf32>
    %21 = vector.extract_strided_slice %2 {offsets = [1, 0, 0], sizes = [8, 8, 8], strides = [1, 1, 1]} : vector<10x10x8xbf16> to vector<8x8x8xbf16>
    %22 = vector.shape_cast %21 : vector<8x8x8xbf16> to vector<64x8xbf16>
    %c3 = arith.constant 3 : index
    %c0_14 = arith.constant 0 : index
    %c0_15 = arith.constant 0 : index
    %23 = vector.load %arg5[%c3, %c0_14, %c0_15] : memref<27x8x16xbf16, #tpu.memory_space<vmem>>, vector<1x8x16xbf16>
    %24 = vector.shape_cast %23 : vector<1x8x16xbf16> to vector<8x16xbf16>
    %cst_16 = arith.constant dense<0.000000e+00> : vector<64x16xf32>
    %25 = tpu.matmul %22, %24, %cst_16 {dimension_numbers = #tpu.dot_dimension_numbers<[1], [0], [0], [1], [0, 0, 1, 1], [], []>} : vector<64x8xbf16>, vector<8x16xbf16>, vector<64x16xf32> -> vector<64x16xf32>
    %26 = arith.addf %20, %25 : vector<64x16xf32>
    %27 = vector.extract_strided_slice %2 {offsets = [1, 1, 0], sizes = [8, 8, 8], strides = [1, 1, 1]} : vector<10x10x8xbf16> to vector<8x8x8xbf16>
    %28 = vector.shape_cast %27 : vector<8x8x8xbf16> to vector<64x8xbf16>
    %c4 = arith.constant 4 : index
    %c0_17 = arith.constant 0 : index
    %c0_18 = arith.constant 0 : index
    %29 = vector.load %arg5[%c4, %c0_17, %c0_18] : memref<27x8x16xbf16, #tpu.memory_space<vmem>>, vector<1x8x16xbf16>
    %30 = vector.shape_cast %29 : vector<1x8x16xbf16> to vector<8x16xbf16>
    %cst_19 = arith.constant dense<0.000000e+00> : vector<64x16xf32>
    %31 = tpu.matmul %28, %30, %cst_19 {dimension_numbers = #tpu.dot_dimension_numbers<[1], [0], [0], [1], [0, 0, 1, 1], [], []>} : vector<64x8xbf16>, vector<8x16xbf16>, vector<64x16xf32> -> vector<64x16xf32>
    %32 = arith.addf %26, %31 : vector<64x16xf32>
    %33 = vector.extract_strided_slice %2 {offsets = [1, 2, 0], sizes = [8, 8, 8], strides = [1, 1, 1]} : vector<10x10x8xbf16> to vector<8x8x8xbf16>
    %34 = vector.shape_cast %33 : vector<8x8x8xbf16> to vector<64x8xbf16>
    %c5 = arith.constant 5 : index
    %c0_20 = arith.constant 0 : index
    %c0_21 = arith.constant 0 : index
    %35 = vector.load %arg5[%c5, %c0_20, %c0_21] : memref<27x8x16xbf16, #tpu.memory_space<vmem>>, vector<1x8x16xbf16>
    %36 = vector.shape_cast %35 : vector<1x8x16xbf16> to vector<8x16xbf16>
    %cst_22 = arith.constant dense<0.000000e+00> : vector<64x16xf32>
    %37 = tpu.matmul %34, %36, %cst_22 {dimension_numbers = #tpu.dot_dimension_numbers<[1], [0], [0], [1], [0, 0, 1, 1], [], []>} : vector<64x8xbf16>, vector<8x16xbf16>, vector<64x16xf32> -> vector<64x16xf32>
    %38 = arith.addf %32, %37 : vector<64x16xf32>
    %39 = vector.extract_strided_slice %2 {offsets = [2, 0, 0], sizes = [8, 8, 8], strides = [1, 1, 1]} : vector<10x10x8xbf16> to vector<8x8x8xbf16>
    %40 = vector.shape_cast %39 : vector<8x8x8xbf16> to vector<64x8xbf16>
    %c6 = arith.constant 6 : index
    %c0_23 = arith.constant 0 : index
    %c0_24 = arith.constant 0 : index
    %41 = vector.load %arg5[%c6, %c0_23, %c0_24] : memref<27x8x16xbf16, #tpu.memory_space<vmem>>, vector<1x8x16xbf16>
    %42 = vector.shape_cast %41 : vector<1x8x16xbf16> to vector<8x16xbf16>
    %cst_25 = arith.constant dense<0.000000e+00> : vector<64x16xf32>
    %43 = tpu.matmul %40, %42, %cst_25 {dimension_numbers = #tpu.dot_dimension_numbers<[1], [0], [0], [1], [0, 0, 1, 1], [], []>} : vector<64x8xbf16>, vector<8x16xbf16>, vector<64x16xf32> -> vector<64x16xf32>
    %44 = arith.addf %38, %43 : vector<64x16xf32>
    %45 = vector.extract_strided_slice %2 {offsets = [2, 1, 0], sizes = [8, 8, 8], strides = [1, 1, 1]} : vector<10x10x8xbf16> to vector<8x8x8xbf16>
    %46 = vector.shape_cast %45 : vector<8x8x8xbf16> to vector<64x8xbf16>
    %c7 = arith.constant 7 : index
    %c0_26 = arith.constant 0 : index
    %c0_27 = arith.constant 0 : index
    %47 = vector.load %arg5[%c7, %c0_26, %c0_27] : memref<27x8x16xbf16, #tpu.memory_space<vmem>>, vector<1x8x16xbf16>
    %48 = vector.shape_cast %47 : vector<1x8x16xbf16> to vector<8x16xbf16>
    %cst_28 = arith.constant dense<0.000000e+00> : vector<64x16xf32>
    %49 = tpu.matmul %46, %48, %cst_28 {dimension_numbers = #tpu.dot_dimension_numbers<[1], [0], [0], [1], [0, 0, 1, 1], [], []>} : vector<64x8xbf16>, vector<8x16xbf16>, vector<64x16xf32> -> vector<64x16xf32>
    %50 = arith.addf %44, %49 : vector<64x16xf32>
    %51 = vector.extract_strided_slice %2 {offsets = [2, 2, 0], sizes = [8, 8, 8], strides = [1, 1, 1]} : vector<10x10x8xbf16> to vector<8x8x8xbf16>
    %52 = vector.shape_cast %51 : vector<8x8x8xbf16> to vector<64x8xbf16>
    %c8 = arith.constant 8 : index
    %c0_29 = arith.constant 0 : index
    %c0_30 = arith.constant 0 : index
    %53 = vector.load %arg5[%c8, %c0_29, %c0_30] : memref<27x8x16xbf16, #tpu.memory_space<vmem>>, vector<1x8x16xbf16>
    %54 = vector.shape_cast %53 : vector<1x8x16xbf16> to vector<8x16xbf16>
    %cst_31 = arith.constant dense<0.000000e+00> : vector<64x16xf32>
    %55 = tpu.matmul %52, %54, %cst_31 {dimension_numbers = #tpu.dot_dimension_numbers<[1], [0], [0], [1], [0, 0, 1, 1], [], []>} : vector<64x8xbf16>, vector<8x16xbf16>, vector<64x16xf32> -> vector<64x16xf32>
    %56 = arith.addf %50, %55 : vector<64x16xf32>
    %c0_32 = arith.constant 0 : index
    %c0_33 = arith.constant 0 : index
    %c0_34 = arith.constant 0 : index
    %c0_35 = arith.constant 0 : index
    %c0_36 = arith.constant 0 : index
    %57 = vector.load %arg3[%c0_32, %c0_33, %c0_34, %c0_35, %c0_36] : memref<1x1x10x10x8xbf16, #tpu.memory_space<vmem>>, vector<1x1x10x10x8xbf16>
    %58 = vector.shape_cast %57 : vector<1x1x10x10x8xbf16> to vector<10x10x8xbf16>
    %59 = vector.extract_strided_slice %58 {offsets = [0, 0, 0], sizes = [8, 8, 8], strides = [1, 1, 1]} : vector<10x10x8xbf16> to vector<8x8x8xbf16>
    %60 = vector.shape_cast %59 : vector<8x8x8xbf16> to vector<64x8xbf16>
    %c9 = arith.constant 9 : index
    %c0_37 = arith.constant 0 : index
    %c0_38 = arith.constant 0 : index
    %61 = vector.load %arg5[%c9, %c0_37, %c0_38] : memref<27x8x16xbf16, #tpu.memory_space<vmem>>, vector<1x8x16xbf16>
    %62 = vector.shape_cast %61 : vector<1x8x16xbf16> to vector<8x16xbf16>
    %cst_39 = arith.constant dense<0.000000e+00> : vector<64x16xf32>
    %63 = tpu.matmul %60, %62, %cst_39 {dimension_numbers = #tpu.dot_dimension_numbers<[1], [0], [0], [1], [0, 0, 1, 1], [], []>} : vector<64x8xbf16>, vector<8x16xbf16>, vector<64x16xf32> -> vector<64x16xf32>
    %64 = arith.addf %56, %63 : vector<64x16xf32>
    %65 = vector.extract_strided_slice %58 {offsets = [0, 1, 0], sizes = [8, 8, 8], strides = [1, 1, 1]} : vector<10x10x8xbf16> to vector<8x8x8xbf16>
    %66 = vector.shape_cast %65 : vector<8x8x8xbf16> to vector<64x8xbf16>
    %c10 = arith.constant 10 : index
    %c0_40 = arith.constant 0 : index
    %c0_41 = arith.constant 0 : index
    %67 = vector.load %arg5[%c10, %c0_40, %c0_41] : memref<27x8x16xbf16, #tpu.memory_space<vmem>>, vector<1x8x16xbf16>
    %68 = vector.shape_cast %67 : vector<1x8x16xbf16> to vector<8x16xbf16>
    %cst_42 = arith.constant dense<0.000000e+00> : vector<64x16xf32>
    %69 = tpu.matmul %66, %68, %cst_42 {dimension_numbers = #tpu.dot_dimension_numbers<[1], [0], [0], [1], [0, 0, 1, 1], [], []>} : vector<64x8xbf16>, vector<8x16xbf16>, vector<64x16xf32> -> vector<64x16xf32>
    %70 = arith.addf %64, %69 : vector<64x16xf32>
    %71 = vector.extract_strided_slice %58 {offsets = [0, 2, 0], sizes = [8, 8, 8], strides = [1, 1, 1]} : vector<10x10x8xbf16> to vector<8x8x8xbf16>
    %72 = vector.shape_cast %71 : vector<8x8x8xbf16> to vector<64x8xbf16>
    %c11 = arith.constant 11 : index
    %c0_43 = arith.constant 0 : index
    %c0_44 = arith.constant 0 : index
    %73 = vector.load %arg5[%c11, %c0_43, %c0_44] : memref<27x8x16xbf16, #tpu.memory_space<vmem>>, vector<1x8x16xbf16>
    %74 = vector.shape_cast %73 : vector<1x8x16xbf16> to vector<8x16xbf16>
    %cst_45 = arith.constant dense<0.000000e+00> : vector<64x16xf32>
    %75 = tpu.matmul %72, %74, %cst_45 {dimension_numbers = #tpu.dot_dimension_numbers<[1], [0], [0], [1], [0, 0, 1, 1], [], []>} : vector<64x8xbf16>, vector<8x16xbf16>, vector<64x16xf32> -> vector<64x16xf32>
    %76 = arith.addf %70, %75 : vector<64x16xf32>
    %77 = vector.extract_strided_slice %58 {offsets = [1, 0, 0], sizes = [8, 8, 8], strides = [1, 1, 1]} : vector<10x10x8xbf16> to vector<8x8x8xbf16>
    %78 = vector.shape_cast %77 : vector<8x8x8xbf16> to vector<64x8xbf16>
    %c12 = arith.constant 12 : index
    %c0_46 = arith.constant 0 : index
    %c0_47 = arith.constant 0 : index
    %79 = vector.load %arg5[%c12, %c0_46, %c0_47] : memref<27x8x16xbf16, #tpu.memory_space<vmem>>, vector<1x8x16xbf16>
    %80 = vector.shape_cast %79 : vector<1x8x16xbf16> to vector<8x16xbf16>
    %cst_48 = arith.constant dense<0.000000e+00> : vector<64x16xf32>
    %81 = tpu.matmul %78, %80, %cst_48 {dimension_numbers = #tpu.dot_dimension_numbers<[1], [0], [0], [1], [0, 0, 1, 1], [], []>} : vector<64x8xbf16>, vector<8x16xbf16>, vector<64x16xf32> -> vector<64x16xf32>
    %82 = arith.addf %76, %81 : vector<64x16xf32>
    %83 = vector.extract_strided_slice %58 {offsets = [1, 1, 0], sizes = [8, 8, 8], strides = [1, 1, 1]} : vector<10x10x8xbf16> to vector<8x8x8xbf16>
    %84 = vector.shape_cast %83 : vector<8x8x8xbf16> to vector<64x8xbf16>
    %c13 = arith.constant 13 : index
    %c0_49 = arith.constant 0 : index
    %c0_50 = arith.constant 0 : index
    %85 = vector.load %arg5[%c13, %c0_49, %c0_50] : memref<27x8x16xbf16, #tpu.memory_space<vmem>>, vector<1x8x16xbf16>
    %86 = vector.shape_cast %85 : vector<1x8x16xbf16> to vector<8x16xbf16>
    %cst_51 = arith.constant dense<0.000000e+00> : vector<64x16xf32>
    %87 = tpu.matmul %84, %86, %cst_51 {dimension_numbers = #tpu.dot_dimension_numbers<[1], [0], [0], [1], [0, 0, 1, 1], [], []>} : vector<64x8xbf16>, vector<8x16xbf16>, vector<64x16xf32> -> vector<64x16xf32>
    %88 = arith.addf %82, %87 : vector<64x16xf32>
    %89 = vector.extract_strided_slice %58 {offsets = [1, 2, 0], sizes = [8, 8, 8], strides = [1, 1, 1]} : vector<10x10x8xbf16> to vector<8x8x8xbf16>
    %90 = vector.shape_cast %89 : vector<8x8x8xbf16> to vector<64x8xbf16>
    %c14 = arith.constant 14 : index
    %c0_52 = arith.constant 0 : index
    %c0_53 = arith.constant 0 : index
    %91 = vector.load %arg5[%c14, %c0_52, %c0_53] : memref<27x8x16xbf16, #tpu.memory_space<vmem>>, vector<1x8x16xbf16>
    %92 = vector.shape_cast %91 : vector<1x8x16xbf16> to vector<8x16xbf16>
    %cst_54 = arith.constant dense<0.000000e+00> : vector<64x16xf32>
    %93 = tpu.matmul %90, %92, %cst_54 {dimension_numbers = #tpu.dot_dimension_numbers<[1], [0], [0], [1], [0, 0, 1, 1], [], []>} : vector<64x8xbf16>, vector<8x16xbf16>, vector<64x16xf32> -> vector<64x16xf32>
    %94 = arith.addf %88, %93 : vector<64x16xf32>
    %95 = vector.extract_strided_slice %58 {offsets = [2, 0, 0], sizes = [8, 8, 8], strides = [1, 1, 1]} : vector<10x10x8xbf16> to vector<8x8x8xbf16>
    %96 = vector.shape_cast %95 : vector<8x8x8xbf16> to vector<64x8xbf16>
    %c15 = arith.constant 15 : index
    %c0_55 = arith.constant 0 : index
    %c0_56 = arith.constant 0 : index
    %97 = vector.load %arg5[%c15, %c0_55, %c0_56] : memref<27x8x16xbf16, #tpu.memory_space<vmem>>, vector<1x8x16xbf16>
    %98 = vector.shape_cast %97 : vector<1x8x16xbf16> to vector<8x16xbf16>
    %cst_57 = arith.constant dense<0.000000e+00> : vector<64x16xf32>
    %99 = tpu.matmul %96, %98, %cst_57 {dimension_numbers = #tpu.dot_dimension_numbers<[1], [0], [0], [1], [0, 0, 1, 1], [], []>} : vector<64x8xbf16>, vector<8x16xbf16>, vector<64x16xf32> -> vector<64x16xf32>
    %100 = arith.addf %94, %99 : vector<64x16xf32>
    %101 = vector.extract_strided_slice %58 {offsets = [2, 1, 0], sizes = [8, 8, 8], strides = [1, 1, 1]} : vector<10x10x8xbf16> to vector<8x8x8xbf16>
    %102 = vector.shape_cast %101 : vector<8x8x8xbf16> to vector<64x8xbf16>
    %c16 = arith.constant 16 : index
    %c0_58 = arith.constant 0 : index
    %c0_59 = arith.constant 0 : index
    %103 = vector.load %arg5[%c16, %c0_58, %c0_59] : memref<27x8x16xbf16, #tpu.memory_space<vmem>>, vector<1x8x16xbf16>
    %104 = vector.shape_cast %103 : vector<1x8x16xbf16> to vector<8x16xbf16>
    %cst_60 = arith.constant dense<0.000000e+00> : vector<64x16xf32>
    %105 = tpu.matmul %102, %104, %cst_60 {dimension_numbers = #tpu.dot_dimension_numbers<[1], [0], [0], [1], [0, 0, 1, 1], [], []>} : vector<64x8xbf16>, vector<8x16xbf16>, vector<64x16xf32> -> vector<64x16xf32>
    %106 = arith.addf %100, %105 : vector<64x16xf32>
    %107 = vector.extract_strided_slice %58 {offsets = [2, 2, 0], sizes = [8, 8, 8], strides = [1, 1, 1]} : vector<10x10x8xbf16> to vector<8x8x8xbf16>
    %108 = vector.shape_cast %107 : vector<8x8x8xbf16> to vector<64x8xbf16>
    %c17 = arith.constant 17 : index
    %c0_61 = arith.constant 0 : index
    %c0_62 = arith.constant 0 : index
    %109 = vector.load %arg5[%c17, %c0_61, %c0_62] : memref<27x8x16xbf16, #tpu.memory_space<vmem>>, vector<1x8x16xbf16>
    %110 = vector.shape_cast %109 : vector<1x8x16xbf16> to vector<8x16xbf16>
    %cst_63 = arith.constant dense<0.000000e+00> : vector<64x16xf32>
    %111 = tpu.matmul %108, %110, %cst_63 {dimension_numbers = #tpu.dot_dimension_numbers<[1], [0], [0], [1], [0, 0, 1, 1], [], []>} : vector<64x8xbf16>, vector<8x16xbf16>, vector<64x16xf32> -> vector<64x16xf32>
    %112 = arith.addf %106, %111 : vector<64x16xf32>
    %c0_64 = arith.constant 0 : index
    %c0_65 = arith.constant 0 : index
    %c0_66 = arith.constant 0 : index
    %c0_67 = arith.constant 0 : index
    %c0_68 = arith.constant 0 : index
    %113 = vector.load %arg4[%c0_64, %c0_65, %c0_66, %c0_67, %c0_68] : memref<1x1x10x10x8xbf16, #tpu.memory_space<vmem>>, vector<1x1x10x10x8xbf16>
    %114 = vector.shape_cast %113 : vector<1x1x10x10x8xbf16> to vector<10x10x8xbf16>
    %115 = vector.extract_strided_slice %114 {offsets = [0, 0, 0], sizes = [8, 8, 8], strides = [1, 1, 1]} : vector<10x10x8xbf16> to vector<8x8x8xbf16>
    %116 = vector.shape_cast %115 : vector<8x8x8xbf16> to vector<64x8xbf16>
    %c18 = arith.constant 18 : index
    %c0_69 = arith.constant 0 : index
    %c0_70 = arith.constant 0 : index
    %117 = vector.load %arg5[%c18, %c0_69, %c0_70] : memref<27x8x16xbf16, #tpu.memory_space<vmem>>, vector<1x8x16xbf16>
    %118 = vector.shape_cast %117 : vector<1x8x16xbf16> to vector<8x16xbf16>
    %cst_71 = arith.constant dense<0.000000e+00> : vector<64x16xf32>
    %119 = tpu.matmul %116, %118, %cst_71 {dimension_numbers = #tpu.dot_dimension_numbers<[1], [0], [0], [1], [0, 0, 1, 1], [], []>} : vector<64x8xbf16>, vector<8x16xbf16>, vector<64x16xf32> -> vector<64x16xf32>
    %120 = arith.addf %112, %119 : vector<64x16xf32>
    %121 = vector.extract_strided_slice %114 {offsets = [0, 1, 0], sizes = [8, 8, 8], strides = [1, 1, 1]} : vector<10x10x8xbf16> to vector<8x8x8xbf16>
    %122 = vector.shape_cast %121 : vector<8x8x8xbf16> to vector<64x8xbf16>
    %c19 = arith.constant 19 : index
    %c0_72 = arith.constant 0 : index
    %c0_73 = arith.constant 0 : index
    %123 = vector.load %arg5[%c19, %c0_72, %c0_73] : memref<27x8x16xbf16, #tpu.memory_space<vmem>>, vector<1x8x16xbf16>
    %124 = vector.shape_cast %123 : vector<1x8x16xbf16> to vector<8x16xbf16>
    %cst_74 = arith.constant dense<0.000000e+00> : vector<64x16xf32>
    %125 = tpu.matmul %122, %124, %cst_74 {dimension_numbers = #tpu.dot_dimension_numbers<[1], [0], [0], [1], [0, 0, 1, 1], [], []>} : vector<64x8xbf16>, vector<8x16xbf16>, vector<64x16xf32> -> vector<64x16xf32>
    %126 = arith.addf %120, %125 : vector<64x16xf32>
    %127 = vector.extract_strided_slice %114 {offsets = [0, 2, 0], sizes = [8, 8, 8], strides = [1, 1, 1]} : vector<10x10x8xbf16> to vector<8x8x8xbf16>
    %128 = vector.shape_cast %127 : vector<8x8x8xbf16> to vector<64x8xbf16>
    %c20 = arith.constant 20 : index
    %c0_75 = arith.constant 0 : index
    %c0_76 = arith.constant 0 : index
    %129 = vector.load %arg5[%c20, %c0_75, %c0_76] : memref<27x8x16xbf16, #tpu.memory_space<vmem>>, vector<1x8x16xbf16>
    %130 = vector.shape_cast %129 : vector<1x8x16xbf16> to vector<8x16xbf16>
    %cst_77 = arith.constant dense<0.000000e+00> : vector<64x16xf32>
    %131 = tpu.matmul %128, %130, %cst_77 {dimension_numbers = #tpu.dot_dimension_numbers<[1], [0], [0], [1], [0, 0, 1, 1], [], []>} : vector<64x8xbf16>, vector<8x16xbf16>, vector<64x16xf32> -> vector<64x16xf32>
    %132 = arith.addf %126, %131 : vector<64x16xf32>
    %133 = vector.extract_strided_slice %114 {offsets = [1, 0, 0], sizes = [8, 8, 8], strides = [1, 1, 1]} : vector<10x10x8xbf16> to vector<8x8x8xbf16>
    %134 = vector.shape_cast %133 : vector<8x8x8xbf16> to vector<64x8xbf16>
    %c21 = arith.constant 21 : index
    %c0_78 = arith.constant 0 : index
    %c0_79 = arith.constant 0 : index
    %135 = vector.load %arg5[%c21, %c0_78, %c0_79] : memref<27x8x16xbf16, #tpu.memory_space<vmem>>, vector<1x8x16xbf16>
    %136 = vector.shape_cast %135 : vector<1x8x16xbf16> to vector<8x16xbf16>
    %cst_80 = arith.constant dense<0.000000e+00> : vector<64x16xf32>
    %137 = tpu.matmul %134, %136, %cst_80 {dimension_numbers = #tpu.dot_dimension_numbers<[1], [0], [0], [1], [0, 0, 1, 1], [], []>} : vector<64x8xbf16>, vector<8x16xbf16>, vector<64x16xf32> -> vector<64x16xf32>
    %138 = arith.addf %132, %137 : vector<64x16xf32>
    %139 = vector.extract_strided_slice %114 {offsets = [1, 1, 0], sizes = [8, 8, 8], strides = [1, 1, 1]} : vector<10x10x8xbf16> to vector<8x8x8xbf16>
    %140 = vector.shape_cast %139 : vector<8x8x8xbf16> to vector<64x8xbf16>
    %c22 = arith.constant 22 : index
    %c0_81 = arith.constant 0 : index
    %c0_82 = arith.constant 0 : index
    %141 = vector.load %arg5[%c22, %c0_81, %c0_82] : memref<27x8x16xbf16, #tpu.memory_space<vmem>>, vector<1x8x16xbf16>
    %142 = vector.shape_cast %141 : vector<1x8x16xbf16> to vector<8x16xbf16>
    %cst_83 = arith.constant dense<0.000000e+00> : vector<64x16xf32>
    %143 = tpu.matmul %140, %142, %cst_83 {dimension_numbers = #tpu.dot_dimension_numbers<[1], [0], [0], [1], [0, 0, 1, 1], [], []>} : vector<64x8xbf16>, vector<8x16xbf16>, vector<64x16xf32> -> vector<64x16xf32>
    %144 = arith.addf %138, %143 : vector<64x16xf32>
    %145 = vector.extract_strided_slice %114 {offsets = [1, 2, 0], sizes = [8, 8, 8], strides = [1, 1, 1]} : vector<10x10x8xbf16> to vector<8x8x8xbf16>
    %146 = vector.shape_cast %145 : vector<8x8x8xbf16> to vector<64x8xbf16>
    %c23 = arith.constant 23 : index
    %c0_84 = arith.constant 0 : index
    %c0_85 = arith.constant 0 : index
    %147 = vector.load %arg5[%c23, %c0_84, %c0_85] : memref<27x8x16xbf16, #tpu.memory_space<vmem>>, vector<1x8x16xbf16>
    %148 = vector.shape_cast %147 : vector<1x8x16xbf16> to vector<8x16xbf16>
    %cst_86 = arith.constant dense<0.000000e+00> : vector<64x16xf32>
    %149 = tpu.matmul %146, %148, %cst_86 {dimension_numbers = #tpu.dot_dimension_numbers<[1], [0], [0], [1], [0, 0, 1, 1], [], []>} : vector<64x8xbf16>, vector<8x16xbf16>, vector<64x16xf32> -> vector<64x16xf32>
    %150 = arith.addf %144, %149 : vector<64x16xf32>
    %151 = vector.extract_strided_slice %114 {offsets = [2, 0, 0], sizes = [8, 8, 8], strides = [1, 1, 1]} : vector<10x10x8xbf16> to vector<8x8x8xbf16>
    %152 = vector.shape_cast %151 : vector<8x8x8xbf16> to vector<64x8xbf16>
    %c24 = arith.constant 24 : index
    %c0_87 = arith.constant 0 : index
    %c0_88 = arith.constant 0 : index
    %153 = vector.load %arg5[%c24, %c0_87, %c0_88] : memref<27x8x16xbf16, #tpu.memory_space<vmem>>, vector<1x8x16xbf16>
    %154 = vector.shape_cast %153 : vector<1x8x16xbf16> to vector<8x16xbf16>
    %cst_89 = arith.constant dense<0.000000e+00> : vector<64x16xf32>
    %155 = tpu.matmul %152, %154, %cst_89 {dimension_numbers = #tpu.dot_dimension_numbers<[1], [0], [0], [1], [0, 0, 1, 1], [], []>} : vector<64x8xbf16>, vector<8x16xbf16>, vector<64x16xf32> -> vector<64x16xf32>
    %156 = arith.addf %150, %155 : vector<64x16xf32>
    %157 = vector.extract_strided_slice %114 {offsets = [2, 1, 0], sizes = [8, 8, 8], strides = [1, 1, 1]} : vector<10x10x8xbf16> to vector<8x8x8xbf16>
    %158 = vector.shape_cast %157 : vector<8x8x8xbf16> to vector<64x8xbf16>
    %c25 = arith.constant 25 : index
    %c0_90 = arith.constant 0 : index
    %c0_91 = arith.constant 0 : index
    %159 = vector.load %arg5[%c25, %c0_90, %c0_91] : memref<27x8x16xbf16, #tpu.memory_space<vmem>>, vector<1x8x16xbf16>
    %160 = vector.shape_cast %159 : vector<1x8x16xbf16> to vector<8x16xbf16>
    %cst_92 = arith.constant dense<0.000000e+00> : vector<64x16xf32>
    %161 = tpu.matmul %158, %160, %cst_92 {dimension_numbers = #tpu.dot_dimension_numbers<[1], [0], [0], [1], [0, 0, 1, 1], [], []>} : vector<64x8xbf16>, vector<8x16xbf16>, vector<64x16xf32> -> vector<64x16xf32>
    %162 = arith.addf %156, %161 : vector<64x16xf32>
    %163 = vector.extract_strided_slice %114 {offsets = [2, 2, 0], sizes = [8, 8, 8], strides = [1, 1, 1]} : vector<10x10x8xbf16> to vector<8x8x8xbf16>
    %164 = vector.shape_cast %163 : vector<8x8x8xbf16> to vector<64x8xbf16>
    %c26 = arith.constant 26 : index
    %c0_93 = arith.constant 0 : index
    %c0_94 = arith.constant 0 : index
    %165 = vector.load %arg5[%c26, %c0_93, %c0_94] : memref<27x8x16xbf16, #tpu.memory_space<vmem>>, vector<1x8x16xbf16>
    %166 = vector.shape_cast %165 : vector<1x8x16xbf16> to vector<8x16xbf16>
    %cst_95 = arith.constant dense<0.000000e+00> : vector<64x16xf32>
    %167 = tpu.matmul %164, %166, %cst_95 {dimension_numbers = #tpu.dot_dimension_numbers<[1], [0], [0], [1], [0, 0, 1, 1], [], []>} : vector<64x8xbf16>, vector<8x16xbf16>, vector<64x16xf32> -> vector<64x16xf32>
    %168 = arith.addf %162, %167 : vector<64x16xf32>
    %c0_96 = arith.constant 0 : index
    %c0_97 = arith.constant 0 : index
    %169 = vector.load %arg6[%c0_96, %c0_97] : memref<1x16xf32, #tpu.memory_space<vmem>>, vector<1x16xf32>
    %170 = vector.broadcast %169 : vector<1x16xf32> to vector<64x16xf32>
    %171 = arith.addf %168, %170 : vector<64x16xf32>
    %cst_98 = arith.constant 0.000000e+00 : f32
    %172 = vector.broadcast %cst_98 : f32 to vector<64x16xf32>
    %173 = arith.maximumf %171, %172 : vector<64x16xf32>
    %174 = arith.truncf %173 : vector<64x16xf32> to vector<64x16xbf16>
    %c0_99 = arith.constant 0 : index
    %c0_100 = arith.constant 0 : index
    %c0_101 = arith.constant 0 : index
    %c0_102 = arith.constant 0 : index
    %175 = vector.load %arg7[%c0_99, %c0_100, %c0_101, %c0_102] : memref<1x1x64x16xbf16, #tpu.memory_space<vmem>>, vector<1x1x64x16xbf16>
    %176 = vector.shape_cast %175 : vector<1x1x64x16xbf16> to vector<64x16xbf16>
    %177 = vector.shape_cast %174 : vector<64x16xbf16> to vector<1x1x64x16xbf16>
    tpu.vector_store %arg7[%c0_99, %c0_100, %c0_101, %c0_102], %177 {strides = array<i32>} : memref<1x1x64x16xbf16, #tpu.memory_space<vmem>>, vector<1x1x64x16xbf16>,
    return
  }
  func.func @transform_0(%arg0: i32, %arg1: i32) -> (i32, i32, i32, i32, i32) {
    %c0_i32 = arith.constant 0 : i32
    %0 = arith.addi %arg1, %c0_i32 : i32
    %c0_i32_0 = arith.constant 0 : i32
    %c0_i32_1 = arith.constant 0 : i32
    %c0_i32_2 = arith.constant 0 : i32
    %c0_i32_3 = arith.constant 0 : i32
    return %arg0, %0, %c0_i32_0, %c0_i32_1, %c0_i32_2 : i32, i32, i32, i32, i32
  }
  func.func @transform_1(%arg0: i32, %arg1: i32) -> (i32, i32, i32, i32, i32) {
    %c1_i32 = arith.constant 1 : i32
    %0 = arith.addi %arg1, %c1_i32 : i32
    %c0_i32 = arith.constant 0 : i32
    %c0_i32_0 = arith.constant 0 : i32
    %c0_i32_1 = arith.constant 0 : i32
    %c0_i32_2 = arith.constant 0 : i32
    return %arg0, %0, %c0_i32, %c0_i32_0, %c0_i32_1 : i32, i32, i32, i32, i32
  }
  func.func @transform_2(%arg0: i32, %arg1: i32) -> (i32, i32, i32, i32, i32) {
    %c2_i32 = arith.constant 2 : i32
    %0 = arith.addi %arg1, %c2_i32 : i32
    %c0_i32 = arith.constant 0 : i32
    %c0_i32_0 = arith.constant 0 : i32
    %c0_i32_1 = arith.constant 0 : i32
    %c0_i32_2 = arith.constant 0 : i32
    return %arg0, %0, %c0_i32, %c0_i32_0, %c0_i32_1 : i32, i32, i32, i32, i32
  }
  func.func @transform_3(%arg0: i32, %arg1: i32) -> (i32, i32, i32) {
    %c0_i32 = arith.constant 0 : i32
    %c0_i32_0 = arith.constant 0 : i32
    %c0_i32_1 = arith.constant 0 : i32
    %c0_i32_2 = arith.constant 0 : i32
    return %c0_i32, %c0_i32_0, %c0_i32_1 : i32, i32, i32
  }
  func.func @transform_4(%arg0: i32, %arg1: i32) -> (i32, i32) {
    %c0_i32 = arith.constant 0 : i32
    %c0_i32_0 = arith.constant 0 : i32
    %c0_i32_1 = arith.constant 0 : i32
    return %c0_i32, %c0_i32_0 : i32, i32
  }
  func.func @transform_5(%arg0: i32, %arg1: i32) -> (i32, i32, i32, i32) {
    %c0_i32 = arith.constant 0 : i32
    %c0_i32_0 = arith.constant 0 : i32
    %c0_i32_1 = arith.constant 0 : i32
    return %arg0, %arg1, %c0_i32, %c0_i32_0 : i32, i32, i32, i32
  }
}

module attributes {stable_mosaic.version = 11 : i64} {
  func.func @_conv3x3_bias_relu_kernel(%arg0: i32, %arg1: i32, %arg2: memref<1x1x10x10x16xbf16, #tpu.memory_space<vmem>>, %arg3: memref<1x1x10x10x16xbf16, #tpu.memory_space<vmem>>, %arg4: memref<1x1x10x10x16xbf16, #tpu.memory_space<vmem>>, %arg5: memref<27x16x16xbf16, #tpu.memory_space<vmem>>, %arg6: memref<1x16xf32, #tpu.memory_space<vmem>>, %arg7: memref<1x1x64x16xf32, #tpu.memory_space<vmem>>) attributes {dimension_semantics = [#tpu.dimension_semantics<parallel>, #tpu.dimension_semantics<parallel>], iteration_bounds = array<i64: 2, 4>, scalar_prefetch = 0 : i64, scratch_operands = 0 : i64, tpu.core_type = #tpu.core_type<tc>, window_params = [{transform_indices = @transform_0, window_bounds = array<i64: 1, 1, 10, 10, 16>}, {transform_indices = @transform_1, window_bounds = array<i64: 1, 1, 10, 10, 16>}, {transform_indices = @transform_2, window_bounds = array<i64: 1, 1, 10, 10, 16>}, {pipeline_mode = #tpu.pipeline_mode<synchronous>, transform_indices = @transform_3, window_bounds = array<i64: 27, 16, 16>}, {pipeline_mode = #tpu.pipeline_mode<synchronous>, transform_indices = @transform_4, window_bounds = array<i64: 1, 16>}, {transform_indices = @transform_5, window_bounds = array<i64: 1, 1, 64, 16>}]} {
    %cst = arith.constant 0.000000e+00 : f32
    %0 = vector.broadcast %cst : f32 to vector<64x16xf32>
    %c0 = arith.constant 0 : index
    %c0_0 = arith.constant 0 : index
    %c0_1 = arith.constant 0 : index
    %c0_2 = arith.constant 0 : index
    %c0_3 = arith.constant 0 : index
    %1 = vector.load %arg2[%c0, %c0_0, %c0_1, %c0_2, %c0_3] : memref<1x1x10x10x16xbf16, #tpu.memory_space<vmem>>, vector<1x1x10x10x16xbf16>
    %2 = vector.shape_cast %1 : vector<1x1x10x10x16xbf16> to vector<10x10x16xbf16>
    %3 = vector.extract_strided_slice %2 {offsets = [0, 0, 0], sizes = [8, 8, 16], strides = [1, 1, 1]} : vector<10x10x16xbf16> to vector<8x8x16xbf16>
    %4 = vector.shape_cast %3 : vector<8x8x16xbf16> to vector<64x16xbf16>
    %c0_4 = arith.constant 0 : index
    %c0_5 = arith.constant 0 : index
    %c0_6 = arith.constant 0 : index
    %5 = vector.load %arg5[%c0_4, %c0_5, %c0_6] : memref<27x16x16xbf16, #tpu.memory_space<vmem>>, vector<1x16x16xbf16>
    %6 = vector.shape_cast %5 : vector<1x16x16xbf16> to vector<16x16xbf16>
    %cst_7 = arith.constant dense<0.000000e+00> : vector<64x16xf32>
    %7 = tpu.matmul %4, %6, %cst_7 {dimension_numbers = #tpu.dot_dimension_numbers<[1], [0], [0], [1], [0, 0, 1, 1], [], []>} : vector<64x16xbf16>, vector<16x16xbf16>, vector<64x16xf32> -> vector<64x16xf32>
    %8 = arith.addf %0, %7 : vector<64x16xf32>
    %9 = vector.extract_strided_slice %2 {offsets = [0, 1, 0], sizes = [8, 8, 16], strides = [1, 1, 1]} : vector<10x10x16xbf16> to vector<8x8x16xbf16>
    %10 = vector.shape_cast %9 : vector<8x8x16xbf16> to vector<64x16xbf16>
    %c1 = arith.constant 1 : index
    %c0_8 = arith.constant 0 : index
    %c0_9 = arith.constant 0 : index
    %11 = vector.load %arg5[%c1, %c0_8, %c0_9] : memref<27x16x16xbf16, #tpu.memory_space<vmem>>, vector<1x16x16xbf16>
    %12 = vector.shape_cast %11 : vector<1x16x16xbf16> to vector<16x16xbf16>
    %cst_10 = arith.constant dense<0.000000e+00> : vector<64x16xf32>
    %13 = tpu.matmul %10, %12, %cst_10 {dimension_numbers = #tpu.dot_dimension_numbers<[1], [0], [0], [1], [0, 0, 1, 1], [], []>} : vector<64x16xbf16>, vector<16x16xbf16>, vector<64x16xf32> -> vector<64x16xf32>
    %14 = arith.addf %8, %13 : vector<64x16xf32>
    %15 = vector.extract_strided_slice %2 {offsets = [0, 2, 0], sizes = [8, 8, 16], strides = [1, 1, 1]} : vector<10x10x16xbf16> to vector<8x8x16xbf16>
    %16 = vector.shape_cast %15 : vector<8x8x16xbf16> to vector<64x16xbf16>
    %c2 = arith.constant 2 : index
    %c0_11 = arith.constant 0 : index
    %c0_12 = arith.constant 0 : index
    %17 = vector.load %arg5[%c2, %c0_11, %c0_12] : memref<27x16x16xbf16, #tpu.memory_space<vmem>>, vector<1x16x16xbf16>
    %18 = vector.shape_cast %17 : vector<1x16x16xbf16> to vector<16x16xbf16>
    %cst_13 = arith.constant dense<0.000000e+00> : vector<64x16xf32>
    %19 = tpu.matmul %16, %18, %cst_13 {dimension_numbers = #tpu.dot_dimension_numbers<[1], [0], [0], [1], [0, 0, 1, 1], [], []>} : vector<64x16xbf16>, vector<16x16xbf16>, vector<64x16xf32> -> vector<64x16xf32>
    %20 = arith.addf %14, %19 : vector<64x16xf32>
    %21 = vector.extract_strided_slice %2 {offsets = [1, 0, 0], sizes = [8, 8, 16], strides = [1, 1, 1]} : vector<10x10x16xbf16> to vector<8x8x16xbf16>
    %22 = vector.shape_cast %21 : vector<8x8x16xbf16> to vector<64x16xbf16>
    %c3 = arith.constant 3 : index
    %c0_14 = arith.constant 0 : index
    %c0_15 = arith.constant 0 : index
    %23 = vector.load %arg5[%c3, %c0_14, %c0_15] : memref<27x16x16xbf16, #tpu.memory_space<vmem>>, vector<1x16x16xbf16>
    %24 = vector.shape_cast %23 : vector<1x16x16xbf16> to vector<16x16xbf16>
    %cst_16 = arith.constant dense<0.000000e+00> : vector<64x16xf32>
    %25 = tpu.matmul %22, %24, %cst_16 {dimension_numbers = #tpu.dot_dimension_numbers<[1], [0], [0], [1], [0, 0, 1, 1], [], []>} : vector<64x16xbf16>, vector<16x16xbf16>, vector<64x16xf32> -> vector<64x16xf32>
    %26 = arith.addf %20, %25 : vector<64x16xf32>
    %27 = vector.extract_strided_slice %2 {offsets = [1, 1, 0], sizes = [8, 8, 16], strides = [1, 1, 1]} : vector<10x10x16xbf16> to vector<8x8x16xbf16>
    %28 = vector.shape_cast %27 : vector<8x8x16xbf16> to vector<64x16xbf16>
    %c4 = arith.constant 4 : index
    %c0_17 = arith.constant 0 : index
    %c0_18 = arith.constant 0 : index
    %29 = vector.load %arg5[%c4, %c0_17, %c0_18] : memref<27x16x16xbf16, #tpu.memory_space<vmem>>, vector<1x16x16xbf16>
    %30 = vector.shape_cast %29 : vector<1x16x16xbf16> to vector<16x16xbf16>
    %cst_19 = arith.constant dense<0.000000e+00> : vector<64x16xf32>
    %31 = tpu.matmul %28, %30, %cst_19 {dimension_numbers = #tpu.dot_dimension_numbers<[1], [0], [0], [1], [0, 0, 1, 1], [], []>} : vector<64x16xbf16>, vector<16x16xbf16>, vector<64x16xf32> -> vector<64x16xf32>
    %32 = arith.addf %26, %31 : vector<64x16xf32>
    %33 = vector.extract_strided_slice %2 {offsets = [1, 2, 0], sizes = [8, 8, 16], strides = [1, 1, 1]} : vector<10x10x16xbf16> to vector<8x8x16xbf16>
    %34 = vector.shape_cast %33 : vector<8x8x16xbf16> to vector<64x16xbf16>
    %c5 = arith.constant 5 : index
    %c0_20 = arith.constant 0 : index
    %c0_21 = arith.constant 0 : index
    %35 = vector.load %arg5[%c5, %c0_20, %c0_21] : memref<27x16x16xbf16, #tpu.memory_space<vmem>>, vector<1x16x16xbf16>
    %36 = vector.shape_cast %35 : vector<1x16x16xbf16> to vector<16x16xbf16>
    %cst_22 = arith.constant dense<0.000000e+00> : vector<64x16xf32>
    %37 = tpu.matmul %34, %36, %cst_22 {dimension_numbers = #tpu.dot_dimension_numbers<[1], [0], [0], [1], [0, 0, 1, 1], [], []>} : vector<64x16xbf16>, vector<16x16xbf16>, vector<64x16xf32> -> vector<64x16xf32>
    %38 = arith.addf %32, %37 : vector<64x16xf32>
    %39 = vector.extract_strided_slice %2 {offsets = [2, 0, 0], sizes = [8, 8, 16], strides = [1, 1, 1]} : vector<10x10x16xbf16> to vector<8x8x16xbf16>
    %40 = vector.shape_cast %39 : vector<8x8x16xbf16> to vector<64x16xbf16>
    %c6 = arith.constant 6 : index
    %c0_23 = arith.constant 0 : index
    %c0_24 = arith.constant 0 : index
    %41 = vector.load %arg5[%c6, %c0_23, %c0_24] : memref<27x16x16xbf16, #tpu.memory_space<vmem>>, vector<1x16x16xbf16>
    %42 = vector.shape_cast %41 : vector<1x16x16xbf16> to vector<16x16xbf16>
    %cst_25 = arith.constant dense<0.000000e+00> : vector<64x16xf32>
    %43 = tpu.matmul %40, %42, %cst_25 {dimension_numbers = #tpu.dot_dimension_numbers<[1], [0], [0], [1], [0, 0, 1, 1], [], []>} : vector<64x16xbf16>, vector<16x16xbf16>, vector<64x16xf32> -> vector<64x16xf32>
    %44 = arith.addf %38, %43 : vector<64x16xf32>
    %45 = vector.extract_strided_slice %2 {offsets = [2, 1, 0], sizes = [8, 8, 16], strides = [1, 1, 1]} : vector<10x10x16xbf16> to vector<8x8x16xbf16>
    %46 = vector.shape_cast %45 : vector<8x8x16xbf16> to vector<64x16xbf16>
    %c7 = arith.constant 7 : index
    %c0_26 = arith.constant 0 : index
    %c0_27 = arith.constant 0 : index
    %47 = vector.load %arg5[%c7, %c0_26, %c0_27] : memref<27x16x16xbf16, #tpu.memory_space<vmem>>, vector<1x16x16xbf16>
    %48 = vector.shape_cast %47 : vector<1x16x16xbf16> to vector<16x16xbf16>
    %cst_28 = arith.constant dense<0.000000e+00> : vector<64x16xf32>
    %49 = tpu.matmul %46, %48, %cst_28 {dimension_numbers = #tpu.dot_dimension_numbers<[1], [0], [0], [1], [0, 0, 1, 1], [], []>} : vector<64x16xbf16>, vector<16x16xbf16>, vector<64x16xf32> -> vector<64x16xf32>
    %50 = arith.addf %44, %49 : vector<64x16xf32>
    %51 = vector.extract_strided_slice %2 {offsets = [2, 2, 0], sizes = [8, 8, 16], strides = [1, 1, 1]} : vector<10x10x16xbf16> to vector<8x8x16xbf16>
    %52 = vector.shape_cast %51 : vector<8x8x16xbf16> to vector<64x16xbf16>
    %c8 = arith.constant 8 : index
    %c0_29 = arith.constant 0 : index
    %c0_30 = arith.constant 0 : index
    %53 = vector.load %arg5[%c8, %c0_29, %c0_30] : memref<27x16x16xbf16, #tpu.memory_space<vmem>>, vector<1x16x16xbf16>
    %54 = vector.shape_cast %53 : vector<1x16x16xbf16> to vector<16x16xbf16>
    %cst_31 = arith.constant dense<0.000000e+00> : vector<64x16xf32>
    %55 = tpu.matmul %52, %54, %cst_31 {dimension_numbers = #tpu.dot_dimension_numbers<[1], [0], [0], [1], [0, 0, 1, 1], [], []>} : vector<64x16xbf16>, vector<16x16xbf16>, vector<64x16xf32> -> vector<64x16xf32>
    %56 = arith.addf %50, %55 : vector<64x16xf32>
    %c0_32 = arith.constant 0 : index
    %c0_33 = arith.constant 0 : index
    %c0_34 = arith.constant 0 : index
    %c0_35 = arith.constant 0 : index
    %c0_36 = arith.constant 0 : index
    %57 = vector.load %arg3[%c0_32, %c0_33, %c0_34, %c0_35, %c0_36] : memref<1x1x10x10x16xbf16, #tpu.memory_space<vmem>>, vector<1x1x10x10x16xbf16>
    %58 = vector.shape_cast %57 : vector<1x1x10x10x16xbf16> to vector<10x10x16xbf16>
    %59 = vector.extract_strided_slice %58 {offsets = [0, 0, 0], sizes = [8, 8, 16], strides = [1, 1, 1]} : vector<10x10x16xbf16> to vector<8x8x16xbf16>
    %60 = vector.shape_cast %59 : vector<8x8x16xbf16> to vector<64x16xbf16>
    %c9 = arith.constant 9 : index
    %c0_37 = arith.constant 0 : index
    %c0_38 = arith.constant 0 : index
    %61 = vector.load %arg5[%c9, %c0_37, %c0_38] : memref<27x16x16xbf16, #tpu.memory_space<vmem>>, vector<1x16x16xbf16>
    %62 = vector.shape_cast %61 : vector<1x16x16xbf16> to vector<16x16xbf16>
    %cst_39 = arith.constant dense<0.000000e+00> : vector<64x16xf32>
    %63 = tpu.matmul %60, %62, %cst_39 {dimension_numbers = #tpu.dot_dimension_numbers<[1], [0], [0], [1], [0, 0, 1, 1], [], []>} : vector<64x16xbf16>, vector<16x16xbf16>, vector<64x16xf32> -> vector<64x16xf32>
    %64 = arith.addf %56, %63 : vector<64x16xf32>
    %65 = vector.extract_strided_slice %58 {offsets = [0, 1, 0], sizes = [8, 8, 16], strides = [1, 1, 1]} : vector<10x10x16xbf16> to vector<8x8x16xbf16>
    %66 = vector.shape_cast %65 : vector<8x8x16xbf16> to vector<64x16xbf16>
    %c10 = arith.constant 10 : index
    %c0_40 = arith.constant 0 : index
    %c0_41 = arith.constant 0 : index
    %67 = vector.load %arg5[%c10, %c0_40, %c0_41] : memref<27x16x16xbf16, #tpu.memory_space<vmem>>, vector<1x16x16xbf16>
    %68 = vector.shape_cast %67 : vector<1x16x16xbf16> to vector<16x16xbf16>
    %cst_42 = arith.constant dense<0.000000e+00> : vector<64x16xf32>
    %69 = tpu.matmul %66, %68, %cst_42 {dimension_numbers = #tpu.dot_dimension_numbers<[1], [0], [0], [1], [0, 0, 1, 1], [], []>} : vector<64x16xbf16>, vector<16x16xbf16>, vector<64x16xf32> -> vector<64x16xf32>
    %70 = arith.addf %64, %69 : vector<64x16xf32>
    %71 = vector.extract_strided_slice %58 {offsets = [0, 2, 0], sizes = [8, 8, 16], strides = [1, 1, 1]} : vector<10x10x16xbf16> to vector<8x8x16xbf16>
    %72 = vector.shape_cast %71 : vector<8x8x16xbf16> to vector<64x16xbf16>
    %c11 = arith.constant 11 : index
    %c0_43 = arith.constant 0 : index
    %c0_44 = arith.constant 0 : index
    %73 = vector.load %arg5[%c11, %c0_43, %c0_44] : memref<27x16x16xbf16, #tpu.memory_space<vmem>>, vector<1x16x16xbf16>
    %74 = vector.shape_cast %73 : vector<1x16x16xbf16> to vector<16x16xbf16>
    %cst_45 = arith.constant dense<0.000000e+00> : vector<64x16xf32>
    %75 = tpu.matmul %72, %74, %cst_45 {dimension_numbers = #tpu.dot_dimension_numbers<[1], [0], [0], [1], [0, 0, 1, 1], [], []>} : vector<64x16xbf16>, vector<16x16xbf16>, vector<64x16xf32> -> vector<64x16xf32>
    %76 = arith.addf %70, %75 : vector<64x16xf32>
    %77 = vector.extract_strided_slice %58 {offsets = [1, 0, 0], sizes = [8, 8, 16], strides = [1, 1, 1]} : vector<10x10x16xbf16> to vector<8x8x16xbf16>
    %78 = vector.shape_cast %77 : vector<8x8x16xbf16> to vector<64x16xbf16>
    %c12 = arith.constant 12 : index
    %c0_46 = arith.constant 0 : index
    %c0_47 = arith.constant 0 : index
    %79 = vector.load %arg5[%c12, %c0_46, %c0_47] : memref<27x16x16xbf16, #tpu.memory_space<vmem>>, vector<1x16x16xbf16>
    %80 = vector.shape_cast %79 : vector<1x16x16xbf16> to vector<16x16xbf16>
    %cst_48 = arith.constant dense<0.000000e+00> : vector<64x16xf32>
    %81 = tpu.matmul %78, %80, %cst_48 {dimension_numbers = #tpu.dot_dimension_numbers<[1], [0], [0], [1], [0, 0, 1, 1], [], []>} : vector<64x16xbf16>, vector<16x16xbf16>, vector<64x16xf32> -> vector<64x16xf32>
    %82 = arith.addf %76, %81 : vector<64x16xf32>
    %83 = vector.extract_strided_slice %58 {offsets = [1, 1, 0], sizes = [8, 8, 16], strides = [1, 1, 1]} : vector<10x10x16xbf16> to vector<8x8x16xbf16>
    %84 = vector.shape_cast %83 : vector<8x8x16xbf16> to vector<64x16xbf16>
    %c13 = arith.constant 13 : index
    %c0_49 = arith.constant 0 : index
    %c0_50 = arith.constant 0 : index
    %85 = vector.load %arg5[%c13, %c0_49, %c0_50] : memref<27x16x16xbf16, #tpu.memory_space<vmem>>, vector<1x16x16xbf16>
    %86 = vector.shape_cast %85 : vector<1x16x16xbf16> to vector<16x16xbf16>
    %cst_51 = arith.constant dense<0.000000e+00> : vector<64x16xf32>
    %87 = tpu.matmul %84, %86, %cst_51 {dimension_numbers = #tpu.dot_dimension_numbers<[1], [0], [0], [1], [0, 0, 1, 1], [], []>} : vector<64x16xbf16>, vector<16x16xbf16>, vector<64x16xf32> -> vector<64x16xf32>
    %88 = arith.addf %82, %87 : vector<64x16xf32>
    %89 = vector.extract_strided_slice %58 {offsets = [1, 2, 0], sizes = [8, 8, 16], strides = [1, 1, 1]} : vector<10x10x16xbf16> to vector<8x8x16xbf16>
    %90 = vector.shape_cast %89 : vector<8x8x16xbf16> to vector<64x16xbf16>
    %c14 = arith.constant 14 : index
    %c0_52 = arith.constant 0 : index
    %c0_53 = arith.constant 0 : index
    %91 = vector.load %arg5[%c14, %c0_52, %c0_53] : memref<27x16x16xbf16, #tpu.memory_space<vmem>>, vector<1x16x16xbf16>
    %92 = vector.shape_cast %91 : vector<1x16x16xbf16> to vector<16x16xbf16>
    %cst_54 = arith.constant dense<0.000000e+00> : vector<64x16xf32>
    %93 = tpu.matmul %90, %92, %cst_54 {dimension_numbers = #tpu.dot_dimension_numbers<[1], [0], [0], [1], [0, 0, 1, 1], [], []>} : vector<64x16xbf16>, vector<16x16xbf16>, vector<64x16xf32> -> vector<64x16xf32>
    %94 = arith.addf %88, %93 : vector<64x16xf32>
    %95 = vector.extract_strided_slice %58 {offsets = [2, 0, 0], sizes = [8, 8, 16], strides = [1, 1, 1]} : vector<10x10x16xbf16> to vector<8x8x16xbf16>
    %96 = vector.shape_cast %95 : vector<8x8x16xbf16> to vector<64x16xbf16>
    %c15 = arith.constant 15 : index
    %c0_55 = arith.constant 0 : index
    %c0_56 = arith.constant 0 : index
    %97 = vector.load %arg5[%c15, %c0_55, %c0_56] : memref<27x16x16xbf16, #tpu.memory_space<vmem>>, vector<1x16x16xbf16>
    %98 = vector.shape_cast %97 : vector<1x16x16xbf16> to vector<16x16xbf16>
    %cst_57 = arith.constant dense<0.000000e+00> : vector<64x16xf32>
    %99 = tpu.matmul %96, %98, %cst_57 {dimension_numbers = #tpu.dot_dimension_numbers<[1], [0], [0], [1], [0, 0, 1, 1], [], []>} : vector<64x16xbf16>, vector<16x16xbf16>, vector<64x16xf32> -> vector<64x16xf32>
    %100 = arith.addf %94, %99 : vector<64x16xf32>
    %101 = vector.extract_strided_slice %58 {offsets = [2, 1, 0], sizes = [8, 8, 16], strides = [1, 1, 1]} : vector<10x10x16xbf16> to vector<8x8x16xbf16>
    %102 = vector.shape_cast %101 : vector<8x8x16xbf16> to vector<64x16xbf16>
    %c16 = arith.constant 16 : index
    %c0_58 = arith.constant 0 : index
    %c0_59 = arith.constant 0 : index
    %103 = vector.load %arg5[%c16, %c0_58, %c0_59] : memref<27x16x16xbf16, #tpu.memory_space<vmem>>, vector<1x16x16xbf16>
    %104 = vector.shape_cast %103 : vector<1x16x16xbf16> to vector<16x16xbf16>
    %cst_60 = arith.constant dense<0.000000e+00> : vector<64x16xf32>
    %105 = tpu.matmul %102, %104, %cst_60 {dimension_numbers = #tpu.dot_dimension_numbers<[1], [0], [0], [1], [0, 0, 1, 1], [], []>} : vector<64x16xbf16>, vector<16x16xbf16>, vector<64x16xf32> -> vector<64x16xf32>
    %106 = arith.addf %100, %105 : vector<64x16xf32>
    %107 = vector.extract_strided_slice %58 {offsets = [2, 2, 0], sizes = [8, 8, 16], strides = [1, 1, 1]} : vector<10x10x16xbf16> to vector<8x8x16xbf16>
    %108 = vector.shape_cast %107 : vector<8x8x16xbf16> to vector<64x16xbf16>
    %c17 = arith.constant 17 : index
    %c0_61 = arith.constant 0 : index
    %c0_62 = arith.constant 0 : index
    %109 = vector.load %arg5[%c17, %c0_61, %c0_62] : memref<27x16x16xbf16, #tpu.memory_space<vmem>>, vector<1x16x16xbf16>
    %110 = vector.shape_cast %109 : vector<1x16x16xbf16> to vector<16x16xbf16>
    %cst_63 = arith.constant dense<0.000000e+00> : vector<64x16xf32>
    %111 = tpu.matmul %108, %110, %cst_63 {dimension_numbers = #tpu.dot_dimension_numbers<[1], [0], [0], [1], [0, 0, 1, 1], [], []>} : vector<64x16xbf16>, vector<16x16xbf16>, vector<64x16xf32> -> vector<64x16xf32>
    %112 = arith.addf %106, %111 : vector<64x16xf32>
    %c0_64 = arith.constant 0 : index
    %c0_65 = arith.constant 0 : index
    %c0_66 = arith.constant 0 : index
    %c0_67 = arith.constant 0 : index
    %c0_68 = arith.constant 0 : index
    %113 = vector.load %arg4[%c0_64, %c0_65, %c0_66, %c0_67, %c0_68] : memref<1x1x10x10x16xbf16, #tpu.memory_space<vmem>>, vector<1x1x10x10x16xbf16>
    %114 = vector.shape_cast %113 : vector<1x1x10x10x16xbf16> to vector<10x10x16xbf16>
    %115 = vector.extract_strided_slice %114 {offsets = [0, 0, 0], sizes = [8, 8, 16], strides = [1, 1, 1]} : vector<10x10x16xbf16> to vector<8x8x16xbf16>
    %116 = vector.shape_cast %115 : vector<8x8x16xbf16> to vector<64x16xbf16>
    %c18 = arith.constant 18 : index
    %c0_69 = arith.constant 0 : index
    %c0_70 = arith.constant 0 : index
    %117 = vector.load %arg5[%c18, %c0_69, %c0_70] : memref<27x16x16xbf16, #tpu.memory_space<vmem>>, vector<1x16x16xbf16>
    %118 = vector.shape_cast %117 : vector<1x16x16xbf16> to vector<16x16xbf16>
    %cst_71 = arith.constant dense<0.000000e+00> : vector<64x16xf32>
    %119 = tpu.matmul %116, %118, %cst_71 {dimension_numbers = #tpu.dot_dimension_numbers<[1], [0], [0], [1], [0, 0, 1, 1], [], []>} : vector<64x16xbf16>, vector<16x16xbf16>, vector<64x16xf32> -> vector<64x16xf32>
    %120 = arith.addf %112, %119 : vector<64x16xf32>
    %121 = vector.extract_strided_slice %114 {offsets = [0, 1, 0], sizes = [8, 8, 16], strides = [1, 1, 1]} : vector<10x10x16xbf16> to vector<8x8x16xbf16>
    %122 = vector.shape_cast %121 : vector<8x8x16xbf16> to vector<64x16xbf16>
    %c19 = arith.constant 19 : index
    %c0_72 = arith.constant 0 : index
    %c0_73 = arith.constant 0 : index
    %123 = vector.load %arg5[%c19, %c0_72, %c0_73] : memref<27x16x16xbf16, #tpu.memory_space<vmem>>, vector<1x16x16xbf16>
    %124 = vector.shape_cast %123 : vector<1x16x16xbf16> to vector<16x16xbf16>
    %cst_74 = arith.constant dense<0.000000e+00> : vector<64x16xf32>
    %125 = tpu.matmul %122, %124, %cst_74 {dimension_numbers = #tpu.dot_dimension_numbers<[1], [0], [0], [1], [0, 0, 1, 1], [], []>} : vector<64x16xbf16>, vector<16x16xbf16>, vector<64x16xf32> -> vector<64x16xf32>
    %126 = arith.addf %120, %125 : vector<64x16xf32>
    %127 = vector.extract_strided_slice %114 {offsets = [0, 2, 0], sizes = [8, 8, 16], strides = [1, 1, 1]} : vector<10x10x16xbf16> to vector<8x8x16xbf16>
    %128 = vector.shape_cast %127 : vector<8x8x16xbf16> to vector<64x16xbf16>
    %c20 = arith.constant 20 : index
    %c0_75 = arith.constant 0 : index
    %c0_76 = arith.constant 0 : index
    %129 = vector.load %arg5[%c20, %c0_75, %c0_76] : memref<27x16x16xbf16, #tpu.memory_space<vmem>>, vector<1x16x16xbf16>
    %130 = vector.shape_cast %129 : vector<1x16x16xbf16> to vector<16x16xbf16>
    %cst_77 = arith.constant dense<0.000000e+00> : vector<64x16xf32>
    %131 = tpu.matmul %128, %130, %cst_77 {dimension_numbers = #tpu.dot_dimension_numbers<[1], [0], [0], [1], [0, 0, 1, 1], [], []>} : vector<64x16xbf16>, vector<16x16xbf16>, vector<64x16xf32> -> vector<64x16xf32>
    %132 = arith.addf %126, %131 : vector<64x16xf32>
    %133 = vector.extract_strided_slice %114 {offsets = [1, 0, 0], sizes = [8, 8, 16], strides = [1, 1, 1]} : vector<10x10x16xbf16> to vector<8x8x16xbf16>
    %134 = vector.shape_cast %133 : vector<8x8x16xbf16> to vector<64x16xbf16>
    %c21 = arith.constant 21 : index
    %c0_78 = arith.constant 0 : index
    %c0_79 = arith.constant 0 : index
    %135 = vector.load %arg5[%c21, %c0_78, %c0_79] : memref<27x16x16xbf16, #tpu.memory_space<vmem>>, vector<1x16x16xbf16>
    %136 = vector.shape_cast %135 : vector<1x16x16xbf16> to vector<16x16xbf16>
    %cst_80 = arith.constant dense<0.000000e+00> : vector<64x16xf32>
    %137 = tpu.matmul %134, %136, %cst_80 {dimension_numbers = #tpu.dot_dimension_numbers<[1], [0], [0], [1], [0, 0, 1, 1], [], []>} : vector<64x16xbf16>, vector<16x16xbf16>, vector<64x16xf32> -> vector<64x16xf32>
    %138 = arith.addf %132, %137 : vector<64x16xf32>
    %139 = vector.extract_strided_slice %114 {offsets = [1, 1, 0], sizes = [8, 8, 16], strides = [1, 1, 1]} : vector<10x10x16xbf16> to vector<8x8x16xbf16>
    %140 = vector.shape_cast %139 : vector<8x8x16xbf16> to vector<64x16xbf16>
    %c22 = arith.constant 22 : index
    %c0_81 = arith.constant 0 : index
    %c0_82 = arith.constant 0 : index
    %141 = vector.load %arg5[%c22, %c0_81, %c0_82] : memref<27x16x16xbf16, #tpu.memory_space<vmem>>, vector<1x16x16xbf16>
    %142 = vector.shape_cast %141 : vector<1x16x16xbf16> to vector<16x16xbf16>
    %cst_83 = arith.constant dense<0.000000e+00> : vector<64x16xf32>
    %143 = tpu.matmul %140, %142, %cst_83 {dimension_numbers = #tpu.dot_dimension_numbers<[1], [0], [0], [1], [0, 0, 1, 1], [], []>} : vector<64x16xbf16>, vector<16x16xbf16>, vector<64x16xf32> -> vector<64x16xf32>
    %144 = arith.addf %138, %143 : vector<64x16xf32>
    %145 = vector.extract_strided_slice %114 {offsets = [1, 2, 0], sizes = [8, 8, 16], strides = [1, 1, 1]} : vector<10x10x16xbf16> to vector<8x8x16xbf16>
    %146 = vector.shape_cast %145 : vector<8x8x16xbf16> to vector<64x16xbf16>
    %c23 = arith.constant 23 : index
    %c0_84 = arith.constant 0 : index
    %c0_85 = arith.constant 0 : index
    %147 = vector.load %arg5[%c23, %c0_84, %c0_85] : memref<27x16x16xbf16, #tpu.memory_space<vmem>>, vector<1x16x16xbf16>
    %148 = vector.shape_cast %147 : vector<1x16x16xbf16> to vector<16x16xbf16>
    %cst_86 = arith.constant dense<0.000000e+00> : vector<64x16xf32>
    %149 = tpu.matmul %146, %148, %cst_86 {dimension_numbers = #tpu.dot_dimension_numbers<[1], [0], [0], [1], [0, 0, 1, 1], [], []>} : vector<64x16xbf16>, vector<16x16xbf16>, vector<64x16xf32> -> vector<64x16xf32>
    %150 = arith.addf %144, %149 : vector<64x16xf32>
    %151 = vector.extract_strided_slice %114 {offsets = [2, 0, 0], sizes = [8, 8, 16], strides = [1, 1, 1]} : vector<10x10x16xbf16> to vector<8x8x16xbf16>
    %152 = vector.shape_cast %151 : vector<8x8x16xbf16> to vector<64x16xbf16>
    %c24 = arith.constant 24 : index
    %c0_87 = arith.constant 0 : index
    %c0_88 = arith.constant 0 : index
    %153 = vector.load %arg5[%c24, %c0_87, %c0_88] : memref<27x16x16xbf16, #tpu.memory_space<vmem>>, vector<1x16x16xbf16>
    %154 = vector.shape_cast %153 : vector<1x16x16xbf16> to vector<16x16xbf16>
    %cst_89 = arith.constant dense<0.000000e+00> : vector<64x16xf32>
    %155 = tpu.matmul %152, %154, %cst_89 {dimension_numbers = #tpu.dot_dimension_numbers<[1], [0], [0], [1], [0, 0, 1, 1], [], []>} : vector<64x16xbf16>, vector<16x16xbf16>, vector<64x16xf32> -> vector<64x16xf32>
    %156 = arith.addf %150, %155 : vector<64x16xf32>
    %157 = vector.extract_strided_slice %114 {offsets = [2, 1, 0], sizes = [8, 8, 16], strides = [1, 1, 1]} : vector<10x10x16xbf16> to vector<8x8x16xbf16>
    %158 = vector.shape_cast %157 : vector<8x8x16xbf16> to vector<64x16xbf16>
    %c25 = arith.constant 25 : index
    %c0_90 = arith.constant 0 : index
    %c0_91 = arith.constant 0 : index
    %159 = vector.load %arg5[%c25, %c0_90, %c0_91] : memref<27x16x16xbf16, #tpu.memory_space<vmem>>, vector<1x16x16xbf16>
    %160 = vector.shape_cast %159 : vector<1x16x16xbf16> to vector<16x16xbf16>
    %cst_92 = arith.constant dense<0.000000e+00> : vector<64x16xf32>
    %161 = tpu.matmul %158, %160, %cst_92 {dimension_numbers = #tpu.dot_dimension_numbers<[1], [0], [0], [1], [0, 0, 1, 1], [], []>} : vector<64x16xbf16>, vector<16x16xbf16>, vector<64x16xf32> -> vector<64x16xf32>
    %162 = arith.addf %156, %161 : vector<64x16xf32>
    %163 = vector.extract_strided_slice %114 {offsets = [2, 2, 0], sizes = [8, 8, 16], strides = [1, 1, 1]} : vector<10x10x16xbf16> to vector<8x8x16xbf16>
    %164 = vector.shape_cast %163 : vector<8x8x16xbf16> to vector<64x16xbf16>
    %c26 = arith.constant 26 : index
    %c0_93 = arith.constant 0 : index
    %c0_94 = arith.constant 0 : index
    %165 = vector.load %arg5[%c26, %c0_93, %c0_94] : memref<27x16x16xbf16, #tpu.memory_space<vmem>>, vector<1x16x16xbf16>
    %166 = vector.shape_cast %165 : vector<1x16x16xbf16> to vector<16x16xbf16>
    %cst_95 = arith.constant dense<0.000000e+00> : vector<64x16xf32>
    %167 = tpu.matmul %164, %166, %cst_95 {dimension_numbers = #tpu.dot_dimension_numbers<[1], [0], [0], [1], [0, 0, 1, 1], [], []>} : vector<64x16xbf16>, vector<16x16xbf16>, vector<64x16xf32> -> vector<64x16xf32>
    %168 = arith.addf %162, %167 : vector<64x16xf32>
    %c0_96 = arith.constant 0 : index
    %c0_97 = arith.constant 0 : index
    %169 = vector.load %arg6[%c0_96, %c0_97] : memref<1x16xf32, #tpu.memory_space<vmem>>, vector<1x16xf32>
    %170 = vector.broadcast %169 : vector<1x16xf32> to vector<64x16xf32>
    %171 = arith.addf %168, %170 : vector<64x16xf32>
    %cst_98 = arith.constant 0.000000e+00 : f32
    %172 = vector.broadcast %cst_98 : f32 to vector<64x16xf32>
    %173 = arith.maximumf %171, %172 : vector<64x16xf32>
    %c0_99 = arith.constant 0 : index
    %c0_100 = arith.constant 0 : index
    %c0_101 = arith.constant 0 : index
    %c0_102 = arith.constant 0 : index
    %174 = vector.load %arg7[%c0_99, %c0_100, %c0_101, %c0_102] : memref<1x1x64x16xf32, #tpu.memory_space<vmem>>, vector<1x1x64x16xf32>
    %175 = vector.shape_cast %174 : vector<1x1x64x16xf32> to vector<64x16xf32>
    %176 = vector.shape_cast %173 : vector<64x16xf32> to vector<1x1x64x16xf32>
    tpu.vector_store %arg7[%c0_99, %c0_100, %c0_101, %c0_102], %176 {strides = array<i32>} : memref<1x1x64x16xf32, #tpu.memory_space<vmem>>, vector<1x1x64x16xf32>,
    return
  }
  func.func @transform_0(%arg0: i32, %arg1: i32) -> (i32, i32, i32, i32, i32) {
    %c0_i32 = arith.constant 0 : i32
    %0 = arith.addi %arg1, %c0_i32 : i32
    %c0_i32_0 = arith.constant 0 : i32
    %c0_i32_1 = arith.constant 0 : i32
    %c0_i32_2 = arith.constant 0 : i32
    %c0_i32_3 = arith.constant 0 : i32
    return %arg0, %0, %c0_i32_0, %c0_i32_1, %c0_i32_2 : i32, i32, i32, i32, i32
  }
  func.func @transform_1(%arg0: i32, %arg1: i32) -> (i32, i32, i32, i32, i32) {
    %c1_i32 = arith.constant 1 : i32
    %0 = arith.addi %arg1, %c1_i32 : i32
    %c0_i32 = arith.constant 0 : i32
    %c0_i32_0 = arith.constant 0 : i32
    %c0_i32_1 = arith.constant 0 : i32
    %c0_i32_2 = arith.constant 0 : i32
    return %arg0, %0, %c0_i32, %c0_i32_0, %c0_i32_1 : i32, i32, i32, i32, i32
  }
  func.func @transform_2(%arg0: i32, %arg1: i32) -> (i32, i32, i32, i32, i32) {
    %c2_i32 = arith.constant 2 : i32
    %0 = arith.addi %arg1, %c2_i32 : i32
    %c0_i32 = arith.constant 0 : i32
    %c0_i32_0 = arith.constant 0 : i32
    %c0_i32_1 = arith.constant 0 : i32
    %c0_i32_2 = arith.constant 0 : i32
    return %arg0, %0, %c0_i32, %c0_i32_0, %c0_i32_1 : i32, i32, i32, i32, i32
  }
  func.func @transform_3(%arg0: i32, %arg1: i32) -> (i32, i32, i32) {
    %c0_i32 = arith.constant 0 : i32
    %c0_i32_0 = arith.constant 0 : i32
    %c0_i32_1 = arith.constant 0 : i32
    %c0_i32_2 = arith.constant 0 : i32
    return %c0_i32, %c0_i32_0, %c0_i32_1 : i32, i32, i32
  }
  func.func @transform_4(%arg0: i32, %arg1: i32) -> (i32, i32) {
    %c0_i32 = arith.constant 0 : i32
    %c0_i32_0 = arith.constant 0 : i32
    %c0_i32_1 = arith.constant 0 : i32
    return %c0_i32, %c0_i32_0 : i32, i32
  }
  func.func @transform_5(%arg0: i32, %arg1: i32) -> (i32, i32, i32, i32) {
    %c0_i32 = arith.constant 0 : i32
    %c0_i32_0 = arith.constant 0 : i32
    %c0_i32_1 = arith.constant 0 : i32
    return %arg0, %arg1, %c0_i32, %c0_i32_0 : i32, i32, i32, i32
  }
}

module attributes {stable_mosaic.version = 11 : i64} {
  func.func @_conv3x3_bias_relu_kernel(%arg0: i32, %arg1: i32, %arg2: memref<1x1x10x10x8xbf16, #tpu.memory_space<vmem>>, %arg3: memref<1x1x10x10x8xbf16, #tpu.memory_space<vmem>>, %arg4: memref<1x1x10x10x8xbf16, #tpu.memory_space<vmem>>, %arg5: memref<27x8x16xbf16, #tpu.memory_space<vmem>>, %arg6: memref<1x16xf32, #tpu.memory_space<vmem>>, %arg7: memref<1x1x64x16xf32, #tpu.memory_space<vmem>>) attributes {dimension_semantics = [#tpu.dimension_semantics<parallel>, #tpu.dimension_semantics<parallel>], iteration_bounds = array<i64: 2, 4>, scalar_prefetch = 0 : i64, scratch_operands = 0 : i64, tpu.core_type = #tpu.core_type<tc>, window_params = [{transform_indices = @transform_0, window_bounds = array<i64: 1, 1, 10, 10, 8>}, {transform_indices = @transform_1, window_bounds = array<i64: 1, 1, 10, 10, 8>}, {transform_indices = @transform_2, window_bounds = array<i64: 1, 1, 10, 10, 8>}, {pipeline_mode = #tpu.pipeline_mode<synchronous>, transform_indices = @transform_3, window_bounds = array<i64: 27, 8, 16>}, {pipeline_mode = #tpu.pipeline_mode<synchronous>, transform_indices = @transform_4, window_bounds = array<i64: 1, 16>}, {transform_indices = @transform_5, window_bounds = array<i64: 1, 1, 64, 16>}]} {
    %cst = arith.constant 0.000000e+00 : f32
    %0 = vector.broadcast %cst : f32 to vector<64x16xf32>
    %c0 = arith.constant 0 : index
    %c0_0 = arith.constant 0 : index
    %c0_1 = arith.constant 0 : index
    %c0_2 = arith.constant 0 : index
    %c0_3 = arith.constant 0 : index
    %1 = vector.load %arg2[%c0, %c0_0, %c0_1, %c0_2, %c0_3] : memref<1x1x10x10x8xbf16, #tpu.memory_space<vmem>>, vector<1x1x10x10x8xbf16>
    %2 = vector.shape_cast %1 : vector<1x1x10x10x8xbf16> to vector<10x10x8xbf16>
    %3 = vector.extract_strided_slice %2 {offsets = [0, 0, 0], sizes = [8, 8, 8], strides = [1, 1, 1]} : vector<10x10x8xbf16> to vector<8x8x8xbf16>
    %4 = vector.shape_cast %3 : vector<8x8x8xbf16> to vector<64x8xbf16>
    %c0_4 = arith.constant 0 : index
    %c0_5 = arith.constant 0 : index
    %c0_6 = arith.constant 0 : index
    %5 = vector.load %arg5[%c0_4, %c0_5, %c0_6] : memref<27x8x16xbf16, #tpu.memory_space<vmem>>, vector<1x8x16xbf16>
    %6 = vector.shape_cast %5 : vector<1x8x16xbf16> to vector<8x16xbf16>
    %cst_7 = arith.constant dense<0.000000e+00> : vector<64x16xf32>
    %7 = tpu.matmul %4, %6, %cst_7 {dimension_numbers = #tpu.dot_dimension_numbers<[1], [0], [0], [1], [0, 0, 1, 1], [], []>} : vector<64x8xbf16>, vector<8x16xbf16>, vector<64x16xf32> -> vector<64x16xf32>
    %8 = arith.addf %0, %7 : vector<64x16xf32>
    %9 = vector.extract_strided_slice %2 {offsets = [0, 1, 0], sizes = [8, 8, 8], strides = [1, 1, 1]} : vector<10x10x8xbf16> to vector<8x8x8xbf16>
    %10 = vector.shape_cast %9 : vector<8x8x8xbf16> to vector<64x8xbf16>
    %c1 = arith.constant 1 : index
    %c0_8 = arith.constant 0 : index
    %c0_9 = arith.constant 0 : index
    %11 = vector.load %arg5[%c1, %c0_8, %c0_9] : memref<27x8x16xbf16, #tpu.memory_space<vmem>>, vector<1x8x16xbf16>
    %12 = vector.shape_cast %11 : vector<1x8x16xbf16> to vector<8x16xbf16>
    %cst_10 = arith.constant dense<0.000000e+00> : vector<64x16xf32>
    %13 = tpu.matmul %10, %12, %cst_10 {dimension_numbers = #tpu.dot_dimension_numbers<[1], [0], [0], [1], [0, 0, 1, 1], [], []>} : vector<64x8xbf16>, vector<8x16xbf16>, vector<64x16xf32> -> vector<64x16xf32>
    %14 = arith.addf %8, %13 : vector<64x16xf32>
    %15 = vector.extract_strided_slice %2 {offsets = [0, 2, 0], sizes = [8, 8, 8], strides = [1, 1, 1]} : vector<10x10x8xbf16> to vector<8x8x8xbf16>
    %16 = vector.shape_cast %15 : vector<8x8x8xbf16> to vector<64x8xbf16>
    %c2 = arith.constant 2 : index
    %c0_11 = arith.constant 0 : index
    %c0_12 = arith.constant 0 : index
    %17 = vector.load %arg5[%c2, %c0_11, %c0_12] : memref<27x8x16xbf16, #tpu.memory_space<vmem>>, vector<1x8x16xbf16>
    %18 = vector.shape_cast %17 : vector<1x8x16xbf16> to vector<8x16xbf16>
    %cst_13 = arith.constant dense<0.000000e+00> : vector<64x16xf32>
    %19 = tpu.matmul %16, %18, %cst_13 {dimension_numbers = #tpu.dot_dimension_numbers<[1], [0], [0], [1], [0, 0, 1, 1], [], []>} : vector<64x8xbf16>, vector<8x16xbf16>, vector<64x16xf32> -> vector<64x16xf32>
    %20 = arith.addf %14, %19 : vector<64x16xf32>
    %21 = vector.extract_strided_slice %2 {offsets = [1, 0, 0], sizes = [8, 8, 8], strides = [1, 1, 1]} : vector<10x10x8xbf16> to vector<8x8x8xbf16>
    %22 = vector.shape_cast %21 : vector<8x8x8xbf16> to vector<64x8xbf16>
    %c3 = arith.constant 3 : index
    %c0_14 = arith.constant 0 : index
    %c0_15 = arith.constant 0 : index
    %23 = vector.load %arg5[%c3, %c0_14, %c0_15] : memref<27x8x16xbf16, #tpu.memory_space<vmem>>, vector<1x8x16xbf16>
    %24 = vector.shape_cast %23 : vector<1x8x16xbf16> to vector<8x16xbf16>
    %cst_16 = arith.constant dense<0.000000e+00> : vector<64x16xf32>
    %25 = tpu.matmul %22, %24, %cst_16 {dimension_numbers = #tpu.dot_dimension_numbers<[1], [0], [0], [1], [0, 0, 1, 1], [], []>} : vector<64x8xbf16>, vector<8x16xbf16>, vector<64x16xf32> -> vector<64x16xf32>
    %26 = arith.addf %20, %25 : vector<64x16xf32>
    %27 = vector.extract_strided_slice %2 {offsets = [1, 1, 0], sizes = [8, 8, 8], strides = [1, 1, 1]} : vector<10x10x8xbf16> to vector<8x8x8xbf16>
    %28 = vector.shape_cast %27 : vector<8x8x8xbf16> to vector<64x8xbf16>
    %c4 = arith.constant 4 : index
    %c0_17 = arith.constant 0 : index
    %c0_18 = arith.constant 0 : index
    %29 = vector.load %arg5[%c4, %c0_17, %c0_18] : memref<27x8x16xbf16, #tpu.memory_space<vmem>>, vector<1x8x16xbf16>
    %30 = vector.shape_cast %29 : vector<1x8x16xbf16> to vector<8x16xbf16>
    %cst_19 = arith.constant dense<0.000000e+00> : vector<64x16xf32>
    %31 = tpu.matmul %28, %30, %cst_19 {dimension_numbers = #tpu.dot_dimension_numbers<[1], [0], [0], [1], [0, 0, 1, 1], [], []>} : vector<64x8xbf16>, vector<8x16xbf16>, vector<64x16xf32> -> vector<64x16xf32>
    %32 = arith.addf %26, %31 : vector<64x16xf32>
    %33 = vector.extract_strided_slice %2 {offsets = [1, 2, 0], sizes = [8, 8, 8], strides = [1, 1, 1]} : vector<10x10x8xbf16> to vector<8x8x8xbf16>
    %34 = vector.shape_cast %33 : vector<8x8x8xbf16> to vector<64x8xbf16>
    %c5 = arith.constant 5 : index
    %c0_20 = arith.constant 0 : index
    %c0_21 = arith.constant 0 : index
    %35 = vector.load %arg5[%c5, %c0_20, %c0_21] : memref<27x8x16xbf16, #tpu.memory_space<vmem>>, vector<1x8x16xbf16>
    %36 = vector.shape_cast %35 : vector<1x8x16xbf16> to vector<8x16xbf16>
    %cst_22 = arith.constant dense<0.000000e+00> : vector<64x16xf32>
    %37 = tpu.matmul %34, %36, %cst_22 {dimension_numbers = #tpu.dot_dimension_numbers<[1], [0], [0], [1], [0, 0, 1, 1], [], []>} : vector<64x8xbf16>, vector<8x16xbf16>, vector<64x16xf32> -> vector<64x16xf32>
    %38 = arith.addf %32, %37 : vector<64x16xf32>
    %39 = vector.extract_strided_slice %2 {offsets = [2, 0, 0], sizes = [8, 8, 8], strides = [1, 1, 1]} : vector<10x10x8xbf16> to vector<8x8x8xbf16>
    %40 = vector.shape_cast %39 : vector<8x8x8xbf16> to vector<64x8xbf16>
    %c6 = arith.constant 6 : index
    %c0_23 = arith.constant 0 : index
    %c0_24 = arith.constant 0 : index
    %41 = vector.load %arg5[%c6, %c0_23, %c0_24] : memref<27x8x16xbf16, #tpu.memory_space<vmem>>, vector<1x8x16xbf16>
    %42 = vector.shape_cast %41 : vector<1x8x16xbf16> to vector<8x16xbf16>
    %cst_25 = arith.constant dense<0.000000e+00> : vector<64x16xf32>
    %43 = tpu.matmul %40, %42, %cst_25 {dimension_numbers = #tpu.dot_dimension_numbers<[1], [0], [0], [1], [0, 0, 1, 1], [], []>} : vector<64x8xbf16>, vector<8x16xbf16>, vector<64x16xf32> -> vector<64x16xf32>
    %44 = arith.addf %38, %43 : vector<64x16xf32>
    %45 = vector.extract_strided_slice %2 {offsets = [2, 1, 0], sizes = [8, 8, 8], strides = [1, 1, 1]} : vector<10x10x8xbf16> to vector<8x8x8xbf16>
    %46 = vector.shape_cast %45 : vector<8x8x8xbf16> to vector<64x8xbf16>
    %c7 = arith.constant 7 : index
    %c0_26 = arith.constant 0 : index
    %c0_27 = arith.constant 0 : index
    %47 = vector.load %arg5[%c7, %c0_26, %c0_27] : memref<27x8x16xbf16, #tpu.memory_space<vmem>>, vector<1x8x16xbf16>
    %48 = vector.shape_cast %47 : vector<1x8x16xbf16> to vector<8x16xbf16>
    %cst_28 = arith.constant dense<0.000000e+00> : vector<64x16xf32>
    %49 = tpu.matmul %46, %48, %cst_28 {dimension_numbers = #tpu.dot_dimension_numbers<[1], [0], [0], [1], [0, 0, 1, 1], [], []>} : vector<64x8xbf16>, vector<8x16xbf16>, vector<64x16xf32> -> vector<64x16xf32>
    %50 = arith.addf %44, %49 : vector<64x16xf32>
    %51 = vector.extract_strided_slice %2 {offsets = [2, 2, 0], sizes = [8, 8, 8], strides = [1, 1, 1]} : vector<10x10x8xbf16> to vector<8x8x8xbf16>
    %52 = vector.shape_cast %51 : vector<8x8x8xbf16> to vector<64x8xbf16>
    %c8 = arith.constant 8 : index
    %c0_29 = arith.constant 0 : index
    %c0_30 = arith.constant 0 : index
    %53 = vector.load %arg5[%c8, %c0_29, %c0_30] : memref<27x8x16xbf16, #tpu.memory_space<vmem>>, vector<1x8x16xbf16>
    %54 = vector.shape_cast %53 : vector<1x8x16xbf16> to vector<8x16xbf16>
    %cst_31 = arith.constant dense<0.000000e+00> : vector<64x16xf32>
    %55 = tpu.matmul %52, %54, %cst_31 {dimension_numbers = #tpu.dot_dimension_numbers<[1], [0], [0], [1], [0, 0, 1, 1], [], []>} : vector<64x8xbf16>, vector<8x16xbf16>, vector<64x16xf32> -> vector<64x16xf32>
    %56 = arith.addf %50, %55 : vector<64x16xf32>
    %c0_32 = arith.constant 0 : index
    %c0_33 = arith.constant 0 : index
    %c0_34 = arith.constant 0 : index
    %c0_35 = arith.constant 0 : index
    %c0_36 = arith.constant 0 : index
    %57 = vector.load %arg3[%c0_32, %c0_33, %c0_34, %c0_35, %c0_36] : memref<1x1x10x10x8xbf16, #tpu.memory_space<vmem>>, vector<1x1x10x10x8xbf16>
    %58 = vector.shape_cast %57 : vector<1x1x10x10x8xbf16> to vector<10x10x8xbf16>
    %59 = vector.extract_strided_slice %58 {offsets = [0, 0, 0], sizes = [8, 8, 8], strides = [1, 1, 1]} : vector<10x10x8xbf16> to vector<8x8x8xbf16>
    %60 = vector.shape_cast %59 : vector<8x8x8xbf16> to vector<64x8xbf16>
    %c9 = arith.constant 9 : index
    %c0_37 = arith.constant 0 : index
    %c0_38 = arith.constant 0 : index
    %61 = vector.load %arg5[%c9, %c0_37, %c0_38] : memref<27x8x16xbf16, #tpu.memory_space<vmem>>, vector<1x8x16xbf16>
    %62 = vector.shape_cast %61 : vector<1x8x16xbf16> to vector<8x16xbf16>
    %cst_39 = arith.constant dense<0.000000e+00> : vector<64x16xf32>
    %63 = tpu.matmul %60, %62, %cst_39 {dimension_numbers = #tpu.dot_dimension_numbers<[1], [0], [0], [1], [0, 0, 1, 1], [], []>} : vector<64x8xbf16>, vector<8x16xbf16>, vector<64x16xf32> -> vector<64x16xf32>
    %64 = arith.addf %56, %63 : vector<64x16xf32>
    %65 = vector.extract_strided_slice %58 {offsets = [0, 1, 0], sizes = [8, 8, 8], strides = [1, 1, 1]} : vector<10x10x8xbf16> to vector<8x8x8xbf16>
    %66 = vector.shape_cast %65 : vector<8x8x8xbf16> to vector<64x8xbf16>
    %c10 = arith.constant 10 : index
    %c0_40 = arith.constant 0 : index
    %c0_41 = arith.constant 0 : index
    %67 = vector.load %arg5[%c10, %c0_40, %c0_41] : memref<27x8x16xbf16, #tpu.memory_space<vmem>>, vector<1x8x16xbf16>
    %68 = vector.shape_cast %67 : vector<1x8x16xbf16> to vector<8x16xbf16>
    %cst_42 = arith.constant dense<0.000000e+00> : vector<64x16xf32>
    %69 = tpu.matmul %66, %68, %cst_42 {dimension_numbers = #tpu.dot_dimension_numbers<[1], [0], [0], [1], [0, 0, 1, 1], [], []>} : vector<64x8xbf16>, vector<8x16xbf16>, vector<64x16xf32> -> vector<64x16xf32>
    %70 = arith.addf %64, %69 : vector<64x16xf32>
    %71 = vector.extract_strided_slice %58 {offsets = [0, 2, 0], sizes = [8, 8, 8], strides = [1, 1, 1]} : vector<10x10x8xbf16> to vector<8x8x8xbf16>
    %72 = vector.shape_cast %71 : vector<8x8x8xbf16> to vector<64x8xbf16>
    %c11 = arith.constant 11 : index
    %c0_43 = arith.constant 0 : index
    %c0_44 = arith.constant 0 : index
    %73 = vector.load %arg5[%c11, %c0_43, %c0_44] : memref<27x8x16xbf16, #tpu.memory_space<vmem>>, vector<1x8x16xbf16>
    %74 = vector.shape_cast %73 : vector<1x8x16xbf16> to vector<8x16xbf16>
    %cst_45 = arith.constant dense<0.000000e+00> : vector<64x16xf32>
    %75 = tpu.matmul %72, %74, %cst_45 {dimension_numbers = #tpu.dot_dimension_numbers<[1], [0], [0], [1], [0, 0, 1, 1], [], []>} : vector<64x8xbf16>, vector<8x16xbf16>, vector<64x16xf32> -> vector<64x16xf32>
    %76 = arith.addf %70, %75 : vector<64x16xf32>
    %77 = vector.extract_strided_slice %58 {offsets = [1, 0, 0], sizes = [8, 8, 8], strides = [1, 1, 1]} : vector<10x10x8xbf16> to vector<8x8x8xbf16>
    %78 = vector.shape_cast %77 : vector<8x8x8xbf16> to vector<64x8xbf16>
    %c12 = arith.constant 12 : index
    %c0_46 = arith.constant 0 : index
    %c0_47 = arith.constant 0 : index
    %79 = vector.load %arg5[%c12, %c0_46, %c0_47] : memref<27x8x16xbf16, #tpu.memory_space<vmem>>, vector<1x8x16xbf16>
    %80 = vector.shape_cast %79 : vector<1x8x16xbf16> to vector<8x16xbf16>
    %cst_48 = arith.constant dense<0.000000e+00> : vector<64x16xf32>
    %81 = tpu.matmul %78, %80, %cst_48 {dimension_numbers = #tpu.dot_dimension_numbers<[1], [0], [0], [1], [0, 0, 1, 1], [], []>} : vector<64x8xbf16>, vector<8x16xbf16>, vector<64x16xf32> -> vector<64x16xf32>
    %82 = arith.addf %76, %81 : vector<64x16xf32>
    %83 = vector.extract_strided_slice %58 {offsets = [1, 1, 0], sizes = [8, 8, 8], strides = [1, 1, 1]} : vector<10x10x8xbf16> to vector<8x8x8xbf16>
    %84 = vector.shape_cast %83 : vector<8x8x8xbf16> to vector<64x8xbf16>
    %c13 = arith.constant 13 : index
    %c0_49 = arith.constant 0 : index
    %c0_50 = arith.constant 0 : index
    %85 = vector.load %arg5[%c13, %c0_49, %c0_50] : memref<27x8x16xbf16, #tpu.memory_space<vmem>>, vector<1x8x16xbf16>
    %86 = vector.shape_cast %85 : vector<1x8x16xbf16> to vector<8x16xbf16>
    %cst_51 = arith.constant dense<0.000000e+00> : vector<64x16xf32>
    %87 = tpu.matmul %84, %86, %cst_51 {dimension_numbers = #tpu.dot_dimension_numbers<[1], [0], [0], [1], [0, 0, 1, 1], [], []>} : vector<64x8xbf16>, vector<8x16xbf16>, vector<64x16xf32> -> vector<64x16xf32>
    %88 = arith.addf %82, %87 : vector<64x16xf32>
    %89 = vector.extract_strided_slice %58 {offsets = [1, 2, 0], sizes = [8, 8, 8], strides = [1, 1, 1]} : vector<10x10x8xbf16> to vector<8x8x8xbf16>
    %90 = vector.shape_cast %89 : vector<8x8x8xbf16> to vector<64x8xbf16>
    %c14 = arith.constant 14 : index
    %c0_52 = arith.constant 0 : index
    %c0_53 = arith.constant 0 : index
    %91 = vector.load %arg5[%c14, %c0_52, %c0_53] : memref<27x8x16xbf16, #tpu.memory_space<vmem>>, vector<1x8x16xbf16>
    %92 = vector.shape_cast %91 : vector<1x8x16xbf16> to vector<8x16xbf16>
    %cst_54 = arith.constant dense<0.000000e+00> : vector<64x16xf32>
    %93 = tpu.matmul %90, %92, %cst_54 {dimension_numbers = #tpu.dot_dimension_numbers<[1], [0], [0], [1], [0, 0, 1, 1], [], []>} : vector<64x8xbf16>, vector<8x16xbf16>, vector<64x16xf32> -> vector<64x16xf32>
    %94 = arith.addf %88, %93 : vector<64x16xf32>
    %95 = vector.extract_strided_slice %58 {offsets = [2, 0, 0], sizes = [8, 8, 8], strides = [1, 1, 1]} : vector<10x10x8xbf16> to vector<8x8x8xbf16>
    %96 = vector.shape_cast %95 : vector<8x8x8xbf16> to vector<64x8xbf16>
    %c15 = arith.constant 15 : index
    %c0_55 = arith.constant 0 : index
    %c0_56 = arith.constant 0 : index
    %97 = vector.load %arg5[%c15, %c0_55, %c0_56] : memref<27x8x16xbf16, #tpu.memory_space<vmem>>, vector<1x8x16xbf16>
    %98 = vector.shape_cast %97 : vector<1x8x16xbf16> to vector<8x16xbf16>
    %cst_57 = arith.constant dense<0.000000e+00> : vector<64x16xf32>
    %99 = tpu.matmul %96, %98, %cst_57 {dimension_numbers = #tpu.dot_dimension_numbers<[1], [0], [0], [1], [0, 0, 1, 1], [], []>} : vector<64x8xbf16>, vector<8x16xbf16>, vector<64x16xf32> -> vector<64x16xf32>
    %100 = arith.addf %94, %99 : vector<64x16xf32>
    %101 = vector.extract_strided_slice %58 {offsets = [2, 1, 0], sizes = [8, 8, 8], strides = [1, 1, 1]} : vector<10x10x8xbf16> to vector<8x8x8xbf16>
    %102 = vector.shape_cast %101 : vector<8x8x8xbf16> to vector<64x8xbf16>
    %c16 = arith.constant 16 : index
    %c0_58 = arith.constant 0 : index
    %c0_59 = arith.constant 0 : index
    %103 = vector.load %arg5[%c16, %c0_58, %c0_59] : memref<27x8x16xbf16, #tpu.memory_space<vmem>>, vector<1x8x16xbf16>
    %104 = vector.shape_cast %103 : vector<1x8x16xbf16> to vector<8x16xbf16>
    %cst_60 = arith.constant dense<0.000000e+00> : vector<64x16xf32>
    %105 = tpu.matmul %102, %104, %cst_60 {dimension_numbers = #tpu.dot_dimension_numbers<[1], [0], [0], [1], [0, 0, 1, 1], [], []>} : vector<64x8xbf16>, vector<8x16xbf16>, vector<64x16xf32> -> vector<64x16xf32>
    %106 = arith.addf %100, %105 : vector<64x16xf32>
    %107 = vector.extract_strided_slice %58 {offsets = [2, 2, 0], sizes = [8, 8, 8], strides = [1, 1, 1]} : vector<10x10x8xbf16> to vector<8x8x8xbf16>
    %108 = vector.shape_cast %107 : vector<8x8x8xbf16> to vector<64x8xbf16>
    %c17 = arith.constant 17 : index
    %c0_61 = arith.constant 0 : index
    %c0_62 = arith.constant 0 : index
    %109 = vector.load %arg5[%c17, %c0_61, %c0_62] : memref<27x8x16xbf16, #tpu.memory_space<vmem>>, vector<1x8x16xbf16>
    %110 = vector.shape_cast %109 : vector<1x8x16xbf16> to vector<8x16xbf16>
    %cst_63 = arith.constant dense<0.000000e+00> : vector<64x16xf32>
    %111 = tpu.matmul %108, %110, %cst_63 {dimension_numbers = #tpu.dot_dimension_numbers<[1], [0], [0], [1], [0, 0, 1, 1], [], []>} : vector<64x8xbf16>, vector<8x16xbf16>, vector<64x16xf32> -> vector<64x16xf32>
    %112 = arith.addf %106, %111 : vector<64x16xf32>
    %c0_64 = arith.constant 0 : index
    %c0_65 = arith.constant 0 : index
    %c0_66 = arith.constant 0 : index
    %c0_67 = arith.constant 0 : index
    %c0_68 = arith.constant 0 : index
    %113 = vector.load %arg4[%c0_64, %c0_65, %c0_66, %c0_67, %c0_68] : memref<1x1x10x10x8xbf16, #tpu.memory_space<vmem>>, vector<1x1x10x10x8xbf16>
    %114 = vector.shape_cast %113 : vector<1x1x10x10x8xbf16> to vector<10x10x8xbf16>
    %115 = vector.extract_strided_slice %114 {offsets = [0, 0, 0], sizes = [8, 8, 8], strides = [1, 1, 1]} : vector<10x10x8xbf16> to vector<8x8x8xbf16>
    %116 = vector.shape_cast %115 : vector<8x8x8xbf16> to vector<64x8xbf16>
    %c18 = arith.constant 18 : index
    %c0_69 = arith.constant 0 : index
    %c0_70 = arith.constant 0 : index
    %117 = vector.load %arg5[%c18, %c0_69, %c0_70] : memref<27x8x16xbf16, #tpu.memory_space<vmem>>, vector<1x8x16xbf16>
    %118 = vector.shape_cast %117 : vector<1x8x16xbf16> to vector<8x16xbf16>
    %cst_71 = arith.constant dense<0.000000e+00> : vector<64x16xf32>
    %119 = tpu.matmul %116, %118, %cst_71 {dimension_numbers = #tpu.dot_dimension_numbers<[1], [0], [0], [1], [0, 0, 1, 1], [], []>} : vector<64x8xbf16>, vector<8x16xbf16>, vector<64x16xf32> -> vector<64x16xf32>
    %120 = arith.addf %112, %119 : vector<64x16xf32>
    %121 = vector.extract_strided_slice %114 {offsets = [0, 1, 0], sizes = [8, 8, 8], strides = [1, 1, 1]} : vector<10x10x8xbf16> to vector<8x8x8xbf16>
    %122 = vector.shape_cast %121 : vector<8x8x8xbf16> to vector<64x8xbf16>
    %c19 = arith.constant 19 : index
    %c0_72 = arith.constant 0 : index
    %c0_73 = arith.constant 0 : index
    %123 = vector.load %arg5[%c19, %c0_72, %c0_73] : memref<27x8x16xbf16, #tpu.memory_space<vmem>>, vector<1x8x16xbf16>
    %124 = vector.shape_cast %123 : vector<1x8x16xbf16> to vector<8x16xbf16>
    %cst_74 = arith.constant dense<0.000000e+00> : vector<64x16xf32>
    %125 = tpu.matmul %122, %124, %cst_74 {dimension_numbers = #tpu.dot_dimension_numbers<[1], [0], [0], [1], [0, 0, 1, 1], [], []>} : vector<64x8xbf16>, vector<8x16xbf16>, vector<64x16xf32> -> vector<64x16xf32>
    %126 = arith.addf %120, %125 : vector<64x16xf32>
    %127 = vector.extract_strided_slice %114 {offsets = [0, 2, 0], sizes = [8, 8, 8], strides = [1, 1, 1]} : vector<10x10x8xbf16> to vector<8x8x8xbf16>
    %128 = vector.shape_cast %127 : vector<8x8x8xbf16> to vector<64x8xbf16>
    %c20 = arith.constant 20 : index
    %c0_75 = arith.constant 0 : index
    %c0_76 = arith.constant 0 : index
    %129 = vector.load %arg5[%c20, %c0_75, %c0_76] : memref<27x8x16xbf16, #tpu.memory_space<vmem>>, vector<1x8x16xbf16>
    %130 = vector.shape_cast %129 : vector<1x8x16xbf16> to vector<8x16xbf16>
    %cst_77 = arith.constant dense<0.000000e+00> : vector<64x16xf32>
    %131 = tpu.matmul %128, %130, %cst_77 {dimension_numbers = #tpu.dot_dimension_numbers<[1], [0], [0], [1], [0, 0, 1, 1], [], []>} : vector<64x8xbf16>, vector<8x16xbf16>, vector<64x16xf32> -> vector<64x16xf32>
    %132 = arith.addf %126, %131 : vector<64x16xf32>
    %133 = vector.extract_strided_slice %114 {offsets = [1, 0, 0], sizes = [8, 8, 8], strides = [1, 1, 1]} : vector<10x10x8xbf16> to vector<8x8x8xbf16>
    %134 = vector.shape_cast %133 : vector<8x8x8xbf16> to vector<64x8xbf16>
    %c21 = arith.constant 21 : index
    %c0_78 = arith.constant 0 : index
    %c0_79 = arith.constant 0 : index
    %135 = vector.load %arg5[%c21, %c0_78, %c0_79] : memref<27x8x16xbf16, #tpu.memory_space<vmem>>, vector<1x8x16xbf16>
    %136 = vector.shape_cast %135 : vector<1x8x16xbf16> to vector<8x16xbf16>
    %cst_80 = arith.constant dense<0.000000e+00> : vector<64x16xf32>
    %137 = tpu.matmul %134, %136, %cst_80 {dimension_numbers = #tpu.dot_dimension_numbers<[1], [0], [0], [1], [0, 0, 1, 1], [], []>} : vector<64x8xbf16>, vector<8x16xbf16>, vector<64x16xf32> -> vector<64x16xf32>
    %138 = arith.addf %132, %137 : vector<64x16xf32>
    %139 = vector.extract_strided_slice %114 {offsets = [1, 1, 0], sizes = [8, 8, 8], strides = [1, 1, 1]} : vector<10x10x8xbf16> to vector<8x8x8xbf16>
    %140 = vector.shape_cast %139 : vector<8x8x8xbf16> to vector<64x8xbf16>
    %c22 = arith.constant 22 : index
    %c0_81 = arith.constant 0 : index
    %c0_82 = arith.constant 0 : index
    %141 = vector.load %arg5[%c22, %c0_81, %c0_82] : memref<27x8x16xbf16, #tpu.memory_space<vmem>>, vector<1x8x16xbf16>
    %142 = vector.shape_cast %141 : vector<1x8x16xbf16> to vector<8x16xbf16>
    %cst_83 = arith.constant dense<0.000000e+00> : vector<64x16xf32>
    %143 = tpu.matmul %140, %142, %cst_83 {dimension_numbers = #tpu.dot_dimension_numbers<[1], [0], [0], [1], [0, 0, 1, 1], [], []>} : vector<64x8xbf16>, vector<8x16xbf16>, vector<64x16xf32> -> vector<64x16xf32>
    %144 = arith.addf %138, %143 : vector<64x16xf32>
    %145 = vector.extract_strided_slice %114 {offsets = [1, 2, 0], sizes = [8, 8, 8], strides = [1, 1, 1]} : vector<10x10x8xbf16> to vector<8x8x8xbf16>
    %146 = vector.shape_cast %145 : vector<8x8x8xbf16> to vector<64x8xbf16>
    %c23 = arith.constant 23 : index
    %c0_84 = arith.constant 0 : index
    %c0_85 = arith.constant 0 : index
    %147 = vector.load %arg5[%c23, %c0_84, %c0_85] : memref<27x8x16xbf16, #tpu.memory_space<vmem>>, vector<1x8x16xbf16>
    %148 = vector.shape_cast %147 : vector<1x8x16xbf16> to vector<8x16xbf16>
    %cst_86 = arith.constant dense<0.000000e+00> : vector<64x16xf32>
    %149 = tpu.matmul %146, %148, %cst_86 {dimension_numbers = #tpu.dot_dimension_numbers<[1], [0], [0], [1], [0, 0, 1, 1], [], []>} : vector<64x8xbf16>, vector<8x16xbf16>, vector<64x16xf32> -> vector<64x16xf32>
    %150 = arith.addf %144, %149 : vector<64x16xf32>
    %151 = vector.extract_strided_slice %114 {offsets = [2, 0, 0], sizes = [8, 8, 8], strides = [1, 1, 1]} : vector<10x10x8xbf16> to vector<8x8x8xbf16>
    %152 = vector.shape_cast %151 : vector<8x8x8xbf16> to vector<64x8xbf16>
    %c24 = arith.constant 24 : index
    %c0_87 = arith.constant 0 : index
    %c0_88 = arith.constant 0 : index
    %153 = vector.load %arg5[%c24, %c0_87, %c0_88] : memref<27x8x16xbf16, #tpu.memory_space<vmem>>, vector<1x8x16xbf16>
    %154 = vector.shape_cast %153 : vector<1x8x16xbf16> to vector<8x16xbf16>
    %cst_89 = arith.constant dense<0.000000e+00> : vector<64x16xf32>
    %155 = tpu.matmul %152, %154, %cst_89 {dimension_numbers = #tpu.dot_dimension_numbers<[1], [0], [0], [1], [0, 0, 1, 1], [], []>} : vector<64x8xbf16>, vector<8x16xbf16>, vector<64x16xf32> -> vector<64x16xf32>
    %156 = arith.addf %150, %155 : vector<64x16xf32>
    %157 = vector.extract_strided_slice %114 {offsets = [2, 1, 0], sizes = [8, 8, 8], strides = [1, 1, 1]} : vector<10x10x8xbf16> to vector<8x8x8xbf16>
    %158 = vector.shape_cast %157 : vector<8x8x8xbf16> to vector<64x8xbf16>
    %c25 = arith.constant 25 : index
    %c0_90 = arith.constant 0 : index
    %c0_91 = arith.constant 0 : index
    %159 = vector.load %arg5[%c25, %c0_90, %c0_91] : memref<27x8x16xbf16, #tpu.memory_space<vmem>>, vector<1x8x16xbf16>
    %160 = vector.shape_cast %159 : vector<1x8x16xbf16> to vector<8x16xbf16>
    %cst_92 = arith.constant dense<0.000000e+00> : vector<64x16xf32>
    %161 = tpu.matmul %158, %160, %cst_92 {dimension_numbers = #tpu.dot_dimension_numbers<[1], [0], [0], [1], [0, 0, 1, 1], [], []>} : vector<64x8xbf16>, vector<8x16xbf16>, vector<64x16xf32> -> vector<64x16xf32>
    %162 = arith.addf %156, %161 : vector<64x16xf32>
    %163 = vector.extract_strided_slice %114 {offsets = [2, 2, 0], sizes = [8, 8, 8], strides = [1, 1, 1]} : vector<10x10x8xbf16> to vector<8x8x8xbf16>
    %164 = vector.shape_cast %163 : vector<8x8x8xbf16> to vector<64x8xbf16>
    %c26 = arith.constant 26 : index
    %c0_93 = arith.constant 0 : index
    %c0_94 = arith.constant 0 : index
    %165 = vector.load %arg5[%c26, %c0_93, %c0_94] : memref<27x8x16xbf16, #tpu.memory_space<vmem>>, vector<1x8x16xbf16>
    %166 = vector.shape_cast %165 : vector<1x8x16xbf16> to vector<8x16xbf16>
    %cst_95 = arith.constant dense<0.000000e+00> : vector<64x16xf32>
    %167 = tpu.matmul %164, %166, %cst_95 {dimension_numbers = #tpu.dot_dimension_numbers<[1], [0], [0], [1], [0, 0, 1, 1], [], []>} : vector<64x8xbf16>, vector<8x16xbf16>, vector<64x16xf32> -> vector<64x16xf32>
    %168 = arith.addf %162, %167 : vector<64x16xf32>
    %c0_96 = arith.constant 0 : index
    %c0_97 = arith.constant 0 : index
    %169 = vector.load %arg6[%c0_96, %c0_97] : memref<1x16xf32, #tpu.memory_space<vmem>>, vector<1x16xf32>
    %170 = vector.broadcast %169 : vector<1x16xf32> to vector<64x16xf32>
    %171 = arith.addf %168, %170 : vector<64x16xf32>
    %cst_98 = arith.constant 0.000000e+00 : f32
    %172 = vector.broadcast %cst_98 : f32 to vector<64x16xf32>
    %173 = arith.maximumf %171, %172 : vector<64x16xf32>
    %c0_99 = arith.constant 0 : index
    %c0_100 = arith.constant 0 : index
    %c0_101 = arith.constant 0 : index
    %c0_102 = arith.constant 0 : index
    %174 = vector.load %arg7[%c0_99, %c0_100, %c0_101, %c0_102] : memref<1x1x64x16xf32, #tpu.memory_space<vmem>>, vector<1x1x64x16xf32>
    %175 = vector.shape_cast %174 : vector<1x1x64x16xf32> to vector<64x16xf32>
    %176 = vector.shape_cast %173 : vector<64x16xf32> to vector<1x1x64x16xf32>
    tpu.vector_store %arg7[%c0_99, %c0_100, %c0_101, %c0_102], %176 {strides = array<i32>} : memref<1x1x64x16xf32, #tpu.memory_space<vmem>>, vector<1x1x64x16xf32>,
    return
  }
  func.func @transform_0(%arg0: i32, %arg1: i32) -> (i32, i32, i32, i32, i32) {
    %c0_i32 = arith.constant 0 : i32
    %0 = arith.addi %arg1, %c0_i32 : i32
    %c0_i32_0 = arith.constant 0 : i32
    %c0_i32_1 = arith.constant 0 : i32
    %c0_i32_2 = arith.constant 0 : i32
    %c0_i32_3 = arith.constant 0 : i32
    return %arg0, %0, %c0_i32_0, %c0_i32_1, %c0_i32_2 : i32, i32, i32, i32, i32
  }
  func.func @transform_1(%arg0: i32, %arg1: i32) -> (i32, i32, i32, i32, i32) {
    %c1_i32 = arith.constant 1 : i32
    %0 = arith.addi %arg1, %c1_i32 : i32
    %c0_i32 = arith.constant 0 : i32
    %c0_i32_0 = arith.constant 0 : i32
    %c0_i32_1 = arith.constant 0 : i32
    %c0_i32_2 = arith.constant 0 : i32
    return %arg0, %0, %c0_i32, %c0_i32_0, %c0_i32_1 : i32, i32, i32, i32, i32
  }
  func.func @transform_2(%arg0: i32, %arg1: i32) -> (i32, i32, i32, i32, i32) {
    %c2_i32 = arith.constant 2 : i32
    %0 = arith.addi %arg1, %c2_i32 : i32
    %c0_i32 = arith.constant 0 : i32
    %c0_i32_0 = arith.constant 0 : i32
    %c0_i32_1 = arith.constant 0 : i32
    %c0_i32_2 = arith.constant 0 : i32
    return %arg0, %0, %c0_i32, %c0_i32_0, %c0_i32_1 : i32, i32, i32, i32, i32
  }
  func.func @transform_3(%arg0: i32, %arg1: i32) -> (i32, i32, i32) {
    %c0_i32 = arith.constant 0 : i32
    %c0_i32_0 = arith.constant 0 : i32
    %c0_i32_1 = arith.constant 0 : i32
    %c0_i32_2 = arith.constant 0 : i32
    return %c0_i32, %c0_i32_0, %c0_i32_1 : i32, i32, i32
  }
  func.func @transform_4(%arg0: i32, %arg1: i32) -> (i32, i32) {
    %c0_i32 = arith.constant 0 : i32
    %c0_i32_0 = arith.constant 0 : i32
    %c0_i32_1 = arith.constant 0 : i32
    return %c0_i32, %c0_i32_0 : i32, i32
  }
  func.func @transform_5(%arg0: i32, %arg1: i32) -> (i32, i32, i32, i32) {
    %c0_i32 = arith.constant 0 : i32
    %c0_i32_0 = arith.constant 0 : i32
    %c0_i32_1 = arith.constant 0 : i32
    return %arg0, %arg1, %c0_i32, %c0_i32_0 : i32, i32, i32, i32
  }
}

module attributes {stable_mosaic.version = 11 : i64} {
  func.func @_maxpool3_conv1x1_kernel(%arg0: i32, %arg1: i32, %arg2: memref<1x1x10x10x8xbf16, #tpu.memory_space<vmem>>, %arg3: memref<1x1x10x10x8xbf16, #tpu.memory_space<vmem>>, %arg4: memref<1x1x10x10x8xbf16, #tpu.memory_space<vmem>>, %arg5: memref<8x8xbf16, #tpu.memory_space<vmem>>, %arg6: memref<1x8xf32, #tpu.memory_space<vmem>>, %arg7: memref<1x1x64x8xf32, #tpu.memory_space<vmem>>) attributes {dimension_semantics = [#tpu.dimension_semantics<parallel>, #tpu.dimension_semantics<parallel>], iteration_bounds = array<i64: 2, 4>, scalar_prefetch = 0 : i64, scratch_operands = 0 : i64, tpu.core_type = #tpu.core_type<tc>, window_params = [{transform_indices = @transform_0, window_bounds = array<i64: 1, 1, 10, 10, 8>}, {transform_indices = @transform_1, window_bounds = array<i64: 1, 1, 10, 10, 8>}, {transform_indices = @transform_2, window_bounds = array<i64: 1, 1, 10, 10, 8>}, {pipeline_mode = #tpu.pipeline_mode<synchronous>, transform_indices = @transform_3, window_bounds = array<i64: 8, 8>}, {pipeline_mode = #tpu.pipeline_mode<synchronous>, transform_indices = @transform_4, window_bounds = array<i64: 1, 8>}, {transform_indices = @transform_5, window_bounds = array<i64: 1, 1, 64, 8>}]} {
    %c0 = arith.constant 0 : index
    %c0_0 = arith.constant 0 : index
    %c0_1 = arith.constant 0 : index
    %c0_2 = arith.constant 0 : index
    %c0_3 = arith.constant 0 : index
    %0 = vector.load %arg2[%c0, %c0_0, %c0_1, %c0_2, %c0_3] : memref<1x1x10x10x8xbf16, #tpu.memory_space<vmem>>, vector<1x1x10x10x8xbf16>
    %1 = vector.shape_cast %0 : vector<1x1x10x10x8xbf16> to vector<10x10x8xbf16>
    %2 = vector.extract_strided_slice %1 {offsets = [0, 0, 0], sizes = [8, 8, 8], strides = [1, 1, 1]} : vector<10x10x8xbf16> to vector<8x8x8xbf16>
    %3 = vector.extract_strided_slice %1 {offsets = [0, 1, 0], sizes = [8, 8, 8], strides = [1, 1, 1]} : vector<10x10x8xbf16> to vector<8x8x8xbf16>
    %4 = arith.maximumf %2, %3 : vector<8x8x8xbf16>
    %5 = vector.extract_strided_slice %1 {offsets = [0, 2, 0], sizes = [8, 8, 8], strides = [1, 1, 1]} : vector<10x10x8xbf16> to vector<8x8x8xbf16>
    %6 = arith.maximumf %4, %5 : vector<8x8x8xbf16>
    %7 = vector.extract_strided_slice %1 {offsets = [1, 0, 0], sizes = [8, 8, 8], strides = [1, 1, 1]} : vector<10x10x8xbf16> to vector<8x8x8xbf16>
    %8 = arith.maximumf %6, %7 : vector<8x8x8xbf16>
    %9 = vector.extract_strided_slice %1 {offsets = [1, 1, 0], sizes = [8, 8, 8], strides = [1, 1, 1]} : vector<10x10x8xbf16> to vector<8x8x8xbf16>
    %10 = arith.maximumf %8, %9 : vector<8x8x8xbf16>
    %11 = vector.extract_strided_slice %1 {offsets = [1, 2, 0], sizes = [8, 8, 8], strides = [1, 1, 1]} : vector<10x10x8xbf16> to vector<8x8x8xbf16>
    %12 = arith.maximumf %10, %11 : vector<8x8x8xbf16>
    %13 = vector.extract_strided_slice %1 {offsets = [2, 0, 0], sizes = [8, 8, 8], strides = [1, 1, 1]} : vector<10x10x8xbf16> to vector<8x8x8xbf16>
    %14 = arith.maximumf %12, %13 : vector<8x8x8xbf16>
    %15 = vector.extract_strided_slice %1 {offsets = [2, 1, 0], sizes = [8, 8, 8], strides = [1, 1, 1]} : vector<10x10x8xbf16> to vector<8x8x8xbf16>
    %16 = arith.maximumf %14, %15 : vector<8x8x8xbf16>
    %17 = vector.extract_strided_slice %1 {offsets = [2, 2, 0], sizes = [8, 8, 8], strides = [1, 1, 1]} : vector<10x10x8xbf16> to vector<8x8x8xbf16>
    %18 = arith.maximumf %16, %17 : vector<8x8x8xbf16>
    %c0_4 = arith.constant 0 : index
    %c0_5 = arith.constant 0 : index
    %c0_6 = arith.constant 0 : index
    %c0_7 = arith.constant 0 : index
    %c0_8 = arith.constant 0 : index
    %19 = vector.load %arg3[%c0_4, %c0_5, %c0_6, %c0_7, %c0_8] : memref<1x1x10x10x8xbf16, #tpu.memory_space<vmem>>, vector<1x1x10x10x8xbf16>
    %20 = vector.shape_cast %19 : vector<1x1x10x10x8xbf16> to vector<10x10x8xbf16>
    %21 = vector.extract_strided_slice %20 {offsets = [0, 0, 0], sizes = [8, 8, 8], strides = [1, 1, 1]} : vector<10x10x8xbf16> to vector<8x8x8xbf16>
    %22 = arith.maximumf %18, %21 : vector<8x8x8xbf16>
    %23 = vector.extract_strided_slice %20 {offsets = [0, 1, 0], sizes = [8, 8, 8], strides = [1, 1, 1]} : vector<10x10x8xbf16> to vector<8x8x8xbf16>
    %24 = arith.maximumf %22, %23 : vector<8x8x8xbf16>
    %25 = vector.extract_strided_slice %20 {offsets = [0, 2, 0], sizes = [8, 8, 8], strides = [1, 1, 1]} : vector<10x10x8xbf16> to vector<8x8x8xbf16>
    %26 = arith.maximumf %24, %25 : vector<8x8x8xbf16>
    %27 = vector.extract_strided_slice %20 {offsets = [1, 0, 0], sizes = [8, 8, 8], strides = [1, 1, 1]} : vector<10x10x8xbf16> to vector<8x8x8xbf16>
    %28 = arith.maximumf %26, %27 : vector<8x8x8xbf16>
    %29 = vector.extract_strided_slice %20 {offsets = [1, 1, 0], sizes = [8, 8, 8], strides = [1, 1, 1]} : vector<10x10x8xbf16> to vector<8x8x8xbf16>
    %30 = arith.maximumf %28, %29 : vector<8x8x8xbf16>
    %31 = vector.extract_strided_slice %20 {offsets = [1, 2, 0], sizes = [8, 8, 8], strides = [1, 1, 1]} : vector<10x10x8xbf16> to vector<8x8x8xbf16>
    %32 = arith.maximumf %30, %31 : vector<8x8x8xbf16>
    %33 = vector.extract_strided_slice %20 {offsets = [2, 0, 0], sizes = [8, 8, 8], strides = [1, 1, 1]} : vector<10x10x8xbf16> to vector<8x8x8xbf16>
    %34 = arith.maximumf %32, %33 : vector<8x8x8xbf16>
    %35 = vector.extract_strided_slice %20 {offsets = [2, 1, 0], sizes = [8, 8, 8], strides = [1, 1, 1]} : vector<10x10x8xbf16> to vector<8x8x8xbf16>
    %36 = arith.maximumf %34, %35 : vector<8x8x8xbf16>
    %37 = vector.extract_strided_slice %20 {offsets = [2, 2, 0], sizes = [8, 8, 8], strides = [1, 1, 1]} : vector<10x10x8xbf16> to vector<8x8x8xbf16>
    %38 = arith.maximumf %36, %37 : vector<8x8x8xbf16>
    %c0_9 = arith.constant 0 : index
    %c0_10 = arith.constant 0 : index
    %c0_11 = arith.constant 0 : index
    %c0_12 = arith.constant 0 : index
    %c0_13 = arith.constant 0 : index
    %39 = vector.load %arg4[%c0_9, %c0_10, %c0_11, %c0_12, %c0_13] : memref<1x1x10x10x8xbf16, #tpu.memory_space<vmem>>, vector<1x1x10x10x8xbf16>
    %40 = vector.shape_cast %39 : vector<1x1x10x10x8xbf16> to vector<10x10x8xbf16>
    %41 = vector.extract_strided_slice %40 {offsets = [0, 0, 0], sizes = [8, 8, 8], strides = [1, 1, 1]} : vector<10x10x8xbf16> to vector<8x8x8xbf16>
    %42 = arith.maximumf %38, %41 : vector<8x8x8xbf16>
    %43 = vector.extract_strided_slice %40 {offsets = [0, 1, 0], sizes = [8, 8, 8], strides = [1, 1, 1]} : vector<10x10x8xbf16> to vector<8x8x8xbf16>
    %44 = arith.maximumf %42, %43 : vector<8x8x8xbf16>
    %45 = vector.extract_strided_slice %40 {offsets = [0, 2, 0], sizes = [8, 8, 8], strides = [1, 1, 1]} : vector<10x10x8xbf16> to vector<8x8x8xbf16>
    %46 = arith.maximumf %44, %45 : vector<8x8x8xbf16>
    %47 = vector.extract_strided_slice %40 {offsets = [1, 0, 0], sizes = [8, 8, 8], strides = [1, 1, 1]} : vector<10x10x8xbf16> to vector<8x8x8xbf16>
    %48 = arith.maximumf %46, %47 : vector<8x8x8xbf16>
    %49 = vector.extract_strided_slice %40 {offsets = [1, 1, 0], sizes = [8, 8, 8], strides = [1, 1, 1]} : vector<10x10x8xbf16> to vector<8x8x8xbf16>
    %50 = arith.maximumf %48, %49 : vector<8x8x8xbf16>
    %51 = vector.extract_strided_slice %40 {offsets = [1, 2, 0], sizes = [8, 8, 8], strides = [1, 1, 1]} : vector<10x10x8xbf16> to vector<8x8x8xbf16>
    %52 = arith.maximumf %50, %51 : vector<8x8x8xbf16>
    %53 = vector.extract_strided_slice %40 {offsets = [2, 0, 0], sizes = [8, 8, 8], strides = [1, 1, 1]} : vector<10x10x8xbf16> to vector<8x8x8xbf16>
    %54 = arith.maximumf %52, %53 : vector<8x8x8xbf16>
    %55 = vector.extract_strided_slice %40 {offsets = [2, 1, 0], sizes = [8, 8, 8], strides = [1, 1, 1]} : vector<10x10x8xbf16> to vector<8x8x8xbf16>
    %56 = arith.maximumf %54, %55 : vector<8x8x8xbf16>
    %57 = vector.extract_strided_slice %40 {offsets = [2, 2, 0], sizes = [8, 8, 8], strides = [1, 1, 1]} : vector<10x10x8xbf16> to vector<8x8x8xbf16>
    %58 = arith.maximumf %56, %57 : vector<8x8x8xbf16>
    %59 = vector.shape_cast %58 : vector<8x8x8xbf16> to vector<64x8xbf16>
    %c0_14 = arith.constant 0 : index
    %c0_15 = arith.constant 0 : index
    %60 = vector.load %arg5[%c0_14, %c0_15] : memref<8x8xbf16, #tpu.memory_space<vmem>>, vector<8x8xbf16>
    %cst = arith.constant dense<0.000000e+00> : vector<64x8xf32>
    %61 = tpu.matmul %59, %60, %cst {dimension_numbers = #tpu.dot_dimension_numbers<[1], [0], [0], [1], [0, 0, 1, 1], [], []>} : vector<64x8xbf16>, vector<8x8xbf16>, vector<64x8xf32> -> vector<64x8xf32>
    %c0_16 = arith.constant 0 : index
    %c0_17 = arith.constant 0 : index
    %62 = vector.load %arg6[%c0_16, %c0_17] : memref<1x8xf32, #tpu.memory_space<vmem>>, vector<1x8xf32>
    %63 = vector.broadcast %62 : vector<1x8xf32> to vector<64x8xf32>
    %64 = arith.addf %61, %63 : vector<64x8xf32>
    %cst_18 = arith.constant 0.000000e+00 : f32
    %65 = vector.broadcast %cst_18 : f32 to vector<64x8xf32>
    %66 = arith.maximumf %64, %65 : vector<64x8xf32>
    %c0_19 = arith.constant 0 : index
    %c0_20 = arith.constant 0 : index
    %c0_21 = arith.constant 0 : index
    %c0_22 = arith.constant 0 : index
    %67 = vector.load %arg7[%c0_19, %c0_20, %c0_21, %c0_22] : memref<1x1x64x8xf32, #tpu.memory_space<vmem>>, vector<1x1x64x8xf32>
    %68 = vector.shape_cast %67 : vector<1x1x64x8xf32> to vector<64x8xf32>
    %69 = vector.shape_cast %66 : vector<64x8xf32> to vector<1x1x64x8xf32>
    tpu.vector_store %arg7[%c0_19, %c0_20, %c0_21, %c0_22], %69 {strides = array<i32>} : memref<1x1x64x8xf32, #tpu.memory_space<vmem>>, vector<1x1x64x8xf32>,
    return
  }
  func.func @transform_0(%arg0: i32, %arg1: i32) -> (i32, i32, i32, i32, i32) {
    %c0_i32 = arith.constant 0 : i32
    %0 = arith.addi %arg1, %c0_i32 : i32
    %c0_i32_0 = arith.constant 0 : i32
    %c0_i32_1 = arith.constant 0 : i32
    %c0_i32_2 = arith.constant 0 : i32
    %c0_i32_3 = arith.constant 0 : i32
    return %arg0, %0, %c0_i32_0, %c0_i32_1, %c0_i32_2 : i32, i32, i32, i32, i32
  }
  func.func @transform_1(%arg0: i32, %arg1: i32) -> (i32, i32, i32, i32, i32) {
    %c1_i32 = arith.constant 1 : i32
    %0 = arith.addi %arg1, %c1_i32 : i32
    %c0_i32 = arith.constant 0 : i32
    %c0_i32_0 = arith.constant 0 : i32
    %c0_i32_1 = arith.constant 0 : i32
    %c0_i32_2 = arith.constant 0 : i32
    return %arg0, %0, %c0_i32, %c0_i32_0, %c0_i32_1 : i32, i32, i32, i32, i32
  }
  func.func @transform_2(%arg0: i32, %arg1: i32) -> (i32, i32, i32, i32, i32) {
    %c2_i32 = arith.constant 2 : i32
    %0 = arith.addi %arg1, %c2_i32 : i32
    %c0_i32 = arith.constant 0 : i32
    %c0_i32_0 = arith.constant 0 : i32
    %c0_i32_1 = arith.constant 0 : i32
    %c0_i32_2 = arith.constant 0 : i32
    return %arg0, %0, %c0_i32, %c0_i32_0, %c0_i32_1 : i32, i32, i32, i32, i32
  }
  func.func @transform_3(%arg0: i32, %arg1: i32) -> (i32, i32) {
    %c0_i32 = arith.constant 0 : i32
    %c0_i32_0 = arith.constant 0 : i32
    %c0_i32_1 = arith.constant 0 : i32
    return %c0_i32, %c0_i32_0 : i32, i32
  }
  func.func @transform_4(%arg0: i32, %arg1: i32) -> (i32, i32) {
    %c0_i32 = arith.constant 0 : i32
    %c0_i32_0 = arith.constant 0 : i32
    %c0_i32_1 = arith.constant 0 : i32
    return %c0_i32, %c0_i32_0 : i32, i32
  }
  func.func @transform_5(%arg0: i32, %arg1: i32) -> (i32, i32, i32, i32) {
    %c0_i32 = arith.constant 0 : i32
    %c0_i32_0 = arith.constant 0 : i32
    %c0_i32_1 = arith.constant 0 : i32
    return %arg0, %arg1, %c0_i32, %c0_i32_0 : i32, i32, i32, i32
  }
}

</mosaic_0001>

<llo_original>
// kernel: inception_forward.5
$region0: #{inception_forward.5}
  #allocation0 [shape = 'u32[]', space=smem, size = 0x4, offset = 0x4, fixed_abs, tag = 'smem constant byte address 0x4 - core index']
  #allocation1 [shape = 'u32[72,128]{1,0:T(1,128)}', space=vmem, size = 0x9000, scoped, tag = 'internal scratch']
  %s0 = inlined_call_operand.vmem [shape: bf16[512,8], index: 0, kind: input, shape index: {}]
  %s1 = inlined_call_operand.vmem [shape: bf16[8,24], index: 1, kind: input, shape index: {}]
  %s2 = inlined_call_operand.vmem [shape: f32[1,24], index: 2, kind: input, shape index: {}]
  %s3 = inlined_call_operand.vmem [shape: f32[512,8], index: 3, kind: output, shape index: {0}]
  %s4 = inlined_call_operand.vmem [shape: bf16[512,16], index: 4, kind: output, shape index: {1}]
  %5 = xla_tuple %s3, %s4
  %s6 = sld [smem:[#allocation0]]
  $region30: #{inception_forward.5} parent=0
    _
  %s8 = ssub.s32 1, %s6
  %s9 = scalar_select 0, %s8, %s6
  // Predicated region
  $region2: #{inception_forward.5} parent=0 // pred_check
    _
  $region3: #{inception_forward.5} parent=0 // pred_check_branch
    %11 = sbr.rel (0) target = $region5
  $region4: #{inception_forward.5} parent=0 // pred_region
    _
  $region5: #{inception_forward.5} parent=0 // pred_fallthru
    _
  // Predicated region
  $region6: #{inception_forward.5} parent=0 // pred_check
    _
  $region7: #{inception_forward.5} parent=0 // pred_check_branch
    %13 = sbr.rel (0) target = $region9
  $region8: #{inception_forward.5} parent=0 // pred_region
    _
  $region9: #{inception_forward.5} parent=0 // pred_fallthru
    _
  // Predicated region
  $region10: #{inception_forward.5} parent=0 // pred_check
    _
  $region11: #{inception_forward.5} parent=0 // pred_check_branch
    %15 = sbr.rel (0) target = $region13
  $region12: #{inception_forward.5} parent=0 // pred_region
    _
  $region13: #{inception_forward.5} parent=0 // pred_fallthru
    _
  %v17 = vld [vmem:[%s0] sm:$0xf]
  %v18 = vld [vmem:[%s0 + $0x4] sm:$0xf]
  %v19 = vld [vmem:[%s0 + $0x8] sm:$0xf]
  %v20 = vld [vmem:[%s0 + $0xc] sm:$0xf]
  %v21 = vld [vmem:[%s0 + $0x10] sm:$0xf]
  %v22 = vld [vmem:[%s0 + $0x14] sm:$0xf]
  %v23 = vld [vmem:[%s0 + $0x18] sm:$0xf]
  %v24 = vld [vmem:[%s0 + $0x1c] sm:$0xf]
  %v25 = vld [vmem:[%s0 + $0x20] sm:$0xf]
  %v26 = vld [vmem:[%s0 + $0x24] sm:$0xf]
  %v27 = vld [vmem:[%s0 + $0x28] sm:$0xf]
  %v28 = vld [vmem:[%s0 + $0x2c] sm:$0xf]
  %v29 = vld [vmem:[%s0 + $0x30] sm:$0xf]
  %v30 = vld [vmem:[%s0 + $0x34] sm:$0xf]
  %v31 = vld [vmem:[%s0 + $0x38] sm:$0xf]
  %v32 = vld [vmem:[%s0 + $0x3c] sm:$0xf]
  %v33 = vld [vmem:[%s0 + $0x40] sm:$0xf]
  %v34 = vld [vmem:[%s0 + $0x44] sm:$0xf]
  %v35 = vld [vmem:[%s0 + $0x48] sm:$0xf]
  %v36 = vld [vmem:[%s0 + $0x4c] sm:$0xf]
  %v37 = vld [vmem:[%s0 + $0x50] sm:$0xf]
  %v38 = vld [vmem:[%s0 + $0x54] sm:$0xf]
  %v39 = vld [vmem:[%s0 + $0x58] sm:$0xf]
  %v40 = vld [vmem:[%s0 + $0x5c] sm:$0xf]
  %v41 = vld [vmem:[%s0 + $0x60] sm:$0xf]
  %v42 = vld [vmem:[%s0 + $0x64] sm:$0xf]
  %v43 = vld [vmem:[%s0 + $0x68] sm:$0xf]
  %v44 = vld [vmem:[%s0 + $0x6c] sm:$0xf]
  %v45 = vld [vmem:[%s0 + $0x70] sm:$0xf]
  %v46 = vld [vmem:[%s0 + $0x74] sm:$0xf]
  %v47 = vld [vmem:[%s0 + $0x78] sm:$0xf]
  %v48 = vld [vmem:[%s0 + $0x7c] sm:$0xf]
  %v49 = vld [vmem:[%s0 + $0x80] sm:$0xf]
  %v50 = vld [vmem:[%s0 + $0x84] sm:$0xf]
  %v51 = vld [vmem:[%s0 + $0x88] sm:$0xf]
  %v52 = vld [vmem:[%s0 + $0x8c] sm:$0xf]
  %v53 = vld [vmem:[%s0 + $0x90] sm:$0xf]
  %v54 = vld [vmem:[%s0 + $0x94] sm:$0xf]
  %v55 = vld [vmem:[%s0 + $0x98] sm:$0xf]
  %v56 = vld [vmem:[%s0 + $0x9c] sm:$0xf]
  %v57 = vld [vmem:[%s0 + $0xa0] sm:$0xf]
  %v58 = vld [vmem:[%s0 + $0xa4] sm:$0xf]
  %v59 = vld [vmem:[%s0 + $0xa8] sm:$0xf]
  %v60 = vld [vmem:[%s0 + $0xac] sm:$0xf]
  %v61 = vld [vmem:[%s0 + $0xb0] sm:$0xf]
  %v62 = vld [vmem:[%s0 + $0xb4] sm:$0xf]
  %v63 = vld [vmem:[%s0 + $0xb8] sm:$0xf]
  %v64 = vld [vmem:[%s0 + $0xbc] sm:$0xf]
  %v65 = vld [vmem:[%s0 + $0xc0] sm:$0xf]
  %v66 = vld [vmem:[%s0 + $0xc4] sm:$0xf]
  %v67 = vld [vmem:[%s0 + $0xc8] sm:$0xf]
  %v68 = vld [vmem:[%s0 + $0xcc] sm:$0xf]
  %v69 = vld [vmem:[%s0 + $0xd0] sm:$0xf]
  %v70 = vld [vmem:[%s0 + $0xd4] sm:$0xf]
  %v71 = vld [vmem:[%s0 + $0xd8] sm:$0xf]
  %v72 = vld [vmem:[%s0 + $0xdc] sm:$0xf]
  %v73 = vld [vmem:[%s0 + $0xe0] sm:$0xf]
  %v74 = vld [vmem:[%s0 + $0xe4] sm:$0xf]
  %v75 = vld [vmem:[%s0 + $0xe8] sm:$0xf]
  %v76 = vld [vmem:[%s0 + $0xec] sm:$0xf]
  %v77 = vld [vmem:[%s0 + $0xf0] sm:$0xf]
  %v78 = vld [vmem:[%s0 + $0xf4] sm:$0xf]
  %v79 = vld [vmem:[%s0 + $0xf8] sm:$0xf]
  %v80 = vld [vmem:[%s0 + $0xfc] sm:$0xf]
  %v81 = vld [vmem:[%s1] sm:$0xf]
  %v82 = vld [vmem:[%s2] sm:$0x1]
  %v84 = vperm.slane %v82, 0
  %v150 = vunpack.c.l.b16 %v17
  %v151 = vunpack.c.l.b16 %v18
  %v152 = vunpack.c.l.b16 %v19
  %v153 = vunpack.c.l.b16 %v20
  %v154 = vunpack.c.l.b16 %v21
  %v155 = vunpack.c.l.b16 %v22
  %v156 = vunpack.c.l.b16 %v23
  %v157 = vunpack.c.l.b16 %v24
  %v158 = vunpack.c.l.b16 %v25
  %v159 = vunpack.c.l.b16 %v26
  %v160 = vunpack.c.l.b16 %v27
  %v161 = vunpack.c.l.b16 %v28
  %v162 = vunpack.c.l.b16 %v29
  %v163 = vunpack.c.l.b16 %v30
  %v164 = vunpack.c.l.b16 %v31
  %v165 = vunpack.c.l.b16 %v32
  %v166 = vunpack.c.l.b16 %v33
  %v167 = vunpack.c.l.b16 %v34
  %v168 = vunpack.c.l.b16 %v35
  %v169 = vunpack.c.l.b16 %v36
  %v170 = vunpack.c.l.b16 %v37
  %v171 = vunpack.c.l.b16 %v38
  %v172 = vunpack.c.l.b16 %v39
  %v173 = vunpack.c.l.b16 %v40
  %v174 = vunpack.c.l.b16 %v41
  %v175 = vunpack.c.l.b16 %v42
  %v176 = vunpack.c.l.b16 %v43
  %v177 = vunpack.c.l.b16 %v44
  %v178 = vunpack.c.l.b16 %v45
  %v179 = vunpack.c.l.b16 %v46
  %v180 = vunpack.c.l.b16 %v47
  %v181 = vunpack.c.l.b16 %v48
  %v182 = vunpack.c.l.b16 %v49
  %v183 = vunpack.c.l.b16 %v50
  %v184 = vunpack.c.l.b16 %v51
  %v185 = vunpack.c.l.b16 %v52
  %v186 = vunpack.c.l.b16 %v53
  %v187 = vunpack.c.l.b16 %v54
  %v188 = vunpack.c.l.b16 %v55
  %v189 = vunpack.c.l.b16 %v56
  %v190 = vunpack.c.l.b16 %v57
  %v191 = vunpack.c.l.b16 %v58
  %v192 = vunpack.c.l.b16 %v59
  %v193 = vunpack.c.l.b16 %v60
  %v194 = vunpack.c.l.b16 %v61
  %v195 = vunpack.c.l.b16 %v62
  %v196 = vunpack.c.l.b16 %v63
  %v197 = vunpack.c.l.b16 %v64
  %v198 = vunpack.c.l.b16 %v65
  %v199 = vunpack.c.l.b16 %v66
  %v200 = vunpack.c.l.b16 %v67
  %v201 = vunpack.c.l.b16 %v68
  %v202 = vunpack.c.l.b16 %v69
  %v203 = vunpack.c.l.b16 %v70
  %v204 = vunpack.c.l.b16 %v71
  %v205 = vunpack.c.l.b16 %v72
  %v206 = vunpack.c.l.b16 %v73
  %v207 = vunpack.c.l.b16 %v74
  %v208 = vunpack.c.l.b16 %v75
  %v209 = vunpack.c.l.b16 %v76
  %v210 = vunpack.c.l.b16 %v77
  %v211 = vunpack.c.l.b16 %v78
  %v212 = vunpack.c.l.b16 %v79
  %v213 = vunpack.c.l.b16 %v80
  %v214 = vpack.c.b16 %v151, %v150
  %v215 = vpack.c.b16 %v153, %v152
  %v216 = vpack.c.b16 %v155, %v154
  %v217 = vpack.c.b16 %v157, %v156
  %v218 = vpack.c.b16 %v159, %v158
  %v219 = vpack.c.b16 %v161, %v160
  %v220 = vpack.c.b16 %v163, %v162
  %v221 = vpack.c.b16 %v165, %v164
  %v222 = vpack.c.b16 %v167, %v166
  %v223 = vpack.c.b16 %v169, %v168
  %v224 = vpack.c.b16 %v171, %v170
  %v225 = vpack.c.b16 %v173, %v172
  %v226 = vpack.c.b16 %v175, %v174
  %v227 = vpack.c.b16 %v177, %v176
  %v228 = vpack.c.b16 %v179, %v178
  %v229 = vpack.c.b16 %v181, %v180
  %v230 = vpack.c.b16 %v183, %v182
  %v231 = vpack.c.b16 %v185, %v184
  %v232 = vpack.c.b16 %v187, %v186
  %v233 = vpack.c.b16 %v189, %v188
  %v234 = vpack.c.b16 %v191, %v190
  %v235 = vpack.c.b16 %v193, %v192
  %v236 = vpack.c.b16 %v195, %v194
  %v237 = vpack.c.b16 %v197, %v196
  %v238 = vpack.c.b16 %v199, %v198
  %v239 = vpack.c.b16 %v201, %v200
  %v240 = vpack.c.b16 %v203, %v202
  %v241 = vpack.c.b16 %v205, %v204
  %v242 = vpack.c.b16 %v207, %v206
  %v243 = vpack.c.b16 %v209, %v208
  %v244 = vpack.c.b16 %v211, %v210
  %v245 = vpack.c.b16 %v213, %v212
  %vm246 = vcmask 64512
  %v248 = vsel %vm246, %v214, 0
  %v251 = vsel %vm246, %v215, 0
  %v254 = vsel %vm246, %v216, 0
  %v257 = vsel %vm246, %v217, 0
  %v260 = vsel %vm246, %v218, 0
  %v263 = vsel %vm246, %v219, 0
  %v266 = vsel %vm246, %v220, 0
  %v269 = vsel %vm246, %v221, 0
  %v272 = vsel %vm246, %v222, 0
  %v275 = vsel %vm246, %v223, 0
  %v278 = vsel %vm246, %v224, 0
  %v281 = vsel %vm246, %v225, 0
  %v284 = vsel %vm246, %v226, 0
  %v287 = vsel %vm246, %v227, 0
  %v290 = vsel %vm246, %v228, 0
  %v293 = vsel %vm246, %v229, 0
  %v296 = vsel %vm246, %v230, 0
  %v299 = vsel %vm246, %v231, 0
  %v302 = vsel %vm246, %v232, 0
  %v305 = vsel %vm246, %v233, 0
  %v308 = vsel %vm246, %v234, 0
  %v311 = vsel %vm246, %v235, 0
  %v314 = vsel %vm246, %v236, 0
  %v317 = vsel %vm246, %v237, 0
  %v320 = vsel %vm246, %v238, 0
  %v323 = vsel %vm246, %v239, 0
  %v326 = vsel %vm246, %v240, 0
  %v329 = vsel %vm246, %v241, 0
  %v332 = vsel %vm246, %v242, 0
  %v335 = vsel %vm246, %v243, 0
  %v338 = vsel %vm246, %v244, 0
  %v341 = vsel %vm246, %v245, 0
  %vm343 = vcmask 1043456
  %v345 = vsel %vm343, %v81, 0
  %347 = vmatpush.bf16.msra.mxu0 0
  %348 = vmatpush.bf16.msra.mxu0 0
  %349 = vmatpush.bf16.msra.mxu0 0
  %350 = vmatpush.bf16.msra.mxu0 0
  %351 = vmatpush.bf16.msra.mxu0 0
  %352 = vmatpush.bf16.msra.mxu0 0
  %353 = vmatpush.bf16.msra.mxu0 0
  %354 = vmatpush.bf16.msra.mxu0 %v345
  %355 = vmatmul.bf16.gmra.mxu0 %v248
  %v356 = vpop.f32.mrf.mxu0
  %v357 = vadd.f32 %v84, %v356
  %v358 = vpop.f32.mrf.mxu0
  %v359 = vadd.f32 %v84, %v358
  %360 = vmatmul.bf16.gmra.mxu0 %v251
  %v361 = vpop.f32.mrf.mxu0
  %v362 = vadd.f32 %v84, %v361
  %v363 = vpop.f32.mrf.mxu0
  %v364 = vadd.f32 %v84, %v363
  %365 = vmatmul.bf16.gmra.mxu0 %v254
  %v366 = vpop.f32.mrf.mxu0
  %v367 = vadd.f32 %v84, %v366
  %v368 = vpop.f32.mrf.mxu0
  %v369 = vadd.f32 %v84, %v368
  %370 = vmatmul.bf16.gmra.mxu0 %v257
  %v371 = vpop.f32.mrf.mxu0
  %v372 = vadd.f32 %v84, %v371
  %v373 = vpop.f32.mrf.mxu0
  %v374 = vadd.f32 %v84, %v373
  %375 = vmatmul.bf16.gmra.mxu0 %v260
  %v376 = vpop.f32.mrf.mxu0
  %v377 = vadd.f32 %v84, %v376
  %v378 = vpop.f32.mrf.mxu0
  %v379 = vadd.f32 %v84, %v378
  %380 = vmatmul.bf16.gmra.mxu0 %v263
  %v381 = vpop.f32.mrf.mxu0
  %v382 = vadd.f32 %v84, %v381
  %v383 = vpop.f32.mrf.mxu0
  %v384 = vadd.f32 %v84, %v383
  %385 = vmatmul.bf16.gmra.mxu0 %v266
  %v386 = vpop.f32.mrf.mxu0
  %v387 = vadd.f32 %v84, %v386
  %v388 = vpop.f32.mrf.mxu0
  %v389 = vadd.f32 %v84, %v388
  %390 = vmatmul.bf16.gmra.mxu0 %v269
  %v391 = vpop.f32.mrf.mxu0
  %v392 = vadd.f32 %v84, %v391
  %v393 = vpop.f32.mrf.mxu0
  %v394 = vadd.f32 %v84, %v393
  %395 = vmatmul.bf16.gmra.mxu0 %v272
  %v396 = vpop.f32.mrf.mxu0
  %v397 = vadd.f32 %v84, %v396
  %v398 = vpop.f32.mrf.mxu0
  %v399 = vadd.f32 %v84, %v398
  %400 = vmatmul.bf16.gmra.mxu0 %v275
  %v401 = vpop.f32.mrf.mxu0
  %v402 = vadd.f32 %v84, %v401
  %v403 = vpop.f32.mrf.mxu0
  %v404 = vadd.f32 %v84, %v403
  %405 = vmatmul.bf16.gmra.mxu0 %v278
  %v406 = vpop.f32.mrf.mxu0
  %v407 = vadd.f32 %v84, %v406
  %v408 = vpop.f32.mrf.mxu0
  %v409 = vadd.f32 %v84, %v408
  %410 = vmatmul.bf16.gmra.mxu0 %v281
  %v411 = vpop.f32.mrf.mxu0
  %v412 = vadd.f32 %v84, %v411
  %v413 = vpop.f32.mrf.mxu0
  %v414 = vadd.f32 %v84, %v413
  %415 = vmatmul.bf16.gmra.mxu0 %v284
  %v416 = vpop.f32.mrf.mxu0
  %v417 = vadd.f32 %v84, %v416
  %v418 = vpop.f32.mrf.mxu0
  %v419 = vadd.f32 %v84, %v418
  %420 = vmatmul.bf16.gmra.mxu0 %v287
  %v421 = vpop.f32.mrf.mxu0
  %v422 = vadd.f32 %v84, %v421
  %v423 = vpop.f32.mrf.mxu0
  %v424 = vadd.f32 %v84, %v423
  %425 = vmatmul.bf16.gmra.mxu0 %v290
  %v426 = vpop.f32.mrf.mxu0
  %v427 = vadd.f32 %v84, %v426
  %v428 = vpop.f32.mrf.mxu0
  %v429 = vadd.f32 %v84, %v428
  %430 = vmatmul.bf16.gmra.mxu0 %v293
  %v431 = vpop.f32.mrf.mxu0
  %v432 = vadd.f32 %v84, %v431
  %v433 = vpop.f32.mrf.mxu0
  %v434 = vadd.f32 %v84, %v433
  %435 = vmatmul.bf16.gmra.mxu0 %v296
  %v436 = vpop.f32.mrf.mxu0
  %v437 = vadd.f32 %v84, %v436
  %v438 = vpop.f32.mrf.mxu0
  %v439 = vadd.f32 %v84, %v438
  %440 = vmatmul.bf16.gmra.mxu0 %v299
  %v441 = vpop.f32.mrf.mxu0
  %v442 = vadd.f32 %v84, %v441
  %v443 = vpop.f32.mrf.mxu0
  %v444 = vadd.f32 %v84, %v443
  %445 = vmatmul.bf16.gmra.mxu0 %v302
  %v446 = vpop.f32.mrf.mxu0
  %v447 = vadd.f32 %v84, %v446
  %v448 = vpop.f32.mrf.mxu0
  %v449 = vadd.f32 %v84, %v448
  %450 = vmatmul.bf16.gmra.mxu0 %v305
  %v451 = vpop.f32.mrf.mxu0
  %v452 = vadd.f32 %v84, %v451
  %v453 = vpop.f32.mrf.mxu0
  %v454 = vadd.f32 %v84, %v453
  %455 = vmatmul.bf16.gmra.mxu0 %v308
  %v456 = vpop.f32.mrf.mxu0
  %v457 = vadd.f32 %v84, %v456
  %v458 = vpop.f32.mrf.mxu0
  %v459 = vadd.f32 %v84, %v458
  %460 = vmatmul.bf16.gmra.mxu0 %v311
  %v461 = vpop.f32.mrf.mxu0
  %v462 = vadd.f32 %v84, %v461
  %v463 = vpop.f32.mrf.mxu0
  %v464 = vadd.f32 %v84, %v463
  %465 = vmatmul.bf16.gmra.mxu0 %v314
  %v466 = vpop.f32.mrf.mxu0
  %v467 = vadd.f32 %v84, %v466
  %v468 = vpop.f32.mrf.mxu0
  %v469 = vadd.f32 %v84, %v468
  %470 = vmatmul.bf16.gmra.mxu0 %v317
  %v471 = vpop.f32.mrf.mxu0
  %v472 = vadd.f32 %v84, %v471
  %v473 = vpop.f32.mrf.mxu0
  %v474 = vadd.f32 %v84, %v473
  %475 = vmatmul.bf16.gmra.mxu0 %v320
  %v476 = vpop.f32.mrf.mxu0
  %v477 = vadd.f32 %v84, %v476
  %v478 = vpop.f32.mrf.mxu0
  %v479 = vadd.f32 %v84, %v478
  %480 = vmatmul.bf16.gmra.mxu0 %v323
  %v481 = vpop.f32.mrf.mxu0
  %v482 = vadd.f32 %v84, %v481
  %v483 = vpop.f32.mrf.mxu0
  %v484 = vadd.f32 %v84, %v483
  %485 = vmatmul.bf16.gmra.mxu0 %v326
  %v486 = vpop.f32.mrf.mxu0
  %v487 = vadd.f32 %v84, %v486
  %v488 = vpop.f32.mrf.mxu0
  %v489 = vadd.f32 %v84, %v488
  %490 = vmatmul.bf16.gmra.mxu0 %v329
  %v491 = vpop.f32.mrf.mxu0
  %v492 = vadd.f32 %v84, %v491
  %v493 = vpop.f32.mrf.mxu0
  %v494 = vadd.f32 %v84, %v493
  %495 = vmatmul.bf16.gmra.mxu0 %v332
  %v496 = vpop.f32.mrf.mxu0
  %v497 = vadd.f32 %v84, %v496
  %v498 = vpop.f32.mrf.mxu0
  %v499 = vadd.f32 %v84, %v498
  %500 = vmatmul.bf16.gmra.mxu0 %v335
  %v501 = vpop.f32.mrf.mxu0
  %v502 = vadd.f32 %v84, %v501
  %v503 = vpop.f32.mrf.mxu0
  %v504 = vadd.f32 %v84, %v503
  %505 = vmatmul.bf16.gmra.mxu0 %v338
  %v506 = vpop.f32.mrf.mxu0
  %v507 = vadd.f32 %v84, %v506
  %v508 = vpop.f32.mrf.mxu0
  %v509 = vadd.f32 %v84, %v508
  %510 = vmatmul.bf16.gmra.mxu0 %v341
  %v511 = vpop.f32.mrf.mxu0
  %v512 = vadd.f32 %v84, %v511
  %v513 = vpop.f32.mrf.mxu0
  %v514 = vadd.f32 %v84, %v513
  %515 = vdwg.mxu0
  %v516 = vmax.f32 %v357, 0.0
  %v517 = vmax.f32 %v359, 0.0
  %v518 = vmax.f32 %v362, 0.0
  %v519 = vmax.f32 %v364, 0.0
  %v520 = vmax.f32 %v367, 0.0
  %v521 = vmax.f32 %v369, 0.0
  %v522 = vmax.f32 %v372, 0.0
  %v523 = vmax.f32 %v374, 0.0
  %v524 = vmax.f32 %v377, 0.0
  %v525 = vmax.f32 %v379, 0.0
  %v526 = vmax.f32 %v382, 0.0
  %v527 = vmax.f32 %v384, 0.0
  %v528 = vmax.f32 %v387, 0.0
  %v529 = vmax.f32 %v389, 0.0
  %v530 = vmax.f32 %v392, 0.0
  %v531 = vmax.f32 %v394, 0.0
  %v532 = vmax.f32 %v397, 0.0
  %v533 = vmax.f32 %v399, 0.0
  %v534 = vmax.f32 %v402, 0.0
  %v535 = vmax.f32 %v404, 0.0
  %v536 = vmax.f32 %v407, 0.0
  %v537 = vmax.f32 %v409, 0.0
  %v538 = vmax.f32 %v412, 0.0
  %v539 = vmax.f32 %v414, 0.0
  %v540 = vmax.f32 %v417, 0.0
  %v541 = vmax.f32 %v419, 0.0
  %v542 = vmax.f32 %v422, 0.0
  %v543 = vmax.f32 %v424, 0.0
  %v544 = vmax.f32 %v427, 0.0
  %v545 = vmax.f32 %v429, 0.0
  %v546 = vmax.f32 %v432, 0.0
  %v547 = vmax.f32 %v434, 0.0
  %v548 = vmax.f32 %v437, 0.0
  %v549 = vmax.f32 %v439, 0.0
  %v550 = vmax.f32 %v442, 0.0
  %v551 = vmax.f32 %v444, 0.0
  %v552 = vmax.f32 %v447, 0.0
  %v553 = vmax.f32 %v449, 0.0
  %v554 = vmax.f32 %v452, 0.0
  %v555 = vmax.f32 %v454, 0.0
  %v556 = vmax.f32 %v457, 0.0
  %v557 = vmax.f32 %v459, 0.0
  %v558 = vmax.f32 %v462, 0.0
  %v559 = vmax.f32 %v464, 0.0
  %v560 = vmax.f32 %v467, 0.0
  %v561 = vmax.f32 %v469, 0.0
  %v562 = vmax.f32 %v472, 0.0
  %v563 = vmax.f32 %v474, 0.0
  %v564 = vmax.f32 %v477, 0.0
  %v565 = vmax.f32 %v479, 0.0
  %v566 = vmax.f32 %v482, 0.0
  %v567 = vmax.f32 %v484, 0.0
  %v568 = vmax.f32 %v487, 0.0
  %v569 = vmax.f32 %v489, 0.0
  %v570 = vmax.f32 %v492, 0.0
  %v571 = vmax.f32 %v494, 0.0
  %v572 = vmax.f32 %v497, 0.0
  %v573 = vmax.f32 %v499, 0.0
  %v574 = vmax.f32 %v502, 0.0
  %v575 = vmax.f32 %v504, 0.0
  %v576 = vmax.f32 %v507, 0.0
  %v577 = vmax.f32 %v509, 0.0
  %v578 = vmax.f32 %v512, 0.0
  %v579 = vmax.f32 %v514, 0.0
  %580 = vst.msk [vmem:[%s3] sm:$0xff] %vm246, %v516
  %581 = vst.msk [vmem:[%s3 + $0x8] sm:$0xff] %vm246, %v517
  %582 = vst.msk [vmem:[%s3 + $0x10] sm:$0xff] %vm246, %v518
  %583 = vst.msk [vmem:[%s3 + $0x18] sm:$0xff] %vm246, %v519
  %584 = vst.msk [vmem:[%s3 + $0x20] sm:$0xff] %vm246, %v520
  %585 = vst.msk [vmem:[%s3 + $0x28] sm:$0xff] %vm246, %v521
  %586 = vst.msk [vmem:[%s3 + $0x30] sm:$0xff] %vm246, %v522
  %587 = vst.msk [vmem:[%s3 + $0x38] sm:$0xff] %vm246, %v523
  %588 = vst.msk [vmem:[%s3 + $0x40] sm:$0xff] %vm246, %v524
  %589 = vst.msk [vmem:[%s3 + $0x48] sm:$0xff] %vm246, %v525
  %590 = vst.msk [vmem:[%s3 + $0x50] sm:$0xff] %vm246, %v526
  %591 = vst.msk [vmem:[%s3 + $0x58] sm:$0xff] %vm246, %v527
  %592 = vst.msk [vmem:[%s3 + $0x60] sm:$0xff] %vm246, %v528
  %593 = vst.msk [vmem:[%s3 + $0x68] sm:$0xff] %vm246, %v529
  %594 = vst.msk [vmem:[%s3 + $0x70] sm:$0xff] %vm246, %v530
  %595 = vst.msk [vmem:[%s3 + $0x78] sm:$0xff] %vm246, %v531
  %596 = vst.msk [vmem:[%s3 + $0x80] sm:$0xff] %vm246, %v532
  %597 = vst.msk [vmem:[%s3 + $0x88] sm:$0xff] %vm246, %v533
  %598 = vst.msk [vmem:[%s3 + $0x90] sm:$0xff] %vm246, %v534
  %599 = vst.msk [vmem:[%s3 + $0x98] sm:$0xff] %vm246, %v535
  %600 = vst.msk [vmem:[%s3 + $0xa0] sm:$0xff] %vm246, %v536
  %601 = vst.msk [vmem:[%s3 + $0xa8] sm:$0xff] %vm246, %v537
  %602 = vst.msk [vmem:[%s3 + $0xb0] sm:$0xff] %vm246, %v538
  %603 = vst.msk [vmem:[%s3 + $0xb8] sm:$0xff] %vm246, %v539
  %604 = vst.msk [vmem:[%s3 + $0xc0] sm:$0xff] %vm246, %v540
  %605 = vst.msk [vmem:[%s3 + $0xc8] sm:$0xff] %vm246, %v541
  %606 = vst.msk [vmem:[%s3 + $0xd0] sm:$0xff] %vm246, %v542
  %607 = vst.msk [vmem:[%s3 + $0xd8] sm:$0xff] %vm246, %v543
  %608 = vst.msk [vmem:[%s3 + $0xe0] sm:$0xff] %vm246, %v544
  %609 = vst.msk [vmem:[%s3 + $0xe8] sm:$0xff] %vm246, %v545
  %610 = vst.msk [vmem:[%s3 + $0xf0] sm:$0xff] %vm246, %v546
  %611 = vst.msk [vmem:[%s3 + $0xf8] sm:$0xff] %vm246, %v547
  %612 = vst.msk [vmem:[%s3 + $0x100] sm:$0xff] %vm246, %v548
  %613 = vst.msk [vmem:[%s3 + $0x108] sm:$0xff] %vm246, %v549
  %614 = vst.msk [vmem:[%s3 + $0x110] sm:$0xff] %vm246, %v550
  %615 = vst.msk [vmem:[%s3 + $0x118] sm:$0xff] %vm246, %v551
  %616 = vst.msk [vmem:[%s3 + $0x120] sm:$0xff] %vm246, %v552
  %617 = vst.msk [vmem:[%s3 + $0x128] sm:$0xff] %vm246, %v553
  %618 = vst.msk [vmem:[%s3 + $0x130] sm:$0xff] %vm246, %v554
  %619 = vst.msk [vmem:[%s3 + $0x138] sm:$0xff] %vm246, %v555
  %620 = vst.msk [vmem:[%s3 + $0x140] sm:$0xff] %vm246, %v556
  %621 = vst.msk [vmem:[%s3 + $0x148] sm:$0xff] %vm246, %v557
  %622 = vst.msk [vmem:[%s3 + $0x150] sm:$0xff] %vm246, %v558
  %623 = vst.msk [vmem:[%s3 + $0x158] sm:$0xff] %vm246, %v559
  %624 = vst.msk [vmem:[%s3 + $0x160] sm:$0xff] %vm246, %v560
  %625 = vst.msk [vmem:[%s3 + $0x168] sm:$0xff] %vm246, %v561
  %626 = vst.msk [vmem:[%s3 + $0x170] sm:$0xff] %vm246, %v562
  %627 = vst.msk [vmem:[%s3 + $0x178] sm:$0xff] %vm246, %v563
  %628 = vst.msk [vmem:[%s3 + $0x180] sm:$0xff] %vm246, %v564
  %629 = vst.msk [vmem:[%s3 + $0x188] sm:$0xff] %vm246, %v565
  %630 = vst.msk [vmem:[%s3 + $0x190] sm:$0xff] %vm246, %v566
  %631 = vst.msk [vmem:[%s3 + $0x198] sm:$0xff] %vm246, %v567
  %632 = vst.msk [vmem:[%s3 + $0x1a0] sm:$0xff] %vm246, %v568
  %633 = vst.msk [vmem:[%s3 + $0x1a8] sm:$0xff] %vm246, %v569
  %634 = vst.msk [vmem:[%s3 + $0x1b0] sm:$0xff] %vm246, %v570
  %635 = vst.msk [vmem:[%s3 + $0x1b8] sm:$0xff] %vm246, %v571
  %636 = vst.msk [vmem:[%s3 + $0x1c0] sm:$0xff] %vm246, %v572
  %637 = vst.msk [vmem:[%s3 + $0x1c8] sm:$0xff] %vm246, %v573
  %638 = vst.msk [vmem:[%s3 + $0x1d0] sm:$0xff] %vm246, %v574
  %639 = vst.msk [vmem:[%s3 + $0x1d8] sm:$0xff] %vm246, %v575
  %640 = vst.msk [vmem:[%s3 + $0x1e0] sm:$0xff] %vm246, %v576
  %641 = vst.msk [vmem:[%s3 + $0x1e8] sm:$0xff] %vm246, %v577
  %642 = vst.msk [vmem:[%s3 + $0x1f0] sm:$0xff] %vm246, %v578
  %643 = vst.msk [vmem:[%s3 + $0x1f8] sm:$0xff] %vm246, %v579
  %v644 = vpack.c.bf16 %v516, %v516
  %v645 = vpack.c.bf16 %v517, %v517
  %v646 = vpack.c.bf16 %v518, %v518
  %v647 = vpack.c.bf16 %v519, %v519
  %v648 = vpack.c.bf16 %v520, %v520
  %v649 = vpack.c.bf16 %v521, %v521
  %v650 = vpack.c.bf16 %v522, %v522
  %v651 = vpack.c.bf16 %v523, %v523
  %v652 = vpack.c.bf16 %v524, %v524
  %v653 = vpack.c.bf16 %v525, %v525
  %v654 = vpack.c.bf16 %v526, %v526
  %v655 = vpack.c.bf16 %v527, %v527
  %v656 = vpack.c.bf16 %v528, %v528
  %v657 = vpack.c.bf16 %v529, %v529
  %v658 = vpack.c.bf16 %v530, %v530
  %v659 = vpack.c.bf16 %v531, %v531
  %v660 = vpack.c.bf16 %v532, %v532
  %v661 = vpack.c.bf16 %v533, %v533
  %v662 = vpack.c.bf16 %v534, %v534
  %v663 = vpack.c.bf16 %v535, %v535
  %v664 = vpack.c.bf16 %v536, %v536
  %v665 = vpack.c.bf16 %v537, %v537
  %v666 = vpack.c.bf16 %v538, %v538
  %v667 = vpack.c.bf16 %v539, %v539
  %v668 = vpack.c.bf16 %v540, %v540
  %v669 = vpack.c.bf16 %v541, %v541
  %v670 = vpack.c.bf16 %v542, %v542
  %v671 = vpack.c.bf16 %v543, %v543
  %v672 = vpack.c.bf16 %v544, %v544
  %v673 = vpack.c.bf16 %v545, %v545
  %v674 = vpack.c.bf16 %v546, %v546
  %v675 = vpack.c.bf16 %v547, %v547
  %v676 = vpack.c.bf16 %v548, %v548
  %v677 = vpack.c.bf16 %v549, %v549
  %v678 = vpack.c.bf16 %v550, %v550
  %v679 = vpack.c.bf16 %v551, %v551
  %v680 = vpack.c.bf16 %v552, %v552
  %v681 = vpack.c.bf16 %v553, %v553
  %v682 = vpack.c.bf16 %v554, %v554
  %v683 = vpack.c.bf16 %v555, %v555
  %v684 = vpack.c.bf16 %v556, %v556
  %v685 = vpack.c.bf16 %v557, %v557
  %v686 = vpack.c.bf16 %v558, %v558
  %v687 = vpack.c.bf16 %v559, %v559
  %v688 = vpack.c.bf16 %v560, %v560
  %v689 = vpack.c.bf16 %v561, %v561
  %v690 = vpack.c.bf16 %v562, %v562
  %v691 = vpack.c.bf16 %v563, %v563
  %v692 = vpack.c.bf16 %v564, %v564
  %v693 = vpack.c.bf16 %v565, %v565
  %v694 = vpack.c.bf16 %v566, %v566
  %v695 = vpack.c.bf16 %v567, %v567
  %v696 = vpack.c.bf16 %v568, %v568
  %v697 = vpack.c.bf16 %v569, %v569
  %v698 = vpack.c.bf16 %v570, %v570
  %v699 = vpack.c.bf16 %v571, %v571
  %v700 = vpack.c.bf16 %v572, %v572
  %v701 = vpack.c.bf16 %v573, %v573
  %v702 = vpack.c.bf16 %v574, %v574
  %v703 = vpack.c.bf16 %v575, %v575
  %v704 = vpack.c.bf16 %v576, %v576
  %v705 = vpack.c.bf16 %v577, %v577
  %v706 = vpack.c.bf16 %v578, %v578
  %v707 = vpack.c.bf16 %v579, %v579
  %772 = vrot.lane.b32.xlu0 %v644, 120
  %v773 = vpop.permute.xlu0 %772
  %774 = vrot.lane.b32.xlu0 %v645, 120
  %v775 = vpop.permute.xlu0 %774
  %776 = vrot.lane.b32.xlu0 %v646, 120
  %v777 = vpop.permute.xlu0 %776
  %778 = vrot.lane.b32.xlu0 %v647, 120
  %v779 = vpop.permute.xlu0 %778
  %780 = vrot.lane.b32.xlu0 %v648, 120
  %v781 = vpop.permute.xlu0 %780
  %782 = vrot.lane.b32.xlu0 %v649, 120
  %v783 = vpop.permute.xlu0 %782
  %784 = vrot.lane.b32.xlu0 %v650, 120
  %v785 = vpop.permute.xlu0 %784
  %786 = vrot.lane.b32.xlu0 %v651, 120
  %v787 = vpop.permute.xlu0 %786
  %788 = vrot.lane.b32.xlu0 %v652, 120
  %v789 = vpop.permute.xlu0 %788
  %790 = vrot.lane.b32.xlu0 %v653, 120
  %v791 = vpop.permute.xlu0 %790
  %792 = vrot.lane.b32.xlu0 %v654, 120
  %v793 = vpop.permute.xlu0 %792
  %794 = vrot.lane.b32.xlu0 %v655, 120
  %v795 = vpop.permute.xlu0 %794
  %796 = vrot.lane.b32.xlu0 %v656, 120
  %v797 = vpop.permute.xlu0 %796
  %798 = vrot.lane.b32.xlu0 %v657, 120
  %v799 = vpop.permute.xlu0 %798
  %800 = vrot.lane.b32.xlu0 %v658, 120
  %v801 = vpop.permute.xlu0 %800
  %802 = vrot.lane.b32.xlu0 %v659, 120
  %v803 = vpop.permute.xlu0 %802
  %804 = vrot.lane.b32.xlu0 %v660, 120
  %v805 = vpop.permute.xlu0 %804
  %806 = vrot.lane.b32.xlu0 %v661, 120
  %v807 = vpop.permute.xlu0 %806
  %808 = vrot.lane.b32.xlu0 %v662, 120
  %v809 = vpop.permute.xlu0 %808
  %810 = vrot.lane.b32.xlu0 %v663, 120
  %v811 = vpop.permute.xlu0 %810
  %812 = vrot.lane.b32.xlu0 %v664, 120
  %v813 = vpop.permute.xlu0 %812
  %814 = vrot.lane.b32.xlu0 %v665, 120
  %v815 = vpop.permute.xlu0 %814
  %816 = vrot.lane.b32.xlu0 %v666, 120
  %v817 = vpop.permute.xlu0 %816
  %818 = vrot.lane.b32.xlu0 %v667, 120
  %v819 = vpop.permute.xlu0 %818
  %820 = vrot.lane.b32.xlu0 %v668, 120
  %v821 = vpop.permute.xlu0 %820
  %822 = vrot.lane.b32.xlu0 %v669, 120
  %v823 = vpop.permute.xlu0 %822
  %824 = vrot.lane.b32.xlu0 %v670, 120
  %v825 = vpop.permute.xlu0 %824
  %826 = vrot.lane.b32.xlu0 %v671, 120
  %v827 = vpop.permute.xlu0 %826
  %828 = vrot.lane.b32.xlu0 %v672, 120
  %v829 = vpop.permute.xlu0 %828
  %830 = vrot.lane.b32.xlu0 %v673, 120
  %v831 = vpop.permute.xlu0 %830
  %832 = vrot.lane.b32.xlu0 %v674, 120
  %v833 = vpop.permute.xlu0 %832
  %834 = vrot.lane.b32.xlu0 %v675, 120
  %v835 = vpop.permute.xlu0 %834
  %836 = vrot.lane.b32.xlu0 %v676, 120
  %v837 = vpop.permute.xlu0 %836
  %838 = vrot.lane.b32.xlu0 %v677, 120
  %v839 = vpop.permute.xlu0 %838
  %840 = vrot.lane.b32.xlu0 %v678, 120
  %v841 = vpop.permute.xlu0 %840
  %842 = vrot.lane.b32.xlu0 %v679, 120
  %v843 = vpop.permute.xlu0 %842
  %844 = vrot.lane.b32.xlu0 %v680, 120
  %v845 = vpop.permute.xlu0 %844
  %846 = vrot.lane.b32.xlu0 %v681, 120
  %v847 = vpop.permute.xlu0 %846
  %848 = vrot.lane.b32.xlu0 %v682, 120
  %v849 = vpop.permute.xlu0 %848
  %850 = vrot.lane.b32.xlu0 %v683, 120
  %v851 = vpop.permute.xlu0 %850
  %852 = vrot.lane.b32.xlu0 %v684, 120
  %v853 = vpop.permute.xlu0 %852
  %854 = vrot.lane.b32.xlu0 %v685, 120
  %v855 = vpop.permute.xlu0 %854
  %856 = vrot.lane.b32.xlu0 %v686, 120
  %v857 = vpop.permute.xlu0 %856
  %858 = vrot.lane.b32.xlu0 %v687, 120
  %v859 = vpop.permute.xlu0 %858
  %860 = vrot.lane.b32.xlu0 %v688, 120
  %v861 = vpop.permute.xlu0 %860
  %862 = vrot.lane.b32.xlu0 %v689, 120
  %v863 = vpop.permute.xlu0 %862
  %864 = vrot.lane.b32.xlu0 %v690, 120
  %v865 = vpop.permute.xlu0 %864
  %866 = vrot.lane.b32.xlu0 %v691, 120
  %v867 = vpop.permute.xlu0 %866
  %868 = vrot.lane.b32.xlu0 %v692, 120
  %v869 = vpop.permute.xlu0 %868
  %870 = vrot.lane.b32.xlu0 %v693, 120
  %v871 = vpop.permute.xlu0 %870
  %872 = vrot.lane.b32.xlu0 %v694, 120
  %v873 = vpop.permute.xlu0 %872
  %874 = vrot.lane.b32.xlu0 %v695, 120
  %v875 = vpop.permute.xlu0 %874
  %876 = vrot.lane.b32.xlu0 %v696, 120
  %v877 = vpop.permute.xlu0 %876
  %878 = vrot.lane.b32.xlu0 %v697, 120
  %v879 = vpop.permute.xlu0 %878
  %880 = vrot.lane.b32.xlu0 %v698, 120
  %v881 = vpop.permute.xlu0 %880
  %882 = vrot.lane.b32.xlu0 %v699, 120
  %v883 = vpop.permute.xlu0 %882
  %884 = vrot.lane.b32.xlu0 %v700, 120
  %v885 = vpop.permute.xlu0 %884
  %886 = vrot.lane.b32.xlu0 %v701, 120
  %v887 = vpop.permute.xlu0 %886
  %888 = vrot.lane.b32.xlu0 %v702, 120
  %v889 = vpop.permute.xlu0 %888
  %890 = vrot.lane.b32.xlu0 %v703, 120
  %v891 = vpop.permute.xlu0 %890
  %892 = vrot.lane.b32.xlu0 %v704, 120
  %v893 = vpop.permute.xlu0 %892
  %894 = vrot.lane.b32.xlu0 %v705, 120
  %v895 = vpop.permute.xlu0 %894
  %896 = vrot.lane.b32.xlu0 %v706, 120
  %v897 = vpop.permute.xlu0 %896
  %898 = vrot.lane.b32.xlu0 %v707, 120
  %v899 = vpop.permute.xlu0 %898
  %vm964 = vcmask 125952
  %965 = vst.msk [vmem:[%s4] sm:$0xf] %vm964, %v773
  %966 = vst.msk [vmem:[%s4 + $0x4] sm:$0xf] %vm964, %v775
  %967 = vst.msk [vmem:[%s4 + $0x8] sm:$0xf] %vm964, %v777
  %968 = vst.msk [vmem:[%s4 + $0xc] sm:$0xf] %vm964, %v779
  %969 = vst.msk [vmem:[%s4 + $0x10] sm:$0xf] %vm964, %v781
  %970 = vst.msk [vmem:[%s4 + $0x14] sm:$0xf] %vm964, %v783
  %971 = vst.msk [vmem:[%s4 + $0x18] sm:$0xf] %vm964, %v785
  %972 = vst.msk [vmem:[%s4 + $0x1c] sm:$0xf] %vm964, %v787
  %973 = vst.msk [vmem:[%s4 + $0x20] sm:$0xf] %vm964, %v789
  %974 = vst.msk [vmem:[%s4 + $0x24] sm:$0xf] %vm964, %v791
  %975 = vst.msk [vmem:[%s4 + $0x28] sm:$0xf] %vm964, %v793
  %976 = vst.msk [vmem:[%s4 + $0x2c] sm:$0xf] %vm964, %v795
  %977 = vst.msk [vmem:[%s4 + $0x30] sm:$0xf] %vm964, %v797
  %978 = vst.msk [vmem:[%s4 + $0x34] sm:$0xf] %vm964, %v799
  %979 = vst.msk [vmem:[%s4 + $0x38] sm:$0xf] %vm964, %v801
  %980 = vst.msk [vmem:[%s4 + $0x3c] sm:$0xf] %vm964, %v803
  %981 = vst.msk [vmem:[%s4 + $0x40] sm:$0xf] %vm964, %v805
  %982 = vst.msk [vmem:[%s4 + $0x44] sm:$0xf] %vm964, %v807
  %983 = vst.msk [vmem:[%s4 + $0x48] sm:$0xf] %vm964, %v809
  %984 = vst.msk [vmem:[%s4 + $0x4c] sm:$0xf] %vm964, %v811
  %985 = vst.msk [vmem:[%s4 + $0x50] sm:$0xf] %vm964, %v813
  %986 = vst.msk [vmem:[%s4 + $0x54] sm:$0xf] %vm964, %v815
  %987 = vst.msk [vmem:[%s4 + $0x58] sm:$0xf] %vm964, %v817
  %988 = vst.msk [vmem:[%s4 + $0x5c] sm:$0xf] %vm964, %v819
  %989 = vst.msk [vmem:[%s4 + $0x60] sm:$0xf] %vm964, %v821
  %990 = vst.msk [vmem:[%s4 + $0x64] sm:$0xf] %vm964, %v823
  %991 = vst.msk [vmem:[%s4 + $0x68] sm:$0xf] %vm964, %v825
  %992 = vst.msk [vmem:[%s4 + $0x6c] sm:$0xf] %vm964, %v827
  %993 = vst.msk [vmem:[%s4 + $0x70] sm:$0xf] %vm964, %v829
  %994 = vst.msk [vmem:[%s4 + $0x74] sm:$0xf] %vm964, %v831
  %995 = vst.msk [vmem:[%s4 + $0x78] sm:$0xf] %vm964, %v833
  %996 = vst.msk [vmem:[%s4 + $0x7c] sm:$0xf] %vm964, %v835
  %997 = vst.msk [vmem:[%s4 + $0x80] sm:$0xf] %vm964, %v837
  %998 = vst.msk [vmem:[%s4 + $0x84] sm:$0xf] %vm964, %v839
  %999 = vst.msk [vmem:[%s4 + $0x88] sm:$0xf] %vm964, %v841
  %1000 = vst.msk [vmem:[%s4 + $0x8c] sm:$0xf] %vm964, %v843
  %1001 = vst.msk [vmem:[%s4 + $0x90] sm:$0xf] %vm964, %v845
  %1002 = vst.msk [vmem:[%s4 + $0x94] sm:$0xf] %vm964, %v847
  %1003 = vst.msk [vmem:[%s4 + $0x98] sm:$0xf] %vm964, %v849
  %1004 = vst.msk [vmem:[%s4 + $0x9c] sm:$0xf] %vm964, %v851
  %1005 = vst.msk [vmem:[%s4 + $0xa0] sm:$0xf] %vm964, %v853
  %1006 = vst.msk [vmem:[%s4 + $0xa4] sm:$0xf] %vm964, %v855
  %1007 = vst.msk [vmem:[%s4 + $0xa8] sm:$0xf] %vm964, %v857
  %1008 = vst.msk [vmem:[%s4 + $0xac] sm:$0xf] %vm964, %v859
  %1009 = vst.msk [vmem:[%s4 + $0xb0] sm:$0xf] %vm964, %v861
  %1010 = vst.msk [vmem:[%s4 + $0xb4] sm:$0xf] %vm964, %v863
  %1011 = vst.msk [vmem:[%s4 + $0xb8] sm:$0xf] %vm964, %v865
  %1012 = vst.msk [vmem:[%s4 + $0xbc] sm:$0xf] %vm964, %v867
  %1013 = vst.msk [vmem:[%s4 + $0xc0] sm:$0xf] %vm964, %v869
  %1014 = vst.msk [vmem:[%s4 + $0xc4] sm:$0xf] %vm964, %v871
  %1015 = vst.msk [vmem:[%s4 + $0xc8] sm:$0xf] %vm964, %v873
  %1016 = vst.msk [vmem:[%s4 + $0xcc] sm:$0xf] %vm964, %v875
  %1017 = vst.msk [vmem:[%s4 + $0xd0] sm:$0xf] %vm964, %v877
  %1018 = vst.msk [vmem:[%s4 + $0xd4] sm:$0xf] %vm964, %v879
  %1019 = vst.msk [vmem:[%s4 + $0xd8] sm:$0xf] %vm964, %v881
  %1020 = vst.msk [vmem:[%s4 + $0xdc] sm:$0xf] %vm964, %v883
  %1021 = vst.msk [vmem:[%s4 + $0xe0] sm:$0xf] %vm964, %v885
  %1022 = vst.msk [vmem:[%s4 + $0xe4] sm:$0xf] %vm964, %v887
  %1023 = vst.msk [vmem:[%s4 + $0xe8] sm:$0xf] %vm964, %v889
  %1024 = vst.msk [vmem:[%s4 + $0xec] sm:$0xf] %vm964, %v891
  %1025 = vst.msk [vmem:[%s4 + $0xf0] sm:$0xf] %vm964, %v893
  %1026 = vst.msk [vmem:[%s4 + $0xf4] sm:$0xf] %vm964, %v895
  %1027 = vst.msk [vmem:[%s4 + $0xf8] sm:$0xf] %vm964, %v897
  %1028 = vst.msk [vmem:[%s4 + $0xfc] sm:$0xf] %vm964, %v899
  // Predicated region
  $region14: #{inception_forward.5} parent=0 // pred_check
    _
  $region15: #{inception_forward.5} parent=0 // pred_check_branch
    %1030 = sbr.rel (0) target = $region17
  $region16: #{inception_forward.5} parent=0 // pred_region
    _
  $region17: #{inception_forward.5} parent=0 // pred_fallthru
    _
  // Predicated region
  $region18: #{inception_forward.5} parent=0 // pred_check
    _
  $region19: #{inception_forward.5} parent=0 // pred_check_branch
    %1032 = sbr.rel (0) target = $region21
  $region20: #{inception_forward.5} parent=0 // pred_region
    _
  $region21: #{inception_forward.5} parent=0 // pred_fallthru
    _
  // Predicated region
  $region22: #{inception_forward.5} parent=0 // pred_check
    _
  $region23: #{inception_forward.5} parent=0 // pred_check_branch
    %1034 = sbr.rel (0) target = $region25
  $region24: #{inception_forward.5} parent=0 // pred_region
    _
  $region25: #{inception_forward.5} parent=0 // pred_fallthru
    _
  // Predicated region
  $region26: #{inception_forward.5} parent=0 // pred_check
    _
  $region27: #{inception_forward.5} parent=0 // pred_check_branch
    %1036 = sbr.rel (0) target = $region29
  $region28: #{inception_forward.5} parent=0 // pred_region
    _
  $region29: #{inception_forward.5} parent=0 // pred_fallthru
    _

// kernel: inception_forward.8
$region0: #{inception_forward.8}
  #allocation0 [shape = 'u32[]', space=smem, size = 0x4, offset = 0x4, fixed_abs, tag = 'smem constant byte address 0x4 - core index']
  #allocation1 [shape = 'u32[72,128]{1,0:T(1,128)}', space=vmem, size = 0x9000, scoped, tag = 'internal scratch']
  %s0 = inlined_call_operand.vmem [shape: bf16[2,6,10,10,16], index: 0, kind: input, shape index: {}, may-alias: {0,1,2}]
  %s1 = inlined_call_operand.vmem [shape: bf16[2,6,10,10,16], index: 1, kind: input, shape index: {}, may-alias: {0,1,2}]
  %s2 = inlined_call_operand.vmem [shape: bf16[2,6,10,10,16], index: 2, kind: input, shape index: {}, may-alias: {0,1,2}]
  %s3 = inlined_call_operand.vmem [shape: bf16[27,16,16], index: 3, kind: input, shape index: {}]
  %s4 = inlined_call_operand.vmem [shape: f32[1,16], index: 4, kind: input, shape index: {}]
  %s5 = inlined_call_operand.vmem [shape: f32[2,4,64,16], index: 5, kind: output, shape index: {}]
  %s6 = sld [smem:[#allocation0]]
  $region53: #{inception_forward.8} parent=0
    _
  %s8 = ssub.s32 1, %s6
  %s9 = scalar_select 0, %s8, %s6
  loop: start=0, step=1, limit=10
  $region2: #{inception_forward.8} parent=0 // loop_pre_header
    _
  $region3: #{inception_forward.8} parent=0 // loop_header
    %s11 = sphi 0, %s15
    %p12 = scmp.ge.s32.totalorder %s11, 10
    %s18 = sphi 0, %s30
    %s19 = sphi 0, %s26
    %s20 = sphi 0, %s18
    %s21 = sphi 0, %s19
    %s22 = sphi 0, %s20
    %s23 = sphi 0, %s21
    %s35 = sphi 0, %s37
    %s38 = sphi 0, %s35
    %s39 = sphi 0, %s38
    %s55 = sphi 0, %s39
    %s65 = sphi 0, %s67
    %s68 = sphi 0, %s65
    %s69 = sphi 0, %s68
    %s85 = sphi 0, %s69
    %s95 = sphi 0, %s97
    %s98 = sphi 0, %s95
    %s99 = sphi 0, %s98
    %s115 = sphi 0, %s99
    %s119 = sphi 0, %s119
    %s121 = sphi 0, %s119
    %s122 = sphi 0, %s121
    %s136 = sphi 0, %s122
    %s140 = sphi 0, %s140
    %s142 = sphi 0, %s140
    %s143 = sphi 0, %s142
    %s157 = sphi 0, %s143
    %s165 = sphi 0, %s167
    %s168 = sphi 0, %s165
    %s169 = sphi 0, %s168
    %s185 = sphi 0, %s169
  $region4: #{inception_forward.8} parent=0 // loop_header_branch
    %14 = sbr.rel (%p12) target = $region8
  $region5: #{inception_forward.8} parent=0 // loop_body
    %s16 = ssub.s32 %s11, 1
    %s17 = ssub.s32 %s11, 2
    %s24 = sadd.s32 1, %s19
    %p25 = scmp.ge.s32.totalorder %s24, 4
    %s26 = scalar_select %p25, 0, %s24
    %s27 = sadd.s32 1, %s18
    %s28 = scalar_select %p25, %s27, %s18
    %p29 = scmp.ge.s32.totalorder %s28, 2
    %s30 = scalar_select %p29, 0, %s28
    %s31 = ssub.s32 %s18, %s30
    %s32 = ssub.s32 %s19, %s26
    %s33 = sor.u32 %s31, %s32
    %p34 = scmp.eq.s32.totalorder %s33, 0
    %s36 = sadd.s32 %s35, 1
    %s37 = scalar_select %p34, %s35, %s36
    %p40 = pneg %p34
    %p41 = scmp.eq.s32.totalorder %s11, 7
    %p42 = por %p40, %p41
    %p43 = scmp.ne.s32.totalorder %s35, %s38
    %p44 = scmp.eq.s32.totalorder %s11, 0
    %p45 = por %p43, %p44
    %p46 = scmp.ne.s32.totalorder %s35, %s38
    %p47 = scmp.eq.s32.totalorder %s16, 7
    %p48 = por %p46, %p47
    %p49 = scmp.ne.s32.totalorder %s38, %s39
    %p50 = scmp.eq.s32.totalorder %s16, 0
    %p51 = por %p49, %p50
    %p52 = scmp.ne.s32.totalorder %s38, %s39
    %p53 = scmp.eq.s32.totalorder %s17, 7
    %p54 = por %p52, %p53
    %p56 = scmp.ne.s32.totalorder %s39, %s55
    %p57 = scmp.eq.s32.totalorder %s17, 0
    %p58 = por %p56, %p57
    %s59 = sadd.s32 %s19, 1
    %s60 = sadd.s32 %s26, 1
    %s61 = ssub.s32 %s18, %s30
    %s62 = ssub.s32 %s59, %s60
    %s63 = sor.u32 %s61, %s62
    %p64 = scmp.eq.s32.totalorder %s63, 0
    %s66 = sadd.s32 %s65, 1
    %s67 = scalar_select %p64, %s65, %s66
    %p70 = pneg %p64
    %p71 = scmp.eq.s32.totalorder %s11, 7
    %p72 = por %p70, %p71
    %p73 = scmp.ne.s32.totalorder %s65, %s68
    %p74 = scmp.eq.s32.totalorder %s11, 0
    %p75 = por %p73, %p74
    %p76 = scmp.ne.s32.totalorder %s65, %s68
    %p77 = scmp.eq.s32.totalorder %s16, 7
    %p78 = por %p76, %p77
    %p79 = scmp.ne.s32.totalorder %s68, %s69
    %p80 = scmp.eq.s32.totalorder %s16, 0
    %p81 = por %p79, %p80
    %p82 = scmp.ne.s32.totalorder %s68, %s69
    %p83 = scmp.eq.s32.totalorder %s17, 7
    %p84 = por %p82, %p83
    %p86 = scmp.ne.s32.totalorder %s69, %s85
    %p87 = scmp.eq.s32.totalorder %s17, 0
    %p88 = por %p86, %p87
    %s89 = sadd.s32 %s19, 2
    %s90 = sadd.s32 %s26, 2
    %s91 = ssub.s32 %s18, %s30
    %s92 = ssub.s32 %s89, %s90
    %s93 = sor.u32 %s91, %s92
    %p94 = scmp.eq.s32.totalorder %s93, 0
    %s96 = sadd.s32 %s95, 1
    %s97 = scalar_select %p94, %s95, %s96
    %p100 = pneg %p94
    %p101 = scmp.eq.s32.totalorder %s11, 7
    %p102 = por %p100, %p101
    %p103 = scmp.ne.s32.totalorder %s95, %s98
    %p104 = scmp.eq.s32.totalorder %s11, 0
    %p105 = por %p103, %p104
    %p106 = scmp.ne.s32.totalorder %s95, %s98
    %p107 = scmp.eq.s32.totalorder %s16, 7
    %p108 = por %p106, %p107
    %p109 = scmp.ne.s32.totalorder %s98, %s99
    %p110 = scmp.eq.s32.totalorder %s16, 0
    %p111 = por %p109, %p110
    %p112 = scmp.ne.s32.totalorder %s98, %s99
    %p113 = scmp.eq.s32.totalorder %s17, 7
    %p114 = por %p112, %p113
    %p116 = scmp.ne.s32.totalorder %s99, %s115
    %p117 = scmp.eq.s32.totalorder %s17, 0
    %p118 = por %p116, %p117
    %s120 = sadd.s32 %s119, 1
    %p123 = scmp.eq.s32.totalorder %s11, 7
    %p124 = scmp.ne.s32.totalorder %s119, %s121
    %p125 = scmp.eq.s32.totalorder %s11, 0
    %p126 = por %p124, %p125
    %p127 = scmp.ne.s32.totalorder %s119, %s121
    %p128 = scmp.eq.s32.totalorder %s16, 7
    %p129 = por %p127, %p128
    %p130 = scmp.ne.s32.totalorder %s121, %s122
    %p131 = scmp.eq.s32.totalorder %s16, 0
    %p132 = por %p130, %p131
    %p133 = scmp.ne.s32.totalorder %s121, %s122
    %p134 = scmp.eq.s32.totalorder %s17, 7
    %p135 = por %p133, %p134
    %p137 = scmp.ne.s32.totalorder %s122, %s136
    %p138 = scmp.eq.s32.totalorder %s17, 0
    %p139 = por %p137, %p138
    %s141 = sadd.s32 %s140, 1
    %p144 = scmp.eq.s32.totalorder %s11, 7
    %p145 = scmp.ne.s32.totalorder %s140, %s142
    %p146 = scmp.eq.s32.totalorder %s11, 0
    %p147 = por %p145, %p146
    %p148 = scmp.ne.s32.totalorder %s140, %s142
    %p149 = scmp.eq.s32.totalorder %s16, 7
    %p150 = por %p148, %p149
    %p151 = scmp.ne.s32.totalorder %s142, %s143
    %p152 = scmp.eq.s32.totalorder %s16, 0
    %p153 = por %p151, %p152
    %p154 = scmp.ne.s32.totalorder %s142, %s143
    %p155 = scmp.eq.s32.totalorder %s17, 7
    %p156 = por %p154, %p155
    %p158 = scmp.ne.s32.totalorder %s143, %s157
    %p159 = scmp.eq.s32.totalorder %s17, 0
    %p160 = por %p158, %p159
    %s161 = ssub.s32 %s18, %s30
    %s162 = ssub.s32 %s19, %s26
    %s163 = sor.u32 %s161, %s162
    %p164 = scmp.eq.s32.totalorder %s163, 0
    %s166 = sadd.s32 %s165, 1
    %s167 = scalar_select %p164, %s165, %s166
    %p170 = pneg %p164
    %p171 = scmp.eq.s32.totalorder %s11, 7
    %p172 = por %p170, %p171
    %p173 = scmp.ne.s32.totalorder %s165, %s168
    %p174 = scmp.eq.s32.totalorder %s11, 0
    %p175 = por %p173, %p174
    %p176 = scmp.ne.s32.totalorder %s165, %s168
    %p177 = scmp.eq.s32.totalorder %s16, 7
    %p178 = por %p176, %p177
    %p179 = scmp.ne.s32.totalorder %s168, %s169
    %p180 = scmp.eq.s32.totalorder %s16, 0
    %p181 = por %p179, %p180
    %p182 = scmp.ne.s32.totalorder %s168, %s169
    %p183 = scmp.eq.s32.totalorder %s17, 7
    %p184 = por %p182, %p183
    %p186 = scmp.ne.s32.totalorder %s169, %s185
    %p187 = scmp.eq.s32.totalorder %s17, 0
    %p188 = por %p186, %p187
    %p189 = scmp.le.s32.totalorder 1, %s11
    %p190 = scmp.lt.s32.totalorder %s11, 9
    %p191 = pnand %p189, %p190
    %p192 = pneg %p191
    // Predicated region
    $region9: #{inception_forward.8} parent=5 // pred_check
      _
    $region10: #{inception_forward.8} parent=5 // pred_check_branch
      %194 = sbr.rel (%p191) target = $region12
    $region11: #{inception_forward.8} parent=5 // pred_region
      %s195 = ssub.s32 %s11, 1
      // Predicated region
      $region13: #{inception_forward.8} parent=11 // pred_check
        %p196 = pneg %p132
      $region14: #{inception_forward.8} parent=11 // pred_check_branch
        %198 = sbr.rel (%p196) target = $region16
      $region15: #{inception_forward.8} parent=11 // pred_region
        _
      $region16: #{inception_forward.8} parent=11 // pred_fallthru
        _
      // Predicated region
      $region17: #{inception_forward.8} parent=11 // pred_check
        %p199 = pneg %p153
      $region18: #{inception_forward.8} parent=11 // pred_check_branch
        %201 = sbr.rel (%p199) target = $region20
      $region19: #{inception_forward.8} parent=11 // pred_region
        _
      $region20: #{inception_forward.8} parent=11 // pred_fallthru
        _
    $region12: #{inception_forward.8} parent=5 // pred_fallthru
      _
    %p202 = scmp.lt.s32.totalorder %s11, 8
    // Predicated region
    $region21: #{inception_forward.8} parent=5 // pred_check
      %p203 = pneg %p202
    $region22: #{inception_forward.8} parent=5 // pred_check_branch
      %205 = sbr.rel (%p203) target = $region24
    $region23: #{inception_forward.8} parent=5 // pred_region
      // Predicated region
      $region25: #{inception_forward.8} parent=23 // pred_check
        %p206 = pneg %p45
      $region26: #{inception_forward.8} parent=23 // pred_check_branch
        %208 = sbr.rel (%p206) target = $region28
      $region27: #{inception_forward.8} parent=23 // pred_region
        %p209 = scmp.lt.s32.totalorder %s18, 1
        %s210 = scalar_select %p209, %s18, 1
        %p211 = scmp.lt.s32.totalorder %s19, 5
        %s212 = scalar_select %p211, %s19, 5
        %s213 = smul.addr %s212, 20
        %s214 = smul.addr %s210, 120
        %s215 = sadd.s32 %s213, %s214
        %s216 = smul.addr %s215, 4
        %s217 = scalar_lea.vmem %s0, %s216
      $region28: #{inception_forward.8} parent=23 // pred_fallthru
        _
      // Predicated region
      $region29: #{inception_forward.8} parent=23 // pred_check
        %p218 = pneg %p75
      $region30: #{inception_forward.8} parent=23 // pred_check_branch
        %220 = sbr.rel (%p218) target = $region32
      $region31: #{inception_forward.8} parent=23 // pred_region
        %s221 = sadd.s32 %s19, 1
        %p222 = scmp.lt.s32.totalorder %s18, 1
        %s223 = scalar_select %p222, %s18, 1
        %p224 = scmp.lt.s32.totalorder %s221, 5
        %s225 = scalar_select %p224, %s221, 5
        %s226 = smul.addr %s225, 20
        %s227 = smul.addr %s223, 120
        %s228 = sadd.s32 %s226, %s227
        %s229 = smul.addr %s228, 4
        %s230 = scalar_lea.vmem %s1, %s229
        %s231 = sadd.s32 %s19, 1
      $region32: #{inception_forward.8} parent=23 // pred_fallthru
        _
      // Predicated region
      $region33: #{inception_forward.8} parent=23 // pred_check
        %p232 = pneg %p105
      $region34: #{inception_forward.8} parent=23 // pred_check_branch
        %234 = sbr.rel (%p232) target = $region36
      $region35: #{inception_forward.8} parent=23 // pred_region
        %s235 = sadd.s32 %s19, 2
        %p236 = scmp.lt.s32.totalorder %s18, 1
        %s237 = scalar_select %p236, %s18, 1
        %p238 = scmp.lt.s32.totalorder %s235, 5
        %s239 = scalar_select %p238, %s235, 5
        %s240 = smul.addr %s239, 20
        %s241 = smul.addr %s237, 120
        %s242 = sadd.s32 %s240, %s241
        %s243 = smul.addr %s242, 4
        %s244 = scalar_lea.vmem %s2, %s243
        %s245 = sadd.s32 %s19, 2
      $region36: #{inception_forward.8} parent=23 // pred_fallthru
        _
    $region24: #{inception_forward.8} parent=5 // pred_fallthru
      _
    %p246 = scmp.le.s32.totalorder 1, %s11
    %p247 = scmp.lt.s32.totalorder %s11, 9
    %p248 = pnand %p246, %p247
    %p249 = pneg %p248
    // Predicated region
    $region37: #{inception_forward.8} parent=5 // pred_check
      _
    $region38: #{inception_forward.8} parent=5 // pred_check_branch
      %251 = sbr.rel (%p248) target = $region40
    $region39: #{inception_forward.8} parent=5 // pred_region
      %s252 = ssub.s32 %s11, 1
      %p253 = scmp.lt.s32.totalorder %s20, 1
      %s254 = scalar_select %p253, %s20, 1
      %p255 = scmp.lt.s32.totalorder %s21, 5
      %s256 = scalar_select %p255, %s21, 5
      %s257 = smul.addr %s256, 20
      %s258 = smul.addr %s254, 120
      %s259 = sadd.s32 %s257, %s258
      %s260 = smul.addr %s259, 4
      %s261 = scalar_lea.vmem %s0, %s260
      %p262 = pneg %p51
      %p263 = pneg %p48
      %s264 = sadd.s32 %s21, 1
      %p265 = scmp.lt.s32.totalorder %s20, 1
      %s266 = scalar_select %p265, %s20, 1
      %p267 = scmp.lt.s32.totalorder %s264, 5
      %s268 = scalar_select %p267, %s264, 5
      %s269 = smul.addr %s268, 20
      %s270 = smul.addr %s266, 120
      %s271 = sadd.s32 %s269, %s270
      %s272 = smul.addr %s271, 4
      %s273 = scalar_lea.vmem %s1, %s272
      %p274 = pneg %p81
      %p275 = pneg %p78
      %s276 = sadd.s32 %s21, 2
      %p277 = scmp.lt.s32.totalorder %s20, 1
      %s278 = scalar_select %p277, %s20, 1
      %p279 = scmp.lt.s32.totalorder %s276, 5
      %s280 = scalar_select %p279, %s276, 5
      %s281 = smul.addr %s280, 20
      %s282 = smul.addr %s278, 120
      %s283 = sadd.s32 %s281, %s282
      %s284 = smul.addr %s283, 4
      %s285 = scalar_lea.vmem %s2, %s284
      %p286 = pneg %p111
      %p287 = pneg %p108
      %p288 = pneg %p132
      %p289 = pneg %p129
      %p290 = pneg %p153
      %p291 = pneg %p150
      %p292 = pneg %p181
      %p293 = pneg %p178
      %p294 = scmp.lt.s32.totalorder %s20, 1
      %s295 = scalar_select %p294, %s20, 1
      %p296 = scmp.lt.s32.totalorder %s21, 3
      %s297 = scalar_select %p296, %s21, 3
      %s298 = smul.addr %s297, 8
      %s299 = smul.addr %s295, 32
      %s300 = sadd.s32 %s298, %s299
      %s301 = smul.addr %s300, 8
      %s302 = scalar_lea.vmem %s5, %s301
      %p303 = scmp.lt.s32.totalorder %s20, 1
      %s304 = scalar_select %p303, %s20, 1
      %p305 = scmp.lt.s32.totalorder %s21, 5
      %s306 = scalar_select %p305, %s21, 5
      %s307 = smul.addr %s306, 20
      %s308 = smul.addr %s304, 120
      %s309 = sadd.s32 %s307, %s308
      %s310 = smul.addr %s309, 4
      %s311 = scalar_lea.vmem %s0, %s310
      %s312 = sadd.s32 %s21, 1
      %p313 = scmp.lt.s32.totalorder %s20, 1
      %s314 = scalar_select %p313, %s20, 1
      %p315 = scmp.lt.s32.totalorder %s312, 5
      %s316 = scalar_select %p315, %s312, 5
      %s317 = smul.addr %s316, 20
      %s318 = smul.addr %s314, 120
      %s319 = sadd.s32 %s317, %s318
      %s320 = smul.addr %s319, 4
      %s321 = scalar_lea.vmem %s1, %s320
      %s322 = sadd.s32 %s21, 1
      %s323 = sadd.s32 %s21, 2
      %p324 = scmp.lt.s32.totalorder %s20, 1
      %s325 = scalar_select %p324, %s20, 1
      %p326 = scmp.lt.s32.totalorder %s323, 5
      %s327 = scalar_select %p326, %s323, 5
      %s328 = smul.addr %s327, 20
      %s329 = smul.addr %s325, 120
      %s330 = sadd.s32 %s328, %s329
      %s331 = smul.addr %s330, 4
      %s332 = scalar_lea.vmem %s2, %s331
      %s333 = sadd.s32 %s21, 2
      %p334 = scmp.lt.s32.totalorder %s20, 1
      %s335 = scalar_select %p334, %s20, 1
      %p336 = scmp.lt.s32.totalorder %s21, 3
      %s337 = scalar_select %p336, %s21, 3
      %s338 = smul.addr %s337, 8
      %s339 = smul.addr %s335, 32
      %s340 = sadd.s32 %s338, %s339
      %s341 = smul.addr %s340, 8
      %s342 = scalar_lea.vmem %s5, %s341
      %v344 = vld [vmem:[%s311] sm:$0xf]
      %v345 = vld [vmem:[%s311 + $0x4] sm:$0x1]
      %v346 = vld [vmem:[%s311 + $0x8] sm:$0xf]
      %v347 = vld [vmem:[%s311 + $0xc] sm:$0x1]
      %v348 = vld [vmem:[%s311 + $0x10] sm:$0xf]
      %v349 = vld [vmem:[%s311 + $0x14] sm:$0x1]
      %v350 = vld [vmem:[%s311 + $0x18] sm:$0xf]
      %v351 = vld [vmem:[%s311 + $0x1c] sm:$0x1]
      %v352 = vld [vmem:[%s311 + $0x20] sm:$0xf]
      %v353 = vld [vmem:[%s311 + $0x24] sm:$0x1]
      %v354 = vld [vmem:[%s311 + $0x28] sm:$0xf]
      %v355 = vld [vmem:[%s311 + $0x2c] sm:$0x1]
      %v356 = vld [vmem:[%s311 + $0x30] sm:$0xf]
      %v357 = vld [vmem:[%s311 + $0x34] sm:$0x1]
      %v358 = vld [vmem:[%s311 + $0x38] sm:$0xf]
      %v359 = vld [vmem:[%s311 + $0x3c] sm:$0x1]
      %v360 = vld [vmem:[%s311 + $0x40] sm:$0xf]
      %v361 = vld [vmem:[%s311 + $0x44] sm:$0x1]
      %v362 = vld [vmem:[%s311 + $0x48] sm:$0xf]
      %v363 = vld [vmem:[%s311 + $0x4c] sm:$0x1]
      %v364 = vld [vmem:[%s3] sm:$0xf]
      %v365 = vld [vmem:[%s3 + $0x4] sm:$0xf]
      %vm366 = vsmask.f32 3328
      %vm367 = vsmask.f32 7440
      %vm368 = vmor %vm366, %vm367
      %v370 = vshrl.u32 %v344, 16
      %v372 = vrot.slane %v370, 4
      %v373 = vshll.u32 %v344, 16
      %v375 = vrot.slane %v373, 5
      %v376 = vor.u32 %v372, %v375
      %v377 = vrot.slane %v376, 4
      %v379 = vshll.u32 %v345, 16
      %v381 = vrot.slane %v379, 5
      %v382 = vsel %vm368, %v377, %v381
      %v384 = vshrl.u32 %v346, 16
      %v386 = vrot.slane %v384, 4
      %v387 = vshll.u32 %v346, 16
      %v389 = vrot.slane %v387, 5
      %v390 = vor.u32 %v386, %v389
      %v391 = vrot.slane %v390, 4
      %v393 = vshll.u32 %v347, 16
      %v395 = vrot.slane %v393, 5
      %v396 = vsel %vm368, %v391, %v395
      %v398 = vshrl.u32 %v348, 16
      %v400 = vrot.slane %v398, 4
      %v401 = vshll.u32 %v348, 16
      %v403 = vrot.slane %v401, 5
      %v404 = vor.u32 %v400, %v403
      %v405 = vrot.slane %v404, 4
      %v407 = vshll.u32 %v349, 16
      %v409 = vrot.slane %v407, 5
      %v410 = vsel %vm368, %v405, %v409
      %v412 = vshrl.u32 %v350, 16
      %v414 = vrot.slane %v412, 4
      %v415 = vshll.u32 %v350, 16
      %v417 = vrot.slane %v415, 5
      %v418 = vor.u32 %v414, %v417
      %v419 = vrot.slane %v418, 4
      %v421 = vshll.u32 %v351, 16
      %v423 = vrot.slane %v421, 5
      %v424 = vsel %vm368, %v419, %v423
      %v426 = vshrl.u32 %v352, 16
      %v428 = vrot.slane %v426, 4
      %v429 = vshll.u32 %v352, 16
      %v431 = vrot.slane %v429, 5
      %v432 = vor.u32 %v428, %v431
      %v433 = vrot.slane %v432, 4
      %v435 = vshll.u32 %v353, 16
      %v437 = vrot.slane %v435, 5
      %v438 = vsel %vm368, %v433, %v437
      %v440 = vshrl.u32 %v354, 16
      %v442 = vrot.slane %v440, 4
      %v443 = vshll.u32 %v354, 16
      %v445 = vrot.slane %v443, 5
      %v446 = vor.u32 %v442, %v445
      %v447 = vrot.slane %v446, 4
      %v449 = vshll.u32 %v355, 16
      %v451 = vrot.slane %v449, 5
      %v452 = vsel %vm368, %v447, %v451
      %v454 = vshrl.u32 %v356, 16
      %v456 = vrot.slane %v454, 4
      %v457 = vshll.u32 %v356, 16
      %v459 = vrot.slane %v457, 5
      %v460 = vor.u32 %v456, %v459
      %v461 = vrot.slane %v460, 4
      %v463 = vshll.u32 %v357, 16
      %v465 = vrot.slane %v463, 5
      %v466 = vsel %vm368, %v461, %v465
      %v468 = vshrl.u32 %v358, 16
      %v470 = vrot.slane %v468, 4
      %v471 = vshll.u32 %v358, 16
      %v473 = vrot.slane %v471, 5
      %v474 = vor.u32 %v470, %v473
      %v475 = vrot.slane %v474, 4
      %v477 = vshll.u32 %v359, 16
      %v479 = vrot.slane %v477, 5
      %v480 = vsel %vm368, %v475, %v479
      %s481 = scalar_lea.vmem %s3, 8
      %v482 = vld [vmem:[%s481] sm:$0xf]
      %v483 = vld [vmem:[%s481 + $0x4] sm:$0xf]
      %v484 = vunpack.c.l.b16 %v382
      %v485 = vunpack.c.l.b16 %v396
      %v486 = vunpack.c.l.b16 %v410
      %v487 = vunpack.c.l.b16 %v424
      %v488 = vunpack.c.l.b16 %v438
      %v489 = vunpack.c.l.b16 %v452
      %v490 = vunpack.c.l.b16 %v466
      %v491 = vunpack.c.l.b16 %v480
      %v492 = vpack.c.b16 %v485, %v484
      %v493 = vpack.c.b16 %v487, %v486
      %v494 = vpack.c.b16 %v489, %v488
      %v495 = vpack.c.b16 %v491, %v490
      %v498 = vunpack.c.l.b16 %v482
      %v499 = vunpack.c.l.b16 %v483
      %v500 = vpack.c.b16 %v499, %v498
      %vm502 = vcmask 130048
      %v504 = vsel %vm502, %v492, 0
      %v507 = vsel %vm502, %v493, 0
      %v510 = vsel %vm502, %v494, 0
      %v513 = vsel %vm502, %v495, 0
      %515 = vmatpush.bf16.msra.mxu0 0
      %516 = vmatpush.bf16.msra.mxu0 0
      %517 = vmatpush.bf16.msra.mxu0 0
      %518 = vmatpush.bf16.msra.mxu0 0
      %519 = vmatpush.bf16.msra.mxu0 0
      %520 = vmatpush.bf16.msra.mxu0 0
      %521 = vmatpush.bf16.msra.mxu0 0
      %522 = vmatpush.bf16.msra.mxu0 %v500
      %523 = vmatmul.bf16.gmra.mxu0 %v504
      %v524 = vpop.f32.mrf.mxu0
      %v525 = vadd.f32 0.0, %v524
      %v526 = vpop.f32.mrf.mxu0
      %v527 = vadd.f32 0.0, %v526
      %528 = vmatmul.bf16.gmra.mxu0 %v507
      %v529 = vpop.f32.mrf.mxu0
      %v530 = vadd.f32 0.0, %v529
      %v531 = vpop.f32.mrf.mxu0
      %v532 = vadd.f32 0.0, %v531
      %533 = vmatmul.bf16.gmra.mxu0 %v510
      %v534 = vpop.f32.mrf.mxu0
      %v535 = vadd.f32 0.0, %v534
      %v536 = vpop.f32.mrf.mxu0
      %v537 = vadd.f32 0.0, %v536
      %538 = vmatmul.bf16.gmra.mxu0 %v513
      %v539 = vpop.f32.mrf.mxu0
      %v540 = vadd.f32 0.0, %v539
      %v541 = vpop.f32.mrf.mxu0
      %v542 = vadd.f32 0.0, %v541
      %543 = vdwg.mxu0
      %v552 = vunpack.c.l.b16 %v344
      %v553 = vunpack.c.l.b16 %v346
      %v554 = vunpack.c.l.b16 %v348
      %v555 = vunpack.c.l.b16 %v350
      %v556 = vunpack.c.l.b16 %v352
      %v557 = vunpack.c.l.b16 %v354
      %v558 = vunpack.c.l.b16 %v356
      %v559 = vunpack.c.l.b16 %v358
      %v560 = vpack.c.b16 %v553, %v552
      %v561 = vpack.c.b16 %v555, %v554
      %v562 = vpack.c.b16 %v557, %v556
      %v563 = vpack.c.b16 %v559, %v558
      %v566 = vunpack.c.l.b16 %v364
      %v567 = vunpack.c.l.b16 %v365
      %v568 = vpack.c.b16 %v567, %v566
      %v571 = vsel %vm502, %v560, 0
      %v574 = vsel %vm502, %v561, 0
      %v577 = vsel %vm502, %v562, 0
      %v580 = vsel %vm502, %v563, 0
      %582 = vmatpush.bf16.msra.mxu0 0
      %583 = vmatpush.bf16.msra.mxu0 0
      %584 = vmatpush.bf16.msra.mxu0 0
      %585 = vmatpush.bf16.msra.mxu0 0
      %586 = vmatpush.bf16.msra.mxu0 0
      %587 = vmatpush.bf16.msra.mxu0 0
      %588 = vmatpush.bf16.msra.mxu0 0
      %589 = vmatpush.bf16.msra.mxu0 %v568
      %590 = vmatmul.bf16.gmra.mxu0 %v571
      %v591 = vpop.f32.mrf.mxu0
      %v592 = vadd.f32 %v525, %v591
      %v593 = vpop.f32.mrf.mxu0
      %v594 = vadd.f32 %v527, %v593
      %595 = vmatmul.bf16.gmra.mxu0 %v574
      %v596 = vpop.f32.mrf.mxu0
      %v597 = vadd.f32 %v530, %v596
      %v598 = vpop.f32.mrf.mxu0
      %v599 = vadd.f32 %v532, %v598
      %600 = vmatmul.bf16.gmra.mxu0 %v577
      %v601 = vpop.f32.mrf.mxu0
      %v602 = vadd.f32 %v535, %v601
      %v603 = vpop.f32.mrf.mxu0
      %v604 = vadd.f32 %v537, %v603
      %605 = vmatmul.bf16.gmra.mxu0 %v580
      %v606 = vpop.f32.mrf.mxu0
      %v607 = vadd.f32 %v540, %v606
      %v608 = vpop.f32.mrf.mxu0
      %v609 = vadd.f32 %v542, %v608
      %610 = vdwg.mxu0
      %vm619 = vcmask 1042432
      %vm620 = vcmask 1046532
      %vm621 = vmor %vm619, %vm620
      %v622 = vrot.slane %v344, 5
      %v623 = vrot.slane %v622, 4
      %v624 = vrot.slane %v345, 5
      %v625 = vsel %vm621, %v623, %v624
      %v626 = vrot.slane %v346, 5
      %v627 = vrot.slane %v626, 4
      %v628 = vrot.slane %v347, 5
      %v629 = vsel %vm621, %v627, %v628
      %v630 = vrot.slane %v348, 5
      %v631 = vrot.slane %v630, 4
      %v632 = vrot.slane %v349, 5
      %v633 = vsel %vm621, %v631, %v632
      %v634 = vrot.slane %v350, 5
      %v635 = vrot.slane %v634, 4
      %v636 = vrot.slane %v351, 5
      %v637 = vsel %vm621, %v635, %v636
      %v638 = vrot.slane %v352, 5
      %v639 = vrot.slane %v638, 4
      %v640 = vrot.slane %v353, 5
      %v641 = vsel %vm621, %v639, %v640
      %v642 = vrot.slane %v354, 5
      %v643 = vrot.slane %v642, 4
      %v644 = vrot.slane %v355, 5
      %v645 = vsel %vm621, %v643, %v644
      %v646 = vrot.slane %v356, 5
      %v647 = vrot.slane %v646, 4
      %v648 = vrot.slane %v357, 5
      %v649 = vsel %vm621, %v647, %v648
      %v650 = vrot.slane %v358, 5
      %v651 = vrot.slane %v650, 4
      %v652 = vrot.slane %v359, 5
      %v653 = vsel %vm621, %v651, %v652
      %s654 = scalar_lea.vmem %s3, 16
      %v655 = vld [vmem:[%s654] sm:$0xf]
      %v656 = vld [vmem:[%s654 + $0x4] sm:$0xf]
      %v657 = vunpack.c.l.b16 %v625
      %v658 = vunpack.c.l.b16 %v629
      %v659 = vunpack.c.l.b16 %v633
      %v660 = vunpack.c.l.b16 %v637
      %v661 = vunpack.c.l.b16 %v641
      %v662 = vunpack.c.l.b16 %v645
      %v663 = vunpack.c.l.b16 %v649
      %v664 = vunpack.c.l.b16 %v653
      %v665 = vpack.c.b16 %v658, %v657
      %v666 = vpack.c.b16 %v660, %v659
      %v667 = vpack.c.b16 %v662, %v661
      %v668 = vpack.c.b16 %v664, %v663
      %v671 = vunpack.c.l.b16 %v655
      %v672 = vunpack.c.l.b16 %v656
      %v673 = vpack.c.b16 %v672, %v671
      %v676 = vsel %vm502, %v665, 0
      %v679 = vsel %vm502, %v666, 0
      %v682 = vsel %vm502, %v667, 0
      %v685 = vsel %vm502, %v668, 0
      %687 = vmatpush.bf16.msra.mxu0 0
      %688 = vmatpush.bf16.msra.mxu0 0
      %689 = vmatpush.bf16.msra.mxu0 0
      %690 = vmatpush.bf16.msra.mxu0 0
      %691 = vmatpush.bf16.msra.mxu0 0
      %692 = vmatpush.bf16.msra.mxu0 0
      %693 = vmatpush.bf16.msra.mxu0 0
      %694 = vmatpush.bf16.msra.mxu0 %v673
      %695 = vmatmul.bf16.gmra.mxu0 %v676
      %v696 = vpop.f32.mrf.mxu0
      %v697 = vadd.f32 0.0, %v696
      %v698 = vpop.f32.mrf.mxu0
      %v699 = vadd.f32 0.0, %v698
      %700 = vmatmul.bf16.gmra.mxu0 %v679
      %v701 = vpop.f32.mrf.mxu0
      %v702 = vadd.f32 0.0, %v701
      %v703 = vpop.f32.mrf.mxu0
      %v704 = vadd.f32 0.0, %v703
      %705 = vmatmul.bf16.gmra.mxu0 %v682
      %v706 = vpop.f32.mrf.mxu0
      %v707 = vadd.f32 0.0, %v706
      %v708 = vpop.f32.mrf.mxu0
      %v709 = vadd.f32 0.0, %v708
      %710 = vmatmul.bf16.gmra.mxu0 %v685
      %v711 = vpop.f32.mrf.mxu0
      %v712 = vadd.f32 0.0, %v711
      %v713 = vpop.f32.mrf.mxu0
      %v714 = vadd.f32 0.0, %v713
      %715 = vdwg.mxu0
      %v716 = vadd.f32 %v592, %v697
      %v717 = vadd.f32 %v594, %v699
      %v718 = vadd.f32 %v597, %v702
      %v719 = vadd.f32 %v599, %v704
      %v720 = vadd.f32 %v602, %v707
      %v721 = vadd.f32 %v604, %v709
      %v722 = vadd.f32 %v607, %v712
      %v723 = vadd.f32 %v609, %v714
      %s724 = scalar_lea.vmem %s3, 24
      %v725 = vld [vmem:[%s724] sm:$0xf]
      %v726 = vld [vmem:[%s724 + $0x4] sm:$0xf]
      %v728 = vunpack.c.l.b16 %v360
      %v729 = vpack.c.b16 %v554, %v553
      %v730 = vpack.c.b16 %v556, %v555
      %v731 = vpack.c.b16 %v558, %v557
      %v732 = vpack.c.b16 %v728, %v559
      %v735 = vunpack.c.l.b16 %v725
      %v736 = vunpack.c.l.b16 %v726
      %v737 = vpack.c.b16 %v736, %v735
      %v740 = vsel %vm502, %v729, 0
      %v743 = vsel %vm502, %v730, 0
      %v746 = vsel %vm502, %v731, 0
      %v749 = vsel %vm502, %v732, 0
      %751 = vmatpush.bf16.msra.mxu0 0
      %752 = vmatpush.bf16.msra.mxu0 0
      %753 = vmatpush.bf16.msra.mxu0 0
      %754 = vmatpush.bf16.msra.mxu0 0
      %755 = vmatpush.bf16.msra.mxu0 0
      %756 = vmatpush.bf16.msra.mxu0 0
      %757 = vmatpush.bf16.msra.mxu0 0
      %758 = vmatpush.bf16.msra.mxu0 %v737
      %759 = vmatmul.bf16.gmra.mxu0 %v740
      %v760 = vpop.f32.mrf.mxu0
      %v761 = vadd.f32 0.0, %v760
      %v762 = vpop.f32.mrf.mxu0
      %v763 = vadd.f32 0.0, %v762
      %764 = vmatmul.bf16.gmra.mxu0 %v743
      %v765 = vpop.f32.mrf.mxu0
      %v766 = vadd.f32 0.0, %v765
      %v767 = vpop.f32.mrf.mxu0
      %v768 = vadd.f32 0.0, %v767
      %769 = vmatmul.bf16.gmra.mxu0 %v746
      %v770 = vpop.f32.mrf.mxu0
      %v771 = vadd.f32 0.0, %v770
      %v772 = vpop.f32.mrf.mxu0
      %v773 = vadd.f32 0.0, %v772
      %774 = vmatmul.bf16.gmra.mxu0 %v749
      %v775 = vpop.f32.mrf.mxu0
      %v776 = vadd.f32 0.0, %v775
      %v777 = vpop.f32.mrf.mxu0
      %v778 = vadd.f32 0.0, %v777
      %779 = vdwg.mxu0
      %v780 = vadd.f32 %v716, %v761
      %v781 = vadd.f32 %v717, %v763
      %v782 = vadd.f32 %v718, %v766
      %v783 = vadd.f32 %v719, %v768
      %v784 = vadd.f32 %v720, %v771
      %v785 = vadd.f32 %v721, %v773
      %v786 = vadd.f32 %v722, %v776
      %v787 = vadd.f32 %v723, %v778
      %v789 = vshrl.u32 %v360, 16
      %v791 = vrot.slane %v789, 4
      %v792 = vshll.u32 %v360, 16
      %v794 = vrot.slane %v792, 5
      %v795 = vor.u32 %v791, %v794
      %v796 = vrot.slane %v795, 4
      %v798 = vshll.u32 %v361, 16
      %v800 = vrot.slane %v798, 5
      %v801 = vsel %vm368, %v796, %v800
      %s802 = scalar_lea.vmem %s3, 32
      %v803 = vld [vmem:[%s802] sm:$0xf]
      %v804 = vld [vmem:[%s802 + $0x4] sm:$0xf]
      %v805 = vunpack.c.l.b16 %v801
      %v806 = vpack.c.b16 %v486, %v485
      %v807 = vpack.c.b16 %v488, %v487
      %v808 = vpack.c.b16 %v490, %v489
      %v809 = vpack.c.b16 %v805, %v491
      %v812 = vunpack.c.l.b16 %v803
      %v813 = vunpack.c.l.b16 %v804
      %v814 = vpack.c.b16 %v813, %v812
      %v817 = vsel %vm502, %v806, 0
      %v820 = vsel %vm502, %v807, 0
      %v823 = vsel %vm502, %v808, 0
      %v826 = vsel %vm502, %v809, 0
      %828 = vmatpush.bf16.msra.mxu0 0
      %829 = vmatpush.bf16.msra.mxu0 0
      %830 = vmatpush.bf16.msra.mxu0 0
      %831 = vmatpush.bf16.msra.mxu0 0
      %832 = vmatpush.bf16.msra.mxu0 0
      %833 = vmatpush.bf16.msra.mxu0 0
      %834 = vmatpush.bf16.msra.mxu0 0
      %835 = vmatpush.bf16.msra.mxu0 %v814
      %836 = vmatmul.bf16.gmra.mxu0 %v817
      %v837 = vpop.f32.mrf.mxu0
      %v838 = vadd.f32 0.0, %v837
      %v839 = vpop.f32.mrf.mxu0
      %v840 = vadd.f32 0.0, %v839
      %841 = vmatmul.bf16.gmra.mxu0 %v820
      %v842 = vpop.f32.mrf.mxu0
      %v843 = vadd.f32 0.0, %v842
      %v844 = vpop.f32.mrf.mxu0
      %v845 = vadd.f32 0.0, %v844
      %846 = vmatmul.bf16.gmra.mxu0 %v823
      %v847 = vpop.f32.mrf.mxu0
      %v848 = vadd.f32 0.0, %v847
      %v849 = vpop.f32.mrf.mxu0
      %v850 = vadd.f32 0.0, %v849
      %851 = vmatmul.bf16.gmra.mxu0 %v826
      %v852 = vpop.f32.mrf.mxu0
      %v853 = vadd.f32 0.0, %v852
      %v854 = vpop.f32.mrf.mxu0
      %v855 = vadd.f32 0.0, %v854
      %856 = vdwg.mxu0
      %v857 = vadd.f32 %v780, %v838
      %v858 = vadd.f32 %v781, %v840
      %v859 = vadd.f32 %v782, %v843
      %v860 = vadd.f32 %v783, %v845
      %v861 = vadd.f32 %v784, %v848
      %v862 = vadd.f32 %v785, %v850
      %v863 = vadd.f32 %v786, %v853
      %v864 = vadd.f32 %v787, %v855
      %v866 = vrot.slane %v360, 5
      %v867 = vrot.slane %v866, 4
      %v868 = vrot.slane %v361, 5
      %v869 = vsel %vm621, %v867, %v868
      %s870 = scalar_lea.vmem %s3, 40
      %v871 = vld [vmem:[%s870] sm:$0xf]
      %v872 = vld [vmem:[%s870 + $0x4] sm:$0xf]
      %v873 = vunpack.c.l.b16 %v869
      %v874 = vpack.c.b16 %v659, %v658
      %v875 = vpack.c.b16 %v661, %v660
      %v876 = vpack.c.b16 %v663, %v662
      %v877 = vpack.c.b16 %v873, %v664
      %v880 = vunpack.c.l.b16 %v871
      %v881 = vunpack.c.l.b16 %v872
      %v882 = vpack.c.b16 %v881, %v880
      %v885 = vsel %vm502, %v874, 0
      %v888 = vsel %vm502, %v875, 0
      %v891 = vsel %vm502, %v876, 0
      %v894 = vsel %vm502, %v877, 0
      %896 = vmatpush.bf16.msra.mxu0 0
      %897 = vmatpush.bf16.msra.mxu0 0
      %898 = vmatpush.bf16.msra.mxu0 0
      %899 = vmatpush.bf16.msra.mxu0 0
      %900 = vmatpush.bf16.msra.mxu0 0
      %901 = vmatpush.bf16.msra.mxu0 0
      %902 = vmatpush.bf16.msra.mxu0 0
      %903 = vmatpush.bf16.msra.mxu0 %v882
      %904 = vmatmul.bf16.gmra.mxu0 %v885
      %v905 = vpop.f32.mrf.mxu0
      %v906 = vadd.f32 0.0, %v905
      %v907 = vpop.f32.mrf.mxu0
      %v908 = vadd.f32 0.0, %v907
      %909 = vmatmul.bf16.gmra.mxu0 %v888
      %v910 = vpop.f32.mrf.mxu0
      %v911 = vadd.f32 0.0, %v910
      %v912 = vpop.f32.mrf.mxu0
      %v913 = vadd.f32 0.0, %v912
      %914 = vmatmul.bf16.gmra.mxu0 %v891
      %v915 = vpop.f32.mrf.mxu0
      %v916 = vadd.f32 0.0, %v915
      %v917 = vpop.f32.mrf.mxu0
      %v918 = vadd.f32 0.0, %v917
      %919 = vmatmul.bf16.gmra.mxu0 %v894
      %v920 = vpop.f32.mrf.mxu0
      %v921 = vadd.f32 0.0, %v920
      %v922 = vpop.f32.mrf.mxu0
      %v923 = vadd.f32 0.0, %v922
      %924 = vdwg.mxu0
      %v925 = vadd.f32 %v857, %v906
      %v926 = vadd.f32 %v858, %v908
      %v927 = vadd.f32 %v859, %v911
      %v928 = vadd.f32 %v860, %v913
      %v929 = vadd.f32 %v861, %v916
      %v930 = vadd.f32 %v862, %v918
      %v931 = vadd.f32 %v863, %v921
      %v932 = vadd.f32 %v864, %v923
      %s933 = scalar_lea.vmem %s3, 48
      %v934 = vld [vmem:[%s933] sm:$0xf]
      %v935 = vld [vmem:[%s933 + $0x4] sm:$0xf]
      %v937 = vunpack.c.l.b16 %v362
      %v938 = vpack.c.b16 %v937, %v728
      %v941 = vunpack.c.l.b16 %v934
      %v942 = vunpack.c.l.b16 %v935
      %v943 = vpack.c.b16 %v942, %v941
      %v946 = vsel %vm502, %v938, 0
      %948 = vmatpush.bf16.msra.mxu0 0
      %949 = vmatpush.bf16.msra.mxu0 0
      %950 = vmatpush.bf16.msra.mxu0 0
      %951 = vmatpush.bf16.msra.mxu0 0
      %952 = vmatpush.bf16.msra.mxu0 0
      %953 = vmatpush.bf16.msra.mxu0 0
      %954 = vmatpush.bf16.msra.mxu0 0
      %955 = vmatpush.bf16.msra.mxu0 %v943
      %956 = vmatmul.bf16.gmra.mxu0 %v574
      %v957 = vpop.f32.mrf.mxu0
      %v958 = vadd.f32 0.0, %v957
      %v959 = vpop.f32.mrf.mxu0
      %v960 = vadd.f32 0.0, %v959
      %961 = vmatmul.bf16.gmra.mxu0 %v577
      %v962 = vpop.f32.mrf.mxu0
      %v963 = vadd.f32 0.0, %v962
      %v964 = vpop.f32.mrf.mxu0
      %v965 = vadd.f32 0.0, %v964
      %966 = vmatmul.bf16.gmra.mxu0 %v580
      %v967 = vpop.f32.mrf.mxu0
      %v968 = vadd.f32 0.0, %v967
      %v969 = vpop.f32.mrf.mxu0
      %v970 = vadd.f32 0.0, %v969
      %971 = vmatmul.bf16.gmra.mxu0 %v946
      %v972 = vpop.f32.mrf.mxu0
      %v973 = vadd.f32 0.0, %v972
      %v974 = vpop.f32.mrf.mxu0
      %v975 = vadd.f32 0.0, %v974
      %976 = vdwg.mxu0
      %v977 = vadd.f32 %v925, %v958
      %v978 = vadd.f32 %v926, %v960
      %v979 = vadd.f32 %v927, %v963
      %v980 = vadd.f32 %v928, %v965
      %v981 = vadd.f32 %v929, %v968
      %v982 = vadd.f32 %v930, %v970
      %v983 = vadd.f32 %v931, %v973
      %v984 = vadd.f32 %v932, %v975
      %v986 = vshrl.u32 %v362, 16
      %v988 = vrot.slane %v986, 4
      %v989 = vshll.u32 %v362, 16
      %v991 = vrot.slane %v989, 5
      %v992 = vor.u32 %v988, %v991
      %v993 = vrot.slane %v992, 4
      %v995 = vshll.u32 %v363, 16
      %v997 = vrot.slane %v995, 5
      %v998 = vsel %vm368, %v993, %v997
      %s999 = scalar_lea.vmem %s3, 56
      %v1000 = vld [vmem:[%s999] sm:$0xf]
      %v1001 = vld [vmem:[%s999 + $0x4] sm:$0xf]
      %v1002 = vunpack.c.l.b16 %v998
      %v1003 = vpack.c.b16 %v1002, %v805
      %v1006 = vunpack.c.l.b16 %v1000
      %v1007 = vunpack.c.l.b16 %v1001
      %v1008 = vpack.c.b16 %v1007, %v1006
      %v1011 = vsel %vm502, %v1003, 0
      %1013 = vmatpush.bf16.msra.mxu0 0
      %1014 = vmatpush.bf16.msra.mxu0 0
      %1015 = vmatpush.bf16.msra.mxu0 0
      %1016 = vmatpush.bf16.msra.mxu0 0
      %1017 = vmatpush.bf16.msra.mxu0 0
      %1018 = vmatpush.bf16.msra.mxu0 0
      %1019 = vmatpush.bf16.msra.mxu0 0
      %1020 = vmatpush.bf16.msra.mxu0 %v1008
      %1021 = vmatmul.bf16.gmra.mxu0 %v507
      %v1022 = vpop.f32.mrf.mxu0
      %v1023 = vadd.f32 0.0, %v1022
      %v1024 = vpop.f32.mrf.mxu0
      %v1025 = vadd.f32 0.0, %v1024
      %1026 = vmatmul.bf16.gmra.mxu0 %v510
      %v1027 = vpop.f32.mrf.mxu0
      %v1028 = vadd.f32 0.0, %v1027
      %v1029 = vpop.f32.mrf.mxu0
      %v1030 = vadd.f32 0.0, %v1029
      %1031 = vmatmul.bf16.gmra.mxu0 %v513
      %v1032 = vpop.f32.mrf.mxu0
      %v1033 = vadd.f32 0.0, %v1032
      %v1034 = vpop.f32.mrf.mxu0
      %v1035 = vadd.f32 0.0, %v1034
      %1036 = vmatmul.bf16.gmra.mxu0 %v1011
      %v1037 = vpop.f32.mrf.mxu0
      %v1038 = vadd.f32 0.0, %v1037
      %v1039 = vpop.f32.mrf.mxu0
      %v1040 = vadd.f32 0.0, %v1039
      %1041 = vdwg.mxu0
      %v1042 = vadd.f32 %v977, %v1023
      %v1043 = vadd.f32 %v978, %v1025
      %v1044 = vadd.f32 %v979, %v1028
      %v1045 = vadd.f32 %v980, %v1030
      %v1046 = vadd.f32 %v981, %v1033
      %v1047 = vadd.f32 %v982, %v1035
      %v1048 = vadd.f32 %v983, %v1038
      %v1049 = vadd.f32 %v984, %v1040
      %v1051 = vrot.slane %v362, 5
      %v1052 = vrot.slane %v1051, 4
      %v1053 = vrot.slane %v363, 5
      %v1054 = vsel %vm621, %v1052, %v1053
      %s1055 = scalar_lea.vmem %s3, 64
      %v1056 = vld [vmem:[%s1055] sm:$0xf]
      %v1057 = vld [vmem:[%s1055 + $0x4] sm:$0xf]
      %v1058 = vunpack.c.l.b16 %v1054
      %v1059 = vpack.c.b16 %v1058, %v873
      %v1062 = vunpack.c.l.b16 %v1056
      %v1063 = vunpack.c.l.b16 %v1057
      %v1064 = vpack.c.b16 %v1063, %v1062
      %v1067 = vsel %vm502, %v1059, 0
      %1069 = vmatpush.bf16.msra.mxu0 0
      %1070 = vmatpush.bf16.msra.mxu0 0
      %1071 = vmatpush.bf16.msra.mxu0 0
      %1072 = vmatpush.bf16.msra.mxu0 0
      %1073 = vmatpush.bf16.msra.mxu0 0
      %1074 = vmatpush.bf16.msra.mxu0 0
      %1075 = vmatpush.bf16.msra.mxu0 0
      %1076 = vmatpush.bf16.msra.mxu0 %v1064
      %1077 = vmatmul.bf16.gmra.mxu0 %v679
      %v1078 = vpop.f32.mrf.mxu0
      %v1079 = vadd.f32 0.0, %v1078
      %v1080 = vpop.f32.mrf.mxu0
      %v1081 = vadd.f32 0.0, %v1080
      %1082 = vmatmul.bf16.gmra.mxu0 %v682
      %v1083 = vpop.f32.mrf.mxu0
      %v1084 = vadd.f32 0.0, %v1083
      %v1085 = vpop.f32.mrf.mxu0
      %v1086 = vadd.f32 0.0, %v1085
      %1087 = vmatmul.bf16.gmra.mxu0 %v685
      %v1088 = vpop.f32.mrf.mxu0
      %v1089 = vadd.f32 0.0, %v1088
      %v1090 = vpop.f32.mrf.mxu0
      %v1091 = vadd.f32 0.0, %v1090
      %1092 = vmatmul.bf16.gmra.mxu0 %v1067
      %v1093 = vpop.f32.mrf.mxu0
      %v1094 = vadd.f32 0.0, %v1093
      %v1095 = vpop.f32.mrf.mxu0
      %v1096 = vadd.f32 0.0, %v1095
      %1097 = vdwg.mxu0
      %v1098 = vadd.f32 %v1042, %v1079
      %v1099 = vadd.f32 %v1043, %v1081
      %v1100 = vadd.f32 %v1044, %v1084
      %v1101 = vadd.f32 %v1045, %v1086
      %v1102 = vadd.f32 %v1046, %v1089
      %v1103 = vadd.f32 %v1047, %v1091
      %v1104 = vadd.f32 %v1048, %v1094
      %v1105 = vadd.f32 %v1049, %v1096
      %v1106 = vld [vmem:[%s321] sm:$0xf]
      %v1107 = vld [vmem:[%s321 + $0x4] sm:$0x1]
      %v1108 = vld [vmem:[%s321 + $0x8] sm:$0xf]
      %v1109 = vld [vmem:[%s321 + $0xc] sm:$0x1]
      %v1110 = vld [vmem:[%s321 + $0x10] sm:$0xf]
      %v1111 = vld [vmem:[%s321 + $0x14] sm:$0x1]
      %v1112 = vld [vmem:[%s321 + $0x18] sm:$0xf]
      %v1113 = vld [vmem:[%s321 + $0x1c] sm:$0x1]
      %v1114 = vld [vmem:[%s321 + $0x20] sm:$0xf]
      %v1115 = vld [vmem:[%s321 + $0x24] sm:$0x1]
      %v1116 = vld [vmem:[%s321 + $0x28] sm:$0xf]
      %v1117 = vld [vmem:[%s321 + $0x2c] sm:$0x1]
      %v1118 = vld [vmem:[%s321 + $0x30] sm:$0xf]
      %v1119 = vld [vmem:[%s321 + $0x34] sm:$0x1]
      %v1120 = vld [vmem:[%s321 + $0x38] sm:$0xf]
      %v1121 = vld [vmem:[%s321 + $0x3c] sm:$0x1]
      %v1122 = vld [vmem:[%s321 + $0x40] sm:$0xf]
      %v1123 = vld [vmem:[%s321 + $0x44] sm:$0x1]
      %v1124 = vld [vmem:[%s321 + $0x48] sm:$0xf]
      %v1125 = vld [vmem:[%s321 + $0x4c] sm:$0x1]
      %s1126 = scalar_lea.vmem %s3, 72
      %v1127 = vld [vmem:[%s1126] sm:$0xf]
      %v1128 = vld [vmem:[%s1126 + $0x4] sm:$0xf]
      %v1137 = vunpack.c.l.b16 %v1106
      %v1138 = vunpack.c.l.b16 %v1108
      %v1139 = vunpack.c.l.b16 %v1110
      %v1140 = vunpack.c.l.b16 %v1112
      %v1141 = vunpack.c.l.b16 %v1114
      %v1142 = vunpack.c.l.b16 %v1116
      %v1143 = vunpack.c.l.b16 %v1118
      %v1144 = vunpack.c.l.b16 %v1120
      %v1145 = vpack.c.b16 %v1138, %v1137
      %v1146 = vpack.c.b16 %v1140, %v1139
      %v1147 = vpack.c.b16 %v1142, %v1141
      %v1148 = vpack.c.b16 %v1144, %v1143
      %v1151 = vunpack.c.l.b16 %v1127
      %v1152 = vunpack.c.l.b16 %v1128
      %v1153 = vpack.c.b16 %v1152, %v1151
      %v1156 = vsel %vm502, %v1145, 0
      %v1159 = vsel %vm502, %v1146, 0
      %v1162 = vsel %vm502, %v1147, 0
      %v1165 = vsel %vm502, %v1148, 0
      %1167 = vmatpush.bf16.msra.mxu0 0
      %1168 = vmatpush.bf16.msra.mxu0 0
      %1169 = vmatpush.bf16.msra.mxu0 0
      %1170 = vmatpush.bf16.msra.mxu0 0
      %1171 = vmatpush.bf16.msra.mxu0 0
      %1172 = vmatpush.bf16.msra.mxu0 0
      %1173 = vmatpush.bf16.msra.mxu0 0
      %1174 = vmatpush.bf16.msra.mxu0 %v1153
      %1175 = vmatmul.bf16.gmra.mxu0 %v1156
      %v1176 = vpop.f32.mrf.mxu0
      %v1177 = vadd.f32 0.0, %v1176
      %v1178 = vpop.f32.mrf.mxu0
      %v1179 = vadd.f32 0.0, %v1178
      %1180 = vmatmul.bf16.gmra.mxu0 %v1159
      %v1181 = vpop.f32.mrf.mxu0
      %v1182 = vadd.f32 0.0, %v1181
      %v1183 = vpop.f32.mrf.mxu0
      %v1184 = vadd.f32 0.0, %v1183
      %1185 = vmatmul.bf16.gmra.mxu0 %v1162
      %v1186 = vpop.f32.mrf.mxu0
      %v1187 = vadd.f32 0.0, %v1186
      %v1188 = vpop.f32.mrf.mxu0
      %v1189 = vadd.f32 0.0, %v1188
      %1190 = vmatmul.bf16.gmra.mxu0 %v1165
      %v1191 = vpop.f32.mrf.mxu0
      %v1192 = vadd.f32 0.0, %v1191
      %v1193 = vpop.f32.mrf.mxu0
      %v1194 = vadd.f32 0.0, %v1193
      %1195 = vdwg.mxu0
      %v1196 = vadd.f32 %v1098, %v1177
      %v1197 = vadd.f32 %v1099, %v1179
      %v1198 = vadd.f32 %v1100, %v1182
      %v1199 = vadd.f32 %v1101, %v1184
      %v1200 = vadd.f32 %v1102, %v1187
      %v1201 = vadd.f32 %v1103, %v1189
      %v1202 = vadd.f32 %v1104, %v1192
      %v1203 = vadd.f32 %v1105, %v1194
      %v1205 = vshrl.u32 %v1106, 16
      %v1207 = vrot.slane %v1205, 4
      %v1208 = vshll.u32 %v1106, 16
      %v1210 = vrot.slane %v1208, 5
      %v1211 = vor.u32 %v1207, %v1210
      %v1212 = vrot.slane %v1211, 4
      %v1214 = vshll.u32 %v1107, 16
      %v1216 = vrot.slane %v1214, 5
      %v1217 = vsel %vm368, %v1212, %v1216
      %v1219 = vshrl.u32 %v1108, 16
      %v1221 = vrot.slane %v1219, 4
      %v1222 = vshll.u32 %v1108, 16
      %v1224 = vrot.slane %v1222, 5
      %v1225 = vor.u32 %v1221, %v1224
      %v1226 = vrot.slane %v1225, 4
      %v1228 = vshll.u32 %v1109, 16
      %v1230 = vrot.slane %v1228, 5
      %v1231 = vsel %vm368, %v1226, %v1230
      %v1233 = vshrl.u32 %v1110, 16
      %v1235 = vrot.slane %v1233, 4
      %v1236 = vshll.u32 %v1110, 16
      %v1238 = vrot.slane %v1236, 5
      %v1239 = vor.u32 %v1235, %v1238
      %v1240 = vrot.slane %v1239, 4
      %v1242 = vshll.u32 %v1111, 16
      %v1244 = vrot.slane %v1242, 5
      %v1245 = vsel %vm368, %v1240, %v1244
      %v1247 = vshrl.u32 %v1112, 16
      %v1249 = vrot.slane %v1247, 4
      %v1250 = vshll.u32 %v1112, 16
      %v1252 = vrot.slane %v1250, 5
      %v1253 = vor.u32 %v1249, %v1252
      %v1254 = vrot.slane %v1253, 4
      %v1256 = vshll.u32 %v1113, 16
      %v1258 = vrot.slane %v1256, 5
      %v1259 = vsel %vm368, %v1254, %v1258
      %v1261 = vshrl.u32 %v1114, 16
      %v1263 = vrot.slane %v1261, 4
      %v1264 = vshll.u32 %v1114, 16
      %v1266 = vrot.slane %v1264, 5
      %v1267 = vor.u32 %v1263, %v1266
      %v1268 = vrot.slane %v1267, 4
      %v1270 = vshll.u32 %v1115, 16
      %v1272 = vrot.slane %v1270, 5
      %v1273 = vsel %vm368, %v1268, %v1272
      %v1275 = vshrl.u32 %v1116, 16
      %v1277 = vrot.slane %v1275, 4
      %v1278 = vshll.u32 %v1116, 16
      %v1280 = vrot.slane %v1278, 5
      %v1281 = vor.u32 %v1277, %v1280
      %v1282 = vrot.slane %v1281, 4
      %v1284 = vshll.u32 %v1117, 16
      %v1286 = vrot.slane %v1284, 5
      %v1287 = vsel %vm368, %v1282, %v1286
      %v1289 = vshrl.u32 %v1118, 16
      %v1291 = vrot.slane %v1289, 4
      %v1292 = vshll.u32 %v1118, 16
      %v1294 = vrot.slane %v1292, 5
      %v1295 = vor.u32 %v1291, %v1294
      %v1296 = vrot.slane %v1295, 4
      %v1298 = vshll.u32 %v1119, 16
      %v1300 = vrot.slane %v1298, 5
      %v1301 = vsel %vm368, %v1296, %v1300
      %v1303 = vshrl.u32 %v1120, 16
      %v1305 = vrot.slane %v1303, 4
      %v1306 = vshll.u32 %v1120, 16
      %v1308 = vrot.slane %v1306, 5
      %v1309 = vor.u32 %v1305, %v1308
      %v1310 = vrot.slane %v1309, 4
      %v1312 = vshll.u32 %v1121, 16
      %v1314 = vrot.slane %v1312, 5
      %v1315 = vsel %vm368, %v1310, %v1314
      %s1316 = scalar_lea.vmem %s3, 80
      %v1317 = vld [vmem:[%s1316] sm:$0xf]
      %v1318 = vld [vmem:[%s1316 + $0x4] sm:$0xf]
      %v1319 = vunpack.c.l.b16 %v1217
      %v1320 = vunpack.c.l.b16 %v1231
      %v1321 = vunpack.c.l.b16 %v1245
      %v1322 = vunpack.c.l.b16 %v1259
      %v1323 = vunpack.c.l.b16 %v1273
      %v1324 = vunpack.c.l.b16 %v1287
      %v1325 = vunpack.c.l.b16 %v1301
      %v1326 = vunpack.c.l.b16 %v1315
      %v1327 = vpack.c.b16 %v1320, %v1319
      %v1328 = vpack.c.b16 %v1322, %v1321
      %v1329 = vpack.c.b16 %v1324, %v1323
      %v1330 = vpack.c.b16 %v1326, %v1325
      %v1333 = vunpack.c.l.b16 %v1317
      %v1334 = vunpack.c.l.b16 %v1318
      %v1335 = vpack.c.b16 %v1334, %v1333
      %v1338 = vsel %vm502, %v1327, 0
      %v1341 = vsel %vm502, %v1328, 0
      %v1344 = vsel %vm502, %v1329, 0
      %v1347 = vsel %vm502, %v1330, 0
      %1349 = vmatpush.bf16.msra.mxu0 0
      %1350 = vmatpush.bf16.msra.mxu0 0
      %1351 = vmatpush.bf16.msra.mxu0 0
      %1352 = vmatpush.bf16.msra.mxu0 0
      %1353 = vmatpush.bf16.msra.mxu0 0
      %1354 = vmatpush.bf16.msra.mxu0 0
      %1355 = vmatpush.bf16.msra.mxu0 0
      %1356 = vmatpush.bf16.msra.mxu0 %v1335
      %1357 = vmatmul.bf16.gmra.mxu0 %v1338
      %v1358 = vpop.f32.mrf.mxu0
      %v1359 = vadd.f32 0.0, %v1358
      %v1360 = vpop.f32.mrf.mxu0
      %v1361 = vadd.f32 0.0, %v1360
      %1362 = vmatmul.bf16.gmra.mxu0 %v1341
      %v1363 = vpop.f32.mrf.mxu0
      %v1364 = vadd.f32 0.0, %v1363
      %v1365 = vpop.f32.mrf.mxu0
      %v1366 = vadd.f32 0.0, %v1365
      %1367 = vmatmul.bf16.gmra.mxu0 %v1344
      %v1368 = vpop.f32.mrf.mxu0
      %v1369 = vadd.f32 0.0, %v1368
      %v1370 = vpop.f32.mrf.mxu0
      %v1371 = vadd.f32 0.0, %v1370
      %1372 = vmatmul.bf16.gmra.mxu0 %v1347
      %v1373 = vpop.f32.mrf.mxu0
      %v1374 = vadd.f32 0.0, %v1373
      %v1375 = vpop.f32.mrf.mxu0
      %v1376 = vadd.f32 0.0, %v1375
      %1377 = vdwg.mxu0
      %v1378 = vadd.f32 %v1196, %v1359
      %v1379 = vadd.f32 %v1197, %v1361
      %v1380 = vadd.f32 %v1198, %v1364
      %v1381 = vadd.f32 %v1199, %v1366
      %v1382 = vadd.f32 %v1200, %v1369
      %v1383 = vadd.f32 %v1201, %v1371
      %v1384 = vadd.f32 %v1202, %v1374
      %v1385 = vadd.f32 %v1203, %v1376
      %v1394 = vrot.slane %v1106, 5
      %v1395 = vrot.slane %v1394, 4
      %v1396 = vrot.slane %v1107, 5
      %v1397 = vsel %vm621, %v1395, %v1396
      %v1398 = vrot.slane %v1108, 5
      %v1399 = vrot.slane %v1398, 4
      %v1400 = vrot.slane %v1109, 5
      %v1401 = vsel %vm621, %v1399, %v1400
      %v1402 = vrot.slane %v1110, 5
      %v1403 = vrot.slane %v1402, 4
      %v1404 = vrot.slane %v1111, 5
      %v1405 = vsel %vm621, %v1403, %v1404
      %v1406 = vrot.slane %v1112, 5
      %v1407 = vrot.slane %v1406, 4
      %v1408 = vrot.slane %v1113, 5
      %v1409 = vsel %vm621, %v1407, %v1408
      %v1410 = vrot.slane %v1114, 5
      %v1411 = vrot.slane %v1410, 4
      %v1412 = vrot.slane %v1115, 5
      %v1413 = vsel %vm621, %v1411, %v1412
      %v1414 = vrot.slane %v1116, 5
      %v1415 = vrot.slane %v1414, 4
      %v1416 = vrot.slane %v1117, 5
      %v1417 = vsel %vm621, %v1415, %v1416
      %v1418 = vrot.slane %v1118, 5
      %v1419 = vrot.slane %v1418, 4
      %v1420 = vrot.slane %v1119, 5
      %v1421 = vsel %vm621, %v1419, %v1420
      %v1422 = vrot.slane %v1120, 5
      %v1423 = vrot.slane %v1422, 4
      %v1424 = vrot.slane %v1121, 5
      %v1425 = vsel %vm621, %v1423, %v1424
      %s1426 = scalar_lea.vmem %s3, 88
      %v1427 = vld [vmem:[%s1426] sm:$0xf]
      %v1428 = vld [vmem:[%s1426 + $0x4] sm:$0xf]
      %v1429 = vunpack.c.l.b16 %v1397
      %v1430 = vunpack.c.l.b16 %v1401
      %v1431 = vunpack.c.l.b16 %v1405
      %v1432 = vunpack.c.l.b16 %v1409
      %v1433 = vunpack.c.l.b16 %v1413
      %v1434 = vunpack.c.l.b16 %v1417
      %v1435 = vunpack.c.l.b16 %v1421
      %v1436 = vunpack.c.l.b16 %v1425
      %v1437 = vpack.c.b16 %v1430, %v1429
      %v1438 = vpack.c.b16 %v1432, %v1431
      %v1439 = vpack.c.b16 %v1434, %v1433
      %v1440 = vpack.c.b16 %v1436, %v1435
      %v1443 = vunpack.c.l.b16 %v1427
      %v1444 = vunpack.c.l.b16 %v1428
      %v1445 = vpack.c.b16 %v1444, %v1443
      %v1448 = vsel %vm502, %v1437, 0
      %v1451 = vsel %vm502, %v1438, 0
      %v1454 = vsel %vm502, %v1439, 0
      %v1457 = vsel %vm502, %v1440, 0
      %1459 = vmatpush.bf16.msra.mxu0 0
      %1460 = vmatpush.bf16.msra.mxu0 0
      %1461 = vmatpush.bf16.msra.mxu0 0
      %1462 = vmatpush.bf16.msra.mxu0 0
      %1463 = vmatpush.bf16.msra.mxu0 0
      %1464 = vmatpush.bf16.msra.mxu0 0
      %1465 = vmatpush.bf16.msra.mxu0 0
      %1466 = vmatpush.bf16.msra.mxu0 %v1445
      %1467 = vmatmul.bf16.gmra.mxu0 %v1448
      %v1468 = vpop.f32.mrf.mxu0
      %v1469 = vadd.f32 0.0, %v1468
      %v1470 = vpop.f32.mrf.mxu0
      %v1471 = vadd.f32 0.0, %v1470
      %1472 = vmatmul.bf16.gmra.mxu0 %v1451
      %v1473 = vpop.f32.mrf.mxu0
      %v1474 = vadd.f32 0.0, %v1473
      %v1475 = vpop.f32.mrf.mxu0
      %v1476 = vadd.f32 0.0, %v1475
      %1477 = vmatmul.bf16.gmra.mxu0 %v1454
      %v1478 = vpop.f32.mrf.mxu0
      %v1479 = vadd.f32 0.0, %v1478
      %v1480 = vpop.f32.mrf.mxu0
      %v1481 = vadd.f32 0.0, %v1480
      %1482 = vmatmul.bf16.gmra.mxu0 %v1457
      %v1483 = vpop.f32.mrf.mxu0
      %v1484 = vadd.f32 0.0, %v1483
      %v1485 = vpop.f32.mrf.mxu0
      %v1486 = vadd.f32 0.0, %v1485
      %1487 = vdwg.mxu0
      %v1488 = vadd.f32 %v1378, %v1469
      %v1489 = vadd.f32 %v1379, %v1471
      %v1490 = vadd.f32 %v1380, %v1474
      %v1491 = vadd.f32 %v1381, %v1476
      %v1492 = vadd.f32 %v1382, %v1479
      %v1493 = vadd.f32 %v1383, %v1481
      %v1494 = vadd.f32 %v1384, %v1484
      %v1495 = vadd.f32 %v1385, %v1486
      %s1496 = scalar_lea.vmem %s3, 96
      %v1497 = vld [vmem:[%s1496] sm:$0xf]
      %v1498 = vld [vmem:[%s1496 + $0x4] sm:$0xf]
      %v1500 = vunpack.c.l.b16 %v1122
      %v1501 = vpack.c.b16 %v1139, %v1138
      %v1502 = vpack.c.b16 %v1141, %v1140
      %v1503 = vpack.c.b16 %v1143, %v1142
      %v1504 = vpack.c.b16 %v1500, %v1144
      %v1507 = vunpack.c.l.b16 %v1497
      %v1508 = vunpack.c.l.b16 %v1498
      %v1509 = vpack.c.b16 %v1508, %v1507
      %v1512 = vsel %vm502, %v1501, 0
      %v1515 = vsel %vm502, %v1502, 0
      %v1518 = vsel %vm502, %v1503, 0
      %v1521 = vsel %vm502, %v1504, 0
      %1523 = vmatpush.bf16.msra.mxu0 0
      %1524 = vmatpush.bf16.msra.mxu0 0
      %1525 = vmatpush.bf16.msra.mxu0 0
      %1526 = vmatpush.bf16.msra.mxu0 0
      %1527 = vmatpush.bf16.msra.mxu0 0
      %1528 = vmatpush.bf16.msra.mxu0 0
      %1529 = vmatpush.bf16.msra.mxu0 0
      %1530 = vmatpush.bf16.msra.mxu0 %v1509
      %1531 = vmatmul.bf16.gmra.mxu0 %v1512
      %v1532 = vpop.f32.mrf.mxu0
      %v1533 = vadd.f32 0.0, %v1532
      %v1534 = vpop.f32.mrf.mxu0
      %v1535 = vadd.f32 0.0, %v1534
      %1536 = vmatmul.bf16.gmra.mxu0 %v1515
      %v1537 = vpop.f32.mrf.mxu0
      %v1538 = vadd.f32 0.0, %v1537
      %v1539 = vpop.f32.mrf.mxu0
      %v1540 = vadd.f32 0.0, %v1539
      %1541 = vmatmul.bf16.gmra.mxu0 %v1518
      %v1542 = vpop.f32.mrf.mxu0
      %v1543 = vadd.f32 0.0, %v1542
      %v1544 = vpop.f32.mrf.mxu0
      %v1545 = vadd.f32 0.0, %v1544
      %1546 = vmatmul.bf16.gmra.mxu0 %v1521
      %v1547 = vpop.f32.mrf.mxu0
      %v1548 = vadd.f32 0.0, %v1547
      %v1549 = vpop.f32.mrf.mxu0
      %v1550 = vadd.f32 0.0, %v1549
      %1551 = vdwg.mxu0
      %v1552 = vadd.f32 %v1488, %v1533
      %v1553 = vadd.f32 %v1489, %v1535
      %v1554 = vadd.f32 %v1490, %v1538
      %v1555 = vadd.f32 %v1491, %v1540
      %v1556 = vadd.f32 %v1492, %v1543
      %v1557 = vadd.f32 %v1493, %v1545
      %v1558 = vadd.f32 %v1494, %v1548
      %v1559 = vadd.f32 %v1495, %v1550
      %v1561 = vshrl.u32 %v1122, 16
      %v1563 = vrot.slane %v1561, 4
      %v1564 = vshll.u32 %v1122, 16
      %v1566 = vrot.slane %v1564, 5
      %v1567 = vor.u32 %v1563, %v1566
      %v1568 = vrot.slane %v1567, 4
      %v1570 = vshll.u32 %v1123, 16
      %v1572 = vrot.slane %v1570, 5
      %v1573 = vsel %vm368, %v1568, %v1572
      %s1574 = scalar_lea.vmem %s3, 104
      %v1575 = vld [vmem:[%s1574] sm:$0xf]
      %v1576 = vld [vmem:[%s1574 + $0x4] sm:$0xf]
      %v1577 = vunpack.c.l.b16 %v1573
      %v1578 = vpack.c.b16 %v1321, %v1320
      %v1579 = vpack.c.b16 %v1323, %v1322
      %v1580 = vpack.c.b16 %v1325, %v1324
      %v1581 = vpack.c.b16 %v1577, %v1326
      %v1584 = vunpack.c.l.b16 %v1575
      %v1585 = vunpack.c.l.b16 %v1576
      %v1586 = vpack.c.b16 %v1585, %v1584
      %v1589 = vsel %vm502, %v1578, 0
      %v1592 = vsel %vm502, %v1579, 0
      %v1595 = vsel %vm502, %v1580, 0
      %v1598 = vsel %vm502, %v1581, 0
      %1600 = vmatpush.bf16.msra.mxu0 0
      %1601 = vmatpush.bf16.msra.mxu0 0
      %1602 = vmatpush.bf16.msra.mxu0 0
      %1603 = vmatpush.bf16.msra.mxu0 0
      %1604 = vmatpush.bf16.msra.mxu0 0
      %1605 = vmatpush.bf16.msra.mxu0 0
      %1606 = vmatpush.bf16.msra.mxu0 0
      %1607 = vmatpush.bf16.msra.mxu0 %v1586
      %1608 = vmatmul.bf16.gmra.mxu0 %v1589
      %v1609 = vpop.f32.mrf.mxu0
      %v1610 = vadd.f32 0.0, %v1609
      %v1611 = vpop.f32.mrf.mxu0
      %v1612 = vadd.f32 0.0, %v1611
      %1613 = vmatmul.bf16.gmra.mxu0 %v1592
      %v1614 = vpop.f32.mrf.mxu0
      %v1615 = vadd.f32 0.0, %v1614
      %v1616 = vpop.f32.mrf.mxu0
      %v1617 = vadd.f32 0.0, %v1616
      %1618 = vmatmul.bf16.gmra.mxu0 %v1595
      %v1619 = vpop.f32.mrf.mxu0
      %v1620 = vadd.f32 0.0, %v1619
      %v1621 = vpop.f32.mrf.mxu0
      %v1622 = vadd.f32 0.0, %v1621
      %1623 = vmatmul.bf16.gmra.mxu0 %v1598
      %v1624 = vpop.f32.mrf.mxu0
      %v1625 = vadd.f32 0.0, %v1624
      %v1626 = vpop.f32.mrf.mxu0
      %v1627 = vadd.f32 0.0, %v1626
      %1628 = vdwg.mxu0
      %v1629 = vadd.f32 %v1552, %v1610
      %v1630 = vadd.f32 %v1553, %v1612
      %v1631 = vadd.f32 %v1554, %v1615
      %v1632 = vadd.f32 %v1555, %v1617
      %v1633 = vadd.f32 %v1556, %v1620
      %v1634 = vadd.f32 %v1557, %v1622
      %v1635 = vadd.f32 %v1558, %v1625
      %v1636 = vadd.f32 %v1559, %v1627
      %v1638 = vrot.slane %v1122, 5
      %v1639 = vrot.slane %v1638, 4
      %v1640 = vrot.slane %v1123, 5
      %v1641 = vsel %vm621, %v1639, %v1640
      %s1642 = scalar_lea.vmem %s3, 112
      %v1643 = vld [vmem:[%s1642] sm:$0xf]
      %v1644 = vld [vmem:[%s1642 + $0x4] sm:$0xf]
      %v1645 = vunpack.c.l.b16 %v1641
      %v1646 = vpack.c.b16 %v1431, %v1430
      %v1647 = vpack.c.b16 %v1433, %v1432
      %v1648 = vpack.c.b16 %v1435, %v1434
      %v1649 = vpack.c.b16 %v1645, %v1436
      %v1652 = vunpack.c.l.b16 %v1643
      %v1653 = vunpack.c.l.b16 %v1644
      %v1654 = vpack.c.b16 %v1653, %v1652
      %v1657 = vsel %vm502, %v1646, 0
      %v1660 = vsel %vm502, %v1647, 0
      %v1663 = vsel %vm502, %v1648, 0
      %v1666 = vsel %vm502, %v1649, 0
      %1668 = vmatpush.bf16.msra.mxu0 0
      %1669 = vmatpush.bf16.msra.mxu0 0
      %1670 = vmatpush.bf16.msra.mxu0 0
      %1671 = vmatpush.bf16.msra.mxu0 0
      %1672 = vmatpush.bf16.msra.mxu0 0
      %1673 = vmatpush.bf16.msra.mxu0 0
      %1674 = vmatpush.bf16.msra.mxu0 0
      %1675 = vmatpush.bf16.msra.mxu0 %v1654
      %1676 = vmatmul.bf16.gmra.mxu0 %v1657
      %v1677 = vpop.f32.mrf.mxu0
      %v1678 = vadd.f32 0.0, %v1677
      %v1679 = vpop.f32.mrf.mxu0
      %v1680 = vadd.f32 0.0, %v1679
      %1681 = vmatmul.bf16.gmra.mxu0 %v1660
      %v1682 = vpop.f32.mrf.mxu0
      %v1683 = vadd.f32 0.0, %v1682
      %v1684 = vpop.f32.mrf.mxu0
      %v1685 = vadd.f32 0.0, %v1684
      %1686 = vmatmul.bf16.gmra.mxu0 %v1663
      %v1687 = vpop.f32.mrf.mxu0
      %v1688 = vadd.f32 0.0, %v1687
      %v1689 = vpop.f32.mrf.mxu0
      %v1690 = vadd.f32 0.0, %v1689
      %1691 = vmatmul.bf16.gmra.mxu0 %v1666
      %v1692 = vpop.f32.mrf.mxu0
      %v1693 = vadd.f32 0.0, %v1692
      %v1694 = vpop.f32.mrf.mxu0
      %v1695 = vadd.f32 0.0, %v1694
      %1696 = vdwg.mxu0
      %v1697 = vadd.f32 %v1629, %v1678
      %v1698 = vadd.f32 %v1630, %v1680
      %v1699 = vadd.f32 %v1631, %v1683
      %v1700 = vadd.f32 %v1632, %v1685
      %v1701 = vadd.f32 %v1633, %v1688
      %v1702 = vadd.f32 %v1634, %v1690
      %v1703 = vadd.f32 %v1635, %v1693
      %v1704 = vadd.f32 %v1636, %v1695
      %s1705 = scalar_lea.vmem %s3, 120
      %v1706 = vld [vmem:[%s1705] sm:$0xf]
      %v1707 = vld [vmem:[%s1705 + $0x4] sm:$0xf]
      %v1709 = vunpack.c.l.b16 %v1124
      %v1710 = vpack.c.b16 %v1709, %v1500
      %v1713 = vunpack.c.l.b16 %v1706
      %v1714 = vunpack.c.l.b16 %v1707
      %v1715 = vpack.c.b16 %v1714, %v1713
      %v1718 = vsel %vm502, %v1710, 0
      %1720 = vmatpush.bf16.msra.mxu0 0
      %1721 = vmatpush.bf16.msra.mxu0 0
      %1722 = vmatpush.bf16.msra.mxu0 0
      %1723 = vmatpush.bf16.msra.mxu0 0
      %1724 = vmatpush.bf16.msra.mxu0 0
      %1725 = vmatpush.bf16.msra.mxu0 0
      %1726 = vmatpush.bf16.msra.mxu0 0
      %1727 = vmatpush.bf16.msra.mxu0 %v1715
      %1728 = vmatmul.bf16.gmra.mxu0 %v1159
      %v1729 = vpop.f32.mrf.mxu0
      %v1730 = vadd.f32 0.0, %v1729
      %v1731 = vpop.f32.mrf.mxu0
      %v1732 = vadd.f32 0.0, %v1731
      %1733 = vmatmul.bf16.gmra.mxu0 %v1162
      %v1734 = vpop.f32.mrf.mxu0
      %v1735 = vadd.f32 0.0, %v1734
      %v1736 = vpop.f32.mrf.mxu0
      %v1737 = vadd.f32 0.0, %v1736
      %1738 = vmatmul.bf16.gmra.mxu0 %v1165
      %v1739 = vpop.f32.mrf.mxu0
      %v1740 = vadd.f32 0.0, %v1739
      %v1741 = vpop.f32.mrf.mxu0
      %v1742 = vadd.f32 0.0, %v1741
      %1743 = vmatmul.bf16.gmra.mxu0 %v1718
      %v1744 = vpop.f32.mrf.mxu0
      %v1745 = vadd.f32 0.0, %v1744
      %v1746 = vpop.f32.mrf.mxu0
      %v1747 = vadd.f32 0.0, %v1746
      %1748 = vdwg.mxu0
      %v1749 = vadd.f32 %v1697, %v1730
      %v1750 = vadd.f32 %v1698, %v1732
      %v1751 = vadd.f32 %v1699, %v1735
      %v1752 = vadd.f32 %v1700, %v1737
      %v1753 = vadd.f32 %v1701, %v1740
      %v1754 = vadd.f32 %v1702, %v1742
      %v1755 = vadd.f32 %v1703, %v1745
      %v1756 = vadd.f32 %v1704, %v1747
      %v1758 = vshrl.u32 %v1124, 16
      %v1760 = vrot.slane %v1758, 4
      %v1761 = vshll.u32 %v1124, 16
      %v1763 = vrot.slane %v1761, 5
      %v1764 = vor.u32 %v1760, %v1763
      %v1765 = vrot.slane %v1764, 4
      %v1767 = vshll.u32 %v1125, 16
      %v1769 = vrot.slane %v1767, 5
      %v1770 = vsel %vm368, %v1765, %v1769
      %s1771 = scalar_lea.vmem %s3, 128
      %v1772 = vld [vmem:[%s1771] sm:$0xf]
      %v1773 = vld [vmem:[%s1771 + $0x4] sm:$0xf]
      %v1774 = vunpack.c.l.b16 %v1770
      %v1775 = vpack.c.b16 %v1774, %v1577
      %v1778 = vunpack.c.l.b16 %v1772
      %v1779 = vunpack.c.l.b16 %v1773
      %v1780 = vpack.c.b16 %v1779, %v1778
      %v1783 = vsel %vm502, %v1775, 0
      %1785 = vmatpush.bf16.msra.mxu0 0
      %1786 = vmatpush.bf16.msra.mxu0 0
      %1787 = vmatpush.bf16.msra.mxu0 0
      %1788 = vmatpush.bf16.msra.mxu0 0
      %1789 = vmatpush.bf16.msra.mxu0 0
      %1790 = vmatpush.bf16.msra.mxu0 0
      %1791 = vmatpush.bf16.msra.mxu0 0
      %1792 = vmatpush.bf16.msra.mxu0 %v1780
      %1793 = vmatmul.bf16.gmra.mxu0 %v1341
      %v1794 = vpop.f32.mrf.mxu0
      %v1795 = vadd.f32 0.0, %v1794
      %v1796 = vpop.f32.mrf.mxu0
      %v1797 = vadd.f32 0.0, %v1796
      %1798 = vmatmul.bf16.gmra.mxu0 %v1344
      %v1799 = vpop.f32.mrf.mxu0
      %v1800 = vadd.f32 0.0, %v1799
      %v1801 = vpop.f32.mrf.mxu0
      %v1802 = vadd.f32 0.0, %v1801
      %1803 = vmatmul.bf16.gmra.mxu0 %v1347
      %v1804 = vpop.f32.mrf.mxu0
      %v1805 = vadd.f32 0.0, %v1804
      %v1806 = vpop.f32.mrf.mxu0
      %v1807 = vadd.f32 0.0, %v1806
      %1808 = vmatmul.bf16.gmra.mxu0 %v1783
      %v1809 = vpop.f32.mrf.mxu0
      %v1810 = vadd.f32 0.0, %v1809
      %v1811 = vpop.f32.mrf.mxu0
      %v1812 = vadd.f32 0.0, %v1811
      %1813 = vdwg.mxu0
      %v1814 = vadd.f32 %v1749, %v1795
      %v1815 = vadd.f32 %v1750, %v1797
      %v1816 = vadd.f32 %v1751, %v1800
      %v1817 = vadd.f32 %v1752, %v1802
      %v1818 = vadd.f32 %v1753, %v1805
      %v1819 = vadd.f32 %v1754, %v1807
      %v1820 = vadd.f32 %v1755, %v1810
      %v1821 = vadd.f32 %v1756, %v1812
      %v1823 = vrot.slane %v1124, 5
      %v1824 = vrot.slane %v1823, 4
      %v1825 = vrot.slane %v1125, 5
      %v1826 = vsel %vm621, %v1824, %v1825
      %s1827 = scalar_lea.vmem %s3, 136
      %v1828 = vld [vmem:[%s1827] sm:$0xf]
      %v1829 = vld [vmem:[%s1827 + $0x4] sm:$0xf]
      %v1830 = vunpack.c.l.b16 %v1826
      %v1831 = vpack.c.b16 %v1830, %v1645
      %v1834 = vunpack.c.l.b16 %v1828
      %v1835 = vunpack.c.l.b16 %v1829
      %v1836 = vpack.c.b16 %v1835, %v1834
      %v1839 = vsel %vm502, %v1831, 0
      %1841 = vmatpush.bf16.msra.mxu0 0
      %1842 = vmatpush.bf16.msra.mxu0 0
      %1843 = vmatpush.bf16.msra.mxu0 0
      %1844 = vmatpush.bf16.msra.mxu0 0
      %1845 = vmatpush.bf16.msra.mxu0 0
      %1846 = vmatpush.bf16.msra.mxu0 0
      %1847 = vmatpush.bf16.msra.mxu0 0
      %1848 = vmatpush.bf16.msra.mxu0 %v1836
      %1849 = vmatmul.bf16.gmra.mxu0 %v1451
      %v1850 = vpop.f32.mrf.mxu0
      %v1851 = vadd.f32 0.0, %v1850
      %v1852 = vpop.f32.mrf.mxu0
      %v1853 = vadd.f32 0.0, %v1852
      %1854 = vmatmul.bf16.gmra.mxu0 %v1454
      %v1855 = vpop.f32.mrf.mxu0
      %v1856 = vadd.f32 0.0, %v1855
      %v1857 = vpop.f32.mrf.mxu0
      %v1858 = vadd.f32 0.0, %v1857
      %1859 = vmatmul.bf16.gmra.mxu0 %v1457
      %v1860 = vpop.f32.mrf.mxu0
      %v1861 = vadd.f32 0.0, %v1860
      %v1862 = vpop.f32.mrf.mxu0
      %v1863 = vadd.f32 0.0, %v1862
      %1864 = vmatmul.bf16.gmra.mxu0 %v1839
      %v1865 = vpop.f32.mrf.mxu0
      %v1866 = vadd.f32 0.0, %v1865
      %v1867 = vpop.f32.mrf.mxu0
      %v1868 = vadd.f32 0.0, %v1867
      %1869 = vdwg.mxu0
      %v1870 = vadd.f32 %v1814, %v1851
      %v1871 = vadd.f32 %v1815, %v1853
      %v1872 = vadd.f32 %v1816, %v1856
      %v1873 = vadd.f32 %v1817, %v1858
      %v1874 = vadd.f32 %v1818, %v1861
      %v1875 = vadd.f32 %v1819, %v1863
      %v1876 = vadd.f32 %v1820, %v1866
      %v1877 = vadd.f32 %v1821, %v1868
      %v1878 = vld [vmem:[%s332] sm:$0xf]
      %v1879 = vld [vmem:[%s332 + $0x4] sm:$0x1]
      %v1880 = vld [vmem:[%s332 + $0x8] sm:$0xf]
      %v1881 = vld [vmem:[%s332 + $0xc] sm:$0x1]
      %v1882 = vld [vmem:[%s332 + $0x10] sm:$0xf]
      %v1883 = vld [vmem:[%s332 + $0x14] sm:$0x1]
      %v1884 = vld [vmem:[%s332 + $0x18] sm:$0xf]
      %v1885 = vld [vmem:[%s332 + $0x1c] sm:$0x1]
      %v1886 = vld [vmem:[%s332 + $0x20] sm:$0xf]
      %v1887 = vld [vmem:[%s332 + $0x24] sm:$0x1]
      %v1888 = vld [vmem:[%s332 + $0x28] sm:$0xf]
      %v1889 = vld [vmem:[%s332 + $0x2c] sm:$0x1]
      %v1890 = vld [vmem:[%s332 + $0x30] sm:$0xf]
      %v1891 = vld [vmem:[%s332 + $0x34] sm:$0x1]
      %v1892 = vld [vmem:[%s332 + $0x38] sm:$0xf]
      %v1893 = vld [vmem:[%s332 + $0x3c] sm:$0x1]
      %v1894 = vld [vmem:[%s332 + $0x40] sm:$0xf]
      %v1895 = vld [vmem:[%s332 + $0x44] sm:$0x1]
      %v1896 = vld [vmem:[%s332 + $0x48] sm:$0xf]
      %v1897 = vld [vmem:[%s332 + $0x4c] sm:$0x1]
      %s1898 = scalar_lea.vmem %s3, 144
      %v1899 = vld [vmem:[%s1898] sm:$0xf]
      %v1900 = vld [vmem:[%s1898 + $0x4] sm:$0xf]
      %v1909 = vunpack.c.l.b16 %v1878
      %v1910 = vunpack.c.l.b16 %v1880
      %v1911 = vunpack.c.l.b16 %v1882
      %v1912 = vunpack.c.l.b16 %v1884
      %v1913 = vunpack.c.l.b16 %v1886
      %v1914 = vunpack.c.l.b16 %v1888
      %v1915 = vunpack.c.l.b16 %v1890
      %v1916 = vunpack.c.l.b16 %v1892
      %v1917 = vpack.c.b16 %v1910, %v1909
      %v1918 = vpack.c.b16 %v1912, %v1911
      %v1919 = vpack.c.b16 %v1914, %v1913
      %v1920 = vpack.c.b16 %v1916, %v1915
      %v1923 = vunpack.c.l.b16 %v1899
      %v1924 = vunpack.c.l.b16 %v1900
      %v1925 = vpack.c.b16 %v1924, %v1923
      %v1928 = vsel %vm502, %v1917, 0
      %v1931 = vsel %vm502, %v1918, 0
      %v1934 = vsel %vm502, %v1919, 0
      %v1937 = vsel %vm502, %v1920, 0
      %1939 = vmatpush.bf16.msra.mxu0 0
      %1940 = vmatpush.bf16.msra.mxu0 0
      %1941 = vmatpush.bf16.msra.mxu0 0
      %1942 = vmatpush.bf16.msra.mxu0 0
      %1943 = vmatpush.bf16.msra.mxu0 0
      %1944 = vmatpush.bf16.msra.mxu0 0
      %1945 = vmatpush.bf16.msra.mxu0 0
      %1946 = vmatpush.bf16.msra.mxu0 %v1925
      %1947 = vmatmul.bf16.gmra.mxu0 %v1928
      %v1948 = vpop.f32.mrf.mxu0
      %v1949 = vadd.f32 0.0, %v1948
      %v1950 = vpop.f32.mrf.mxu0
      %v1951 = vadd.f32 0.0, %v1950
      %1952 = vmatmul.bf16.gmra.mxu0 %v1931
      %v1953 = vpop.f32.mrf.mxu0
      %v1954 = vadd.f32 0.0, %v1953
      %v1955 = vpop.f32.mrf.mxu0
      %v1956 = vadd.f32 0.0, %v1955
      %1957 = vmatmul.bf16.gmra.mxu0 %v1934
      %v1958 = vpop.f32.mrf.mxu0
      %v1959 = vadd.f32 0.0, %v1958
      %v1960 = vpop.f32.mrf.mxu0
      %v1961 = vadd.f32 0.0, %v1960
      %1962 = vmatmul.bf16.gmra.mxu0 %v1937
      %v1963 = vpop.f32.mrf.mxu0
      %v1964 = vadd.f32 0.0, %v1963
      %v1965 = vpop.f32.mrf.mxu0
      %v1966 = vadd.f32 0.0, %v1965
      %1967 = vdwg.mxu0
      %v1968 = vadd.f32 %v1870, %v1949
      %v1969 = vadd.f32 %v1871, %v1951
      %v1970 = vadd.f32 %v1872, %v1954
      %v1971 = vadd.f32 %v1873, %v1956
      %v1972 = vadd.f32 %v1874, %v1959
      %v1973 = vadd.f32 %v1875, %v1961
      %v1974 = vadd.f32 %v1876, %v1964
      %v1975 = vadd.f32 %v1877, %v1966
      %v1977 = vshrl.u32 %v1878, 16
      %v1979 = vrot.slane %v1977, 4
      %v1980 = vshll.u32 %v1878, 16
      %v1982 = vrot.slane %v1980, 5
      %v1983 = vor.u32 %v1979, %v1982
      %v1984 = vrot.slane %v1983, 4
      %v1986 = vshll.u32 %v1879, 16
      %v1988 = vrot.slane %v1986, 5
      %v1989 = vsel %vm368, %v1984, %v1988
      %v1991 = vshrl.u32 %v1880, 16
      %v1993 = vrot.slane %v1991, 4
      %v1994 = vshll.u32 %v1880, 16
      %v1996 = vrot.slane %v1994, 5
      %v1997 = vor.u32 %v1993, %v1996
      %v1998 = vrot.slane %v1997, 4
      %v2000 = vshll.u32 %v1881, 16
      %v2002 = vrot.slane %v2000, 5
      %v2003 = vsel %vm368, %v1998, %v2002
      %v2005 = vshrl.u32 %v1882, 16
      %v2007 = vrot.slane %v2005, 4
      %v2008 = vshll.u32 %v1882, 16
      %v2010 = vrot.slane %v2008, 5
      %v2011 = vor.u32 %v2007, %v2010
      %v2012 = vrot.slane %v2011, 4
      %v2014 = vshll.u32 %v1883, 16
      %v2016 = vrot.slane %v2014, 5
      %v2017 = vsel %vm368, %v2012, %v2016
      %v2019 = vshrl.u32 %v1884, 16
      %v2021 = vrot.slane %v2019, 4
      %v2022 = vshll.u32 %v1884, 16
      %v2024 = vrot.slane %v2022, 5
      %v2025 = vor.u32 %v2021, %v2024
      %v2026 = vrot.slane %v2025, 4
      %v2028 = vshll.u32 %v1885, 16
      %v2030 = vrot.slane %v2028, 5
      %v2031 = vsel %vm368, %v2026, %v2030
      %v2033 = vshrl.u32 %v1886, 16
      %v2035 = vrot.slane %v2033, 4
      %v2036 = vshll.u32 %v1886, 16
      %v2038 = vrot.slane %v2036, 5
      %v2039 = vor.u32 %v2035, %v2038
      %v2040 = vrot.slane %v2039, 4
      %v2042 = vshll.u32 %v1887, 16
      %v2044 = vrot.slane %v2042, 5
      %v2045 = vsel %vm368, %v2040, %v2044
      %v2047 = vshrl.u32 %v1888, 16
      %v2049 = vrot.slane %v2047, 4
      %v2050 = vshll.u32 %v1888, 16
      %v2052 = vrot.slane %v2050, 5
      %v2053 = vor.u32 %v2049, %v2052
      %v2054 = vrot.slane %v2053, 4
      %v2056 = vshll.u32 %v1889, 16
      %v2058 = vrot.slane %v2056, 5
      %v2059 = vsel %vm368, %v2054, %v2058
      %v2061 = vshrl.u32 %v1890, 16
      %v2063 = vrot.slane %v2061, 4
      %v2064 = vshll.u32 %v1890, 16
      %v2066 = vrot.slane %v2064, 5
      %v2067 = vor.u32 %v2063, %v2066
      %v2068 = vrot.slane %v2067, 4
      %v2070 = vshll.u32 %v1891, 16
      %v2072 = vrot.slane %v2070, 5
      %v2073 = vsel %vm368, %v2068, %v2072
      %v2075 = vshrl.u32 %v1892, 16
      %v2077 = vrot.slane %v2075, 4
      %v2078 = vshll.u32 %v1892, 16
      %v2080 = vrot.slane %v2078, 5
      %v2081 = vor.u32 %v2077, %v2080
      %v2082 = vrot.slane %v2081, 4
      %v2084 = vshll.u32 %v1893, 16
      %v2086 = vrot.slane %v2084, 5
      %v2087 = vsel %vm368, %v2082, %v2086
      %s2088 = scalar_lea.vmem %s3, 152
      %v2089 = vld [vmem:[%s2088] sm:$0xf]
      %v2090 = vld [vmem:[%s2088 + $0x4] sm:$0xf]
      %v2091 = vunpack.c.l.b16 %v1989
      %v2092 = vunpack.c.l.b16 %v2003
      %v2093 = vunpack.c.l.b16 %v2017
      %v2094 = vunpack.c.l.b16 %v2031
      %v2095 = vunpack.c.l.b16 %v2045
      %v2096 = vunpack.c.l.b16 %v2059
      %v2097 = vunpack.c.l.b16 %v2073
      %v2098 = vunpack.c.l.b16 %v2087
      %v2099 = vpack.c.b16 %v2092, %v2091
      %v2100 = vpack.c.b16 %v2094, %v2093
      %v2101 = vpack.c.b16 %v2096, %v2095
      %v2102 = vpack.c.b16 %v2098, %v2097
      %v2105 = vunpack.c.l.b16 %v2089
      %v2106 = vunpack.c.l.b16 %v2090
      %v2107 = vpack.c.b16 %v2106, %v2105
      %v2110 = vsel %vm502, %v2099, 0
      %v2113 = vsel %vm502, %v2100, 0
      %v2116 = vsel %vm502, %v2101, 0
      %v2119 = vsel %vm502, %v2102, 0
      %2121 = vmatpush.bf16.msra.mxu0 0
      %2122 = vmatpush.bf16.msra.mxu0 0
      %2123 = vmatpush.bf16.msra.mxu0 0
      %2124 = vmatpush.bf16.msra.mxu0 0
      %2125 = vmatpush.bf16.msra.mxu0 0
      %2126 = vmatpush.bf16.msra.mxu0 0
      %2127 = vmatpush.bf16.msra.mxu0 0
      %2128 = vmatpush.bf16.msra.mxu0 %v2107
      %2129 = vmatmul.bf16.gmra.mxu0 %v2110
      %v2130 = vpop.f32.mrf.mxu0
      %v2131 = vadd.f32 0.0, %v2130
      %v2132 = vpop.f32.mrf.mxu0
      %v2133 = vadd.f32 0.0, %v2132
      %2134 = vmatmul.bf16.gmra.mxu0 %v2113
      %v2135 = vpop.f32.mrf.mxu0
      %v2136 = vadd.f32 0.0, %v2135
      %v2137 = vpop.f32.mrf.mxu0
      %v2138 = vadd.f32 0.0, %v2137
      %2139 = vmatmul.bf16.gmra.mxu0 %v2116
      %v2140 = vpop.f32.mrf.mxu0
      %v2141 = vadd.f32 0.0, %v2140
      %v2142 = vpop.f32.mrf.mxu0
      %v2143 = vadd.f32 0.0, %v2142
      %2144 = vmatmul.bf16.gmra.mxu0 %v2119
      %v2145 = vpop.f32.mrf.mxu0
      %v2146 = vadd.f32 0.0, %v2145
      %v2147 = vpop.f32.mrf.mxu0
      %v2148 = vadd.f32 0.0, %v2147
      %2149 = vdwg.mxu0
      %v2150 = vadd.f32 %v1968, %v2131
      %v2151 = vadd.f32 %v1969, %v2133
      %v2152 = vadd.f32 %v1970, %v2136
      %v2153 = vadd.f32 %v1971, %v2138
      %v2154 = vadd.f32 %v1972, %v2141
      %v2155 = vadd.f32 %v1973, %v2143
      %v2156 = vadd.f32 %v1974, %v2146
      %v2157 = vadd.f32 %v1975, %v2148
      %v2166 = vrot.slane %v1878, 5
      %v2167 = vrot.slane %v2166, 4
      %v2168 = vrot.slane %v1879, 5
      %v2169 = vsel %vm621, %v2167, %v2168
      %v2170 = vrot.slane %v1880, 5
      %v2171 = vrot.slane %v2170, 4
      %v2172 = vrot.slane %v1881, 5
      %v2173 = vsel %vm621, %v2171, %v2172
      %v2174 = vrot.slane %v1882, 5
      %v2175 = vrot.slane %v2174, 4
      %v2176 = vrot.slane %v1883, 5
      %v2177 = vsel %vm621, %v2175, %v2176
      %v2178 = vrot.slane %v1884, 5
      %v2179 = vrot.slane %v2178, 4
      %v2180 = vrot.slane %v1885, 5
      %v2181 = vsel %vm621, %v2179, %v2180
      %v2182 = vrot.slane %v1886, 5
      %v2183 = vrot.slane %v2182, 4
      %v2184 = vrot.slane %v1887, 5
      %v2185 = vsel %vm621, %v2183, %v2184
      %v2186 = vrot.slane %v1888, 5
      %v2187 = vrot.slane %v2186, 4
      %v2188 = vrot.slane %v1889, 5
      %v2189 = vsel %vm621, %v2187, %v2188
      %v2190 = vrot.slane %v1890, 5
      %v2191 = vrot.slane %v2190, 4
      %v2192 = vrot.slane %v1891, 5
      %v2193 = vsel %vm621, %v2191, %v2192
      %v2194 = vrot.slane %v1892, 5
      %v2195 = vrot.slane %v2194, 4
      %v2196 = vrot.slane %v1893, 5
      %v2197 = vsel %vm621, %v2195, %v2196
      %s2198 = scalar_lea.vmem %s3, 160
      %v2199 = vld [vmem:[%s2198] sm:$0xf]
      %v2200 = vld [vmem:[%s2198 + $0x4] sm:$0xf]
      %v2201 = vunpack.c.l.b16 %v2169
      %v2202 = vunpack.c.l.b16 %v2173
      %v2203 = vunpack.c.l.b16 %v2177
      %v2204 = vunpack.c.l.b16 %v2181
      %v2205 = vunpack.c.l.b16 %v2185
      %v2206 = vunpack.c.l.b16 %v2189
      %v2207 = vunpack.c.l.b16 %v2193
      %v2208 = vunpack.c.l.b16 %v2197
      %v2209 = vpack.c.b16 %v2202, %v2201
      %v2210 = vpack.c.b16 %v2204, %v2203
      %v2211 = vpack.c.b16 %v2206, %v2205
      %v2212 = vpack.c.b16 %v2208, %v2207
      %v2215 = vunpack.c.l.b16 %v2199
      %v2216 = vunpack.c.l.b16 %v2200
      %v2217 = vpack.c.b16 %v2216, %v2215
      %v2220 = vsel %vm502, %v2209, 0
      %v2223 = vsel %vm502, %v2210, 0
      %v2226 = vsel %vm502, %v2211, 0
      %v2229 = vsel %vm502, %v2212, 0
      %2231 = vmatpush.bf16.msra.mxu0 0
      %2232 = vmatpush.bf16.msra.mxu0 0
      %2233 = vmatpush.bf16.msra.mxu0 0
      %2234 = vmatpush.bf16.msra.mxu0 0
      %2235 = vmatpush.bf16.msra.mxu0 0
      %2236 = vmatpush.bf16.msra.mxu0 0
      %2237 = vmatpush.bf16.msra.mxu0 0
      %2238 = vmatpush.bf16.msra.mxu0 %v2217
      %2239 = vmatmul.bf16.gmra.mxu0 %v2220
      %v2240 = vpop.f32.mrf.mxu0
      %v2241 = vadd.f32 0.0, %v2240
      %v2242 = vpop.f32.mrf.mxu0
      %v2243 = vadd.f32 0.0, %v2242
      %2244 = vmatmul.bf16.gmra.mxu0 %v2223
      %v2245 = vpop.f32.mrf.mxu0
      %v2246 = vadd.f32 0.0, %v2245
      %v2247 = vpop.f32.mrf.mxu0
      %v2248 = vadd.f32 0.0, %v2247
      %2249 = vmatmul.bf16.gmra.mxu0 %v2226
      %v2250 = vpop.f32.mrf.mxu0
      %v2251 = vadd.f32 0.0, %v2250
      %v2252 = vpop.f32.mrf.mxu0
      %v2253 = vadd.f32 0.0, %v2252
      %2254 = vmatmul.bf16.gmra.mxu0 %v2229
      %v2255 = vpop.f32.mrf.mxu0
      %v2256 = vadd.f32 0.0, %v2255
      %v2257 = vpop.f32.mrf.mxu0
      %v2258 = vadd.f32 0.0, %v2257
      %2259 = vdwg.mxu0
      %v2260 = vadd.f32 %v2150, %v2241
      %v2261 = vadd.f32 %v2151, %v2243
      %v2262 = vadd.f32 %v2152, %v2246
      %v2263 = vadd.f32 %v2153, %v2248
      %v2264 = vadd.f32 %v2154, %v2251
      %v2265 = vadd.f32 %v2155, %v2253
      %v2266 = vadd.f32 %v2156, %v2256
      %v2267 = vadd.f32 %v2157, %v2258
      %s2268 = scalar_lea.vmem %s3, 168
      %v2269 = vld [vmem:[%s2268] sm:$0xf]
      %v2270 = vld [vmem:[%s2268 + $0x4] sm:$0xf]
      %v2272 = vunpack.c.l.b16 %v1894
      %v2273 = vpack.c.b16 %v1911, %v1910
      %v2274 = vpack.c.b16 %v1913, %v1912
      %v2275 = vpack.c.b16 %v1915, %v1914
      %v2276 = vpack.c.b16 %v2272, %v1916
      %v2279 = vunpack.c.l.b16 %v2269
      %v2280 = vunpack.c.l.b16 %v2270
      %v2281 = vpack.c.b16 %v2280, %v2279
      %v2284 = vsel %vm502, %v2273, 0
      %v2287 = vsel %vm502, %v2274, 0
      %v2290 = vsel %vm502, %v2275, 0
      %v2293 = vsel %vm502, %v2276, 0
      %2295 = vmatpush.bf16.msra.mxu0 0
      %2296 = vmatpush.bf16.msra.mxu0 0
      %2297 = vmatpush.bf16.msra.mxu0 0
      %2298 = vmatpush.bf16.msra.mxu0 0
      %2299 = vmatpush.bf16.msra.mxu0 0
      %2300 = vmatpush.bf16.msra.mxu0 0
      %2301 = vmatpush.bf16.msra.mxu0 0
      %2302 = vmatpush.bf16.msra.mxu0 %v2281
      %2303 = vmatmul.bf16.gmra.mxu0 %v2284
      %v2304 = vpop.f32.mrf.mxu0
      %v2305 = vadd.f32 0.0, %v2304
      %v2306 = vpop.f32.mrf.mxu0
      %v2307 = vadd.f32 0.0, %v2306
      %2308 = vmatmul.bf16.gmra.mxu0 %v2287
      %v2309 = vpop.f32.mrf.mxu0
      %v2310 = vadd.f32 0.0, %v2309
      %v2311 = vpop.f32.mrf.mxu0
      %v2312 = vadd.f32 0.0, %v2311
      %2313 = vmatmul.bf16.gmra.mxu0 %v2290
      %v2314 = vpop.f32.mrf.mxu0
      %v2315 = vadd.f32 0.0, %v2314
      %v2316 = vpop.f32.mrf.mxu0
      %v2317 = vadd.f32 0.0, %v2316
      %2318 = vmatmul.bf16.gmra.mxu0 %v2293
      %v2319 = vpop.f32.mrf.mxu0
      %v2320 = vadd.f32 0.0, %v2319
      %v2321 = vpop.f32.mrf.mxu0
      %v2322 = vadd.f32 0.0, %v2321
      %2323 = vdwg.mxu0
      %v2324 = vadd.f32 %v2260, %v2305
      %v2325 = vadd.f32 %v2261, %v2307
      %v2326 = vadd.f32 %v2262, %v2310
      %v2327 = vadd.f32 %v2263, %v2312
      %v2328 = vadd.f32 %v2264, %v2315
      %v2329 = vadd.f32 %v2265, %v2317
      %v2330 = vadd.f32 %v2266, %v2320
      %v2331 = vadd.f32 %v2267, %v2322
      %v2333 = vshrl.u32 %v1894, 16
      %v2335 = vrot.slane %v2333, 4
      %v2336 = vshll.u32 %v1894, 16
      %v2338 = vrot.slane %v2336, 5
      %v2339 = vor.u32 %v2335, %v2338
      %v2340 = vrot.slane %v2339, 4
      %v2342 = vshll.u32 %v1895, 16
      %v2344 = vrot.slane %v2342, 5
      %v2345 = vsel %vm368, %v2340, %v2344
      %s2346 = scalar_lea.vmem %s3, 176
      %v2347 = vld [vmem:[%s2346] sm:$0xf]
      %v2348 = vld [vmem:[%s2346 + $0x4] sm:$0xf]
      %v2349 = vunpack.c.l.b16 %v2345
      %v2350 = vpack.c.b16 %v2093, %v2092
      %v2351 = vpack.c.b16 %v2095, %v2094
      %v2352 = vpack.c.b16 %v2097, %v2096
      %v2353 = vpack.c.b16 %v2349, %v2098
      %v2356 = vunpack.c.l.b16 %v2347
      %v2357 = vunpack.c.l.b16 %v2348
      %v2358 = vpack.c.b16 %v2357, %v2356
      %v2361 = vsel %vm502, %v2350, 0
      %v2364 = vsel %vm502, %v2351, 0
      %v2367 = vsel %vm502, %v2352, 0
      %v2370 = vsel %vm502, %v2353, 0
      %2372 = vmatpush.bf16.msra.mxu0 0
      %2373 = vmatpush.bf16.msra.mxu0 0
      %2374 = vmatpush.bf16.msra.mxu0 0
      %2375 = vmatpush.bf16.msra.mxu0 0
      %2376 = vmatpush.bf16.msra.mxu0 0
      %2377 = vmatpush.bf16.msra.mxu0 0
      %2378 = vmatpush.bf16.msra.mxu0 0
      %2379 = vmatpush.bf16.msra.mxu0 %v2358
      %2380 = vmatmul.bf16.gmra.mxu0 %v2361
      %v2381 = vpop.f32.mrf.mxu0
      %v2382 = vadd.f32 0.0, %v2381
      %v2383 = vpop.f32.mrf.mxu0
      %v2384 = vadd.f32 0.0, %v2383
      %2385 = vmatmul.bf16.gmra.mxu0 %v2364
      %v2386 = vpop.f32.mrf.mxu0
      %v2387 = vadd.f32 0.0, %v2386
      %v2388 = vpop.f32.mrf.mxu0
      %v2389 = vadd.f32 0.0, %v2388
      %2390 = vmatmul.bf16.gmra.mxu0 %v2367
      %v2391 = vpop.f32.mrf.mxu0
      %v2392 = vadd.f32 0.0, %v2391
      %v2393 = vpop.f32.mrf.mxu0
      %v2394 = vadd.f32 0.0, %v2393
      %2395 = vmatmul.bf16.gmra.mxu0 %v2370
      %v2396 = vpop.f32.mrf.mxu0
      %v2397 = vadd.f32 0.0, %v2396
      %v2398 = vpop.f32.mrf.mxu0
      %v2399 = vadd.f32 0.0, %v2398
      %2400 = vdwg.mxu0
      %v2401 = vadd.f32 %v2324, %v2382
      %v2402 = vadd.f32 %v2325, %v2384
      %v2403 = vadd.f32 %v2326, %v2387
      %v2404 = vadd.f32 %v2327, %v2389
      %v2405 = vadd.f32 %v2328, %v2392
      %v2406 = vadd.f32 %v2329, %v2394
      %v2407 = vadd.f32 %v2330, %v2397
      %v2408 = vadd.f32 %v2331, %v2399
      %v2410 = vrot.slane %v1894, 5
      %v2411 = vrot.slane %v2410, 4
      %v2412 = vrot.slane %v1895, 5
      %v2413 = vsel %vm621, %v2411, %v2412
      %s2414 = scalar_lea.vmem %s3, 184
      %v2415 = vld [vmem:[%s2414] sm:$0xf]
      %v2416 = vld [vmem:[%s2414 + $0x4] sm:$0xf]
      %v2417 = vunpack.c.l.b16 %v2413
      %v2418 = vpack.c.b16 %v2203, %v2202
      %v2419 = vpack.c.b16 %v2205, %v2204
      %v2420 = vpack.c.b16 %v2207, %v2206
      %v2421 = vpack.c.b16 %v2417, %v2208
      %v2424 = vunpack.c.l.b16 %v2415
      %v2425 = vunpack.c.l.b16 %v2416
      %v2426 = vpack.c.b16 %v2425, %v2424
      %v2429 = vsel %vm502, %v2418, 0
      %v2432 = vsel %vm502, %v2419, 0
      %v2435 = vsel %vm502, %v2420, 0
      %v2438 = vsel %vm502, %v2421, 0
      %2440 = vmatpush.bf16.msra.mxu0 0
      %2441 = vmatpush.bf16.msra.mxu0 0
      %2442 = vmatpush.bf16.msra.mxu0 0
      %2443 = vmatpush.bf16.msra.mxu0 0
      %2444 = vmatpush.bf16.msra.mxu0 0
      %2445 = vmatpush.bf16.msra.mxu0 0
      %2446 = vmatpush.bf16.msra.mxu0 0
      %2447 = vmatpush.bf16.msra.mxu0 %v2426
      %2448 = vmatmul.bf16.gmra.mxu0 %v2429
      %v2449 = vpop.f32.mrf.mxu0
      %v2450 = vadd.f32 0.0, %v2449
      %v2451 = vpop.f32.mrf.mxu0
      %v2452 = vadd.f32 0.0, %v2451
      %2453 = vmatmul.bf16.gmra.mxu0 %v2432
      %v2454 = vpop.f32.mrf.mxu0
      %v2455 = vadd.f32 0.0, %v2454
      %v2456 = vpop.f32.mrf.mxu0
      %v2457 = vadd.f32 0.0, %v2456
      %2458 = vmatmul.bf16.gmra.mxu0 %v2435
      %v2459 = vpop.f32.mrf.mxu0
      %v2460 = vadd.f32 0.0, %v2459
      %v2461 = vpop.f32.mrf.mxu0
      %v2462 = vadd.f32 0.0, %v2461
      %2463 = vmatmul.bf16.gmra.mxu0 %v2438
      %v2464 = vpop.f32.mrf.mxu0
      %v2465 = vadd.f32 0.0, %v2464
      %v2466 = vpop.f32.mrf.mxu0
      %v2467 = vadd.f32 0.0, %v2466
      %2468 = vdwg.mxu0
      %v2469 = vadd.f32 %v2401, %v2450
      %v2470 = vadd.f32 %v2402, %v2452
      %v2471 = vadd.f32 %v2403, %v2455
      %v2472 = vadd.f32 %v2404, %v2457
      %v2473 = vadd.f32 %v2405, %v2460
      %v2474 = vadd.f32 %v2406, %v2462
      %v2475 = vadd.f32 %v2407, %v2465
      %v2476 = vadd.f32 %v2408, %v2467
      %s2477 = scalar_lea.vmem %s3, 192
      %v2478 = vld [vmem:[%s2477] sm:$0xf]
      %v2479 = vld [vmem:[%s2477 + $0x4] sm:$0xf]
      %v2481 = vunpack.c.l.b16 %v1896
      %v2482 = vpack.c.b16 %v2481, %v2272
      %v2485 = vunpack.c.l.b16 %v2478
      %v2486 = vunpack.c.l.b16 %v2479
      %v2487 = vpack.c.b16 %v2486, %v2485
      %v2490 = vsel %vm502, %v2482, 0
      %2492 = vmatpush.bf16.msra.mxu0 0
      %2493 = vmatpush.bf16.msra.mxu0 0
      %2494 = vmatpush.bf16.msra.mxu0 0
      %2495 = vmatpush.bf16.msra.mxu0 0
      %2496 = vmatpush.bf16.msra.mxu0 0
      %2497 = vmatpush.bf16.msra.mxu0 0
      %2498 = vmatpush.bf16.msra.mxu0 0
      %2499 = vmatpush.bf16.msra.mxu0 %v2487
      %2500 = vmatmul.bf16.gmra.mxu0 %v1931
      %v2501 = vpop.f32.mrf.mxu0
      %v2502 = vadd.f32 0.0, %v2501
      %v2503 = vpop.f32.mrf.mxu0
      %v2504 = vadd.f32 0.0, %v2503
      %2505 = vmatmul.bf16.gmra.mxu0 %v1934
      %v2506 = vpop.f32.mrf.mxu0
      %v2507 = vadd.f32 0.0, %v2506
      %v2508 = vpop.f32.mrf.mxu0
      %v2509 = vadd.f32 0.0, %v2508
      %2510 = vmatmul.bf16.gmra.mxu0 %v1937
      %v2511 = vpop.f32.mrf.mxu0
      %v2512 = vadd.f32 0.0, %v2511
      %v2513 = vpop.f32.mrf.mxu0
      %v2514 = vadd.f32 0.0, %v2513
      %2515 = vmatmul.bf16.gmra.mxu0 %v2490
      %v2516 = vpop.f32.mrf.mxu0
      %v2517 = vadd.f32 0.0, %v2516
      %v2518 = vpop.f32.mrf.mxu0
      %v2519 = vadd.f32 0.0, %v2518
      %2520 = vdwg.mxu0
      %v2521 = vadd.f32 %v2469, %v2502
      %v2522 = vadd.f32 %v2470, %v2504
      %v2523 = vadd.f32 %v2471, %v2507
      %v2524 = vadd.f32 %v2472, %v2509
      %v2525 = vadd.f32 %v2473, %v2512
      %v2526 = vadd.f32 %v2474, %v2514
      %v2527 = vadd.f32 %v2475, %v2517
      %v2528 = vadd.f32 %v2476, %v2519
      %v2530 = vshrl.u32 %v1896, 16
      %v2532 = vrot.slane %v2530, 4
      %v2533 = vshll.u32 %v1896, 16
      %v2535 = vrot.slane %v2533, 5
      %v2536 = vor.u32 %v2532, %v2535
      %v2537 = vrot.slane %v2536, 4
      %v2539 = vshll.u32 %v1897, 16
      %v2541 = vrot.slane %v2539, 5
      %v2542 = vsel %vm368, %v2537, %v2541
      %s2543 = scalar_lea.vmem %s3, 200
      %v2544 = vld [vmem:[%s2543] sm:$0xf]
      %v2545 = vld [vmem:[%s2543 + $0x4] sm:$0xf]
      %v2546 = vunpack.c.l.b16 %v2542
      %v2547 = vpack.c.b16 %v2546, %v2349
      %v2550 = vunpack.c.l.b16 %v2544
      %v2551 = vunpack.c.l.b16 %v2545
      %v2552 = vpack.c.b16 %v2551, %v2550
      %v2555 = vsel %vm502, %v2547, 0
      %2557 = vmatpush.bf16.msra.mxu0 0
      %2558 = vmatpush.bf16.msra.mxu0 0
      %2559 = vmatpush.bf16.msra.mxu0 0
      %2560 = vmatpush.bf16.msra.mxu0 0
      %2561 = vmatpush.bf16.msra.mxu0 0
      %2562 = vmatpush.bf16.msra.mxu0 0
      %2563 = vmatpush.bf16.msra.mxu0 0
      %2564 = vmatpush.bf16.msra.mxu0 %v2552
      %2565 = vmatmul.bf16.gmra.mxu0 %v2113
      %v2566 = vpop.f32.mrf.mxu0
      %v2567 = vadd.f32 0.0, %v2566
      %v2568 = vpop.f32.mrf.mxu0
      %v2569 = vadd.f32 0.0, %v2568
      %2570 = vmatmul.bf16.gmra.mxu0 %v2116
      %v2571 = vpop.f32.mrf.mxu0
      %v2572 = vadd.f32 0.0, %v2571
      %v2573 = vpop.f32.mrf.mxu0
      %v2574 = vadd.f32 0.0, %v2573
      %2575 = vmatmul.bf16.gmra.mxu0 %v2119
      %v2576 = vpop.f32.mrf.mxu0
      %v2577 = vadd.f32 0.0, %v2576
      %v2578 = vpop.f32.mrf.mxu0
      %v2579 = vadd.f32 0.0, %v2578
      %2580 = vmatmul.bf16.gmra.mxu0 %v2555
      %v2581 = vpop.f32.mrf.mxu0
      %v2582 = vadd.f32 0.0, %v2581
      %v2583 = vpop.f32.mrf.mxu0
      %v2584 = vadd.f32 0.0, %v2583
      %2585 = vdwg.mxu0
      %v2586 = vadd.f32 %v2521, %v2567
      %v2587 = vadd.f32 %v2522, %v2569
      %v2588 = vadd.f32 %v2523, %v2572
      %v2589 = vadd.f32 %v2524, %v2574
      %v2590 = vadd.f32 %v2525, %v2577
      %v2591 = vadd.f32 %v2526, %v2579
      %v2592 = vadd.f32 %v2527, %v2582
      %v2593 = vadd.f32 %v2528, %v2584
      %v2595 = vrot.slane %v1896, 5
      %v2596 = vrot.slane %v2595, 4
      %v2597 = vrot.slane %v1897, 5
      %v2598 = vsel %vm621, %v2596, %v2597
      %s2599 = scalar_lea.vmem %s3, 208
      %v2600 = vld [vmem:[%s2599] sm:$0xf]
      %v2601 = vld [vmem:[%s2599 + $0x4] sm:$0xf]
      %v2602 = vunpack.c.l.b16 %v2598
      %v2603 = vpack.c.b16 %v2602, %v2417
      %v2606 = vunpack.c.l.b16 %v2600
      %v2607 = vunpack.c.l.b16 %v2601
      %v2608 = vpack.c.b16 %v2607, %v2606
      %v2611 = vsel %vm502, %v2603, 0
      %2613 = vmatpush.bf16.msra.mxu0 0
      %2614 = vmatpush.bf16.msra.mxu0 0
      %2615 = vmatpush.bf16.msra.mxu0 0
      %2616 = vmatpush.bf16.msra.mxu0 0
      %2617 = vmatpush.bf16.msra.mxu0 0
      %2618 = vmatpush.bf16.msra.mxu0 0
      %2619 = vmatpush.bf16.msra.mxu0 0
      %2620 = vmatpush.bf16.msra.mxu0 %v2608
      %2621 = vmatmul.bf16.gmra.mxu0 %v2223
      %v2622 = vpop.f32.mrf.mxu0
      %v2623 = vadd.f32 0.0, %v2622
      %v2624 = vpop.f32.mrf.mxu0
      %v2625 = vadd.f32 0.0, %v2624
      %2626 = vmatmul.bf16.gmra.mxu0 %v2226
      %v2627 = vpop.f32.mrf.mxu0
      %v2628 = vadd.f32 0.0, %v2627
      %v2629 = vpop.f32.mrf.mxu0
      %v2630 = vadd.f32 0.0, %v2629
      %2631 = vmatmul.bf16.gmra.mxu0 %v2229
      %v2632 = vpop.f32.mrf.mxu0
      %v2633 = vadd.f32 0.0, %v2632
      %v2634 = vpop.f32.mrf.mxu0
      %v2635 = vadd.f32 0.0, %v2634
      %2636 = vmatmul.bf16.gmra.mxu0 %v2611
      %v2637 = vpop.f32.mrf.mxu0
      %v2638 = vadd.f32 0.0, %v2637
      %v2639 = vpop.f32.mrf.mxu0
      %v2640 = vadd.f32 0.0, %v2639
      %2641 = vdwg.mxu0
      %v2642 = vadd.f32 %v2586, %v2623
      %v2643 = vadd.f32 %v2587, %v2625
      %v2644 = vadd.f32 %v2588, %v2628
      %v2645 = vadd.f32 %v2589, %v2630
      %v2646 = vadd.f32 %v2590, %v2633
      %v2647 = vadd.f32 %v2591, %v2635
      %v2648 = vadd.f32 %v2592, %v2638
      %v2649 = vadd.f32 %v2593, %v2640
      %v2650 = vld [vmem:[%s4] sm:$0x1]
      %v2652 = vperm.slane %v2650, 0
      %v2654 = vadd.f32 %v2642, %v2652
      %v2655 = vadd.f32 %v2643, %v2652
      %v2656 = vadd.f32 %v2644, %v2652
      %v2657 = vadd.f32 %v2645, %v2652
      %v2658 = vadd.f32 %v2646, %v2652
      %v2659 = vadd.f32 %v2647, %v2652
      %v2660 = vadd.f32 %v2648, %v2652
      %v2661 = vadd.f32 %v2649, %v2652
      %v2662 = vmax.f32 %v2654, 0.0
      %v2663 = vmax.f32 %v2655, 0.0
      %v2664 = vmax.f32 %v2656, 0.0
      %v2665 = vmax.f32 %v2657, 0.0
      %v2666 = vmax.f32 %v2658, 0.0
      %v2667 = vmax.f32 %v2659, 0.0
      %v2668 = vmax.f32 %v2660, 0.0
      %v2669 = vmax.f32 %v2661, 0.0
      %2670 = vst.msk [vmem:[%s342] sm:$0xff] %vm502, %v2662
      %2671 = vst.msk [vmem:[%s342 + $0x8] sm:$0xff] %vm502, %v2663
      %2672 = vst.msk [vmem:[%s342 + $0x10] sm:$0xff] %vm502, %v2664
      %2673 = vst.msk [vmem:[%s342 + $0x18] sm:$0xff] %vm502, %v2665
      %2674 = vst.msk [vmem:[%s342 + $0x20] sm:$0xff] %vm502, %v2666
      %2675 = vst.msk [vmem:[%s342 + $0x28] sm:$0xff] %vm502, %v2667
      %2676 = vst.msk [vmem:[%s342 + $0x30] sm:$0xff] %vm502, %v2668
      %2677 = vst.msk [vmem:[%s342 + $0x38] sm:$0xff] %vm502, %v2669
      %p2678 = scmp.lt.s32.totalorder %s20, 1
      %s2679 = scalar_select %p2678, %s20, 1
      %p2680 = scmp.lt.s32.totalorder %s21, 3
      %s2681 = scalar_select %p2680, %s21, 3
      %s2682 = smul.addr %s2681, 8
      %s2683 = smul.addr %s2679, 32
      %s2684 = sadd.s32 %s2682, %s2683
      %s2685 = smul.addr %s2684, 8
      %s2686 = scalar_lea.vmem %s5, %s2685
      // Predicated region
      $region41: #{inception_forward.8} parent=39 // pred_check
        %p2687 = pneg %p178
      $region42: #{inception_forward.8} parent=39 // pred_check_branch
        %2689 = sbr.rel (%p2687) target = $region44
      $region43: #{inception_forward.8} parent=39 // pred_region
        _
      $region44: #{inception_forward.8} parent=39 // pred_fallthru
        _
    $region40: #{inception_forward.8} parent=5 // pred_fallthru
      _
    %p2690 = scmp.le.s32.totalorder 2, %s11
    // Predicated region
    $region45: #{inception_forward.8} parent=5 // pred_check
      %p2691 = pneg %p2690
    $region46: #{inception_forward.8} parent=5 // pred_check_branch
      %2693 = sbr.rel (%p2691) target = $region48
    $region47: #{inception_forward.8} parent=5 // pred_region
      %s2694 = ssub.s32 %s11, 2
      // Predicated region
      $region49: #{inception_forward.8} parent=47 // pred_check
        %p2695 = pneg %p184
      $region50: #{inception_forward.8} parent=47 // pred_check_branch
        %2697 = sbr.rel (%p2695) target = $region52
      $region51: #{inception_forward.8} parent=47 // pred_region
        %p2698 = scmp.lt.s32.totalorder %s22, 1
        %s2699 = scalar_select %p2698, %s22, 1
        %p2700 = scmp.lt.s32.totalorder %s23, 3
        %s2701 = scalar_select %p2700, %s23, 3
        %s2702 = smul.addr %s2701, 8
        %s2703 = smul.addr %s2699, 32
        %s2704 = sadd.s32 %s2702, %s2703
        %s2705 = smul.addr %s2704, 8
        %s2706 = scalar_lea.vmem %s5, %s2705
      $region52: #{inception_forward.8} parent=47 // pred_fallthru
        _
    $region48: #{inception_forward.8} parent=5 // pred_fallthru
      _
  $region6: #{inception_forward.8} parent=0 // loop_footer
    %s15 = sadd.s32 1, %s11
  $region7: #{inception_forward.8} parent=0 // loop_footer_branch
    %10 = sbr.rel target = $region3
  $region8: #{inception_forward.8} parent=0 // loop_exit
    _

// kernel: inception_forward.7
$region0: #{inception_forward.7}
  #allocation0 [shape = 'u32[]', space=smem, size = 0x4, offset = 0x4, fixed_abs, tag = 'smem constant byte address 0x4 - core index']
  #allocation1 [shape = 'u32[72,128]{1,0:T(1,128)}', space=vmem, size = 0x9000, scoped, tag = 'internal scratch']
  %s0 = inlined_call_operand.vmem [shape: bf16[2,6,10,10,8], index: 0, kind: input, shape index: {}, may-alias: {0,1,2}]
  %s1 = inlined_call_operand.vmem [shape: bf16[2,6,10,10,8], index: 1, kind: input, shape index: {}, may-alias: {0,1,2}]
  %s2 = inlined_call_operand.vmem [shape: bf16[2,6,10,10,8], index: 2, kind: input, shape index: {}, may-alias: {0,1,2}]
  %s3 = inlined_call_operand.vmem [shape: bf16[27,8,16], index: 3, kind: input, shape index: {}]
  %s4 = inlined_call_operand.vmem [shape: f32[1,16], index: 4, kind: input, shape index: {}]
  %s5 = inlined_call_operand.vmem [shape: bf16[2,4,64,16], index: 5, kind: output, shape index: {}]
  %s6 = sld [smem:[#allocation0]]
  $region53: #{inception_forward.7} parent=0
    _
  %s8 = ssub.s32 1, %s6
  %s9 = scalar_select 0, %s8, %s6
  loop: start=0, step=1, limit=10
  $region2: #{inception_forward.7} parent=0 // loop_pre_header
    _
  $region3: #{inception_forward.7} parent=0 // loop_header
    %s11 = sphi 0, %s15
    %p12 = scmp.ge.s32.totalorder %s11, 10
    %s18 = sphi 0, %s30
    %s19 = sphi 0, %s26
    %s20 = sphi 0, %s18
    %s21 = sphi 0, %s19
    %s22 = sphi 0, %s20
    %s23 = sphi 0, %s21
    %s35 = sphi 0, %s37
    %s38 = sphi 0, %s35
    %s39 = sphi 0, %s38
    %s55 = sphi 0, %s39
    %s65 = sphi 0, %s67
    %s68 = sphi 0, %s65
    %s69 = sphi 0, %s68
    %s85 = sphi 0, %s69
    %s95 = sphi 0, %s97
    %s98 = sphi 0, %s95
    %s99 = sphi 0, %s98
    %s115 = sphi 0, %s99
    %s119 = sphi 0, %s119
    %s121 = sphi 0, %s119
    %s122 = sphi 0, %s121
    %s136 = sphi 0, %s122
    %s140 = sphi 0, %s140
    %s142 = sphi 0, %s140
    %s143 = sphi 0, %s142
    %s157 = sphi 0, %s143
    %s165 = sphi 0, %s167
    %s168 = sphi 0, %s165
    %s169 = sphi 0, %s168
    %s185 = sphi 0, %s169
  $region4: #{inception_forward.7} parent=0 // loop_header_branch
    %14 = sbr.rel (%p12) target = $region8
  $region5: #{inception_forward.7} parent=0 // loop_body
    %s16 = ssub.s32 %s11, 1
    %s17 = ssub.s32 %s11, 2
    %s24 = sadd.s32 1, %s19
    %p25 = scmp.ge.s32.totalorder %s24, 4
    %s26 = scalar_select %p25, 0, %s24
    %s27 = sadd.s32 1, %s18
    %s28 = scalar_select %p25, %s27, %s18
    %p29 = scmp.ge.s32.totalorder %s28, 2
    %s30 = scalar_select %p29, 0, %s28
    %s31 = ssub.s32 %s18, %s30
    %s32 = ssub.s32 %s19, %s26
    %s33 = sor.u32 %s31, %s32
    %p34 = scmp.eq.s32.totalorder %s33, 0
    %s36 = sadd.s32 %s35, 1
    %s37 = scalar_select %p34, %s35, %s36
    %p40 = pneg %p34
    %p41 = scmp.eq.s32.totalorder %s11, 7
    %p42 = por %p40, %p41
    %p43 = scmp.ne.s32.totalorder %s35, %s38
    %p44 = scmp.eq.s32.totalorder %s11, 0
    %p45 = por %p43, %p44
    %p46 = scmp.ne.s32.totalorder %s35, %s38
    %p47 = scmp.eq.s32.totalorder %s16, 7
    %p48 = por %p46, %p47
    %p49 = scmp.ne.s32.totalorder %s38, %s39
    %p50 = scmp.eq.s32.totalorder %s16, 0
    %p51 = por %p49, %p50
    %p52 = scmp.ne.s32.totalorder %s38, %s39
    %p53 = scmp.eq.s32.totalorder %s17, 7
    %p54 = por %p52, %p53
    %p56 = scmp.ne.s32.totalorder %s39, %s55
    %p57 = scmp.eq.s32.totalorder %s17, 0
    %p58 = por %p56, %p57
    %s59 = sadd.s32 %s19, 1
    %s60 = sadd.s32 %s26, 1
    %s61 = ssub.s32 %s18, %s30
    %s62 = ssub.s32 %s59, %s60
    %s63 = sor.u32 %s61, %s62
    %p64 = scmp.eq.s32.totalorder %s63, 0
    %s66 = sadd.s32 %s65, 1
    %s67 = scalar_select %p64, %s65, %s66
    %p70 = pneg %p64
    %p71 = scmp.eq.s32.totalorder %s11, 7
    %p72 = por %p70, %p71
    %p73 = scmp.ne.s32.totalorder %s65, %s68
    %p74 = scmp.eq.s32.totalorder %s11, 0
    %p75 = por %p73, %p74
    %p76 = scmp.ne.s32.totalorder %s65, %s68
    %p77 = scmp.eq.s32.totalorder %s16, 7
    %p78 = por %p76, %p77
    %p79 = scmp.ne.s32.totalorder %s68, %s69
    %p80 = scmp.eq.s32.totalorder %s16, 0
    %p81 = por %p79, %p80
    %p82 = scmp.ne.s32.totalorder %s68, %s69
    %p83 = scmp.eq.s32.totalorder %s17, 7
    %p84 = por %p82, %p83
    %p86 = scmp.ne.s32.totalorder %s69, %s85
    %p87 = scmp.eq.s32.totalorder %s17, 0
    %p88 = por %p86, %p87
    %s89 = sadd.s32 %s19, 2
    %s90 = sadd.s32 %s26, 2
    %s91 = ssub.s32 %s18, %s30
    %s92 = ssub.s32 %s89, %s90
    %s93 = sor.u32 %s91, %s92
    %p94 = scmp.eq.s32.totalorder %s93, 0
    %s96 = sadd.s32 %s95, 1
    %s97 = scalar_select %p94, %s95, %s96
    %p100 = pneg %p94
    %p101 = scmp.eq.s32.totalorder %s11, 7
    %p102 = por %p100, %p101
    %p103 = scmp.ne.s32.totalorder %s95, %s98
    %p104 = scmp.eq.s32.totalorder %s11, 0
    %p105 = por %p103, %p104
    %p106 = scmp.ne.s32.totalorder %s95, %s98
    %p107 = scmp.eq.s32.totalorder %s16, 7
    %p108 = por %p106, %p107
    %p109 = scmp.ne.s32.totalorder %s98, %s99
    %p110 = scmp.eq.s32.totalorder %s16, 0
    %p111 = por %p109, %p110
    %p112 = scmp.ne.s32.totalorder %s98, %s99
    %p113 = scmp.eq.s32.totalorder %s17, 7
    %p114 = por %p112, %p113
    %p116 = scmp.ne.s32.totalorder %s99, %s115
    %p117 = scmp.eq.s32.totalorder %s17, 0
    %p118 = por %p116, %p117
    %s120 = sadd.s32 %s119, 1
    %p123 = scmp.eq.s32.totalorder %s11, 7
    %p124 = scmp.ne.s32.totalorder %s119, %s121
    %p125 = scmp.eq.s32.totalorder %s11, 0
    %p126 = por %p124, %p125
    %p127 = scmp.ne.s32.totalorder %s119, %s121
    %p128 = scmp.eq.s32.totalorder %s16, 7
    %p129 = por %p127, %p128
    %p130 = scmp.ne.s32.totalorder %s121, %s122
    %p131 = scmp.eq.s32.totalorder %s16, 0
    %p132 = por %p130, %p131
    %p133 = scmp.ne.s32.totalorder %s121, %s122
    %p134 = scmp.eq.s32.totalorder %s17, 7
    %p135 = por %p133, %p134
    %p137 = scmp.ne.s32.totalorder %s122, %s136
    %p138 = scmp.eq.s32.totalorder %s17, 0
    %p139 = por %p137, %p138
    %s141 = sadd.s32 %s140, 1
    %p144 = scmp.eq.s32.totalorder %s11, 7
    %p145 = scmp.ne.s32.totalorder %s140, %s142
    %p146 = scmp.eq.s32.totalorder %s11, 0
    %p147 = por %p145, %p146
    %p148 = scmp.ne.s32.totalorder %s140, %s142
    %p149 = scmp.eq.s32.totalorder %s16, 7
    %p150 = por %p148, %p149
    %p151 = scmp.ne.s32.totalorder %s142, %s143
    %p152 = scmp.eq.s32.totalorder %s16, 0
    %p153 = por %p151, %p152
    %p154 = scmp.ne.s32.totalorder %s142, %s143
    %p155 = scmp.eq.s32.totalorder %s17, 7
    %p156 = por %p154, %p155
    %p158 = scmp.ne.s32.totalorder %s143, %s157
    %p159 = scmp.eq.s32.totalorder %s17, 0
    %p160 = por %p158, %p159
    %s161 = ssub.s32 %s18, %s30
    %s162 = ssub.s32 %s19, %s26
    %s163 = sor.u32 %s161, %s162
    %p164 = scmp.eq.s32.totalorder %s163, 0
    %s166 = sadd.s32 %s165, 1
    %s167 = scalar_select %p164, %s165, %s166
    %p170 = pneg %p164
    %p171 = scmp.eq.s32.totalorder %s11, 7
    %p172 = por %p170, %p171
    %p173 = scmp.ne.s32.totalorder %s165, %s168
    %p174 = scmp.eq.s32.totalorder %s11, 0
    %p175 = por %p173, %p174
    %p176 = scmp.ne.s32.totalorder %s165, %s168
    %p177 = scmp.eq.s32.totalorder %s16, 7
    %p178 = por %p176, %p177
    %p179 = scmp.ne.s32.totalorder %s168, %s169
    %p180 = scmp.eq.s32.totalorder %s16, 0
    %p181 = por %p179, %p180
    %p182 = scmp.ne.s32.totalorder %s168, %s169
    %p183 = scmp.eq.s32.totalorder %s17, 7
    %p184 = por %p182, %p183
    %p186 = scmp.ne.s32.totalorder %s169, %s185
    %p187 = scmp.eq.s32.totalorder %s17, 0
    %p188 = por %p186, %p187
    %p189 = scmp.le.s32.totalorder 1, %s11
    %p190 = scmp.lt.s32.totalorder %s11, 9
    %p191 = pnand %p189, %p190
    %p192 = pneg %p191
    // Predicated region
    $region9: #{inception_forward.7} parent=5 // pred_check
      _
    $region10: #{inception_forward.7} parent=5 // pred_check_branch
      %194 = sbr.rel (%p191) target = $region12
    $region11: #{inception_forward.7} parent=5 // pred_region
      %s195 = ssub.s32 %s11, 1
      // Predicated region
      $region13: #{inception_forward.7} parent=11 // pred_check
        %p196 = pneg %p132
      $region14: #{inception_forward.7} parent=11 // pred_check_branch
        %198 = sbr.rel (%p196) target = $region16
      $region15: #{inception_forward.7} parent=11 // pred_region
        _
      $region16: #{inception_forward.7} parent=11 // pred_fallthru
        _
      // Predicated region
      $region17: #{inception_forward.7} parent=11 // pred_check
        %p199 = pneg %p153
      $region18: #{inception_forward.7} parent=11 // pred_check_branch
        %201 = sbr.rel (%p199) target = $region20
      $region19: #{inception_forward.7} parent=11 // pred_region
        _
      $region20: #{inception_forward.7} parent=11 // pred_fallthru
        _
    $region12: #{inception_forward.7} parent=5 // pred_fallthru
      _
    %p202 = scmp.lt.s32.totalorder %s11, 8
    // Predicated region
    $region21: #{inception_forward.7} parent=5 // pred_check
      %p203 = pneg %p202
    $region22: #{inception_forward.7} parent=5 // pred_check_branch
      %205 = sbr.rel (%p203) target = $region24
    $region23: #{inception_forward.7} parent=5 // pred_region
      // Predicated region
      $region25: #{inception_forward.7} parent=23 // pred_check
        %p206 = pneg %p45
      $region26: #{inception_forward.7} parent=23 // pred_check_branch
        %208 = sbr.rel (%p206) target = $region28
      $region27: #{inception_forward.7} parent=23 // pred_region
        %p209 = scmp.lt.s32.totalorder %s18, 1
        %s210 = scalar_select %p209, %s18, 1
        %p211 = scmp.lt.s32.totalorder %s19, 5
        %s212 = scalar_select %p211, %s19, 5
        %s213 = smul.addr %s212, 20
        %s214 = smul.addr %s210, 120
        %s215 = sadd.s32 %s213, %s214
        %s216 = smul.addr %s215, 4
        %s217 = scalar_lea.vmem %s0, %s216
      $region28: #{inception_forward.7} parent=23 // pred_fallthru
        _
      // Predicated region
      $region29: #{inception_forward.7} parent=23 // pred_check
        %p218 = pneg %p75
      $region30: #{inception_forward.7} parent=23 // pred_check_branch
        %220 = sbr.rel (%p218) target = $region32
      $region31: #{inception_forward.7} parent=23 // pred_region
        %s221 = sadd.s32 %s19, 1
        %p222 = scmp.lt.s32.totalorder %s18, 1
        %s223 = scalar_select %p222, %s18, 1
        %p224 = scmp.lt.s32.totalorder %s221, 5
        %s225 = scalar_select %p224, %s221, 5
        %s226 = smul.addr %s225, 20
        %s227 = smul.addr %s223, 120
        %s228 = sadd.s32 %s226, %s227
        %s229 = smul.addr %s228, 4
        %s230 = scalar_lea.vmem %s1, %s229
        %s231 = sadd.s32 %s19, 1
      $region32: #{inception_forward.7} parent=23 // pred_fallthru
        _
      // Predicated region
      $region33: #{inception_forward.7} parent=23 // pred_check
        %p232 = pneg %p105
      $region34: #{inception_forward.7} parent=23 // pred_check_branch
        %234 = sbr.rel (%p232) target = $region36
      $region35: #{inception_forward.7} parent=23 // pred_region
        %s235 = sadd.s32 %s19, 2
        %p236 = scmp.lt.s32.totalorder %s18, 1
        %s237 = scalar_select %p236, %s18, 1
        %p238 = scmp.lt.s32.totalorder %s235, 5
        %s239 = scalar_select %p238, %s235, 5
        %s240 = smul.addr %s239, 20
        %s241 = smul.addr %s237, 120
        %s242 = sadd.s32 %s240, %s241
        %s243 = smul.addr %s242, 4
        %s244 = scalar_lea.vmem %s2, %s243
        %s245 = sadd.s32 %s19, 2
      $region36: #{inception_forward.7} parent=23 // pred_fallthru
        _
    $region24: #{inception_forward.7} parent=5 // pred_fallthru
      _
    %p246 = scmp.le.s32.totalorder 1, %s11
    %p247 = scmp.lt.s32.totalorder %s11, 9
    %p248 = pnand %p246, %p247
    %p249 = pneg %p248
    // Predicated region
    $region37: #{inception_forward.7} parent=5 // pred_check
      _
    $region38: #{inception_forward.7} parent=5 // pred_check_branch
      %251 = sbr.rel (%p248) target = $region40
    $region39: #{inception_forward.7} parent=5 // pred_region
      %s252 = ssub.s32 %s11, 1
      %p253 = scmp.lt.s32.totalorder %s20, 1
      %s254 = scalar_select %p253, %s20, 1
      %p255 = scmp.lt.s32.totalorder %s21, 5
      %s256 = scalar_select %p255, %s21, 5
      %s257 = smul.addr %s256, 20
      %s258 = smul.addr %s254, 120
      %s259 = sadd.s32 %s257, %s258
      %s260 = smul.addr %s259, 4
      %s261 = scalar_lea.vmem %s0, %s260
      %p262 = pneg %p51
      %p263 = pneg %p48
      %s264 = sadd.s32 %s21, 1
      %p265 = scmp.lt.s32.totalorder %s20, 1
      %s266 = scalar_select %p265, %s20, 1
      %p267 = scmp.lt.s32.totalorder %s264, 5
      %s268 = scalar_select %p267, %s264, 5
      %s269 = smul.addr %s268, 20
      %s270 = smul.addr %s266, 120
      %s271 = sadd.s32 %s269, %s270
      %s272 = smul.addr %s271, 4
      %s273 = scalar_lea.vmem %s1, %s272
      %p274 = pneg %p81
      %p275 = pneg %p78
      %s276 = sadd.s32 %s21, 2
      %p277 = scmp.lt.s32.totalorder %s20, 1
      %s278 = scalar_select %p277, %s20, 1
      %p279 = scmp.lt.s32.totalorder %s276, 5
      %s280 = scalar_select %p279, %s276, 5
      %s281 = smul.addr %s280, 20
      %s282 = smul.addr %s278, 120
      %s283 = sadd.s32 %s281, %s282
      %s284 = smul.addr %s283, 4
      %s285 = scalar_lea.vmem %s2, %s284
      %p286 = pneg %p111
      %p287 = pneg %p108
      %p288 = pneg %p132
      %p289 = pneg %p129
      %p290 = pneg %p153
      %p291 = pneg %p150
      %p292 = pneg %p181
      %p293 = pneg %p178
      %p294 = scmp.lt.s32.totalorder %s20, 1
      %s295 = scalar_select %p294, %s20, 1
      %p296 = scmp.lt.s32.totalorder %s21, 3
      %s297 = scalar_select %p296, %s21, 3
      %s298 = smul.addr %s297, 8
      %s299 = smul.addr %s295, 32
      %s300 = sadd.s32 %s298, %s299
      %s301 = smul.addr %s300, 4
      %s302 = scalar_lea.vmem %s5, %s301
      %p303 = scmp.lt.s32.totalorder %s20, 1
      %s304 = scalar_select %p303, %s20, 1
      %p305 = scmp.lt.s32.totalorder %s21, 5
      %s306 = scalar_select %p305, %s21, 5
      %s307 = smul.addr %s306, 20
      %s308 = smul.addr %s304, 120
      %s309 = sadd.s32 %s307, %s308
      %s310 = smul.addr %s309, 4
      %s311 = scalar_lea.vmem %s0, %s310
      %s312 = sadd.s32 %s21, 1
      %p313 = scmp.lt.s32.totalorder %s20, 1
      %s314 = scalar_select %p313, %s20, 1
      %p315 = scmp.lt.s32.totalorder %s312, 5
      %s316 = scalar_select %p315, %s312, 5
      %s317 = smul.addr %s316, 20
      %s318 = smul.addr %s314, 120
      %s319 = sadd.s32 %s317, %s318
      %s320 = smul.addr %s319, 4
      %s321 = scalar_lea.vmem %s1, %s320
      %s322 = sadd.s32 %s21, 1
      %s323 = sadd.s32 %s21, 2
      %p324 = scmp.lt.s32.totalorder %s20, 1
      %s325 = scalar_select %p324, %s20, 1
      %p326 = scmp.lt.s32.totalorder %s323, 5
      %s327 = scalar_select %p326, %s323, 5
      %s328 = smul.addr %s327, 20
      %s329 = smul.addr %s325, 120
      %s330 = sadd.s32 %s328, %s329
      %s331 = smul.addr %s330, 4
      %s332 = scalar_lea.vmem %s2, %s331
      %s333 = sadd.s32 %s21, 2
      %p334 = scmp.lt.s32.totalorder %s20, 1
      %s335 = scalar_select %p334, %s20, 1
      %p336 = scmp.lt.s32.totalorder %s21, 3
      %s337 = scalar_select %p336, %s21, 3
      %s338 = smul.addr %s337, 8
      %s339 = smul.addr %s335, 32
      %s340 = sadd.s32 %s338, %s339
      %s341 = smul.addr %s340, 4
      %s342 = scalar_lea.vmem %s5, %s341
      %v344 = vld [vmem:[%s311] sm:$0xf]
      %v345 = vld [vmem:[%s311 + $0x4] sm:$0x1]
      %v346 = vld [vmem:[%s311 + $0x8] sm:$0xf]
      %v347 = vld [vmem:[%s311 + $0xc] sm:$0x1]
      %v348 = vld [vmem:[%s311 + $0x10] sm:$0xf]
      %v349 = vld [vmem:[%s311 + $0x14] sm:$0x1]
      %v350 = vld [vmem:[%s311 + $0x18] sm:$0xf]
      %v351 = vld [vmem:[%s311 + $0x1c] sm:$0x1]
      %v352 = vld [vmem:[%s311 + $0x20] sm:$0xf]
      %v353 = vld [vmem:[%s311 + $0x24] sm:$0x1]
      %v354 = vld [vmem:[%s311 + $0x28] sm:$0xf]
      %v355 = vld [vmem:[%s311 + $0x2c] sm:$0x1]
      %v356 = vld [vmem:[%s311 + $0x30] sm:$0xf]
      %v357 = vld [vmem:[%s311 + $0x34] sm:$0x1]
      %v358 = vld [vmem:[%s311 + $0x38] sm:$0xf]
      %v359 = vld [vmem:[%s311 + $0x3c] sm:$0x1]
      %v360 = vld [vmem:[%s311 + $0x40] sm:$0xf]
      %v361 = vld [vmem:[%s311 + $0x44] sm:$0x1]
      %v362 = vld [vmem:[%s311 + $0x48] sm:$0xf]
      %v363 = vld [vmem:[%s311 + $0x4c] sm:$0x1]
      %v364 = vld [vmem:[%s3] sm:$0xf]
      %vm365 = vsmask.f32 3328
      %vm366 = vsmask.f32 7440
      %vm367 = vmor %vm365, %vm366
      %v369 = vshrl.u32 %v344, 16
      %v371 = vrot.slane %v369, 4
      %v372 = vshll.u32 %v344, 16
      %v374 = vrot.slane %v372, 5
      %v375 = vor.u32 %v371, %v374
      %v376 = vrot.slane %v375, 4
      %v378 = vshll.u32 %v345, 16
      %v380 = vrot.slane %v378, 5
      %v381 = vsel %vm367, %v376, %v380
      %v383 = vshrl.u32 %v346, 16
      %v385 = vrot.slane %v383, 4
      %v386 = vshll.u32 %v346, 16
      %v388 = vrot.slane %v386, 5
      %v389 = vor.u32 %v385, %v388
      %v390 = vrot.slane %v389, 4
      %v392 = vshll.u32 %v347, 16
      %v394 = vrot.slane %v392, 5
      %v395 = vsel %vm367, %v390, %v394
      %v397 = vshrl.u32 %v348, 16
      %v399 = vrot.slane %v397, 4
      %v400 = vshll.u32 %v348, 16
      %v402 = vrot.slane %v400, 5
      %v403 = vor.u32 %v399, %v402
      %v404 = vrot.slane %v403, 4
      %v406 = vshll.u32 %v349, 16
      %v408 = vrot.slane %v406, 5
      %v409 = vsel %vm367, %v404, %v408
      %v411 = vshrl.u32 %v350, 16
      %v413 = vrot.slane %v411, 4
      %v414 = vshll.u32 %v350, 16
      %v416 = vrot.slane %v414, 5
      %v417 = vor.u32 %v413, %v416
      %v418 = vrot.slane %v417, 4
      %v420 = vshll.u32 %v351, 16
      %v422 = vrot.slane %v420, 5
      %v423 = vsel %vm367, %v418, %v422
      %v425 = vshrl.u32 %v352, 16
      %v427 = vrot.slane %v425, 4
      %v428 = vshll.u32 %v352, 16
      %v430 = vrot.slane %v428, 5
      %v431 = vor.u32 %v427, %v430
      %v432 = vrot.slane %v431, 4
      %v434 = vshll.u32 %v353, 16
      %v436 = vrot.slane %v434, 5
      %v437 = vsel %vm367, %v432, %v436
      %v439 = vshrl.u32 %v354, 16
      %v441 = vrot.slane %v439, 4
      %v442 = vshll.u32 %v354, 16
      %v444 = vrot.slane %v442, 5
      %v445 = vor.u32 %v441, %v444
      %v446 = vrot.slane %v445, 4
      %v448 = vshll.u32 %v355, 16
      %v450 = vrot.slane %v448, 5
      %v451 = vsel %vm367, %v446, %v450
      %v453 = vshrl.u32 %v356, 16
      %v455 = vrot.slane %v453, 4
      %v456 = vshll.u32 %v356, 16
      %v458 = vrot.slane %v456, 5
      %v459 = vor.u32 %v455, %v458
      %v460 = vrot.slane %v459, 4
      %v462 = vshll.u32 %v357, 16
      %v464 = vrot.slane %v462, 5
      %v465 = vsel %vm367, %v460, %v464
      %v467 = vshrl.u32 %v358, 16
      %v469 = vrot.slane %v467, 4
      %v470 = vshll.u32 %v358, 16
      %v472 = vrot.slane %v470, 5
      %v473 = vor.u32 %v469, %v472
      %v474 = vrot.slane %v473, 4
      %v476 = vshll.u32 %v359, 16
      %v478 = vrot.slane %v476, 5
      %v479 = vsel %vm367, %v474, %v478
      %s480 = scalar_lea.vmem %s3, 4
      %v481 = vld [vmem:[%s480] sm:$0xf]
      %v482 = vunpack.c.l.b16 %v381
      %v483 = vunpack.c.l.b16 %v395
      %v484 = vunpack.c.l.b16 %v409
      %v485 = vunpack.c.l.b16 %v423
      %v486 = vunpack.c.l.b16 %v437
      %v487 = vunpack.c.l.b16 %v451
      %v488 = vunpack.c.l.b16 %v465
      %v489 = vunpack.c.l.b16 %v479
      %v490 = vpack.c.b16 %v483, %v482
      %v491 = vpack.c.b16 %v485, %v484
      %v492 = vpack.c.b16 %v487, %v486
      %v493 = vpack.c.b16 %v489, %v488
      %vm494 = vcmask 64512
      %v496 = vsel %vm494, %v490, 0
      %v499 = vsel %vm494, %v491, 0
      %v502 = vsel %vm494, %v492, 0
      %v505 = vsel %vm494, %v493, 0
      %vm507 = vcmask 1043456
      %v509 = vsel %vm507, %v481, 0
      %511 = vmatpush.bf16.msra.mxu0 0
      %512 = vmatpush.bf16.msra.mxu0 0
      %513 = vmatpush.bf16.msra.mxu0 0
      %514 = vmatpush.bf16.msra.mxu0 0
      %515 = vmatpush.bf16.msra.mxu0 0
      %516 = vmatpush.bf16.msra.mxu0 0
      %517 = vmatpush.bf16.msra.mxu0 0
      %518 = vmatpush.bf16.msra.mxu0 %v509
      %519 = vmatmul.bf16.gmra.mxu0 %v496
      %v520 = vpop.f32.mrf.mxu0
      %v521 = vadd.f32 0.0, %v520
      %v522 = vpop.f32.mrf.mxu0
      %v523 = vadd.f32 0.0, %v522
      %524 = vmatmul.bf16.gmra.mxu0 %v499
      %v525 = vpop.f32.mrf.mxu0
      %v526 = vadd.f32 0.0, %v525
      %v527 = vpop.f32.mrf.mxu0
      %v528 = vadd.f32 0.0, %v527
      %529 = vmatmul.bf16.gmra.mxu0 %v502
      %v530 = vpop.f32.mrf.mxu0
      %v531 = vadd.f32 0.0, %v530
      %v532 = vpop.f32.mrf.mxu0
      %v533 = vadd.f32 0.0, %v532
      %534 = vmatmul.bf16.gmra.mxu0 %v505
      %v535 = vpop.f32.mrf.mxu0
      %v536 = vadd.f32 0.0, %v535
      %v537 = vpop.f32.mrf.mxu0
      %v538 = vadd.f32 0.0, %v537
      %539 = vdwg.mxu0
      %v548 = vunpack.c.l.b16 %v344
      %v549 = vunpack.c.l.b16 %v346
      %v550 = vunpack.c.l.b16 %v348
      %v551 = vunpack.c.l.b16 %v350
      %v552 = vunpack.c.l.b16 %v352
      %v553 = vunpack.c.l.b16 %v354
      %v554 = vunpack.c.l.b16 %v356
      %v555 = vunpack.c.l.b16 %v358
      %v556 = vpack.c.b16 %v549, %v548
      %v557 = vpack.c.b16 %v551, %v550
      %v558 = vpack.c.b16 %v553, %v552
      %v559 = vpack.c.b16 %v555, %v554
      %v561 = vsel %vm494, %v556, 0
      %v564 = vsel %vm494, %v557, 0
      %v567 = vsel %vm494, %v558, 0
      %v570 = vsel %vm494, %v559, 0
      %v573 = vsel %vm507, %v364, 0
      %575 = vmatpush.bf16.msra.mxu0 0
      %576 = vmatpush.bf16.msra.mxu0 0
      %577 = vmatpush.bf16.msra.mxu0 0
      %578 = vmatpush.bf16.msra.mxu0 0
      %579 = vmatpush.bf16.msra.mxu0 0
      %580 = vmatpush.bf16.msra.mxu0 0
      %581 = vmatpush.bf16.msra.mxu0 0
      %582 = vmatpush.bf16.msra.mxu0 %v573
      %583 = vmatmul.bf16.gmra.mxu0 %v561
      %v584 = vpop.f32.mrf.mxu0
      %v585 = vadd.f32 %v521, %v584
      %v586 = vpop.f32.mrf.mxu0
      %v587 = vadd.f32 %v523, %v586
      %588 = vmatmul.bf16.gmra.mxu0 %v564
      %v589 = vpop.f32.mrf.mxu0
      %v590 = vadd.f32 %v526, %v589
      %v591 = vpop.f32.mrf.mxu0
      %v592 = vadd.f32 %v528, %v591
      %593 = vmatmul.bf16.gmra.mxu0 %v567
      %v594 = vpop.f32.mrf.mxu0
      %v595 = vadd.f32 %v531, %v594
      %v596 = vpop.f32.mrf.mxu0
      %v597 = vadd.f32 %v533, %v596
      %598 = vmatmul.bf16.gmra.mxu0 %v570
      %v599 = vpop.f32.mrf.mxu0
      %v600 = vadd.f32 %v536, %v599
      %v601 = vpop.f32.mrf.mxu0
      %v602 = vadd.f32 %v538, %v601
      %603 = vdwg.mxu0
      %vm612 = vcmask 1042432
      %vm613 = vcmask 1046532
      %vm614 = vmor %vm612, %vm613
      %v615 = vrot.slane %v344, 5
      %v616 = vrot.slane %v615, 4
      %v617 = vrot.slane %v345, 5
      %v618 = vsel %vm614, %v616, %v617
      %v619 = vrot.slane %v346, 5
      %v620 = vrot.slane %v619, 4
      %v621 = vrot.slane %v347, 5
      %v622 = vsel %vm614, %v620, %v621
      %v623 = vrot.slane %v348, 5
      %v624 = vrot.slane %v623, 4
      %v625 = vrot.slane %v349, 5
      %v626 = vsel %vm614, %v624, %v625
      %v627 = vrot.slane %v350, 5
      %v628 = vrot.slane %v627, 4
      %v629 = vrot.slane %v351, 5
      %v630 = vsel %vm614, %v628, %v629
      %v631 = vrot.slane %v352, 5
      %v632 = vrot.slane %v631, 4
      %v633 = vrot.slane %v353, 5
      %v634 = vsel %vm614, %v632, %v633
      %v635 = vrot.slane %v354, 5
      %v636 = vrot.slane %v635, 4
      %v637 = vrot.slane %v355, 5
      %v638 = vsel %vm614, %v636, %v637
      %v639 = vrot.slane %v356, 5
      %v640 = vrot.slane %v639, 4
      %v641 = vrot.slane %v357, 5
      %v642 = vsel %vm614, %v640, %v641
      %v643 = vrot.slane %v358, 5
      %v644 = vrot.slane %v643, 4
      %v645 = vrot.slane %v359, 5
      %v646 = vsel %vm614, %v644, %v645
      %s647 = scalar_lea.vmem %s3, 8
      %v648 = vld [vmem:[%s647] sm:$0xf]
      %v649 = vunpack.c.l.b16 %v618
      %v650 = vunpack.c.l.b16 %v622
      %v651 = vunpack.c.l.b16 %v626
      %v652 = vunpack.c.l.b16 %v630
      %v653 = vunpack.c.l.b16 %v634
      %v654 = vunpack.c.l.b16 %v638
      %v655 = vunpack.c.l.b16 %v642
      %v656 = vunpack.c.l.b16 %v646
      %v657 = vpack.c.b16 %v650, %v649
      %v658 = vpack.c.b16 %v652, %v651
      %v659 = vpack.c.b16 %v654, %v653
      %v660 = vpack.c.b16 %v656, %v655
      %v662 = vsel %vm494, %v657, 0
      %v665 = vsel %vm494, %v658, 0
      %v668 = vsel %vm494, %v659, 0
      %v671 = vsel %vm494, %v660, 0
      %v674 = vsel %vm507, %v648, 0
      %676 = vmatpush.bf16.msra.mxu0 0
      %677 = vmatpush.bf16.msra.mxu0 0
      %678 = vmatpush.bf16.msra.mxu0 0
      %679 = vmatpush.bf16.msra.mxu0 0
      %680 = vmatpush.bf16.msra.mxu0 0
      %681 = vmatpush.bf16.msra.mxu0 0
      %682 = vmatpush.bf16.msra.mxu0 0
      %683 = vmatpush.bf16.msra.mxu0 %v674
      %684 = vmatmul.bf16.gmra.mxu0 %v662
      %v685 = vpop.f32.mrf.mxu0
      %v686 = vadd.f32 0.0, %v685
      %v687 = vpop.f32.mrf.mxu0
      %v688 = vadd.f32 0.0, %v687
      %689 = vmatmul.bf16.gmra.mxu0 %v665
      %v690 = vpop.f32.mrf.mxu0
      %v691 = vadd.f32 0.0, %v690
      %v692 = vpop.f32.mrf.mxu0
      %v693 = vadd.f32 0.0, %v692
      %694 = vmatmul.bf16.gmra.mxu0 %v668
      %v695 = vpop.f32.mrf.mxu0
      %v696 = vadd.f32 0.0, %v695
      %v697 = vpop.f32.mrf.mxu0
      %v698 = vadd.f32 0.0, %v697
      %699 = vmatmul.bf16.gmra.mxu0 %v671
      %v700 = vpop.f32.mrf.mxu0
      %v701 = vadd.f32 0.0, %v700
      %v702 = vpop.f32.mrf.mxu0
      %v703 = vadd.f32 0.0, %v702
      %704 = vdwg.mxu0
      %v705 = vadd.f32 %v585, %v686
      %v706 = vadd.f32 %v587, %v688
      %v707 = vadd.f32 %v590, %v691
      %v708 = vadd.f32 %v592, %v693
      %v709 = vadd.f32 %v595, %v696
      %v710 = vadd.f32 %v597, %v698
      %v711 = vadd.f32 %v600, %v701
      %v712 = vadd.f32 %v602, %v703
      %s713 = scalar_lea.vmem %s3, 12
      %v714 = vld [vmem:[%s713] sm:$0xf]
      %v716 = vunpack.c.l.b16 %v360
      %v717 = vpack.c.b16 %v550, %v549
      %v718 = vpack.c.b16 %v552, %v551
      %v719 = vpack.c.b16 %v554, %v553
      %v720 = vpack.c.b16 %v716, %v555
      %v722 = vsel %vm494, %v717, 0
      %v725 = vsel %vm494, %v718, 0
      %v728 = vsel %vm494, %v719, 0
      %v731 = vsel %vm494, %v720, 0
      %v734 = vsel %vm507, %v714, 0
      %736 = vmatpush.bf16.msra.mxu0 0
      %737 = vmatpush.bf16.msra.mxu0 0
      %738 = vmatpush.bf16.msra.mxu0 0
      %739 = vmatpush.bf16.msra.mxu0 0
      %740 = vmatpush.bf16.msra.mxu0 0
      %741 = vmatpush.bf16.msra.mxu0 0
      %742 = vmatpush.bf16.msra.mxu0 0
      %743 = vmatpush.bf16.msra.mxu0 %v734
      %744 = vmatmul.bf16.gmra.mxu0 %v722
      %v745 = vpop.f32.mrf.mxu0
      %v746 = vadd.f32 0.0, %v745
      %v747 = vpop.f32.mrf.mxu0
      %v748 = vadd.f32 0.0, %v747
      %749 = vmatmul.bf16.gmra.mxu0 %v725
      %v750 = vpop.f32.mrf.mxu0
      %v751 = vadd.f32 0.0, %v750
      %v752 = vpop.f32.mrf.mxu0
      %v753 = vadd.f32 0.0, %v752
      %754 = vmatmul.bf16.gmra.mxu0 %v728
      %v755 = vpop.f32.mrf.mxu0
      %v756 = vadd.f32 0.0, %v755
      %v757 = vpop.f32.mrf.mxu0
      %v758 = vadd.f32 0.0, %v757
      %759 = vmatmul.bf16.gmra.mxu0 %v731
      %v760 = vpop.f32.mrf.mxu0
      %v761 = vadd.f32 0.0, %v760
      %v762 = vpop.f32.mrf.mxu0
      %v763 = vadd.f32 0.0, %v762
      %764 = vdwg.mxu0
      %v765 = vadd.f32 %v705, %v746
      %v766 = vadd.f32 %v706, %v748
      %v767 = vadd.f32 %v707, %v751
      %v768 = vadd.f32 %v708, %v753
      %v769 = vadd.f32 %v709, %v756
      %v770 = vadd.f32 %v710, %v758
      %v771 = vadd.f32 %v711, %v761
      %v772 = vadd.f32 %v712, %v763
      %v774 = vshrl.u32 %v360, 16
      %v776 = vrot.slane %v774, 4
      %v777 = vshll.u32 %v360, 16
      %v779 = vrot.slane %v777, 5
      %v780 = vor.u32 %v776, %v779
      %v781 = vrot.slane %v780, 4
      %v783 = vshll.u32 %v361, 16
      %v785 = vrot.slane %v783, 5
      %v786 = vsel %vm367, %v781, %v785
      %s787 = scalar_lea.vmem %s3, 16
      %v788 = vld [vmem:[%s787] sm:$0xf]
      %v789 = vunpack.c.l.b16 %v786
      %v790 = vpack.c.b16 %v484, %v483
      %v791 = vpack.c.b16 %v486, %v485
      %v792 = vpack.c.b16 %v488, %v487
      %v793 = vpack.c.b16 %v789, %v489
      %v795 = vsel %vm494, %v790, 0
      %v798 = vsel %vm494, %v791, 0
      %v801 = vsel %vm494, %v792, 0
      %v804 = vsel %vm494, %v793, 0
      %v807 = vsel %vm507, %v788, 0
      %809 = vmatpush.bf16.msra.mxu0 0
      %810 = vmatpush.bf16.msra.mxu0 0
      %811 = vmatpush.bf16.msra.mxu0 0
      %812 = vmatpush.bf16.msra.mxu0 0
      %813 = vmatpush.bf16.msra.mxu0 0
      %814 = vmatpush.bf16.msra.mxu0 0
      %815 = vmatpush.bf16.msra.mxu0 0
      %816 = vmatpush.bf16.msra.mxu0 %v807
      %817 = vmatmul.bf16.gmra.mxu0 %v795
      %v818 = vpop.f32.mrf.mxu0
      %v819 = vadd.f32 0.0, %v818
      %v820 = vpop.f32.mrf.mxu0
      %v821 = vadd.f32 0.0, %v820
      %822 = vmatmul.bf16.gmra.mxu0 %v798
      %v823 = vpop.f32.mrf.mxu0
      %v824 = vadd.f32 0.0, %v823
      %v825 = vpop.f32.mrf.mxu0
      %v826 = vadd.f32 0.0, %v825
      %827 = vmatmul.bf16.gmra.mxu0 %v801
      %v828 = vpop.f32.mrf.mxu0
      %v829 = vadd.f32 0.0, %v828
      %v830 = vpop.f32.mrf.mxu0
      %v831 = vadd.f32 0.0, %v830
      %832 = vmatmul.bf16.gmra.mxu0 %v804
      %v833 = vpop.f32.mrf.mxu0
      %v834 = vadd.f32 0.0, %v833
      %v835 = vpop.f32.mrf.mxu0
      %v836 = vadd.f32 0.0, %v835
      %837 = vdwg.mxu0
      %v838 = vadd.f32 %v765, %v819
      %v839 = vadd.f32 %v766, %v821
      %v840 = vadd.f32 %v767, %v824
      %v841 = vadd.f32 %v768, %v826
      %v842 = vadd.f32 %v769, %v829
      %v843 = vadd.f32 %v770, %v831
      %v844 = vadd.f32 %v771, %v834
      %v845 = vadd.f32 %v772, %v836
      %v847 = vrot.slane %v360, 5
      %v848 = vrot.slane %v847, 4
      %v849 = vrot.slane %v361, 5
      %v850 = vsel %vm614, %v848, %v849
      %s851 = scalar_lea.vmem %s3, 20
      %v852 = vld [vmem:[%s851] sm:$0xf]
      %v853 = vunpack.c.l.b16 %v850
      %v854 = vpack.c.b16 %v651, %v650
      %v855 = vpack.c.b16 %v653, %v652
      %v856 = vpack.c.b16 %v655, %v654
      %v857 = vpack.c.b16 %v853, %v656
      %v859 = vsel %vm494, %v854, 0
      %v862 = vsel %vm494, %v855, 0
      %v865 = vsel %vm494, %v856, 0
      %v868 = vsel %vm494, %v857, 0
      %v871 = vsel %vm507, %v852, 0
      %873 = vmatpush.bf16.msra.mxu0 0
      %874 = vmatpush.bf16.msra.mxu0 0
      %875 = vmatpush.bf16.msra.mxu0 0
      %876 = vmatpush.bf16.msra.mxu0 0
      %877 = vmatpush.bf16.msra.mxu0 0
      %878 = vmatpush.bf16.msra.mxu0 0
      %879 = vmatpush.bf16.msra.mxu0 0
      %880 = vmatpush.bf16.msra.mxu0 %v871
      %881 = vmatmul.bf16.gmra.mxu0 %v859
      %v882 = vpop.f32.mrf.mxu0
      %v883 = vadd.f32 0.0, %v882
      %v884 = vpop.f32.mrf.mxu0
      %v885 = vadd.f32 0.0, %v884
      %886 = vmatmul.bf16.gmra.mxu0 %v862
      %v887 = vpop.f32.mrf.mxu0
      %v888 = vadd.f32 0.0, %v887
      %v889 = vpop.f32.mrf.mxu0
      %v890 = vadd.f32 0.0, %v889
      %891 = vmatmul.bf16.gmra.mxu0 %v865
      %v892 = vpop.f32.mrf.mxu0
      %v893 = vadd.f32 0.0, %v892
      %v894 = vpop.f32.mrf.mxu0
      %v895 = vadd.f32 0.0, %v894
      %896 = vmatmul.bf16.gmra.mxu0 %v868
      %v897 = vpop.f32.mrf.mxu0
      %v898 = vadd.f32 0.0, %v897
      %v899 = vpop.f32.mrf.mxu0
      %v900 = vadd.f32 0.0, %v899
      %901 = vdwg.mxu0
      %v902 = vadd.f32 %v838, %v883
      %v903 = vadd.f32 %v839, %v885
      %v904 = vadd.f32 %v840, %v888
      %v905 = vadd.f32 %v841, %v890
      %v906 = vadd.f32 %v842, %v893
      %v907 = vadd.f32 %v843, %v895
      %v908 = vadd.f32 %v844, %v898
      %v909 = vadd.f32 %v845, %v900
      %s910 = scalar_lea.vmem %s3, 24
      %v911 = vld [vmem:[%s910] sm:$0xf]
      %v913 = vunpack.c.l.b16 %v362
      %v914 = vpack.c.b16 %v913, %v716
      %v916 = vsel %vm494, %v914, 0
      %v919 = vsel %vm507, %v911, 0
      %921 = vmatpush.bf16.msra.mxu0 0
      %922 = vmatpush.bf16.msra.mxu0 0
      %923 = vmatpush.bf16.msra.mxu0 0
      %924 = vmatpush.bf16.msra.mxu0 0
      %925 = vmatpush.bf16.msra.mxu0 0
      %926 = vmatpush.bf16.msra.mxu0 0
      %927 = vmatpush.bf16.msra.mxu0 0
      %928 = vmatpush.bf16.msra.mxu0 %v919
      %929 = vmatmul.bf16.gmra.mxu0 %v564
      %v930 = vpop.f32.mrf.mxu0
      %v931 = vadd.f32 0.0, %v930
      %v932 = vpop.f32.mrf.mxu0
      %v933 = vadd.f32 0.0, %v932
      %934 = vmatmul.bf16.gmra.mxu0 %v567
      %v935 = vpop.f32.mrf.mxu0
      %v936 = vadd.f32 0.0, %v935
      %v937 = vpop.f32.mrf.mxu0
      %v938 = vadd.f32 0.0, %v937
      %939 = vmatmul.bf16.gmra.mxu0 %v570
      %v940 = vpop.f32.mrf.mxu0
      %v941 = vadd.f32 0.0, %v940
      %v942 = vpop.f32.mrf.mxu0
      %v943 = vadd.f32 0.0, %v942
      %944 = vmatmul.bf16.gmra.mxu0 %v916
      %v945 = vpop.f32.mrf.mxu0
      %v946 = vadd.f32 0.0, %v945
      %v947 = vpop.f32.mrf.mxu0
      %v948 = vadd.f32 0.0, %v947
      %949 = vdwg.mxu0
      %v950 = vadd.f32 %v902, %v931
      %v951 = vadd.f32 %v903, %v933
      %v952 = vadd.f32 %v904, %v936
      %v953 = vadd.f32 %v905, %v938
      %v954 = vadd.f32 %v906, %v941
      %v955 = vadd.f32 %v907, %v943
      %v956 = vadd.f32 %v908, %v946
      %v957 = vadd.f32 %v909, %v948
      %v959 = vshrl.u32 %v362, 16
      %v961 = vrot.slane %v959, 4
      %v962 = vshll.u32 %v362, 16
      %v964 = vrot.slane %v962, 5
      %v965 = vor.u32 %v961, %v964
      %v966 = vrot.slane %v965, 4
      %v968 = vshll.u32 %v363, 16
      %v970 = vrot.slane %v968, 5
      %v971 = vsel %vm367, %v966, %v970
      %s972 = scalar_lea.vmem %s3, 28
      %v973 = vld [vmem:[%s972] sm:$0xf]
      %v974 = vunpack.c.l.b16 %v971
      %v975 = vpack.c.b16 %v974, %v789
      %v977 = vsel %vm494, %v975, 0
      %v980 = vsel %vm507, %v973, 0
      %982 = vmatpush.bf16.msra.mxu0 0
      %983 = vmatpush.bf16.msra.mxu0 0
      %984 = vmatpush.bf16.msra.mxu0 0
      %985 = vmatpush.bf16.msra.mxu0 0
      %986 = vmatpush.bf16.msra.mxu0 0
      %987 = vmatpush.bf16.msra.mxu0 0
      %988 = vmatpush.bf16.msra.mxu0 0
      %989 = vmatpush.bf16.msra.mxu0 %v980
      %990 = vmatmul.bf16.gmra.mxu0 %v499
      %v991 = vpop.f32.mrf.mxu0
      %v992 = vadd.f32 0.0, %v991
      %v993 = vpop.f32.mrf.mxu0
      %v994 = vadd.f32 0.0, %v993
      %995 = vmatmul.bf16.gmra.mxu0 %v502
      %v996 = vpop.f32.mrf.mxu0
      %v997 = vadd.f32 0.0, %v996
      %v998 = vpop.f32.mrf.mxu0
      %v999 = vadd.f32 0.0, %v998
      %1000 = vmatmul.bf16.gmra.mxu0 %v505
      %v1001 = vpop.f32.mrf.mxu0
      %v1002 = vadd.f32 0.0, %v1001
      %v1003 = vpop.f32.mrf.mxu0
      %v1004 = vadd.f32 0.0, %v1003
      %1005 = vmatmul.bf16.gmra.mxu0 %v977
      %v1006 = vpop.f32.mrf.mxu0
      %v1007 = vadd.f32 0.0, %v1006
      %v1008 = vpop.f32.mrf.mxu0
      %v1009 = vadd.f32 0.0, %v1008
      %1010 = vdwg.mxu0
      %v1011 = vadd.f32 %v950, %v992
      %v1012 = vadd.f32 %v951, %v994
      %v1013 = vadd.f32 %v952, %v997
      %v1014 = vadd.f32 %v953, %v999
      %v1015 = vadd.f32 %v954, %v1002
      %v1016 = vadd.f32 %v955, %v1004
      %v1017 = vadd.f32 %v956, %v1007
      %v1018 = vadd.f32 %v957, %v1009
      %v1020 = vrot.slane %v362, 5
      %v1021 = vrot.slane %v1020, 4
      %v1022 = vrot.slane %v363, 5
      %v1023 = vsel %vm614, %v1021, %v1022
      %s1024 = scalar_lea.vmem %s3, 32
      %v1025 = vld [vmem:[%s1024] sm:$0xf]
      %v1026 = vunpack.c.l.b16 %v1023
      %v1027 = vpack.c.b16 %v1026, %v853
      %v1029 = vsel %vm494, %v1027, 0
      %v1032 = vsel %vm507, %v1025, 0
      %1034 = vmatpush.bf16.msra.mxu0 0
      %1035 = vmatpush.bf16.msra.mxu0 0
      %1036 = vmatpush.bf16.msra.mxu0 0
      %1037 = vmatpush.bf16.msra.mxu0 0
      %1038 = vmatpush.bf16.msra.mxu0 0
      %1039 = vmatpush.bf16.msra.mxu0 0
      %1040 = vmatpush.bf16.msra.mxu0 0
      %1041 = vmatpush.bf16.msra.mxu0 %v1032
      %1042 = vmatmul.bf16.gmra.mxu0 %v665
      %v1043 = vpop.f32.mrf.mxu0
      %v1044 = vadd.f32 0.0, %v1043
      %v1045 = vpop.f32.mrf.mxu0
      %v1046 = vadd.f32 0.0, %v1045
      %1047 = vmatmul.bf16.gmra.mxu0 %v668
      %v1048 = vpop.f32.mrf.mxu0
      %v1049 = vadd.f32 0.0, %v1048
      %v1050 = vpop.f32.mrf.mxu0
      %v1051 = vadd.f32 0.0, %v1050
      %1052 = vmatmul.bf16.gmra.mxu0 %v671
      %v1053 = vpop.f32.mrf.mxu0
      %v1054 = vadd.f32 0.0, %v1053
      %v1055 = vpop.f32.mrf.mxu0
      %v1056 = vadd.f32 0.0, %v1055
      %1057 = vmatmul.bf16.gmra.mxu0 %v1029
      %v1058 = vpop.f32.mrf.mxu0
      %v1059 = vadd.f32 0.0, %v1058
      %v1060 = vpop.f32.mrf.mxu0
      %v1061 = vadd.f32 0.0, %v1060
      %1062 = vdwg.mxu0
      %v1063 = vadd.f32 %v1011, %v1044
      %v1064 = vadd.f32 %v1012, %v1046
      %v1065 = vadd.f32 %v1013, %v1049
      %v1066 = vadd.f32 %v1014, %v1051
      %v1067 = vadd.f32 %v1015, %v1054
      %v1068 = vadd.f32 %v1016, %v1056
      %v1069 = vadd.f32 %v1017, %v1059
      %v1070 = vadd.f32 %v1018, %v1061
      %v1071 = vld [vmem:[%s321] sm:$0xf]
      %v1072 = vld [vmem:[%s321 + $0x4] sm:$0x1]
      %v1073 = vld [vmem:[%s321 + $0x8] sm:$0xf]
      %v1074 = vld [vmem:[%s321 + $0xc] sm:$0x1]
      %v1075 = vld [vmem:[%s321 + $0x10] sm:$0xf]
      %v1076 = vld [vmem:[%s321 + $0x14] sm:$0x1]
      %v1077 = vld [vmem:[%s321 + $0x18] sm:$0xf]
      %v1078 = vld [vmem:[%s321 + $0x1c] sm:$0x1]
      %v1079 = vld [vmem:[%s321 + $0x20] sm:$0xf]
      %v1080 = vld [vmem:[%s321 + $0x24] sm:$0x1]
      %v1081 = vld [vmem:[%s321 + $0x28] sm:$0xf]
      %v1082 = vld [vmem:[%s321 + $0x2c] sm:$0x1]
      %v1083 = vld [vmem:[%s321 + $0x30] sm:$0xf]
      %v1084 = vld [vmem:[%s321 + $0x34] sm:$0x1]
      %v1085 = vld [vmem:[%s321 + $0x38] sm:$0xf]
      %v1086 = vld [vmem:[%s321 + $0x3c] sm:$0x1]
      %v1087 = vld [vmem:[%s321 + $0x40] sm:$0xf]
      %v1088 = vld [vmem:[%s321 + $0x44] sm:$0x1]
      %v1089 = vld [vmem:[%s321 + $0x48] sm:$0xf]
      %v1090 = vld [vmem:[%s321 + $0x4c] sm:$0x1]
      %s1091 = scalar_lea.vmem %s3, 36
      %v1092 = vld [vmem:[%s1091] sm:$0xf]
      %v1101 = vunpack.c.l.b16 %v1071
      %v1102 = vunpack.c.l.b16 %v1073
      %v1103 = vunpack.c.l.b16 %v1075
      %v1104 = vunpack.c.l.b16 %v1077
      %v1105 = vunpack.c.l.b16 %v1079
      %v1106 = vunpack.c.l.b16 %v1081
      %v1107 = vunpack.c.l.b16 %v1083
      %v1108 = vunpack.c.l.b16 %v1085
      %v1109 = vpack.c.b16 %v1102, %v1101
      %v1110 = vpack.c.b16 %v1104, %v1103
      %v1111 = vpack.c.b16 %v1106, %v1105
      %v1112 = vpack.c.b16 %v1108, %v1107
      %v1114 = vsel %vm494, %v1109, 0
      %v1117 = vsel %vm494, %v1110, 0
      %v1120 = vsel %vm494, %v1111, 0
      %v1123 = vsel %vm494, %v1112, 0
      %v1126 = vsel %vm507, %v1092, 0
      %1128 = vmatpush.bf16.msra.mxu0 0
      %1129 = vmatpush.bf16.msra.mxu0 0
      %1130 = vmatpush.bf16.msra.mxu0 0
      %1131 = vmatpush.bf16.msra.mxu0 0
      %1132 = vmatpush.bf16.msra.mxu0 0
      %1133 = vmatpush.bf16.msra.mxu0 0
      %1134 = vmatpush.bf16.msra.mxu0 0
      %1135 = vmatpush.bf16.msra.mxu0 %v1126
      %1136 = vmatmul.bf16.gmra.mxu0 %v1114
      %v1137 = vpop.f32.mrf.mxu0
      %v1138 = vadd.f32 0.0, %v1137
      %v1139 = vpop.f32.mrf.mxu0
      %v1140 = vadd.f32 0.0, %v1139
      %1141 = vmatmul.bf16.gmra.mxu0 %v1117
      %v1142 = vpop.f32.mrf.mxu0
      %v1143 = vadd.f32 0.0, %v1142
      %v1144 = vpop.f32.mrf.mxu0
      %v1145 = vadd.f32 0.0, %v1144
      %1146 = vmatmul.bf16.gmra.mxu0 %v1120
      %v1147 = vpop.f32.mrf.mxu0
      %v1148 = vadd.f32 0.0, %v1147
      %v1149 = vpop.f32.mrf.mxu0
      %v1150 = vadd.f32 0.0, %v1149
      %1151 = vmatmul.bf16.gmra.mxu0 %v1123
      %v1152 = vpop.f32.mrf.mxu0
      %v1153 = vadd.f32 0.0, %v1152
      %v1154 = vpop.f32.mrf.mxu0
      %v1155 = vadd.f32 0.0, %v1154
      %1156 = vdwg.mxu0
      %v1157 = vadd.f32 %v1063, %v1138
      %v1158 = vadd.f32 %v1064, %v1140
      %v1159 = vadd.f32 %v1065, %v1143
      %v1160 = vadd.f32 %v1066, %v1145
      %v1161 = vadd.f32 %v1067, %v1148
      %v1162 = vadd.f32 %v1068, %v1150
      %v1163 = vadd.f32 %v1069, %v1153
      %v1164 = vadd.f32 %v1070, %v1155
      %v1166 = vshrl.u32 %v1071, 16
      %v1168 = vrot.slane %v1166, 4
      %v1169 = vshll.u32 %v1071, 16
      %v1171 = vrot.slane %v1169, 5
      %v1172 = vor.u32 %v1168, %v1171
      %v1173 = vrot.slane %v1172, 4
      %v1175 = vshll.u32 %v1072, 16
      %v1177 = vrot.slane %v1175, 5
      %v1178 = vsel %vm367, %v1173, %v1177
      %v1180 = vshrl.u32 %v1073, 16
      %v1182 = vrot.slane %v1180, 4
      %v1183 = vshll.u32 %v1073, 16
      %v1185 = vrot.slane %v1183, 5
      %v1186 = vor.u32 %v1182, %v1185
      %v1187 = vrot.slane %v1186, 4
      %v1189 = vshll.u32 %v1074, 16
      %v1191 = vrot.slane %v1189, 5
      %v1192 = vsel %vm367, %v1187, %v1191
      %v1194 = vshrl.u32 %v1075, 16
      %v1196 = vrot.slane %v1194, 4
      %v1197 = vshll.u32 %v1075, 16
      %v1199 = vrot.slane %v1197, 5
      %v1200 = vor.u32 %v1196, %v1199
      %v1201 = vrot.slane %v1200, 4
      %v1203 = vshll.u32 %v1076, 16
      %v1205 = vrot.slane %v1203, 5
      %v1206 = vsel %vm367, %v1201, %v1205
      %v1208 = vshrl.u32 %v1077, 16
      %v1210 = vrot.slane %v1208, 4
      %v1211 = vshll.u32 %v1077, 16
      %v1213 = vrot.slane %v1211, 5
      %v1214 = vor.u32 %v1210, %v1213
      %v1215 = vrot.slane %v1214, 4
      %v1217 = vshll.u32 %v1078, 16
      %v1219 = vrot.slane %v1217, 5
      %v1220 = vsel %vm367, %v1215, %v1219
      %v1222 = vshrl.u32 %v1079, 16
      %v1224 = vrot.slane %v1222, 4
      %v1225 = vshll.u32 %v1079, 16
      %v1227 = vrot.slane %v1225, 5
      %v1228 = vor.u32 %v1224, %v1227
      %v1229 = vrot.slane %v1228, 4
      %v1231 = vshll.u32 %v1080, 16
      %v1233 = vrot.slane %v1231, 5
      %v1234 = vsel %vm367, %v1229, %v1233
      %v1236 = vshrl.u32 %v1081, 16
      %v1238 = vrot.slane %v1236, 4
      %v1239 = vshll.u32 %v1081, 16
      %v1241 = vrot.slane %v1239, 5
      %v1242 = vor.u32 %v1238, %v1241
      %v1243 = vrot.slane %v1242, 4
      %v1245 = vshll.u32 %v1082, 16
      %v1247 = vrot.slane %v1245, 5
      %v1248 = vsel %vm367, %v1243, %v1247
      %v1250 = vshrl.u32 %v1083, 16
      %v1252 = vrot.slane %v1250, 4
      %v1253 = vshll.u32 %v1083, 16
      %v1255 = vrot.slane %v1253, 5
      %v1256 = vor.u32 %v1252, %v1255
      %v1257 = vrot.slane %v1256, 4
      %v1259 = vshll.u32 %v1084, 16
      %v1261 = vrot.slane %v1259, 5
      %v1262 = vsel %vm367, %v1257, %v1261
      %v1264 = vshrl.u32 %v1085, 16
      %v1266 = vrot.slane %v1264, 4
      %v1267 = vshll.u32 %v1085, 16
      %v1269 = vrot.slane %v1267, 5
      %v1270 = vor.u32 %v1266, %v1269
      %v1271 = vrot.slane %v1270, 4
      %v1273 = vshll.u32 %v1086, 16
      %v1275 = vrot.slane %v1273, 5
      %v1276 = vsel %vm367, %v1271, %v1275
      %s1277 = scalar_lea.vmem %s3, 40
      %v1278 = vld [vmem:[%s1277] sm:$0xf]
      %v1279 = vunpack.c.l.b16 %v1178
      %v1280 = vunpack.c.l.b16 %v1192
      %v1281 = vunpack.c.l.b16 %v1206
      %v1282 = vunpack.c.l.b16 %v1220
      %v1283 = vunpack.c.l.b16 %v1234
      %v1284 = vunpack.c.l.b16 %v1248
      %v1285 = vunpack.c.l.b16 %v1262
      %v1286 = vunpack.c.l.b16 %v1276
      %v1287 = vpack.c.b16 %v1280, %v1279
      %v1288 = vpack.c.b16 %v1282, %v1281
      %v1289 = vpack.c.b16 %v1284, %v1283
      %v1290 = vpack.c.b16 %v1286, %v1285
      %v1292 = vsel %vm494, %v1287, 0
      %v1295 = vsel %vm494, %v1288, 0
      %v1298 = vsel %vm494, %v1289, 0
      %v1301 = vsel %vm494, %v1290, 0
      %v1304 = vsel %vm507, %v1278, 0
      %1306 = vmatpush.bf16.msra.mxu0 0
      %1307 = vmatpush.bf16.msra.mxu0 0
      %1308 = vmatpush.bf16.msra.mxu0 0
      %1309 = vmatpush.bf16.msra.mxu0 0
      %1310 = vmatpush.bf16.msra.mxu0 0
      %1311 = vmatpush.bf16.msra.mxu0 0
      %1312 = vmatpush.bf16.msra.mxu0 0
      %1313 = vmatpush.bf16.msra.mxu0 %v1304
      %1314 = vmatmul.bf16.gmra.mxu0 %v1292
      %v1315 = vpop.f32.mrf.mxu0
      %v1316 = vadd.f32 0.0, %v1315
      %v1317 = vpop.f32.mrf.mxu0
      %v1318 = vadd.f32 0.0, %v1317
      %1319 = vmatmul.bf16.gmra.mxu0 %v1295
      %v1320 = vpop.f32.mrf.mxu0
      %v1321 = vadd.f32 0.0, %v1320
      %v1322 = vpop.f32.mrf.mxu0
      %v1323 = vadd.f32 0.0, %v1322
      %1324 = vmatmul.bf16.gmra.mxu0 %v1298
      %v1325 = vpop.f32.mrf.mxu0
      %v1326 = vadd.f32 0.0, %v1325
      %v1327 = vpop.f32.mrf.mxu0
      %v1328 = vadd.f32 0.0, %v1327
      %1329 = vmatmul.bf16.gmra.mxu0 %v1301
      %v1330 = vpop.f32.mrf.mxu0
      %v1331 = vadd.f32 0.0, %v1330
      %v1332 = vpop.f32.mrf.mxu0
      %v1333 = vadd.f32 0.0, %v1332
      %1334 = vdwg.mxu0
      %v1335 = vadd.f32 %v1157, %v1316
      %v1336 = vadd.f32 %v1158, %v1318
      %v1337 = vadd.f32 %v1159, %v1321
      %v1338 = vadd.f32 %v1160, %v1323
      %v1339 = vadd.f32 %v1161, %v1326
      %v1340 = vadd.f32 %v1162, %v1328
      %v1341 = vadd.f32 %v1163, %v1331
      %v1342 = vadd.f32 %v1164, %v1333
      %v1351 = vrot.slane %v1071, 5
      %v1352 = vrot.slane %v1351, 4
      %v1353 = vrot.slane %v1072, 5
      %v1354 = vsel %vm614, %v1352, %v1353
      %v1355 = vrot.slane %v1073, 5
      %v1356 = vrot.slane %v1355, 4
      %v1357 = vrot.slane %v1074, 5
      %v1358 = vsel %vm614, %v1356, %v1357
      %v1359 = vrot.slane %v1075, 5
      %v1360 = vrot.slane %v1359, 4
      %v1361 = vrot.slane %v1076, 5
      %v1362 = vsel %vm614, %v1360, %v1361
      %v1363 = vrot.slane %v1077, 5
      %v1364 = vrot.slane %v1363, 4
      %v1365 = vrot.slane %v1078, 5
      %v1366 = vsel %vm614, %v1364, %v1365
      %v1367 = vrot.slane %v1079, 5
      %v1368 = vrot.slane %v1367, 4
      %v1369 = vrot.slane %v1080, 5
      %v1370 = vsel %vm614, %v1368, %v1369
      %v1371 = vrot.slane %v1081, 5
      %v1372 = vrot.slane %v1371, 4
      %v1373 = vrot.slane %v1082, 5
      %v1374 = vsel %vm614, %v1372, %v1373
      %v1375 = vrot.slane %v1083, 5
      %v1376 = vrot.slane %v1375, 4
      %v1377 = vrot.slane %v1084, 5
      %v1378 = vsel %vm614, %v1376, %v1377
      %v1379 = vrot.slane %v1085, 5
      %v1380 = vrot.slane %v1379, 4
      %v1381 = vrot.slane %v1086, 5
      %v1382 = vsel %vm614, %v1380, %v1381
      %s1383 = scalar_lea.vmem %s3, 44
      %v1384 = vld [vmem:[%s1383] sm:$0xf]
      %v1385 = vunpack.c.l.b16 %v1354
      %v1386 = vunpack.c.l.b16 %v1358
      %v1387 = vunpack.c.l.b16 %v1362
      %v1388 = vunpack.c.l.b16 %v1366
      %v1389 = vunpack.c.l.b16 %v1370
      %v1390 = vunpack.c.l.b16 %v1374
      %v1391 = vunpack.c.l.b16 %v1378
      %v1392 = vunpack.c.l.b16 %v1382
      %v1393 = vpack.c.b16 %v1386, %v1385
      %v1394 = vpack.c.b16 %v1388, %v1387
      %v1395 = vpack.c.b16 %v1390, %v1389
      %v1396 = vpack.c.b16 %v1392, %v1391
      %v1398 = vsel %vm494, %v1393, 0
      %v1401 = vsel %vm494, %v1394, 0
      %v1404 = vsel %vm494, %v1395, 0
      %v1407 = vsel %vm494, %v1396, 0
      %v1410 = vsel %vm507, %v1384, 0
      %1412 = vmatpush.bf16.msra.mxu0 0
      %1413 = vmatpush.bf16.msra.mxu0 0
      %1414 = vmatpush.bf16.msra.mxu0 0
      %1415 = vmatpush.bf16.msra.mxu0 0
      %1416 = vmatpush.bf16.msra.mxu0 0
      %1417 = vmatpush.bf16.msra.mxu0 0
      %1418 = vmatpush.bf16.msra.mxu0 0
      %1419 = vmatpush.bf16.msra.mxu0 %v1410
      %1420 = vmatmul.bf16.gmra.mxu0 %v1398
      %v1421 = vpop.f32.mrf.mxu0
      %v1422 = vadd.f32 0.0, %v1421
      %v1423 = vpop.f32.mrf.mxu0
      %v1424 = vadd.f32 0.0, %v1423
      %1425 = vmatmul.bf16.gmra.mxu0 %v1401
      %v1426 = vpop.f32.mrf.mxu0
      %v1427 = vadd.f32 0.0, %v1426
      %v1428 = vpop.f32.mrf.mxu0
      %v1429 = vadd.f32 0.0, %v1428
      %1430 = vmatmul.bf16.gmra.mxu0 %v1404
      %v1431 = vpop.f32.mrf.mxu0
      %v1432 = vadd.f32 0.0, %v1431
      %v1433 = vpop.f32.mrf.mxu0
      %v1434 = vadd.f32 0.0, %v1433
      %1435 = vmatmul.bf16.gmra.mxu0 %v1407
      %v1436 = vpop.f32.mrf.mxu0
      %v1437 = vadd.f32 0.0, %v1436
      %v1438 = vpop.f32.mrf.mxu0
      %v1439 = vadd.f32 0.0, %v1438
      %1440 = vdwg.mxu0
      %v1441 = vadd.f32 %v1335, %v1422
      %v1442 = vadd.f32 %v1336, %v1424
      %v1443 = vadd.f32 %v1337, %v1427
      %v1444 = vadd.f32 %v1338, %v1429
      %v1445 = vadd.f32 %v1339, %v1432
      %v1446 = vadd.f32 %v1340, %v1434
      %v1447 = vadd.f32 %v1341, %v1437
      %v1448 = vadd.f32 %v1342, %v1439
      %s1449 = scalar_lea.vmem %s3, 48
      %v1450 = vld [vmem:[%s1449] sm:$0xf]
      %v1452 = vunpack.c.l.b16 %v1087
      %v1453 = vpack.c.b16 %v1103, %v1102
      %v1454 = vpack.c.b16 %v1105, %v1104
      %v1455 = vpack.c.b16 %v1107, %v1106
      %v1456 = vpack.c.b16 %v1452, %v1108
      %v1458 = vsel %vm494, %v1453, 0
      %v1461 = vsel %vm494, %v1454, 0
      %v1464 = vsel %vm494, %v1455, 0
      %v1467 = vsel %vm494, %v1456, 0
      %v1470 = vsel %vm507, %v1450, 0
      %1472 = vmatpush.bf16.msra.mxu0 0
      %1473 = vmatpush.bf16.msra.mxu0 0
      %1474 = vmatpush.bf16.msra.mxu0 0
      %1475 = vmatpush.bf16.msra.mxu0 0
      %1476 = vmatpush.bf16.msra.mxu0 0
      %1477 = vmatpush.bf16.msra.mxu0 0
      %1478 = vmatpush.bf16.msra.mxu0 0
      %1479 = vmatpush.bf16.msra.mxu0 %v1470
      %1480 = vmatmul.bf16.gmra.mxu0 %v1458
      %v1481 = vpop.f32.mrf.mxu0
      %v1482 = vadd.f32 0.0, %v1481
      %v1483 = vpop.f32.mrf.mxu0
      %v1484 = vadd.f32 0.0, %v1483
      %1485 = vmatmul.bf16.gmra.mxu0 %v1461
      %v1486 = vpop.f32.mrf.mxu0
      %v1487 = vadd.f32 0.0, %v1486
      %v1488 = vpop.f32.mrf.mxu0
      %v1489 = vadd.f32 0.0, %v1488
      %1490 = vmatmul.bf16.gmra.mxu0 %v1464
      %v1491 = vpop.f32.mrf.mxu0
      %v1492 = vadd.f32 0.0, %v1491
      %v1493 = vpop.f32.mrf.mxu0
      %v1494 = vadd.f32 0.0, %v1493
      %1495 = vmatmul.bf16.gmra.mxu0 %v1467
      %v1496 = vpop.f32.mrf.mxu0
      %v1497 = vadd.f32 0.0, %v1496
      %v1498 = vpop.f32.mrf.mxu0
      %v1499 = vadd.f32 0.0, %v1498
      %1500 = vdwg.mxu0
      %v1501 = vadd.f32 %v1441, %v1482
      %v1502 = vadd.f32 %v1442, %v1484
      %v1503 = vadd.f32 %v1443, %v1487
      %v1504 = vadd.f32 %v1444, %v1489
      %v1505 = vadd.f32 %v1445, %v1492
      %v1506 = vadd.f32 %v1446, %v1494
      %v1507 = vadd.f32 %v1447, %v1497
      %v1508 = vadd.f32 %v1448, %v1499
      %v1510 = vshrl.u32 %v1087, 16
      %v1512 = vrot.slane %v1510, 4
      %v1513 = vshll.u32 %v1087, 16
      %v1515 = vrot.slane %v1513, 5
      %v1516 = vor.u32 %v1512, %v1515
      %v1517 = vrot.slane %v1516, 4
      %v1519 = vshll.u32 %v1088, 16
      %v1521 = vrot.slane %v1519, 5
      %v1522 = vsel %vm367, %v1517, %v1521
      %s1523 = scalar_lea.vmem %s3, 52
      %v1524 = vld [vmem:[%s1523] sm:$0xf]
      %v1525 = vunpack.c.l.b16 %v1522
      %v1526 = vpack.c.b16 %v1281, %v1280
      %v1527 = vpack.c.b16 %v1283, %v1282
      %v1528 = vpack.c.b16 %v1285, %v1284
      %v1529 = vpack.c.b16 %v1525, %v1286
      %v1531 = vsel %vm494, %v1526, 0
      %v1534 = vsel %vm494, %v1527, 0
      %v1537 = vsel %vm494, %v1528, 0
      %v1540 = vsel %vm494, %v1529, 0
      %v1543 = vsel %vm507, %v1524, 0
      %1545 = vmatpush.bf16.msra.mxu0 0
      %1546 = vmatpush.bf16.msra.mxu0 0
      %1547 = vmatpush.bf16.msra.mxu0 0
      %1548 = vmatpush.bf16.msra.mxu0 0
      %1549 = vmatpush.bf16.msra.mxu0 0
      %1550 = vmatpush.bf16.msra.mxu0 0
      %1551 = vmatpush.bf16.msra.mxu0 0
      %1552 = vmatpush.bf16.msra.mxu0 %v1543
      %1553 = vmatmul.bf16.gmra.mxu0 %v1531
      %v1554 = vpop.f32.mrf.mxu0
      %v1555 = vadd.f32 0.0, %v1554
      %v1556 = vpop.f32.mrf.mxu0
      %v1557 = vadd.f32 0.0, %v1556
      %1558 = vmatmul.bf16.gmra.mxu0 %v1534
      %v1559 = vpop.f32.mrf.mxu0
      %v1560 = vadd.f32 0.0, %v1559
      %v1561 = vpop.f32.mrf.mxu0
      %v1562 = vadd.f32 0.0, %v1561
      %1563 = vmatmul.bf16.gmra.mxu0 %v1537
      %v1564 = vpop.f32.mrf.mxu0
      %v1565 = vadd.f32 0.0, %v1564
      %v1566 = vpop.f32.mrf.mxu0
      %v1567 = vadd.f32 0.0, %v1566
      %1568 = vmatmul.bf16.gmra.mxu0 %v1540
      %v1569 = vpop.f32.mrf.mxu0
      %v1570 = vadd.f32 0.0, %v1569
      %v1571 = vpop.f32.mrf.mxu0
      %v1572 = vadd.f32 0.0, %v1571
      %1573 = vdwg.mxu0
      %v1574 = vadd.f32 %v1501, %v1555
      %v1575 = vadd.f32 %v1502, %v1557
      %v1576 = vadd.f32 %v1503, %v1560
      %v1577 = vadd.f32 %v1504, %v1562
      %v1578 = vadd.f32 %v1505, %v1565
      %v1579 = vadd.f32 %v1506, %v1567
      %v1580 = vadd.f32 %v1507, %v1570
      %v1581 = vadd.f32 %v1508, %v1572
      %v1583 = vrot.slane %v1087, 5
      %v1584 = vrot.slane %v1583, 4
      %v1585 = vrot.slane %v1088, 5
      %v1586 = vsel %vm614, %v1584, %v1585
      %s1587 = scalar_lea.vmem %s3, 56
      %v1588 = vld [vmem:[%s1587] sm:$0xf]
      %v1589 = vunpack.c.l.b16 %v1586
      %v1590 = vpack.c.b16 %v1387, %v1386
      %v1591 = vpack.c.b16 %v1389, %v1388
      %v1592 = vpack.c.b16 %v1391, %v1390
      %v1593 = vpack.c.b16 %v1589, %v1392
      %v1595 = vsel %vm494, %v1590, 0
      %v1598 = vsel %vm494, %v1591, 0
      %v1601 = vsel %vm494, %v1592, 0
      %v1604 = vsel %vm494, %v1593, 0
      %v1607 = vsel %vm507, %v1588, 0
      %1609 = vmatpush.bf16.msra.mxu0 0
      %1610 = vmatpush.bf16.msra.mxu0 0
      %1611 = vmatpush.bf16.msra.mxu0 0
      %1612 = vmatpush.bf16.msra.mxu0 0
      %1613 = vmatpush.bf16.msra.mxu0 0
      %1614 = vmatpush.bf16.msra.mxu0 0
      %1615 = vmatpush.bf16.msra.mxu0 0
      %1616 = vmatpush.bf16.msra.mxu0 %v1607
      %1617 = vmatmul.bf16.gmra.mxu0 %v1595
      %v1618 = vpop.f32.mrf.mxu0
      %v1619 = vadd.f32 0.0, %v1618
      %v1620 = vpop.f32.mrf.mxu0
      %v1621 = vadd.f32 0.0, %v1620
      %1622 = vmatmul.bf16.gmra.mxu0 %v1598
      %v1623 = vpop.f32.mrf.mxu0
      %v1624 = vadd.f32 0.0, %v1623
      %v1625 = vpop.f32.mrf.mxu0
      %v1626 = vadd.f32 0.0, %v1625
      %1627 = vmatmul.bf16.gmra.mxu0 %v1601
      %v1628 = vpop.f32.mrf.mxu0
      %v1629 = vadd.f32 0.0, %v1628
      %v1630 = vpop.f32.mrf.mxu0
      %v1631 = vadd.f32 0.0, %v1630
      %1632 = vmatmul.bf16.gmra.mxu0 %v1604
      %v1633 = vpop.f32.mrf.mxu0
      %v1634 = vadd.f32 0.0, %v1633
      %v1635 = vpop.f32.mrf.mxu0
      %v1636 = vadd.f32 0.0, %v1635
      %1637 = vdwg.mxu0
      %v1638 = vadd.f32 %v1574, %v1619
      %v1639 = vadd.f32 %v1575, %v1621
      %v1640 = vadd.f32 %v1576, %v1624
      %v1641 = vadd.f32 %v1577, %v1626
      %v1642 = vadd.f32 %v1578, %v1629
      %v1643 = vadd.f32 %v1579, %v1631
      %v1644 = vadd.f32 %v1580, %v1634
      %v1645 = vadd.f32 %v1581, %v1636
      %s1646 = scalar_lea.vmem %s3, 60
      %v1647 = vld [vmem:[%s1646] sm:$0xf]
      %v1649 = vunpack.c.l.b16 %v1089
      %v1650 = vpack.c.b16 %v1649, %v1452
      %v1652 = vsel %vm494, %v1650, 0
      %v1655 = vsel %vm507, %v1647, 0
      %1657 = vmatpush.bf16.msra.mxu0 0
      %1658 = vmatpush.bf16.msra.mxu0 0
      %1659 = vmatpush.bf16.msra.mxu0 0
      %1660 = vmatpush.bf16.msra.mxu0 0
      %1661 = vmatpush.bf16.msra.mxu0 0
      %1662 = vmatpush.bf16.msra.mxu0 0
      %1663 = vmatpush.bf16.msra.mxu0 0
      %1664 = vmatpush.bf16.msra.mxu0 %v1655
      %1665 = vmatmul.bf16.gmra.mxu0 %v1117
      %v1666 = vpop.f32.mrf.mxu0
      %v1667 = vadd.f32 0.0, %v1666
      %v1668 = vpop.f32.mrf.mxu0
      %v1669 = vadd.f32 0.0, %v1668
      %1670 = vmatmul.bf16.gmra.mxu0 %v1120
      %v1671 = vpop.f32.mrf.mxu0
      %v1672 = vadd.f32 0.0, %v1671
      %v1673 = vpop.f32.mrf.mxu0
      %v1674 = vadd.f32 0.0, %v1673
      %1675 = vmatmul.bf16.gmra.mxu0 %v1123
      %v1676 = vpop.f32.mrf.mxu0
      %v1677 = vadd.f32 0.0, %v1676
      %v1678 = vpop.f32.mrf.mxu0
      %v1679 = vadd.f32 0.0, %v1678
      %1680 = vmatmul.bf16.gmra.mxu0 %v1652
      %v1681 = vpop.f32.mrf.mxu0
      %v1682 = vadd.f32 0.0, %v1681
      %v1683 = vpop.f32.mrf.mxu0
      %v1684 = vadd.f32 0.0, %v1683
      %1685 = vdwg.mxu0
      %v1686 = vadd.f32 %v1638, %v1667
      %v1687 = vadd.f32 %v1639, %v1669
      %v1688 = vadd.f32 %v1640, %v1672
      %v1689 = vadd.f32 %v1641, %v1674
      %v1690 = vadd.f32 %v1642, %v1677
      %v1691 = vadd.f32 %v1643, %v1679
      %v1692 = vadd.f32 %v1644, %v1682
      %v1693 = vadd.f32 %v1645, %v1684
      %v1695 = vshrl.u32 %v1089, 16
      %v1697 = vrot.slane %v1695, 4
      %v1698 = vshll.u32 %v1089, 16
      %v1700 = vrot.slane %v1698, 5
      %v1701 = vor.u32 %v1697, %v1700
      %v1702 = vrot.slane %v1701, 4
      %v1704 = vshll.u32 %v1090, 16
      %v1706 = vrot.slane %v1704, 5
      %v1707 = vsel %vm367, %v1702, %v1706
      %s1708 = scalar_lea.vmem %s3, 64
      %v1709 = vld [vmem:[%s1708] sm:$0xf]
      %v1710 = vunpack.c.l.b16 %v1707
      %v1711 = vpack.c.b16 %v1710, %v1525
      %v1713 = vsel %vm494, %v1711, 0
      %v1716 = vsel %vm507, %v1709, 0
      %1718 = vmatpush.bf16.msra.mxu0 0
      %1719 = vmatpush.bf16.msra.mxu0 0
      %1720 = vmatpush.bf16.msra.mxu0 0
      %1721 = vmatpush.bf16.msra.mxu0 0
      %1722 = vmatpush.bf16.msra.mxu0 0
      %1723 = vmatpush.bf16.msra.mxu0 0
      %1724 = vmatpush.bf16.msra.mxu0 0
      %1725 = vmatpush.bf16.msra.mxu0 %v1716
      %1726 = vmatmul.bf16.gmra.mxu0 %v1295
      %v1727 = vpop.f32.mrf.mxu0
      %v1728 = vadd.f32 0.0, %v1727
      %v1729 = vpop.f32.mrf.mxu0
      %v1730 = vadd.f32 0.0, %v1729
      %1731 = vmatmul.bf16.gmra.mxu0 %v1298
      %v1732 = vpop.f32.mrf.mxu0
      %v1733 = vadd.f32 0.0, %v1732
      %v1734 = vpop.f32.mrf.mxu0
      %v1735 = vadd.f32 0.0, %v1734
      %1736 = vmatmul.bf16.gmra.mxu0 %v1301
      %v1737 = vpop.f32.mrf.mxu0
      %v1738 = vadd.f32 0.0, %v1737
      %v1739 = vpop.f32.mrf.mxu0
      %v1740 = vadd.f32 0.0, %v1739
      %1741 = vmatmul.bf16.gmra.mxu0 %v1713
      %v1742 = vpop.f32.mrf.mxu0
      %v1743 = vadd.f32 0.0, %v1742
      %v1744 = vpop.f32.mrf.mxu0
      %v1745 = vadd.f32 0.0, %v1744
      %1746 = vdwg.mxu0
      %v1747 = vadd.f32 %v1686, %v1728
      %v1748 = vadd.f32 %v1687, %v1730
      %v1749 = vadd.f32 %v1688, %v1733
      %v1750 = vadd.f32 %v1689, %v1735
      %v1751 = vadd.f32 %v1690, %v1738
      %v1752 = vadd.f32 %v1691, %v1740
      %v1753 = vadd.f32 %v1692, %v1743
      %v1754 = vadd.f32 %v1693, %v1745
      %v1756 = vrot.slane %v1089, 5
      %v1757 = vrot.slane %v1756, 4
      %v1758 = vrot.slane %v1090, 5
      %v1759 = vsel %vm614, %v1757, %v1758
      %s1760 = scalar_lea.vmem %s3, 68
      %v1761 = vld [vmem:[%s1760] sm:$0xf]
      %v1762 = vunpack.c.l.b16 %v1759
      %v1763 = vpack.c.b16 %v1762, %v1589
      %v1765 = vsel %vm494, %v1763, 0
      %v1768 = vsel %vm507, %v1761, 0
      %1770 = vmatpush.bf16.msra.mxu0 0
      %1771 = vmatpush.bf16.msra.mxu0 0
      %1772 = vmatpush.bf16.msra.mxu0 0
      %1773 = vmatpush.bf16.msra.mxu0 0
      %1774 = vmatpush.bf16.msra.mxu0 0
      %1775 = vmatpush.bf16.msra.mxu0 0
      %1776 = vmatpush.bf16.msra.mxu0 0
      %1777 = vmatpush.bf16.msra.mxu0 %v1768
      %1778 = vmatmul.bf16.gmra.mxu0 %v1401
      %v1779 = vpop.f32.mrf.mxu0
      %v1780 = vadd.f32 0.0, %v1779
      %v1781 = vpop.f32.mrf.mxu0
      %v1782 = vadd.f32 0.0, %v1781
      %1783 = vmatmul.bf16.gmra.mxu0 %v1404
      %v1784 = vpop.f32.mrf.mxu0
      %v1785 = vadd.f32 0.0, %v1784
      %v1786 = vpop.f32.mrf.mxu0
      %v1787 = vadd.f32 0.0, %v1786
      %1788 = vmatmul.bf16.gmra.mxu0 %v1407
      %v1789 = vpop.f32.mrf.mxu0
      %v1790 = vadd.f32 0.0, %v1789
      %v1791 = vpop.f32.mrf.mxu0
      %v1792 = vadd.f32 0.0, %v1791
      %1793 = vmatmul.bf16.gmra.mxu0 %v1765
      %v1794 = vpop.f32.mrf.mxu0
      %v1795 = vadd.f32 0.0, %v1794
      %v1796 = vpop.f32.mrf.mxu0
      %v1797 = vadd.f32 0.0, %v1796
      %1798 = vdwg.mxu0
      %v1799 = vadd.f32 %v1747, %v1780
      %v1800 = vadd.f32 %v1748, %v1782
      %v1801 = vadd.f32 %v1749, %v1785
      %v1802 = vadd.f32 %v1750, %v1787
      %v1803 = vadd.f32 %v1751, %v1790
      %v1804 = vadd.f32 %v1752, %v1792
      %v1805 = vadd.f32 %v1753, %v1795
      %v1806 = vadd.f32 %v1754, %v1797
      %v1807 = vld [vmem:[%s332] sm:$0xf]
      %v1808 = vld [vmem:[%s332 + $0x4] sm:$0x1]
      %v1809 = vld [vmem:[%s332 + $0x8] sm:$0xf]
      %v1810 = vld [vmem:[%s332 + $0xc] sm:$0x1]
      %v1811 = vld [vmem:[%s332 + $0x10] sm:$0xf]
      %v1812 = vld [vmem:[%s332 + $0x14] sm:$0x1]
      %v1813 = vld [vmem:[%s332 + $0x18] sm:$0xf]
      %v1814 = vld [vmem:[%s332 + $0x1c] sm:$0x1]
      %v1815 = vld [vmem:[%s332 + $0x20] sm:$0xf]
      %v1816 = vld [vmem:[%s332 + $0x24] sm:$0x1]
      %v1817 = vld [vmem:[%s332 + $0x28] sm:$0xf]
      %v1818 = vld [vmem:[%s332 + $0x2c] sm:$0x1]
      %v1819 = vld [vmem:[%s332 + $0x30] sm:$0xf]
      %v1820 = vld [vmem:[%s332 + $0x34] sm:$0x1]
      %v1821 = vld [vmem:[%s332 + $0x38] sm:$0xf]
      %v1822 = vld [vmem:[%s332 + $0x3c] sm:$0x1]
      %v1823 = vld [vmem:[%s332 + $0x40] sm:$0xf]
      %v1824 = vld [vmem:[%s332 + $0x44] sm:$0x1]
      %v1825 = vld [vmem:[%s332 + $0x48] sm:$0xf]
      %v1826 = vld [vmem:[%s332 + $0x4c] sm:$0x1]
      %s1827 = scalar_lea.vmem %s3, 72
      %v1828 = vld [vmem:[%s1827] sm:$0xf]
      %v1837 = vunpack.c.l.b16 %v1807
      %v1838 = vunpack.c.l.b16 %v1809
      %v1839 = vunpack.c.l.b16 %v1811
      %v1840 = vunpack.c.l.b16 %v1813
      %v1841 = vunpack.c.l.b16 %v1815
      %v1842 = vunpack.c.l.b16 %v1817
      %v1843 = vunpack.c.l.b16 %v1819
      %v1844 = vunpack.c.l.b16 %v1821
      %v1845 = vpack.c.b16 %v1838, %v1837
      %v1846 = vpack.c.b16 %v1840, %v1839
      %v1847 = vpack.c.b16 %v1842, %v1841
      %v1848 = vpack.c.b16 %v1844, %v1843
      %v1850 = vsel %vm494, %v1845, 0
      %v1853 = vsel %vm494, %v1846, 0
      %v1856 = vsel %vm494, %v1847, 0
      %v1859 = vsel %vm494, %v1848, 0
      %v1862 = vsel %vm507, %v1828, 0
      %1864 = vmatpush.bf16.msra.mxu0 0
      %1865 = vmatpush.bf16.msra.mxu0 0
      %1866 = vmatpush.bf16.msra.mxu0 0
      %1867 = vmatpush.bf16.msra.mxu0 0
      %1868 = vmatpush.bf16.msra.mxu0 0
      %1869 = vmatpush.bf16.msra.mxu0 0
      %1870 = vmatpush.bf16.msra.mxu0 0
      %1871 = vmatpush.bf16.msra.mxu0 %v1862
      %1872 = vmatmul.bf16.gmra.mxu0 %v1850
      %v1873 = vpop.f32.mrf.mxu0
      %v1874 = vadd.f32 0.0, %v1873
      %v1875 = vpop.f32.mrf.mxu0
      %v1876 = vadd.f32 0.0, %v1875
      %1877 = vmatmul.bf16.gmra.mxu0 %v1853
      %v1878 = vpop.f32.mrf.mxu0
      %v1879 = vadd.f32 0.0, %v1878
      %v1880 = vpop.f32.mrf.mxu0
      %v1881 = vadd.f32 0.0, %v1880
      %1882 = vmatmul.bf16.gmra.mxu0 %v1856
      %v1883 = vpop.f32.mrf.mxu0
      %v1884 = vadd.f32 0.0, %v1883
      %v1885 = vpop.f32.mrf.mxu0
      %v1886 = vadd.f32 0.0, %v1885
      %1887 = vmatmul.bf16.gmra.mxu0 %v1859
      %v1888 = vpop.f32.mrf.mxu0
      %v1889 = vadd.f32 0.0, %v1888
      %v1890 = vpop.f32.mrf.mxu0
      %v1891 = vadd.f32 0.0, %v1890
      %1892 = vdwg.mxu0
      %v1893 = vadd.f32 %v1799, %v1874
      %v1894 = vadd.f32 %v1800, %v1876
      %v1895 = vadd.f32 %v1801, %v1879
      %v1896 = vadd.f32 %v1802, %v1881
      %v1897 = vadd.f32 %v1803, %v1884
      %v1898 = vadd.f32 %v1804, %v1886
      %v1899 = vadd.f32 %v1805, %v1889
      %v1900 = vadd.f32 %v1806, %v1891
      %v1902 = vshrl.u32 %v1807, 16
      %v1904 = vrot.slane %v1902, 4
      %v1905 = vshll.u32 %v1807, 16
      %v1907 = vrot.slane %v1905, 5
      %v1908 = vor.u32 %v1904, %v1907
      %v1909 = vrot.slane %v1908, 4
      %v1911 = vshll.u32 %v1808, 16
      %v1913 = vrot.slane %v1911, 5
      %v1914 = vsel %vm367, %v1909, %v1913
      %v1916 = vshrl.u32 %v1809, 16
      %v1918 = vrot.slane %v1916, 4
      %v1919 = vshll.u32 %v1809, 16
      %v1921 = vrot.slane %v1919, 5
      %v1922 = vor.u32 %v1918, %v1921
      %v1923 = vrot.slane %v1922, 4
      %v1925 = vshll.u32 %v1810, 16
      %v1927 = vrot.slane %v1925, 5
      %v1928 = vsel %vm367, %v1923, %v1927
      %v1930 = vshrl.u32 %v1811, 16
      %v1932 = vrot.slane %v1930, 4
      %v1933 = vshll.u32 %v1811, 16
      %v1935 = vrot.slane %v1933, 5
      %v1936 = vor.u32 %v1932, %v1935
      %v1937 = vrot.slane %v1936, 4
      %v1939 = vshll.u32 %v1812, 16
      %v1941 = vrot.slane %v1939, 5
      %v1942 = vsel %vm367, %v1937, %v1941
      %v1944 = vshrl.u32 %v1813, 16
      %v1946 = vrot.slane %v1944, 4
      %v1947 = vshll.u32 %v1813, 16
      %v1949 = vrot.slane %v1947, 5
      %v1950 = vor.u32 %v1946, %v1949
      %v1951 = vrot.slane %v1950, 4
      %v1953 = vshll.u32 %v1814, 16
      %v1955 = vrot.slane %v1953, 5
      %v1956 = vsel %vm367, %v1951, %v1955
      %v1958 = vshrl.u32 %v1815, 16
      %v1960 = vrot.slane %v1958, 4
      %v1961 = vshll.u32 %v1815, 16
      %v1963 = vrot.slane %v1961, 5
      %v1964 = vor.u32 %v1960, %v1963
      %v1965 = vrot.slane %v1964, 4
      %v1967 = vshll.u32 %v1816, 16
      %v1969 = vrot.slane %v1967, 5
      %v1970 = vsel %vm367, %v1965, %v1969
      %v1972 = vshrl.u32 %v1817, 16
      %v1974 = vrot.slane %v1972, 4
      %v1975 = vshll.u32 %v1817, 16
      %v1977 = vrot.slane %v1975, 5
      %v1978 = vor.u32 %v1974, %v1977
      %v1979 = vrot.slane %v1978, 4
      %v1981 = vshll.u32 %v1818, 16
      %v1983 = vrot.slane %v1981, 5
      %v1984 = vsel %vm367, %v1979, %v1983
      %v1986 = vshrl.u32 %v1819, 16
      %v1988 = vrot.slane %v1986, 4
      %v1989 = vshll.u32 %v1819, 16
      %v1991 = vrot.slane %v1989, 5
      %v1992 = vor.u32 %v1988, %v1991
      %v1993 = vrot.slane %v1992, 4
      %v1995 = vshll.u32 %v1820, 16
      %v1997 = vrot.slane %v1995, 5
      %v1998 = vsel %vm367, %v1993, %v1997
      %v2000 = vshrl.u32 %v1821, 16
      %v2002 = vrot.slane %v2000, 4
      %v2003 = vshll.u32 %v1821, 16
      %v2005 = vrot.slane %v2003, 5
      %v2006 = vor.u32 %v2002, %v2005
      %v2007 = vrot.slane %v2006, 4
      %v2009 = vshll.u32 %v1822, 16
      %v2011 = vrot.slane %v2009, 5
      %v2012 = vsel %vm367, %v2007, %v2011
      %s2013 = scalar_lea.vmem %s3, 76
      %v2014 = vld [vmem:[%s2013] sm:$0xf]
      %v2015 = vunpack.c.l.b16 %v1914
      %v2016 = vunpack.c.l.b16 %v1928
      %v2017 = vunpack.c.l.b16 %v1942
      %v2018 = vunpack.c.l.b16 %v1956
      %v2019 = vunpack.c.l.b16 %v1970
      %v2020 = vunpack.c.l.b16 %v1984
      %v2021 = vunpack.c.l.b16 %v1998
      %v2022 = vunpack.c.l.b16 %v2012
      %v2023 = vpack.c.b16 %v2016, %v2015
      %v2024 = vpack.c.b16 %v2018, %v2017
      %v2025 = vpack.c.b16 %v2020, %v2019
      %v2026 = vpack.c.b16 %v2022, %v2021
      %v2028 = vsel %vm494, %v2023, 0
      %v2031 = vsel %vm494, %v2024, 0
      %v2034 = vsel %vm494, %v2025, 0
      %v2037 = vsel %vm494, %v2026, 0
      %v2040 = vsel %vm507, %v2014, 0
      %2042 = vmatpush.bf16.msra.mxu0 0
      %2043 = vmatpush.bf16.msra.mxu0 0
      %2044 = vmatpush.bf16.msra.mxu0 0
      %2045 = vmatpush.bf16.msra.mxu0 0
      %2046 = vmatpush.bf16.msra.mxu0 0
      %2047 = vmatpush.bf16.msra.mxu0 0
      %2048 = vmatpush.bf16.msra.mxu0 0
      %2049 = vmatpush.bf16.msra.mxu0 %v2040
      %2050 = vmatmul.bf16.gmra.mxu0 %v2028
      %v2051 = vpop.f32.mrf.mxu0
      %v2052 = vadd.f32 0.0, %v2051
      %v2053 = vpop.f32.mrf.mxu0
      %v2054 = vadd.f32 0.0, %v2053
      %2055 = vmatmul.bf16.gmra.mxu0 %v2031
      %v2056 = vpop.f32.mrf.mxu0
      %v2057 = vadd.f32 0.0, %v2056
      %v2058 = vpop.f32.mrf.mxu0
      %v2059 = vadd.f32 0.0, %v2058
      %2060 = vmatmul.bf16.gmra.mxu0 %v2034
      %v2061 = vpop.f32.mrf.mxu0
      %v2062 = vadd.f32 0.0, %v2061
      %v2063 = vpop.f32.mrf.mxu0
      %v2064 = vadd.f32 0.0, %v2063
      %2065 = vmatmul.bf16.gmra.mxu0 %v2037
      %v2066 = vpop.f32.mrf.mxu0
      %v2067 = vadd.f32 0.0, %v2066
      %v2068 = vpop.f32.mrf.mxu0
      %v2069 = vadd.f32 0.0, %v2068
      %2070 = vdwg.mxu0
      %v2071 = vadd.f32 %v1893, %v2052
      %v2072 = vadd.f32 %v1894, %v2054
      %v2073 = vadd.f32 %v1895, %v2057
      %v2074 = vadd.f32 %v1896, %v2059
      %v2075 = vadd.f32 %v1897, %v2062
      %v2076 = vadd.f32 %v1898, %v2064
      %v2077 = vadd.f32 %v1899, %v2067
      %v2078 = vadd.f32 %v1900, %v2069
      %v2087 = vrot.slane %v1807, 5
      %v2088 = vrot.slane %v2087, 4
      %v2089 = vrot.slane %v1808, 5
      %v2090 = vsel %vm614, %v2088, %v2089
      %v2091 = vrot.slane %v1809, 5
      %v2092 = vrot.slane %v2091, 4
      %v2093 = vrot.slane %v1810, 5
      %v2094 = vsel %vm614, %v2092, %v2093
      %v2095 = vrot.slane %v1811, 5
      %v2096 = vrot.slane %v2095, 4
      %v2097 = vrot.slane %v1812, 5
      %v2098 = vsel %vm614, %v2096, %v2097
      %v2099 = vrot.slane %v1813, 5
      %v2100 = vrot.slane %v2099, 4
      %v2101 = vrot.slane %v1814, 5
      %v2102 = vsel %vm614, %v2100, %v2101
      %v2103 = vrot.slane %v1815, 5
      %v2104 = vrot.slane %v2103, 4
      %v2105 = vrot.slane %v1816, 5
      %v2106 = vsel %vm614, %v2104, %v2105
      %v2107 = vrot.slane %v1817, 5
      %v2108 = vrot.slane %v2107, 4
      %v2109 = vrot.slane %v1818, 5
      %v2110 = vsel %vm614, %v2108, %v2109
      %v2111 = vrot.slane %v1819, 5
      %v2112 = vrot.slane %v2111, 4
      %v2113 = vrot.slane %v1820, 5
      %v2114 = vsel %vm614, %v2112, %v2113
      %v2115 = vrot.slane %v1821, 5
      %v2116 = vrot.slane %v2115, 4
      %v2117 = vrot.slane %v1822, 5
      %v2118 = vsel %vm614, %v2116, %v2117
      %s2119 = scalar_lea.vmem %s3, 80
      %v2120 = vld [vmem:[%s2119] sm:$0xf]
      %v2121 = vunpack.c.l.b16 %v2090
      %v2122 = vunpack.c.l.b16 %v2094
      %v2123 = vunpack.c.l.b16 %v2098
      %v2124 = vunpack.c.l.b16 %v2102
      %v2125 = vunpack.c.l.b16 %v2106
      %v2126 = vunpack.c.l.b16 %v2110
      %v2127 = vunpack.c.l.b16 %v2114
      %v2128 = vunpack.c.l.b16 %v2118
      %v2129 = vpack.c.b16 %v2122, %v2121
      %v2130 = vpack.c.b16 %v2124, %v2123
      %v2131 = vpack.c.b16 %v2126, %v2125
      %v2132 = vpack.c.b16 %v2128, %v2127
      %v2134 = vsel %vm494, %v2129, 0
      %v2137 = vsel %vm494, %v2130, 0
      %v2140 = vsel %vm494, %v2131, 0
      %v2143 = vsel %vm494, %v2132, 0
      %v2146 = vsel %vm507, %v2120, 0
      %2148 = vmatpush.bf16.msra.mxu0 0
      %2149 = vmatpush.bf16.msra.mxu0 0
      %2150 = vmatpush.bf16.msra.mxu0 0
      %2151 = vmatpush.bf16.msra.mxu0 0
      %2152 = vmatpush.bf16.msra.mxu0 0
      %2153 = vmatpush.bf16.msra.mxu0 0
      %2154 = vmatpush.bf16.msra.mxu0 0
      %2155 = vmatpush.bf16.msra.mxu0 %v2146
      %2156 = vmatmul.bf16.gmra.mxu0 %v2134
      %v2157 = vpop.f32.mrf.mxu0
      %v2158 = vadd.f32 0.0, %v2157
      %v2159 = vpop.f32.mrf.mxu0
      %v2160 = vadd.f32 0.0, %v2159
      %2161 = vmatmul.bf16.gmra.mxu0 %v2137
      %v2162 = vpop.f32.mrf.mxu0
      %v2163 = vadd.f32 0.0, %v2162
      %v2164 = vpop.f32.mrf.mxu0
      %v2165 = vadd.f32 0.0, %v2164
      %2166 = vmatmul.bf16.gmra.mxu0 %v2140
      %v2167 = vpop.f32.mrf.mxu0
      %v2168 = vadd.f32 0.0, %v2167
      %v2169 = vpop.f32.mrf.mxu0
      %v2170 = vadd.f32 0.0, %v2169
      %2171 = vmatmul.bf16.gmra.mxu0 %v2143
      %v2172 = vpop.f32.mrf.mxu0
      %v2173 = vadd.f32 0.0, %v2172
      %v2174 = vpop.f32.mrf.mxu0
      %v2175 = vadd.f32 0.0, %v2174
      %2176 = vdwg.mxu0
      %v2177 = vadd.f32 %v2071, %v2158
      %v2178 = vadd.f32 %v2072, %v2160
      %v2179 = vadd.f32 %v2073, %v2163
      %v2180 = vadd.f32 %v2074, %v2165
      %v2181 = vadd.f32 %v2075, %v2168
      %v2182 = vadd.f32 %v2076, %v2170
      %v2183 = vadd.f32 %v2077, %v2173
      %v2184 = vadd.f32 %v2078, %v2175
      %s2185 = scalar_lea.vmem %s3, 84
      %v2186 = vld [vmem:[%s2185] sm:$0xf]
      %v2188 = vunpack.c.l.b16 %v1823
      %v2189 = vpack.c.b16 %v1839, %v1838
      %v2190 = vpack.c.b16 %v1841, %v1840
      %v2191 = vpack.c.b16 %v1843, %v1842
      %v2192 = vpack.c.b16 %v2188, %v1844
      %v2194 = vsel %vm494, %v2189, 0
      %v2197 = vsel %vm494, %v2190, 0
      %v2200 = vsel %vm494, %v2191, 0
      %v2203 = vsel %vm494, %v2192, 0
      %v2206 = vsel %vm507, %v2186, 0
      %2208 = vmatpush.bf16.msra.mxu0 0
      %2209 = vmatpush.bf16.msra.mxu0 0
      %2210 = vmatpush.bf16.msra.mxu0 0
      %2211 = vmatpush.bf16.msra.mxu0 0
      %2212 = vmatpush.bf16.msra.mxu0 0
      %2213 = vmatpush.bf16.msra.mxu0 0
      %2214 = vmatpush.bf16.msra.mxu0 0
      %2215 = vmatpush.bf16.msra.mxu0 %v2206
      %2216 = vmatmul.bf16.gmra.mxu0 %v2194
      %v2217 = vpop.f32.mrf.mxu0
      %v2218 = vadd.f32 0.0, %v2217
      %v2219 = vpop.f32.mrf.mxu0
      %v2220 = vadd.f32 0.0, %v2219
      %2221 = vmatmul.bf16.gmra.mxu0 %v2197
      %v2222 = vpop.f32.mrf.mxu0
      %v2223 = vadd.f32 0.0, %v2222
      %v2224 = vpop.f32.mrf.mxu0
      %v2225 = vadd.f32 0.0, %v2224
      %2226 = vmatmul.bf16.gmra.mxu0 %v2200
      %v2227 = vpop.f32.mrf.mxu0
      %v2228 = vadd.f32 0.0, %v2227
      %v2229 = vpop.f32.mrf.mxu0
      %v2230 = vadd.f32 0.0, %v2229
      %2231 = vmatmul.bf16.gmra.mxu0 %v2203
      %v2232 = vpop.f32.mrf.mxu0
      %v2233 = vadd.f32 0.0, %v2232
      %v2234 = vpop.f32.mrf.mxu0
      %v2235 = vadd.f32 0.0, %v2234
      %2236 = vdwg.mxu0
      %v2237 = vadd.f32 %v2177, %v2218
      %v2238 = vadd.f32 %v2178, %v2220
      %v2239 = vadd.f32 %v2179, %v2223
      %v2240 = vadd.f32 %v2180, %v2225
      %v2241 = vadd.f32 %v2181, %v2228
      %v2242 = vadd.f32 %v2182, %v2230
      %v2243 = vadd.f32 %v2183, %v2233
      %v2244 = vadd.f32 %v2184, %v2235
      %v2246 = vshrl.u32 %v1823, 16
      %v2248 = vrot.slane %v2246, 4
      %v2249 = vshll.u32 %v1823, 16
      %v2251 = vrot.slane %v2249, 5
      %v2252 = vor.u32 %v2248, %v2251
      %v2253 = vrot.slane %v2252, 4
      %v2255 = vshll.u32 %v1824, 16
      %v2257 = vrot.slane %v2255, 5
      %v2258 = vsel %vm367, %v2253, %v2257
      %s2259 = scalar_lea.vmem %s3, 88
      %v2260 = vld [vmem:[%s2259] sm:$0xf]
      %v2261 = vunpack.c.l.b16 %v2258
      %v2262 = vpack.c.b16 %v2017, %v2016
      %v2263 = vpack.c.b16 %v2019, %v2018
      %v2264 = vpack.c.b16 %v2021, %v2020
      %v2265 = vpack.c.b16 %v2261, %v2022
      %v2267 = vsel %vm494, %v2262, 0
      %v2270 = vsel %vm494, %v2263, 0
      %v2273 = vsel %vm494, %v2264, 0
      %v2276 = vsel %vm494, %v2265, 0
      %v2279 = vsel %vm507, %v2260, 0
      %2281 = vmatpush.bf16.msra.mxu0 0
      %2282 = vmatpush.bf16.msra.mxu0 0
      %2283 = vmatpush.bf16.msra.mxu0 0
      %2284 = vmatpush.bf16.msra.mxu0 0
      %2285 = vmatpush.bf16.msra.mxu0 0
      %2286 = vmatpush.bf16.msra.mxu0 0
      %2287 = vmatpush.bf16.msra.mxu0 0
      %2288 = vmatpush.bf16.msra.mxu0 %v2279
      %2289 = vmatmul.bf16.gmra.mxu0 %v2267
      %v2290 = vpop.f32.mrf.mxu0
      %v2291 = vadd.f32 0.0, %v2290
      %v2292 = vpop.f32.mrf.mxu0
      %v2293 = vadd.f32 0.0, %v2292
      %2294 = vmatmul.bf16.gmra.mxu0 %v2270
      %v2295 = vpop.f32.mrf.mxu0
      %v2296 = vadd.f32 0.0, %v2295
      %v2297 = vpop.f32.mrf.mxu0
      %v2298 = vadd.f32 0.0, %v2297
      %2299 = vmatmul.bf16.gmra.mxu0 %v2273
      %v2300 = vpop.f32.mrf.mxu0
      %v2301 = vadd.f32 0.0, %v2300
      %v2302 = vpop.f32.mrf.mxu0
      %v2303 = vadd.f32 0.0, %v2302
      %2304 = vmatmul.bf16.gmra.mxu0 %v2276
      %v2305 = vpop.f32.mrf.mxu0
      %v2306 = vadd.f32 0.0, %v2305
      %v2307 = vpop.f32.mrf.mxu0
      %v2308 = vadd.f32 0.0, %v2307
      %2309 = vdwg.mxu0
      %v2310 = vadd.f32 %v2237, %v2291
      %v2311 = vadd.f32 %v2238, %v2293
      %v2312 = vadd.f32 %v2239, %v2296
      %v2313 = vadd.f32 %v2240, %v2298
      %v2314 = vadd.f32 %v2241, %v2301
      %v2315 = vadd.f32 %v2242, %v2303
      %v2316 = vadd.f32 %v2243, %v2306
      %v2317 = vadd.f32 %v2244, %v2308
      %v2319 = vrot.slane %v1823, 5
      %v2320 = vrot.slane %v2319, 4
      %v2321 = vrot.slane %v1824, 5
      %v2322 = vsel %vm614, %v2320, %v2321
      %s2323 = scalar_lea.vmem %s3, 92
      %v2324 = vld [vmem:[%s2323] sm:$0xf]
      %v2325 = vunpack.c.l.b16 %v2322
      %v2326 = vpack.c.b16 %v2123, %v2122
      %v2327 = vpack.c.b16 %v2125, %v2124
      %v2328 = vpack.c.b16 %v2127, %v2126
      %v2329 = vpack.c.b16 %v2325, %v2128
      %v2331 = vsel %vm494, %v2326, 0
      %v2334 = vsel %vm494, %v2327, 0
      %v2337 = vsel %vm494, %v2328, 0
      %v2340 = vsel %vm494, %v2329, 0
      %v2343 = vsel %vm507, %v2324, 0
      %2345 = vmatpush.bf16.msra.mxu0 0
      %2346 = vmatpush.bf16.msra.mxu0 0
      %2347 = vmatpush.bf16.msra.mxu0 0
      %2348 = vmatpush.bf16.msra.mxu0 0
      %2349 = vmatpush.bf16.msra.mxu0 0
      %2350 = vmatpush.bf16.msra.mxu0 0
      %2351 = vmatpush.bf16.msra.mxu0 0
      %2352 = vmatpush.bf16.msra.mxu0 %v2343
      %2353 = vmatmul.bf16.gmra.mxu0 %v2331
      %v2354 = vpop.f32.mrf.mxu0
      %v2355 = vadd.f32 0.0, %v2354
      %v2356 = vpop.f32.mrf.mxu0
      %v2357 = vadd.f32 0.0, %v2356
      %2358 = vmatmul.bf16.gmra.mxu0 %v2334
      %v2359 = vpop.f32.mrf.mxu0
      %v2360 = vadd.f32 0.0, %v2359
      %v2361 = vpop.f32.mrf.mxu0
      %v2362 = vadd.f32 0.0, %v2361
      %2363 = vmatmul.bf16.gmra.mxu0 %v2337
      %v2364 = vpop.f32.mrf.mxu0
      %v2365 = vadd.f32 0.0, %v2364
      %v2366 = vpop.f32.mrf.mxu0
      %v2367 = vadd.f32 0.0, %v2366
      %2368 = vmatmul.bf16.gmra.mxu0 %v2340
      %v2369 = vpop.f32.mrf.mxu0
      %v2370 = vadd.f32 0.0, %v2369
      %v2371 = vpop.f32.mrf.mxu0
      %v2372 = vadd.f32 0.0, %v2371
      %2373 = vdwg.mxu0
      %v2374 = vadd.f32 %v2310, %v2355
      %v2375 = vadd.f32 %v2311, %v2357
      %v2376 = vadd.f32 %v2312, %v2360
      %v2377 = vadd.f32 %v2313, %v2362
      %v2378 = vadd.f32 %v2314, %v2365
      %v2379 = vadd.f32 %v2315, %v2367
      %v2380 = vadd.f32 %v2316, %v2370
      %v2381 = vadd.f32 %v2317, %v2372
      %s2382 = scalar_lea.vmem %s3, 96
      %v2383 = vld [vmem:[%s2382] sm:$0xf]
      %v2385 = vunpack.c.l.b16 %v1825
      %v2386 = vpack.c.b16 %v2385, %v2188
      %v2388 = vsel %vm494, %v2386, 0
      %v2391 = vsel %vm507, %v2383, 0
      %2393 = vmatpush.bf16.msra.mxu0 0
      %2394 = vmatpush.bf16.msra.mxu0 0
      %2395 = vmatpush.bf16.msra.mxu0 0
      %2396 = vmatpush.bf16.msra.mxu0 0
      %2397 = vmatpush.bf16.msra.mxu0 0
      %2398 = vmatpush.bf16.msra.mxu0 0
      %2399 = vmatpush.bf16.msra.mxu0 0
      %2400 = vmatpush.bf16.msra.mxu0 %v2391
      %2401 = vmatmul.bf16.gmra.mxu0 %v1853
      %v2402 = vpop.f32.mrf.mxu0
      %v2403 = vadd.f32 0.0, %v2402
      %v2404 = vpop.f32.mrf.mxu0
      %v2405 = vadd.f32 0.0, %v2404
      %2406 = vmatmul.bf16.gmra.mxu0 %v1856
      %v2407 = vpop.f32.mrf.mxu0
      %v2408 = vadd.f32 0.0, %v2407
      %v2409 = vpop.f32.mrf.mxu0
      %v2410 = vadd.f32 0.0, %v2409
      %2411 = vmatmul.bf16.gmra.mxu0 %v1859
      %v2412 = vpop.f32.mrf.mxu0
      %v2413 = vadd.f32 0.0, %v2412
      %v2414 = vpop.f32.mrf.mxu0
      %v2415 = vadd.f32 0.0, %v2414
      %2416 = vmatmul.bf16.gmra.mxu0 %v2388
      %v2417 = vpop.f32.mrf.mxu0
      %v2418 = vadd.f32 0.0, %v2417
      %v2419 = vpop.f32.mrf.mxu0
      %v2420 = vadd.f32 0.0, %v2419
      %2421 = vdwg.mxu0
      %v2422 = vadd.f32 %v2374, %v2403
      %v2423 = vadd.f32 %v2375, %v2405
      %v2424 = vadd.f32 %v2376, %v2408
      %v2425 = vadd.f32 %v2377, %v2410
      %v2426 = vadd.f32 %v2378, %v2413
      %v2427 = vadd.f32 %v2379, %v2415
      %v2428 = vadd.f32 %v2380, %v2418
      %v2429 = vadd.f32 %v2381, %v2420
      %v2431 = vshrl.u32 %v1825, 16
      %v2433 = vrot.slane %v2431, 4
      %v2434 = vshll.u32 %v1825, 16
      %v2436 = vrot.slane %v2434, 5
      %v2437 = vor.u32 %v2433, %v2436
      %v2438 = vrot.slane %v2437, 4
      %v2440 = vshll.u32 %v1826, 16
      %v2442 = vrot.slane %v2440, 5
      %v2443 = vsel %vm367, %v2438, %v2442
      %s2444 = scalar_lea.vmem %s3, 100
      %v2445 = vld [vmem:[%s2444] sm:$0xf]
      %v2446 = vunpack.c.l.b16 %v2443
      %v2447 = vpack.c.b16 %v2446, %v2261
      %v2449 = vsel %vm494, %v2447, 0
      %v2452 = vsel %vm507, %v2445, 0
      %2454 = vmatpush.bf16.msra.mxu0 0
      %2455 = vmatpush.bf16.msra.mxu0 0
      %2456 = vmatpush.bf16.msra.mxu0 0
      %2457 = vmatpush.bf16.msra.mxu0 0
      %2458 = vmatpush.bf16.msra.mxu0 0
      %2459 = vmatpush.bf16.msra.mxu0 0
      %2460 = vmatpush.bf16.msra.mxu0 0
      %2461 = vmatpush.bf16.msra.mxu0 %v2452
      %2462 = vmatmul.bf16.gmra.mxu0 %v2031
      %v2463 = vpop.f32.mrf.mxu0
      %v2464 = vadd.f32 0.0, %v2463
      %v2465 = vpop.f32.mrf.mxu0
      %v2466 = vadd.f32 0.0, %v2465
      %2467 = vmatmul.bf16.gmra.mxu0 %v2034
      %v2468 = vpop.f32.mrf.mxu0
      %v2469 = vadd.f32 0.0, %v2468
      %v2470 = vpop.f32.mrf.mxu0
      %v2471 = vadd.f32 0.0, %v2470
      %2472 = vmatmul.bf16.gmra.mxu0 %v2037
      %v2473 = vpop.f32.mrf.mxu0
      %v2474 = vadd.f32 0.0, %v2473
      %v2475 = vpop.f32.mrf.mxu0
      %v2476 = vadd.f32 0.0, %v2475
      %2477 = vmatmul.bf16.gmra.mxu0 %v2449
      %v2478 = vpop.f32.mrf.mxu0
      %v2479 = vadd.f32 0.0, %v2478
      %v2480 = vpop.f32.mrf.mxu0
      %v2481 = vadd.f32 0.0, %v2480
      %2482 = vdwg.mxu0
      %v2483 = vadd.f32 %v2422, %v2464
      %v2484 = vadd.f32 %v2423, %v2466
      %v2485 = vadd.f32 %v2424, %v2469
      %v2486 = vadd.f32 %v2425, %v2471
      %v2487 = vadd.f32 %v2426, %v2474
      %v2488 = vadd.f32 %v2427, %v2476
      %v2489 = vadd.f32 %v2428, %v2479
      %v2490 = vadd.f32 %v2429, %v2481
      %v2492 = vrot.slane %v1825, 5
      %v2493 = vrot.slane %v2492, 4
      %v2494 = vrot.slane %v1826, 5
      %v2495 = vsel %vm614, %v2493, %v2494
      %s2496 = scalar_lea.vmem %s3, 104
      %v2497 = vld [vmem:[%s2496] sm:$0xf]
      %v2498 = vunpack.c.l.b16 %v2495
      %v2499 = vpack.c.b16 %v2498, %v2325
      %v2501 = vsel %vm494, %v2499, 0
      %v2504 = vsel %vm507, %v2497, 0
      %2506 = vmatpush.bf16.msra.mxu0 0
      %2507 = vmatpush.bf16.msra.mxu0 0
      %2508 = vmatpush.bf16.msra.mxu0 0
      %2509 = vmatpush.bf16.msra.mxu0 0
      %2510 = vmatpush.bf16.msra.mxu0 0
      %2511 = vmatpush.bf16.msra.mxu0 0
      %2512 = vmatpush.bf16.msra.mxu0 0
      %2513 = vmatpush.bf16.msra.mxu0 %v2504
      %2514 = vmatmul.bf16.gmra.mxu0 %v2137
      %v2515 = vpop.f32.mrf.mxu0
      %v2516 = vadd.f32 0.0, %v2515
      %v2517 = vpop.f32.mrf.mxu0
      %v2518 = vadd.f32 0.0, %v2517
      %2519 = vmatmul.bf16.gmra.mxu0 %v2140
      %v2520 = vpop.f32.mrf.mxu0
      %v2521 = vadd.f32 0.0, %v2520
      %v2522 = vpop.f32.mrf.mxu0
      %v2523 = vadd.f32 0.0, %v2522
      %2524 = vmatmul.bf16.gmra.mxu0 %v2143
      %v2525 = vpop.f32.mrf.mxu0
      %v2526 = vadd.f32 0.0, %v2525
      %v2527 = vpop.f32.mrf.mxu0
      %v2528 = vadd.f32 0.0, %v2527
      %2529 = vmatmul.bf16.gmra.mxu0 %v2501
      %v2530 = vpop.f32.mrf.mxu0
      %v2531 = vadd.f32 0.0, %v2530
      %v2532 = vpop.f32.mrf.mxu0
      %v2533 = vadd.f32 0.0, %v2532
      %2534 = vdwg.mxu0
      %v2535 = vadd.f32 %v2483, %v2516
      %v2536 = vadd.f32 %v2484, %v2518
      %v2537 = vadd.f32 %v2485, %v2521
      %v2538 = vadd.f32 %v2486, %v2523
      %v2539 = vadd.f32 %v2487, %v2526
      %v2540 = vadd.f32 %v2488, %v2528
      %v2541 = vadd.f32 %v2489, %v2531
      %v2542 = vadd.f32 %v2490, %v2533
      %v2543 = vld [vmem:[%s4] sm:$0x1]
      %v2545 = vperm.slane %v2543, 0
      %v2547 = vadd.f32 %v2535, %v2545
      %v2548 = vadd.f32 %v2536, %v2545
      %v2549 = vadd.f32 %v2537, %v2545
      %v2550 = vadd.f32 %v2538, %v2545
      %v2551 = vadd.f32 %v2539, %v2545
      %v2552 = vadd.f32 %v2540, %v2545
      %v2553 = vadd.f32 %v2541, %v2545
      %v2554 = vadd.f32 %v2542, %v2545
      %v2555 = vmax.f32 %v2547, 0.0
      %v2556 = vmax.f32 %v2548, 0.0
      %v2557 = vmax.f32 %v2549, 0.0
      %v2558 = vmax.f32 %v2550, 0.0
      %v2559 = vmax.f32 %v2551, 0.0
      %v2560 = vmax.f32 %v2552, 0.0
      %v2561 = vmax.f32 %v2553, 0.0
      %v2562 = vmax.f32 %v2554, 0.0
      %v2563 = vpack.c.bf16 %v2555, %v2555
      %v2564 = vpack.c.bf16 %v2556, %v2556
      %v2565 = vpack.c.bf16 %v2557, %v2557
      %v2566 = vpack.c.bf16 %v2558, %v2558
      %v2567 = vpack.c.bf16 %v2559, %v2559
      %v2568 = vpack.c.bf16 %v2560, %v2560
      %v2569 = vpack.c.bf16 %v2561, %v2561
      %v2570 = vpack.c.bf16 %v2562, %v2562
      %vm2571 = vcmask 125952
      %2572 = vst.msk [vmem:[%s342] sm:$0xf] %vm2571, %v2563
      %2573 = vst.msk [vmem:[%s342 + $0x4] sm:$0xf] %vm2571, %v2564
      %2574 = vst.msk [vmem:[%s342 + $0x8] sm:$0xf] %vm2571, %v2565
      %2575 = vst.msk [vmem:[%s342 + $0xc] sm:$0xf] %vm2571, %v2566
      %2576 = vst.msk [vmem:[%s342 + $0x10] sm:$0xf] %vm2571, %v2567
      %2577 = vst.msk [vmem:[%s342 + $0x14] sm:$0xf] %vm2571, %v2568
      %2578 = vst.msk [vmem:[%s342 + $0x18] sm:$0xf] %vm2571, %v2569
      %2579 = vst.msk [vmem:[%s342 + $0x1c] sm:$0xf] %vm2571, %v2570
      %p2580 = scmp.lt.s32.totalorder %s20, 1
      %s2581 = scalar_select %p2580, %s20, 1
      %p2582 = scmp.lt.s32.totalorder %s21, 3
      %s2583 = scalar_select %p2582, %s21, 3
      %s2584 = smul.addr %s2583, 8
      %s2585 = smul.addr %s2581, 32
      %s2586 = sadd.s32 %s2584, %s2585
      %s2587 = smul.addr %s2586, 4
      %s2588 = scalar_lea.vmem %s5, %s2587
      // Predicated region
      $region41: #{inception_forward.7} parent=39 // pred_check
        %p2589 = pneg %p178
      $region42: #{inception_forward.7} parent=39 // pred_check_branch
        %2591 = sbr.rel (%p2589) target = $region44
      $region43: #{inception_forward.7} parent=39 // pred_region
        _
      $region44: #{inception_forward.7} parent=39 // pred_fallthru
        _
    $region40: #{inception_forward.7} parent=5 // pred_fallthru
      _
    %p2592 = scmp.le.s32.totalorder 2, %s11
    // Predicated region
    $region45: #{inception_forward.7} parent=5 // pred_check
      %p2593 = pneg %p2592
    $region46: #{inception_forward.7} parent=5 // pred_check_branch
      %2595 = sbr.rel (%p2593) target = $region48
    $region47: #{inception_forward.7} parent=5 // pred_region
      %s2596 = ssub.s32 %s11, 2
      // Predicated region
      $region49: #{inception_forward.7} parent=47 // pred_check
        %p2597 = pneg %p184
      $region50: #{inception_forward.7} parent=47 // pred_check_branch
        %2599 = sbr.rel (%p2597) target = $region52
      $region51: #{inception_forward.7} parent=47 // pred_region
        %p2600 = scmp.lt.s32.totalorder %s22, 1
        %s2601 = scalar_select %p2600, %s22, 1
        %p2602 = scmp.lt.s32.totalorder %s23, 3
        %s2603 = scalar_select %p2602, %s23, 3
        %s2604 = smul.addr %s2603, 8
        %s2605 = smul.addr %s2601, 32
        %s2606 = sadd.s32 %s2604, %s2605
        %s2607 = smul.addr %s2606, 4
        %s2608 = scalar_lea.vmem %s5, %s2607
      $region52: #{inception_forward.7} parent=47 // pred_fallthru
        _
    $region48: #{inception_forward.7} parent=5 // pred_fallthru
      _
  $region6: #{inception_forward.7} parent=0 // loop_footer
    %s15 = sadd.s32 1, %s11
  $region7: #{inception_forward.7} parent=0 // loop_footer_branch
    %10 = sbr.rel target = $region3
  $region8: #{inception_forward.7} parent=0 // loop_exit
    _

// kernel: inception_forward.6
$region0: #{inception_forward.6}
  #allocation0 [shape = 'u32[]', space=smem, size = 0x4, offset = 0x4, fixed_abs, tag = 'smem constant byte address 0x4 - core index']
  #allocation1 [shape = 'u32[72,128]{1,0:T(1,128)}', space=vmem, size = 0x9000, scoped, tag = 'internal scratch']
  %s0 = inlined_call_operand.vmem [shape: bf16[2,6,10,10,8], index: 0, kind: input, shape index: {}, may-alias: {0,1,2}]
  %s1 = inlined_call_operand.vmem [shape: bf16[2,6,10,10,8], index: 1, kind: input, shape index: {}, may-alias: {0,1,2}]
  %s2 = inlined_call_operand.vmem [shape: bf16[2,6,10,10,8], index: 2, kind: input, shape index: {}, may-alias: {0,1,2}]
  %s3 = inlined_call_operand.vmem [shape: bf16[27,8,16], index: 3, kind: input, shape index: {}]
  %s4 = inlined_call_operand.vmem [shape: f32[1,16], index: 4, kind: input, shape index: {}]
  %s5 = inlined_call_operand.vmem [shape: f32[2,4,64,16], index: 5, kind: output, shape index: {}]
  %s6 = sld [smem:[#allocation0]]
  $region53: #{inception_forward.6} parent=0
    _
  %s8 = ssub.s32 1, %s6
  %s9 = scalar_select 0, %s8, %s6
  loop: start=0, step=1, limit=10
  $region2: #{inception_forward.6} parent=0 // loop_pre_header
    _
  $region3: #{inception_forward.6} parent=0 // loop_header
    %s11 = sphi 0, %s15
    %p12 = scmp.ge.s32.totalorder %s11, 10
    %s18 = sphi 0, %s30
    %s19 = sphi 0, %s26
    %s20 = sphi 0, %s18
    %s21 = sphi 0, %s19
    %s22 = sphi 0, %s20
    %s23 = sphi 0, %s21
    %s35 = sphi 0, %s37
    %s38 = sphi 0, %s35
    %s39 = sphi 0, %s38
    %s55 = sphi 0, %s39
    %s65 = sphi 0, %s67
    %s68 = sphi 0, %s65
    %s69 = sphi 0, %s68
    %s85 = sphi 0, %s69
    %s95 = sphi 0, %s97
    %s98 = sphi 0, %s95
    %s99 = sphi 0, %s98
    %s115 = sphi 0, %s99
    %s119 = sphi 0, %s119
    %s121 = sphi 0, %s119
    %s122 = sphi 0, %s121
    %s136 = sphi 0, %s122
    %s140 = sphi 0, %s140
    %s142 = sphi 0, %s140
    %s143 = sphi 0, %s142
    %s157 = sphi 0, %s143
    %s165 = sphi 0, %s167
    %s168 = sphi 0, %s165
    %s169 = sphi 0, %s168
    %s185 = sphi 0, %s169
  $region4: #{inception_forward.6} parent=0 // loop_header_branch
    %14 = sbr.rel (%p12) target = $region8
  $region5: #{inception_forward.6} parent=0 // loop_body
    %s16 = ssub.s32 %s11, 1
    %s17 = ssub.s32 %s11, 2
    %s24 = sadd.s32 1, %s19
    %p25 = scmp.ge.s32.totalorder %s24, 4
    %s26 = scalar_select %p25, 0, %s24
    %s27 = sadd.s32 1, %s18
    %s28 = scalar_select %p25, %s27, %s18
    %p29 = scmp.ge.s32.totalorder %s28, 2
    %s30 = scalar_select %p29, 0, %s28
    %s31 = ssub.s32 %s18, %s30
    %s32 = ssub.s32 %s19, %s26
    %s33 = sor.u32 %s31, %s32
    %p34 = scmp.eq.s32.totalorder %s33, 0
    %s36 = sadd.s32 %s35, 1
    %s37 = scalar_select %p34, %s35, %s36
    %p40 = pneg %p34
    %p41 = scmp.eq.s32.totalorder %s11, 7
    %p42 = por %p40, %p41
    %p43 = scmp.ne.s32.totalorder %s35, %s38
    %p44 = scmp.eq.s32.totalorder %s11, 0
    %p45 = por %p43, %p44
    %p46 = scmp.ne.s32.totalorder %s35, %s38
    %p47 = scmp.eq.s32.totalorder %s16, 7
    %p48 = por %p46, %p47
    %p49 = scmp.ne.s32.totalorder %s38, %s39
    %p50 = scmp.eq.s32.totalorder %s16, 0
    %p51 = por %p49, %p50
    %p52 = scmp.ne.s32.totalorder %s38, %s39
    %p53 = scmp.eq.s32.totalorder %s17, 7
    %p54 = por %p52, %p53
    %p56 = scmp.ne.s32.totalorder %s39, %s55
    %p57 = scmp.eq.s32.totalorder %s17, 0
    %p58 = por %p56, %p57
    %s59 = sadd.s32 %s19, 1
    %s60 = sadd.s32 %s26, 1
    %s61 = ssub.s32 %s18, %s30
    %s62 = ssub.s32 %s59, %s60
    %s63 = sor.u32 %s61, %s62
    %p64 = scmp.eq.s32.totalorder %s63, 0
    %s66 = sadd.s32 %s65, 1
    %s67 = scalar_select %p64, %s65, %s66
    %p70 = pneg %p64
    %p71 = scmp.eq.s32.totalorder %s11, 7
    %p72 = por %p70, %p71
    %p73 = scmp.ne.s32.totalorder %s65, %s68
    %p74 = scmp.eq.s32.totalorder %s11, 0
    %p75 = por %p73, %p74
    %p76 = scmp.ne.s32.totalorder %s65, %s68
    %p77 = scmp.eq.s32.totalorder %s16, 7
    %p78 = por %p76, %p77
    %p79 = scmp.ne.s32.totalorder %s68, %s69
    %p80 = scmp.eq.s32.totalorder %s16, 0
    %p81 = por %p79, %p80
    %p82 = scmp.ne.s32.totalorder %s68, %s69
    %p83 = scmp.eq.s32.totalorder %s17, 7
    %p84 = por %p82, %p83
    %p86 = scmp.ne.s32.totalorder %s69, %s85
    %p87 = scmp.eq.s32.totalorder %s17, 0
    %p88 = por %p86, %p87
    %s89 = sadd.s32 %s19, 2
    %s90 = sadd.s32 %s26, 2
    %s91 = ssub.s32 %s18, %s30
    %s92 = ssub.s32 %s89, %s90
    %s93 = sor.u32 %s91, %s92
    %p94 = scmp.eq.s32.totalorder %s93, 0
    %s96 = sadd.s32 %s95, 1
    %s97 = scalar_select %p94, %s95, %s96
    %p100 = pneg %p94
    %p101 = scmp.eq.s32.totalorder %s11, 7
    %p102 = por %p100, %p101
    %p103 = scmp.ne.s32.totalorder %s95, %s98
    %p104 = scmp.eq.s32.totalorder %s11, 0
    %p105 = por %p103, %p104
    %p106 = scmp.ne.s32.totalorder %s95, %s98
    %p107 = scmp.eq.s32.totalorder %s16, 7
    %p108 = por %p106, %p107
    %p109 = scmp.ne.s32.totalorder %s98, %s99
    %p110 = scmp.eq.s32.totalorder %s16, 0
    %p111 = por %p109, %p110
    %p112 = scmp.ne.s32.totalorder %s98, %s99
    %p113 = scmp.eq.s32.totalorder %s17, 7
    %p114 = por %p112, %p113
    %p116 = scmp.ne.s32.totalorder %s99, %s115
    %p117 = scmp.eq.s32.totalorder %s17, 0
    %p118 = por %p116, %p117
    %s120 = sadd.s32 %s119, 1
    %p123 = scmp.eq.s32.totalorder %s11, 7
    %p124 = scmp.ne.s32.totalorder %s119, %s121
    %p125 = scmp.eq.s32.totalorder %s11, 0
    %p126 = por %p124, %p125
    %p127 = scmp.ne.s32.totalorder %s119, %s121
    %p128 = scmp.eq.s32.totalorder %s16, 7
    %p129 = por %p127, %p128
    %p130 = scmp.ne.s32.totalorder %s121, %s122
    %p131 = scmp.eq.s32.totalorder %s16, 0
    %p132 = por %p130, %p131
    %p133 = scmp.ne.s32.totalorder %s121, %s122
    %p134 = scmp.eq.s32.totalorder %s17, 7
    %p135 = por %p133, %p134
    %p137 = scmp.ne.s32.totalorder %s122, %s136
    %p138 = scmp.eq.s32.totalorder %s17, 0
    %p139 = por %p137, %p138
    %s141 = sadd.s32 %s140, 1
    %p144 = scmp.eq.s32.totalorder %s11, 7
    %p145 = scmp.ne.s32.totalorder %s140, %s142
    %p146 = scmp.eq.s32.totalorder %s11, 0
    %p147 = por %p145, %p146
    %p148 = scmp.ne.s32.totalorder %s140, %s142
    %p149 = scmp.eq.s32.totalorder %s16, 7
    %p150 = por %p148, %p149
    %p151 = scmp.ne.s32.totalorder %s142, %s143
    %p152 = scmp.eq.s32.totalorder %s16, 0
    %p153 = por %p151, %p152
    %p154 = scmp.ne.s32.totalorder %s142, %s143
    %p155 = scmp.eq.s32.totalorder %s17, 7
    %p156 = por %p154, %p155
    %p158 = scmp.ne.s32.totalorder %s143, %s157
    %p159 = scmp.eq.s32.totalorder %s17, 0
    %p160 = por %p158, %p159
    %s161 = ssub.s32 %s18, %s30
    %s162 = ssub.s32 %s19, %s26
    %s163 = sor.u32 %s161, %s162
    %p164 = scmp.eq.s32.totalorder %s163, 0
    %s166 = sadd.s32 %s165, 1
    %s167 = scalar_select %p164, %s165, %s166
    %p170 = pneg %p164
    %p171 = scmp.eq.s32.totalorder %s11, 7
    %p172 = por %p170, %p171
    %p173 = scmp.ne.s32.totalorder %s165, %s168
    %p174 = scmp.eq.s32.totalorder %s11, 0
    %p175 = por %p173, %p174
    %p176 = scmp.ne.s32.totalorder %s165, %s168
    %p177 = scmp.eq.s32.totalorder %s16, 7
    %p178 = por %p176, %p177
    %p179 = scmp.ne.s32.totalorder %s168, %s169
    %p180 = scmp.eq.s32.totalorder %s16, 0
    %p181 = por %p179, %p180
    %p182 = scmp.ne.s32.totalorder %s168, %s169
    %p183 = scmp.eq.s32.totalorder %s17, 7
    %p184 = por %p182, %p183
    %p186 = scmp.ne.s32.totalorder %s169, %s185
    %p187 = scmp.eq.s32.totalorder %s17, 0
    %p188 = por %p186, %p187
    %p189 = scmp.le.s32.totalorder 1, %s11
    %p190 = scmp.lt.s32.totalorder %s11, 9
    %p191 = pnand %p189, %p190
    %p192 = pneg %p191
    // Predicated region
    $region9: #{inception_forward.6} parent=5 // pred_check
      _
    $region10: #{inception_forward.6} parent=5 // pred_check_branch
      %194 = sbr.rel (%p191) target = $region12
    $region11: #{inception_forward.6} parent=5 // pred_region
      %s195 = ssub.s32 %s11, 1
      // Predicated region
      $region13: #{inception_forward.6} parent=11 // pred_check
        %p196 = pneg %p132
      $region14: #{inception_forward.6} parent=11 // pred_check_branch
        %198 = sbr.rel (%p196) target = $region16
      $region15: #{inception_forward.6} parent=11 // pred_region
        _
      $region16: #{inception_forward.6} parent=11 // pred_fallthru
        _
      // Predicated region
      $region17: #{inception_forward.6} parent=11 // pred_check
        %p199 = pneg %p153
      $region18: #{inception_forward.6} parent=11 // pred_check_branch
        %201 = sbr.rel (%p199) target = $region20
      $region19: #{inception_forward.6} parent=11 // pred_region
        _
      $region20: #{inception_forward.6} parent=11 // pred_fallthru
        _
    $region12: #{inception_forward.6} parent=5 // pred_fallthru
      _
    %p202 = scmp.lt.s32.totalorder %s11, 8
    // Predicated region
    $region21: #{inception_forward.6} parent=5 // pred_check
      %p203 = pneg %p202
    $region22: #{inception_forward.6} parent=5 // pred_check_branch
      %205 = sbr.rel (%p203) target = $region24
    $region23: #{inception_forward.6} parent=5 // pred_region
      // Predicated region
      $region25: #{inception_forward.6} parent=23 // pred_check
        %p206 = pneg %p45
      $region26: #{inception_forward.6} parent=23 // pred_check_branch
        %208 = sbr.rel (%p206) target = $region28
      $region27: #{inception_forward.6} parent=23 // pred_region
        %p209 = scmp.lt.s32.totalorder %s18, 1
        %s210 = scalar_select %p209, %s18, 1
        %p211 = scmp.lt.s32.totalorder %s19, 5
        %s212 = scalar_select %p211, %s19, 5
        %s213 = smul.addr %s212, 20
        %s214 = smul.addr %s210, 120
        %s215 = sadd.s32 %s213, %s214
        %s216 = smul.addr %s215, 4
        %s217 = scalar_lea.vmem %s0, %s216
      $region28: #{inception_forward.6} parent=23 // pred_fallthru
        _
      // Predicated region
      $region29: #{inception_forward.6} parent=23 // pred_check
        %p218 = pneg %p75
      $region30: #{inception_forward.6} parent=23 // pred_check_branch
        %220 = sbr.rel (%p218) target = $region32
      $region31: #{inception_forward.6} parent=23 // pred_region
        %s221 = sadd.s32 %s19, 1
        %p222 = scmp.lt.s32.totalorder %s18, 1
        %s223 = scalar_select %p222, %s18, 1
        %p224 = scmp.lt.s32.totalorder %s221, 5
        %s225 = scalar_select %p224, %s221, 5
        %s226 = smul.addr %s225, 20
        %s227 = smul.addr %s223, 120
        %s228 = sadd.s32 %s226, %s227
        %s229 = smul.addr %s228, 4
        %s230 = scalar_lea.vmem %s1, %s229
        %s231 = sadd.s32 %s19, 1
      $region32: #{inception_forward.6} parent=23 // pred_fallthru
        _
      // Predicated region
      $region33: #{inception_forward.6} parent=23 // pred_check
        %p232 = pneg %p105
      $region34: #{inception_forward.6} parent=23 // pred_check_branch
        %234 = sbr.rel (%p232) target = $region36
      $region35: #{inception_forward.6} parent=23 // pred_region
        %s235 = sadd.s32 %s19, 2
        %p236 = scmp.lt.s32.totalorder %s18, 1
        %s237 = scalar_select %p236, %s18, 1
        %p238 = scmp.lt.s32.totalorder %s235, 5
        %s239 = scalar_select %p238, %s235, 5
        %s240 = smul.addr %s239, 20
        %s241 = smul.addr %s237, 120
        %s242 = sadd.s32 %s240, %s241
        %s243 = smul.addr %s242, 4
        %s244 = scalar_lea.vmem %s2, %s243
        %s245 = sadd.s32 %s19, 2
      $region36: #{inception_forward.6} parent=23 // pred_fallthru
        _
    $region24: #{inception_forward.6} parent=5 // pred_fallthru
      _
    %p246 = scmp.le.s32.totalorder 1, %s11
    %p247 = scmp.lt.s32.totalorder %s11, 9
    %p248 = pnand %p246, %p247
    %p249 = pneg %p248
    // Predicated region
    $region37: #{inception_forward.6} parent=5 // pred_check
      _
    $region38: #{inception_forward.6} parent=5 // pred_check_branch
      %251 = sbr.rel (%p248) target = $region40
    $region39: #{inception_forward.6} parent=5 // pred_region
      %s252 = ssub.s32 %s11, 1
      %p253 = scmp.lt.s32.totalorder %s20, 1
      %s254 = scalar_select %p253, %s20, 1
      %p255 = scmp.lt.s32.totalorder %s21, 5
      %s256 = scalar_select %p255, %s21, 5
      %s257 = smul.addr %s256, 20
      %s258 = smul.addr %s254, 120
      %s259 = sadd.s32 %s257, %s258
      %s260 = smul.addr %s259, 4
      %s261 = scalar_lea.vmem %s0, %s260
      %p262 = pneg %p51
      %p263 = pneg %p48
      %s264 = sadd.s32 %s21, 1
      %p265 = scmp.lt.s32.totalorder %s20, 1
      %s266 = scalar_select %p265, %s20, 1
      %p267 = scmp.lt.s32.totalorder %s264, 5
      %s268 = scalar_select %p267, %s264, 5
      %s269 = smul.addr %s268, 20
      %s270 = smul.addr %s266, 120
      %s271 = sadd.s32 %s269, %s270
      %s272 = smul.addr %s271, 4
      %s273 = scalar_lea.vmem %s1, %s272
      %p274 = pneg %p81
      %p275 = pneg %p78
      %s276 = sadd.s32 %s21, 2
      %p277 = scmp.lt.s32.totalorder %s20, 1
      %s278 = scalar_select %p277, %s20, 1
      %p279 = scmp.lt.s32.totalorder %s276, 5
      %s280 = scalar_select %p279, %s276, 5
      %s281 = smul.addr %s280, 20
      %s282 = smul.addr %s278, 120
      %s283 = sadd.s32 %s281, %s282
      %s284 = smul.addr %s283, 4
      %s285 = scalar_lea.vmem %s2, %s284
      %p286 = pneg %p111
      %p287 = pneg %p108
      %p288 = pneg %p132
      %p289 = pneg %p129
      %p290 = pneg %p153
      %p291 = pneg %p150
      %p292 = pneg %p181
      %p293 = pneg %p178
      %p294 = scmp.lt.s32.totalorder %s20, 1
      %s295 = scalar_select %p294, %s20, 1
      %p296 = scmp.lt.s32.totalorder %s21, 3
      %s297 = scalar_select %p296, %s21, 3
      %s298 = smul.addr %s297, 8
      %s299 = smul.addr %s295, 32
      %s300 = sadd.s32 %s298, %s299
      %s301 = smul.addr %s300, 8
      %s302 = scalar_lea.vmem %s5, %s301
      %p303 = scmp.lt.s32.totalorder %s20, 1
      %s304 = scalar_select %p303, %s20, 1
      %p305 = scmp.lt.s32.totalorder %s21, 5
      %s306 = scalar_select %p305, %s21, 5
      %s307 = smul.addr %s306, 20
      %s308 = smul.addr %s304, 120
      %s309 = sadd.s32 %s307, %s308
      %s310 = smul.addr %s309, 4
      %s311 = scalar_lea.vmem %s0, %s310
      %s312 = sadd.s32 %s21, 1
      %p313 = scmp.lt.s32.totalorder %s20, 1
      %s314 = scalar_select %p313, %s20, 1
      %p315 = scmp.lt.s32.totalorder %s312, 5
      %s316 = scalar_select %p315, %s312, 5
      %s317 = smul.addr %s316, 20
      %s318 = smul.addr %s314, 120
      %s319 = sadd.s32 %s317, %s318
      %s320 = smul.addr %s319, 4
      %s321 = scalar_lea.vmem %s1, %s320
      %s322 = sadd.s32 %s21, 1
      %s323 = sadd.s32 %s21, 2
      %p324 = scmp.lt.s32.totalorder %s20, 1
      %s325 = scalar_select %p324, %s20, 1
      %p326 = scmp.lt.s32.totalorder %s323, 5
      %s327 = scalar_select %p326, %s323, 5
      %s328 = smul.addr %s327, 20
      %s329 = smul.addr %s325, 120
      %s330 = sadd.s32 %s328, %s329
      %s331 = smul.addr %s330, 4
      %s332 = scalar_lea.vmem %s2, %s331
      %s333 = sadd.s32 %s21, 2
      %p334 = scmp.lt.s32.totalorder %s20, 1
      %s335 = scalar_select %p334, %s20, 1
      %p336 = scmp.lt.s32.totalorder %s21, 3
      %s337 = scalar_select %p336, %s21, 3
      %s338 = smul.addr %s337, 8
      %s339 = smul.addr %s335, 32
      %s340 = sadd.s32 %s338, %s339
      %s341 = smul.addr %s340, 8
      %s342 = scalar_lea.vmem %s5, %s341
      %v344 = vld [vmem:[%s311] sm:$0xf]
      %v345 = vld [vmem:[%s311 + $0x4] sm:$0x1]
      %v346 = vld [vmem:[%s311 + $0x8] sm:$0xf]
      %v347 = vld [vmem:[%s311 + $0xc] sm:$0x1]
      %v348 = vld [vmem:[%s311 + $0x10] sm:$0xf]
      %v349 = vld [vmem:[%s311 + $0x14] sm:$0x1]
      %v350 = vld [vmem:[%s311 + $0x18] sm:$0xf]
      %v351 = vld [vmem:[%s311 + $0x1c] sm:$0x1]
      %v352 = vld [vmem:[%s311 + $0x20] sm:$0xf]
      %v353 = vld [vmem:[%s311 + $0x24] sm:$0x1]
      %v354 = vld [vmem:[%s311 + $0x28] sm:$0xf]
      %v355 = vld [vmem:[%s311 + $0x2c] sm:$0x1]
      %v356 = vld [vmem:[%s311 + $0x30] sm:$0xf]
      %v357 = vld [vmem:[%s311 + $0x34] sm:$0x1]
      %v358 = vld [vmem:[%s311 + $0x38] sm:$0xf]
      %v359 = vld [vmem:[%s311 + $0x3c] sm:$0x1]
      %v360 = vld [vmem:[%s311 + $0x40] sm:$0xf]
      %v361 = vld [vmem:[%s311 + $0x44] sm:$0x1]
      %v362 = vld [vmem:[%s311 + $0x48] sm:$0xf]
      %v363 = vld [vmem:[%s311 + $0x4c] sm:$0x1]
      %v364 = vld [vmem:[%s3] sm:$0xf]
      %vm365 = vsmask.f32 3328
      %vm366 = vsmask.f32 7440
      %vm367 = vmor %vm365, %vm366
      %v369 = vshrl.u32 %v344, 16
      %v371 = vrot.slane %v369, 4
      %v372 = vshll.u32 %v344, 16
      %v374 = vrot.slane %v372, 5
      %v375 = vor.u32 %v371, %v374
      %v376 = vrot.slane %v375, 4
      %v378 = vshll.u32 %v345, 16
      %v380 = vrot.slane %v378, 5
      %v381 = vsel %vm367, %v376, %v380
      %v383 = vshrl.u32 %v346, 16
      %v385 = vrot.slane %v383, 4
      %v386 = vshll.u32 %v346, 16
      %v388 = vrot.slane %v386, 5
      %v389 = vor.u32 %v385, %v388
      %v390 = vrot.slane %v389, 4
      %v392 = vshll.u32 %v347, 16
      %v394 = vrot.slane %v392, 5
      %v395 = vsel %vm367, %v390, %v394
      %v397 = vshrl.u32 %v348, 16
      %v399 = vrot.slane %v397, 4
      %v400 = vshll.u32 %v348, 16
      %v402 = vrot.slane %v400, 5
      %v403 = vor.u32 %v399, %v402
      %v404 = vrot.slane %v403, 4
      %v406 = vshll.u32 %v349, 16
      %v408 = vrot.slane %v406, 5
      %v409 = vsel %vm367, %v404, %v408
      %v411 = vshrl.u32 %v350, 16
      %v413 = vrot.slane %v411, 4
      %v414 = vshll.u32 %v350, 16
      %v416 = vrot.slane %v414, 5
      %v417 = vor.u32 %v413, %v416
      %v418 = vrot.slane %v417, 4
      %v420 = vshll.u32 %v351, 16
      %v422 = vrot.slane %v420, 5
      %v423 = vsel %vm367, %v418, %v422
      %v425 = vshrl.u32 %v352, 16
      %v427 = vrot.slane %v425, 4
      %v428 = vshll.u32 %v352, 16
      %v430 = vrot.slane %v428, 5
      %v431 = vor.u32 %v427, %v430
      %v432 = vrot.slane %v431, 4
      %v434 = vshll.u32 %v353, 16
      %v436 = vrot.slane %v434, 5
      %v437 = vsel %vm367, %v432, %v436
      %v439 = vshrl.u32 %v354, 16
      %v441 = vrot.slane %v439, 4
      %v442 = vshll.u32 %v354, 16
      %v444 = vrot.slane %v442, 5
      %v445 = vor.u32 %v441, %v444
      %v446 = vrot.slane %v445, 4
      %v448 = vshll.u32 %v355, 16
      %v450 = vrot.slane %v448, 5
      %v451 = vsel %vm367, %v446, %v450
      %v453 = vshrl.u32 %v356, 16
      %v455 = vrot.slane %v453, 4
      %v456 = vshll.u32 %v356, 16
      %v458 = vrot.slane %v456, 5
      %v459 = vor.u32 %v455, %v458
      %v460 = vrot.slane %v459, 4
      %v462 = vshll.u32 %v357, 16
      %v464 = vrot.slane %v462, 5
      %v465 = vsel %vm367, %v460, %v464
      %v467 = vshrl.u32 %v358, 16
      %v469 = vrot.slane %v467, 4
      %v470 = vshll.u32 %v358, 16
      %v472 = vrot.slane %v470, 5
      %v473 = vor.u32 %v469, %v472
      %v474 = vrot.slane %v473, 4
      %v476 = vshll.u32 %v359, 16
      %v478 = vrot.slane %v476, 5
      %v479 = vsel %vm367, %v474, %v478
      %s480 = scalar_lea.vmem %s3, 4
      %v481 = vld [vmem:[%s480] sm:$0xf]
      %v482 = vunpack.c.l.b16 %v381
      %v483 = vunpack.c.l.b16 %v395
      %v484 = vunpack.c.l.b16 %v409
      %v485 = vunpack.c.l.b16 %v423
      %v486 = vunpack.c.l.b16 %v437
      %v487 = vunpack.c.l.b16 %v451
      %v488 = vunpack.c.l.b16 %v465
      %v489 = vunpack.c.l.b16 %v479
      %v490 = vpack.c.b16 %v483, %v482
      %v491 = vpack.c.b16 %v485, %v484
      %v492 = vpack.c.b16 %v487, %v486
      %v493 = vpack.c.b16 %v489, %v488
      %vm494 = vcmask 64512
      %v496 = vsel %vm494, %v490, 0
      %v499 = vsel %vm494, %v491, 0
      %v502 = vsel %vm494, %v492, 0
      %v505 = vsel %vm494, %v493, 0
      %vm507 = vcmask 1043456
      %v509 = vsel %vm507, %v481, 0
      %511 = vmatpush.bf16.msra.mxu0 0
      %512 = vmatpush.bf16.msra.mxu0 0
      %513 = vmatpush.bf16.msra.mxu0 0
      %514 = vmatpush.bf16.msra.mxu0 0
      %515 = vmatpush.bf16.msra.mxu0 0
      %516 = vmatpush.bf16.msra.mxu0 0
      %517 = vmatpush.bf16.msra.mxu0 0
      %518 = vmatpush.bf16.msra.mxu0 %v509
      %519 = vmatmul.bf16.gmra.mxu0 %v496
      %v520 = vpop.f32.mrf.mxu0
      %v521 = vadd.f32 0.0, %v520
      %v522 = vpop.f32.mrf.mxu0
      %v523 = vadd.f32 0.0, %v522
      %524 = vmatmul.bf16.gmra.mxu0 %v499
      %v525 = vpop.f32.mrf.mxu0
      %v526 = vadd.f32 0.0, %v525
      %v527 = vpop.f32.mrf.mxu0
      %v528 = vadd.f32 0.0, %v527
      %529 = vmatmul.bf16.gmra.mxu0 %v502
      %v530 = vpop.f32.mrf.mxu0
      %v531 = vadd.f32 0.0, %v530
      %v532 = vpop.f32.mrf.mxu0
      %v533 = vadd.f32 0.0, %v532
      %534 = vmatmul.bf16.gmra.mxu0 %v505
      %v535 = vpop.f32.mrf.mxu0
      %v536 = vadd.f32 0.0, %v535
      %v537 = vpop.f32.mrf.mxu0
      %v538 = vadd.f32 0.0, %v537
      %539 = vdwg.mxu0
      %v548 = vunpack.c.l.b16 %v344
      %v549 = vunpack.c.l.b16 %v346
      %v550 = vunpack.c.l.b16 %v348
      %v551 = vunpack.c.l.b16 %v350
      %v552 = vunpack.c.l.b16 %v352
      %v553 = vunpack.c.l.b16 %v354
      %v554 = vunpack.c.l.b16 %v356
      %v555 = vunpack.c.l.b16 %v358
      %v556 = vpack.c.b16 %v549, %v548
      %v557 = vpack.c.b16 %v551, %v550
      %v558 = vpack.c.b16 %v553, %v552
      %v559 = vpack.c.b16 %v555, %v554
      %v561 = vsel %vm494, %v556, 0
      %v564 = vsel %vm494, %v557, 0
      %v567 = vsel %vm494, %v558, 0
      %v570 = vsel %vm494, %v559, 0
      %v573 = vsel %vm507, %v364, 0
      %575 = vmatpush.bf16.msra.mxu0 0
      %576 = vmatpush.bf16.msra.mxu0 0
      %577 = vmatpush.bf16.msra.mxu0 0
      %578 = vmatpush.bf16.msra.mxu0 0
      %579 = vmatpush.bf16.msra.mxu0 0
      %580 = vmatpush.bf16.msra.mxu0 0
      %581 = vmatpush.bf16.msra.mxu0 0
      %582 = vmatpush.bf16.msra.mxu0 %v573
      %583 = vmatmul.bf16.gmra.mxu0 %v561
      %v584 = vpop.f32.mrf.mxu0
      %v585 = vadd.f32 %v521, %v584
      %v586 = vpop.f32.mrf.mxu0
      %v587 = vadd.f32 %v523, %v586
      %588 = vmatmul.bf16.gmra.mxu0 %v564
      %v589 = vpop.f32.mrf.mxu0
      %v590 = vadd.f32 %v526, %v589
      %v591 = vpop.f32.mrf.mxu0
      %v592 = vadd.f32 %v528, %v591
      %593 = vmatmul.bf16.gmra.mxu0 %v567
      %v594 = vpop.f32.mrf.mxu0
      %v595 = vadd.f32 %v531, %v594
      %v596 = vpop.f32.mrf.mxu0
      %v597 = vadd.f32 %v533, %v596
      %598 = vmatmul.bf16.gmra.mxu0 %v570
      %v599 = vpop.f32.mrf.mxu0
      %v600 = vadd.f32 %v536, %v599
      %v601 = vpop.f32.mrf.mxu0
      %v602 = vadd.f32 %v538, %v601
      %603 = vdwg.mxu0
      %vm612 = vcmask 1042432
      %vm613 = vcmask 1046532
      %vm614 = vmor %vm612, %vm613
      %v615 = vrot.slane %v344, 5
      %v616 = vrot.slane %v615, 4
      %v617 = vrot.slane %v345, 5
      %v618 = vsel %vm614, %v616, %v617
      %v619 = vrot.slane %v346, 5
      %v620 = vrot.slane %v619, 4
      %v621 = vrot.slane %v347, 5
      %v622 = vsel %vm614, %v620, %v621
      %v623 = vrot.slane %v348, 5
      %v624 = vrot.slane %v623, 4
      %v625 = vrot.slane %v349, 5
      %v626 = vsel %vm614, %v624, %v625
      %v627 = vrot.slane %v350, 5
      %v628 = vrot.slane %v627, 4
      %v629 = vrot.slane %v351, 5
      %v630 = vsel %vm614, %v628, %v629
      %v631 = vrot.slane %v352, 5
      %v632 = vrot.slane %v631, 4
      %v633 = vrot.slane %v353, 5
      %v634 = vsel %vm614, %v632, %v633
      %v635 = vrot.slane %v354, 5
      %v636 = vrot.slane %v635, 4
      %v637 = vrot.slane %v355, 5
      %v638 = vsel %vm614, %v636, %v637
      %v639 = vrot.slane %v356, 5
      %v640 = vrot.slane %v639, 4
      %v641 = vrot.slane %v357, 5
      %v642 = vsel %vm614, %v640, %v641
      %v643 = vrot.slane %v358, 5
      %v644 = vrot.slane %v643, 4
      %v645 = vrot.slane %v359, 5
      %v646 = vsel %vm614, %v644, %v645
      %s647 = scalar_lea.vmem %s3, 8
      %v648 = vld [vmem:[%s647] sm:$0xf]
      %v649 = vunpack.c.l.b16 %v618
      %v650 = vunpack.c.l.b16 %v622
      %v651 = vunpack.c.l.b16 %v626
      %v652 = vunpack.c.l.b16 %v630
      %v653 = vunpack.c.l.b16 %v634
      %v654 = vunpack.c.l.b16 %v638
      %v655 = vunpack.c.l.b16 %v642
      %v656 = vunpack.c.l.b16 %v646
      %v657 = vpack.c.b16 %v650, %v649
      %v658 = vpack.c.b16 %v652, %v651
      %v659 = vpack.c.b16 %v654, %v653
      %v660 = vpack.c.b16 %v656, %v655
      %v662 = vsel %vm494, %v657, 0
      %v665 = vsel %vm494, %v658, 0
      %v668 = vsel %vm494, %v659, 0
      %v671 = vsel %vm494, %v660, 0
      %v674 = vsel %vm507, %v648, 0
      %676 = vmatpush.bf16.msra.mxu0 0
      %677 = vmatpush.bf16.msra.mxu0 0
      %678 = vmatpush.bf16.msra.mxu0 0
      %679 = vmatpush.bf16.msra.mxu0 0
      %680 = vmatpush.bf16.msra.mxu0 0
      %681 = vmatpush.bf16.msra.mxu0 0
      %682 = vmatpush.bf16.msra.mxu0 0
      %683 = vmatpush.bf16.msra.mxu0 %v674
      %684 = vmatmul.bf16.gmra.mxu0 %v662
      %v685 = vpop.f32.mrf.mxu0
      %v686 = vadd.f32 0.0, %v685
      %v687 = vpop.f32.mrf.mxu0
      %v688 = vadd.f32 0.0, %v687
      %689 = vmatmul.bf16.gmra.mxu0 %v665
      %v690 = vpop.f32.mrf.mxu0
      %v691 = vadd.f32 0.0, %v690
      %v692 = vpop.f32.mrf.mxu0
      %v693 = vadd.f32 0.0, %v692
      %694 = vmatmul.bf16.gmra.mxu0 %v668
      %v695 = vpop.f32.mrf.mxu0
      %v696 = vadd.f32 0.0, %v695
      %v697 = vpop.f32.mrf.mxu0
      %v698 = vadd.f32 0.0, %v697
      %699 = vmatmul.bf16.gmra.mxu0 %v671
      %v700 = vpop.f32.mrf.mxu0
      %v701 = vadd.f32 0.0, %v700
      %v702 = vpop.f32.mrf.mxu0
      %v703 = vadd.f32 0.0, %v702
      %704 = vdwg.mxu0
      %v705 = vadd.f32 %v585, %v686
      %v706 = vadd.f32 %v587, %v688
      %v707 = vadd.f32 %v590, %v691
      %v708 = vadd.f32 %v592, %v693
      %v709 = vadd.f32 %v595, %v696
      %v710 = vadd.f32 %v597, %v698
      %v711 = vadd.f32 %v600, %v701
      %v712 = vadd.f32 %v602, %v703
      %s713 = scalar_lea.vmem %s3, 12
      %v714 = vld [vmem:[%s713] sm:$0xf]
      %v716 = vunpack.c.l.b16 %v360
      %v717 = vpack.c.b16 %v550, %v549
      %v718 = vpack.c.b16 %v552, %v551
      %v719 = vpack.c.b16 %v554, %v553
      %v720 = vpack.c.b16 %v716, %v555
      %v722 = vsel %vm494, %v717, 0
      %v725 = vsel %vm494, %v718, 0
      %v728 = vsel %vm494, %v719, 0
      %v731 = vsel %vm494, %v720, 0
      %v734 = vsel %vm507, %v714, 0
      %736 = vmatpush.bf16.msra.mxu0 0
      %737 = vmatpush.bf16.msra.mxu0 0
      %738 = vmatpush.bf16.msra.mxu0 0
      %739 = vmatpush.bf16.msra.mxu0 0
      %740 = vmatpush.bf16.msra.mxu0 0
      %741 = vmatpush.bf16.msra.mxu0 0
      %742 = vmatpush.bf16.msra.mxu0 0
      %743 = vmatpush.bf16.msra.mxu0 %v734
      %744 = vmatmul.bf16.gmra.mxu0 %v722
      %v745 = vpop.f32.mrf.mxu0
      %v746 = vadd.f32 0.0, %v745
      %v747 = vpop.f32.mrf.mxu0
      %v748 = vadd.f32 0.0, %v747
      %749 = vmatmul.bf16.gmra.mxu0 %v725
      %v750 = vpop.f32.mrf.mxu0
      %v751 = vadd.f32 0.0, %v750
      %v752 = vpop.f32.mrf.mxu0
      %v753 = vadd.f32 0.0, %v752
      %754 = vmatmul.bf16.gmra.mxu0 %v728
      %v755 = vpop.f32.mrf.mxu0
      %v756 = vadd.f32 0.0, %v755
      %v757 = vpop.f32.mrf.mxu0
      %v758 = vadd.f32 0.0, %v757
      %759 = vmatmul.bf16.gmra.mxu0 %v731
      %v760 = vpop.f32.mrf.mxu0
      %v761 = vadd.f32 0.0, %v760
      %v762 = vpop.f32.mrf.mxu0
      %v763 = vadd.f32 0.0, %v762
      %764 = vdwg.mxu0
      %v765 = vadd.f32 %v705, %v746
      %v766 = vadd.f32 %v706, %v748
      %v767 = vadd.f32 %v707, %v751
      %v768 = vadd.f32 %v708, %v753
      %v769 = vadd.f32 %v709, %v756
      %v770 = vadd.f32 %v710, %v758
      %v771 = vadd.f32 %v711, %v761
      %v772 = vadd.f32 %v712, %v763
      %v774 = vshrl.u32 %v360, 16
      %v776 = vrot.slane %v774, 4
      %v777 = vshll.u32 %v360, 16
      %v779 = vrot.slane %v777, 5
      %v780 = vor.u32 %v776, %v779
      %v781 = vrot.slane %v780, 4
      %v783 = vshll.u32 %v361, 16
      %v785 = vrot.slane %v783, 5
      %v786 = vsel %vm367, %v781, %v785
      %s787 = scalar_lea.vmem %s3, 16
      %v788 = vld [vmem:[%s787] sm:$0xf]
      %v789 = vunpack.c.l.b16 %v786
      %v790 = vpack.c.b16 %v484, %v483
      %v791 = vpack.c.b16 %v486, %v485
      %v792 = vpack.c.b16 %v488, %v487
      %v793 = vpack.c.b16 %v789, %v489
      %v795 = vsel %vm494, %v790, 0
      %v798 = vsel %vm494, %v791, 0
      %v801 = vsel %vm494, %v792, 0
      %v804 = vsel %vm494, %v793, 0
      %v807 = vsel %vm507, %v788, 0
      %809 = vmatpush.bf16.msra.mxu0 0
      %810 = vmatpush.bf16.msra.mxu0 0
      %811 = vmatpush.bf16.msra.mxu0 0
      %812 = vmatpush.bf16.msra.mxu0 0
      %813 = vmatpush.bf16.msra.mxu0 0
      %814 = vmatpush.bf16.msra.mxu0 0
      %815 = vmatpush.bf16.msra.mxu0 0
      %816 = vmatpush.bf16.msra.mxu0 %v807
      %817 = vmatmul.bf16.gmra.mxu0 %v795
      %v818 = vpop.f32.mrf.mxu0
      %v819 = vadd.f32 0.0, %v818
      %v820 = vpop.f32.mrf.mxu0
      %v821 = vadd.f32 0.0, %v820
      %822 = vmatmul.bf16.gmra.mxu0 %v798
      %v823 = vpop.f32.mrf.mxu0
      %v824 = vadd.f32 0.0, %v823
      %v825 = vpop.f32.mrf.mxu0
      %v826 = vadd.f32 0.0, %v825
      %827 = vmatmul.bf16.gmra.mxu0 %v801
      %v828 = vpop.f32.mrf.mxu0
      %v829 = vadd.f32 0.0, %v828
      %v830 = vpop.f32.mrf.mxu0
      %v831 = vadd.f32 0.0, %v830
      %832 = vmatmul.bf16.gmra.mxu0 %v804
      %v833 = vpop.f32.mrf.mxu0
      %v834 = vadd.f32 0.0, %v833
      %v835 = vpop.f32.mrf.mxu0
      %v836 = vadd.f32 0.0, %v835
      %837 = vdwg.mxu0
      %v838 = vadd.f32 %v765, %v819
      %v839 = vadd.f32 %v766, %v821
      %v840 = vadd.f32 %v767, %v824
      %v841 = vadd.f32 %v768, %v826
      %v842 = vadd.f32 %v769, %v829
      %v843 = vadd.f32 %v770, %v831
      %v844 = vadd.f32 %v771, %v834
      %v845 = vadd.f32 %v772, %v836
      %v847 = vrot.slane %v360, 5
      %v848 = vrot.slane %v847, 4
      %v849 = vrot.slane %v361, 5
      %v850 = vsel %vm614, %v848, %v849
      %s851 = scalar_lea.vmem %s3, 20
      %v852 = vld [vmem:[%s851] sm:$0xf]
      %v853 = vunpack.c.l.b16 %v850
      %v854 = vpack.c.b16 %v651, %v650
      %v855 = vpack.c.b16 %v653, %v652
      %v856 = vpack.c.b16 %v655, %v654
      %v857 = vpack.c.b16 %v853, %v656
      %v859 = vsel %vm494, %v854, 0
      %v862 = vsel %vm494, %v855, 0
      %v865 = vsel %vm494, %v856, 0
      %v868 = vsel %vm494, %v857, 0
      %v871 = vsel %vm507, %v852, 0
      %873 = vmatpush.bf16.msra.mxu0 0
      %874 = vmatpush.bf16.msra.mxu0 0
      %875 = vmatpush.bf16.msra.mxu0 0
      %876 = vmatpush.bf16.msra.mxu0 0
      %877 = vmatpush.bf16.msra.mxu0 0
      %878 = vmatpush.bf16.msra.mxu0 0
      %879 = vmatpush.bf16.msra.mxu0 0
      %880 = vmatpush.bf16.msra.mxu0 %v871
      %881 = vmatmul.bf16.gmra.mxu0 %v859
      %v882 = vpop.f32.mrf.mxu0
      %v883 = vadd.f32 0.0, %v882
      %v884 = vpop.f32.mrf.mxu0
      %v885 = vadd.f32 0.0, %v884
      %886 = vmatmul.bf16.gmra.mxu0 %v862
      %v887 = vpop.f32.mrf.mxu0
      %v888 = vadd.f32 0.0, %v887
      %v889 = vpop.f32.mrf.mxu0
      %v890 = vadd.f32 0.0, %v889
      %891 = vmatmul.bf16.gmra.mxu0 %v865
      %v892 = vpop.f32.mrf.mxu0
      %v893 = vadd.f32 0.0, %v892
      %v894 = vpop.f32.mrf.mxu0
      %v895 = vadd.f32 0.0, %v894
      %896 = vmatmul.bf16.gmra.mxu0 %v868
      %v897 = vpop.f32.mrf.mxu0
      %v898 = vadd.f32 0.0, %v897
      %v899 = vpop.f32.mrf.mxu0
      %v900 = vadd.f32 0.0, %v899
      %901 = vdwg.mxu0
      %v902 = vadd.f32 %v838, %v883
      %v903 = vadd.f32 %v839, %v885
      %v904 = vadd.f32 %v840, %v888
      %v905 = vadd.f32 %v841, %v890
      %v906 = vadd.f32 %v842, %v893
      %v907 = vadd.f32 %v843, %v895
      %v908 = vadd.f32 %v844, %v898
      %v909 = vadd.f32 %v845, %v900
      %s910 = scalar_lea.vmem %s3, 24
      %v911 = vld [vmem:[%s910] sm:$0xf]
      %v913 = vunpack.c.l.b16 %v362
      %v914 = vpack.c.b16 %v913, %v716
      %v916 = vsel %vm494, %v914, 0
      %v919 = vsel %vm507, %v911, 0
      %921 = vmatpush.bf16.msra.mxu0 0
      %922 = vmatpush.bf16.msra.mxu0 0
      %923 = vmatpush.bf16.msra.mxu0 0
      %924 = vmatpush.bf16.msra.mxu0 0
      %925 = vmatpush.bf16.msra.mxu0 0
      %926 = vmatpush.bf16.msra.mxu0 0
      %927 = vmatpush.bf16.msra.mxu0 0
      %928 = vmatpush.bf16.msra.mxu0 %v919
      %929 = vmatmul.bf16.gmra.mxu0 %v564
      %v930 = vpop.f32.mrf.mxu0
      %v931 = vadd.f32 0.0, %v930
      %v932 = vpop.f32.mrf.mxu0
      %v933 = vadd.f32 0.0, %v932
      %934 = vmatmul.bf16.gmra.mxu0 %v567
      %v935 = vpop.f32.mrf.mxu0
      %v936 = vadd.f32 0.0, %v935
      %v937 = vpop.f32.mrf.mxu0
      %v938 = vadd.f32 0.0, %v937
      %939 = vmatmul.bf16.gmra.mxu0 %v570
      %v940 = vpop.f32.mrf.mxu0
      %v941 = vadd.f32 0.0, %v940
      %v942 = vpop.f32.mrf.mxu0
      %v943 = vadd.f32 0.0, %v942
      %944 = vmatmul.bf16.gmra.mxu0 %v916
      %v945 = vpop.f32.mrf.mxu0
      %v946 = vadd.f32 0.0, %v945
      %v947 = vpop.f32.mrf.mxu0
      %v948 = vadd.f32 0.0, %v947
      %949 = vdwg.mxu0
      %v950 = vadd.f32 %v902, %v931
      %v951 = vadd.f32 %v903, %v933
      %v952 = vadd.f32 %v904, %v936
      %v953 = vadd.f32 %v905, %v938
      %v954 = vadd.f32 %v906, %v941
      %v955 = vadd.f32 %v907, %v943
      %v956 = vadd.f32 %v908, %v946
      %v957 = vadd.f32 %v909, %v948
      %v959 = vshrl.u32 %v362, 16
      %v961 = vrot.slane %v959, 4
      %v962 = vshll.u32 %v362, 16
      %v964 = vrot.slane %v962, 5
      %v965 = vor.u32 %v961, %v964
      %v966 = vrot.slane %v965, 4
      %v968 = vshll.u32 %v363, 16
      %v970 = vrot.slane %v968, 5
      %v971 = vsel %vm367, %v966, %v970
      %s972 = scalar_lea.vmem %s3, 28
      %v973 = vld [vmem:[%s972] sm:$0xf]
      %v974 = vunpack.c.l.b16 %v971
      %v975 = vpack.c.b16 %v974, %v789
      %v977 = vsel %vm494, %v975, 0
      %v980 = vsel %vm507, %v973, 0
      %982 = vmatpush.bf16.msra.mxu0 0
      %983 = vmatpush.bf16.msra.mxu0 0
      %984 = vmatpush.bf16.msra.mxu0 0
      %985 = vmatpush.bf16.msra.mxu0 0
      %986 = vmatpush.bf16.msra.mxu0 0
      %987 = vmatpush.bf16.msra.mxu0 0
      %988 = vmatpush.bf16.msra.mxu0 0
      %989 = vmatpush.bf16.msra.mxu0 %v980
      %990 = vmatmul.bf16.gmra.mxu0 %v499
      %v991 = vpop.f32.mrf.mxu0
      %v992 = vadd.f32 0.0, %v991
      %v993 = vpop.f32.mrf.mxu0
      %v994 = vadd.f32 0.0, %v993
      %995 = vmatmul.bf16.gmra.mxu0 %v502
      %v996 = vpop.f32.mrf.mxu0
      %v997 = vadd.f32 0.0, %v996
      %v998 = vpop.f32.mrf.mxu0
      %v999 = vadd.f32 0.0, %v998
      %1000 = vmatmul.bf16.gmra.mxu0 %v505
      %v1001 = vpop.f32.mrf.mxu0
      %v1002 = vadd.f32 0.0, %v1001
      %v1003 = vpop.f32.mrf.mxu0
      %v1004 = vadd.f32 0.0, %v1003
      %1005 = vmatmul.bf16.gmra.mxu0 %v977
      %v1006 = vpop.f32.mrf.mxu0
      %v1007 = vadd.f32 0.0, %v1006
      %v1008 = vpop.f32.mrf.mxu0
      %v1009 = vadd.f32 0.0, %v1008
      %1010 = vdwg.mxu0
      %v1011 = vadd.f32 %v950, %v992
      %v1012 = vadd.f32 %v951, %v994
      %v1013 = vadd.f32 %v952, %v997
      %v1014 = vadd.f32 %v953, %v999
      %v1015 = vadd.f32 %v954, %v1002
      %v1016 = vadd.f32 %v955, %v1004
      %v1017 = vadd.f32 %v956, %v1007
      %v1018 = vadd.f32 %v957, %v1009
      %v1020 = vrot.slane %v362, 5
      %v1021 = vrot.slane %v1020, 4
      %v1022 = vrot.slane %v363, 5
      %v1023 = vsel %vm614, %v1021, %v1022
      %s1024 = scalar_lea.vmem %s3, 32
      %v1025 = vld [vmem:[%s1024] sm:$0xf]
      %v1026 = vunpack.c.l.b16 %v1023
      %v1027 = vpack.c.b16 %v1026, %v853
      %v1029 = vsel %vm494, %v1027, 0
      %v1032 = vsel %vm507, %v1025, 0
      %1034 = vmatpush.bf16.msra.mxu0 0
      %1035 = vmatpush.bf16.msra.mxu0 0
      %1036 = vmatpush.bf16.msra.mxu0 0
      %1037 = vmatpush.bf16.msra.mxu0 0
      %1038 = vmatpush.bf16.msra.mxu0 0
      %1039 = vmatpush.bf16.msra.mxu0 0
      %1040 = vmatpush.bf16.msra.mxu0 0
      %1041 = vmatpush.bf16.msra.mxu0 %v1032
      %1042 = vmatmul.bf16.gmra.mxu0 %v665
      %v1043 = vpop.f32.mrf.mxu0
      %v1044 = vadd.f32 0.0, %v1043
      %v1045 = vpop.f32.mrf.mxu0
      %v1046 = vadd.f32 0.0, %v1045
      %1047 = vmatmul.bf16.gmra.mxu0 %v668
      %v1048 = vpop.f32.mrf.mxu0
      %v1049 = vadd.f32 0.0, %v1048
      %v1050 = vpop.f32.mrf.mxu0
      %v1051 = vadd.f32 0.0, %v1050
      %1052 = vmatmul.bf16.gmra.mxu0 %v671
      %v1053 = vpop.f32.mrf.mxu0
      %v1054 = vadd.f32 0.0, %v1053
      %v1055 = vpop.f32.mrf.mxu0
      %v1056 = vadd.f32 0.0, %v1055
      %1057 = vmatmul.bf16.gmra.mxu0 %v1029
      %v1058 = vpop.f32.mrf.mxu0
      %v1059 = vadd.f32 0.0, %v1058
      %v1060 = vpop.f32.mrf.mxu0
      %v1061 = vadd.f32 0.0, %v1060
      %1062 = vdwg.mxu0
      %v1063 = vadd.f32 %v1011, %v1044
      %v1064 = vadd.f32 %v1012, %v1046
      %v1065 = vadd.f32 %v1013, %v1049
      %v1066 = vadd.f32 %v1014, %v1051
      %v1067 = vadd.f32 %v1015, %v1054
      %v1068 = vadd.f32 %v1016, %v1056
      %v1069 = vadd.f32 %v1017, %v1059
      %v1070 = vadd.f32 %v1018, %v1061
      %v1071 = vld [vmem:[%s321] sm:$0xf]
      %v1072 = vld [vmem:[%s321 + $0x4] sm:$0x1]
      %v1073 = vld [vmem:[%s321 + $0x8] sm:$0xf]
      %v1074 = vld [vmem:[%s321 + $0xc] sm:$0x1]
      %v1075 = vld [vmem:[%s321 + $0x10] sm:$0xf]
      %v1076 = vld [vmem:[%s321 + $0x14] sm:$0x1]
      %v1077 = vld [vmem:[%s321 + $0x18] sm:$0xf]
      %v1078 = vld [vmem:[%s321 + $0x1c] sm:$0x1]
      %v1079 = vld [vmem:[%s321 + $0x20] sm:$0xf]
      %v1080 = vld [vmem:[%s321 + $0x24] sm:$0x1]
      %v1081 = vld [vmem:[%s321 + $0x28] sm:$0xf]
      %v1082 = vld [vmem:[%s321 + $0x2c] sm:$0x1]
      %v1083 = vld [vmem:[%s321 + $0x30] sm:$0xf]
      %v1084 = vld [vmem:[%s321 + $0x34] sm:$0x1]
      %v1085 = vld [vmem:[%s321 + $0x38] sm:$0xf]
      %v1086 = vld [vmem:[%s321 + $0x3c] sm:$0x1]
      %v1087 = vld [vmem:[%s321 + $0x40] sm:$0xf]
      %v1088 = vld [vmem:[%s321 + $0x44] sm:$0x1]
      %v1089 = vld [vmem:[%s321 + $0x48] sm:$0xf]
      %v1090 = vld [vmem:[%s321 + $0x4c] sm:$0x1]
      %s1091 = scalar_lea.vmem %s3, 36
      %v1092 = vld [vmem:[%s1091] sm:$0xf]
      %v1101 = vunpack.c.l.b16 %v1071
      %v1102 = vunpack.c.l.b16 %v1073
      %v1103 = vunpack.c.l.b16 %v1075
      %v1104 = vunpack.c.l.b16 %v1077
      %v1105 = vunpack.c.l.b16 %v1079
      %v1106 = vunpack.c.l.b16 %v1081
      %v1107 = vunpack.c.l.b16 %v1083
      %v1108 = vunpack.c.l.b16 %v1085
      %v1109 = vpack.c.b16 %v1102, %v1101
      %v1110 = vpack.c.b16 %v1104, %v1103
      %v1111 = vpack.c.b16 %v1106, %v1105
      %v1112 = vpack.c.b16 %v1108, %v1107
      %v1114 = vsel %vm494, %v1109, 0
      %v1117 = vsel %vm494, %v1110, 0
      %v1120 = vsel %vm494, %v1111, 0
      %v1123 = vsel %vm494, %v1112, 0
      %v1126 = vsel %vm507, %v1092, 0
      %1128 = vmatpush.bf16.msra.mxu0 0
      %1129 = vmatpush.bf16.msra.mxu0 0
      %1130 = vmatpush.bf16.msra.mxu0 0
      %1131 = vmatpush.bf16.msra.mxu0 0
      %1132 = vmatpush.bf16.msra.mxu0 0
      %1133 = vmatpush.bf16.msra.mxu0 0
      %1134 = vmatpush.bf16.msra.mxu0 0
      %1135 = vmatpush.bf16.msra.mxu0 %v1126
      %1136 = vmatmul.bf16.gmra.mxu0 %v1114
      %v1137 = vpop.f32.mrf.mxu0
      %v1138 = vadd.f32 0.0, %v1137
      %v1139 = vpop.f32.mrf.mxu0
      %v1140 = vadd.f32 0.0, %v1139
      %1141 = vmatmul.bf16.gmra.mxu0 %v1117
      %v1142 = vpop.f32.mrf.mxu0
      %v1143 = vadd.f32 0.0, %v1142
      %v1144 = vpop.f32.mrf.mxu0
      %v1145 = vadd.f32 0.0, %v1144
      %1146 = vmatmul.bf16.gmra.mxu0 %v1120
      %v1147 = vpop.f32.mrf.mxu0
      %v1148 = vadd.f32 0.0, %v1147
      %v1149 = vpop.f32.mrf.mxu0
      %v1150 = vadd.f32 0.0, %v1149
      %1151 = vmatmul.bf16.gmra.mxu0 %v1123
      %v1152 = vpop.f32.mrf.mxu0
      %v1153 = vadd.f32 0.0, %v1152
      %v1154 = vpop.f32.mrf.mxu0
      %v1155 = vadd.f32 0.0, %v1154
      %1156 = vdwg.mxu0
      %v1157 = vadd.f32 %v1063, %v1138
      %v1158 = vadd.f32 %v1064, %v1140
      %v1159 = vadd.f32 %v1065, %v1143
      %v1160 = vadd.f32 %v1066, %v1145
      %v1161 = vadd.f32 %v1067, %v1148
      %v1162 = vadd.f32 %v1068, %v1150
      %v1163 = vadd.f32 %v1069, %v1153
      %v1164 = vadd.f32 %v1070, %v1155
      %v1166 = vshrl.u32 %v1071, 16
      %v1168 = vrot.slane %v1166, 4
      %v1169 = vshll.u32 %v1071, 16
      %v1171 = vrot.slane %v1169, 5
      %v1172 = vor.u32 %v1168, %v1171
      %v1173 = vrot.slane %v1172, 4
      %v1175 = vshll.u32 %v1072, 16
      %v1177 = vrot.slane %v1175, 5
      %v1178 = vsel %vm367, %v1173, %v1177
      %v1180 = vshrl.u32 %v1073, 16
      %v1182 = vrot.slane %v1180, 4
      %v1183 = vshll.u32 %v1073, 16
      %v1185 = vrot.slane %v1183, 5
      %v1186 = vor.u32 %v1182, %v1185
      %v1187 = vrot.slane %v1186, 4
      %v1189 = vshll.u32 %v1074, 16
      %v1191 = vrot.slane %v1189, 5
      %v1192 = vsel %vm367, %v1187, %v1191
      %v1194 = vshrl.u32 %v1075, 16
      %v1196 = vrot.slane %v1194, 4
      %v1197 = vshll.u32 %v1075, 16
      %v1199 = vrot.slane %v1197, 5
      %v1200 = vor.u32 %v1196, %v1199
      %v1201 = vrot.slane %v1200, 4
      %v1203 = vshll.u32 %v1076, 16
      %v1205 = vrot.slane %v1203, 5
      %v1206 = vsel %vm367, %v1201, %v1205
      %v1208 = vshrl.u32 %v1077, 16
      %v1210 = vrot.slane %v1208, 4
      %v1211 = vshll.u32 %v1077, 16
      %v1213 = vrot.slane %v1211, 5
      %v1214 = vor.u32 %v1210, %v1213
      %v1215 = vrot.slane %v1214, 4
      %v1217 = vshll.u32 %v1078, 16
      %v1219 = vrot.slane %v1217, 5
      %v1220 = vsel %vm367, %v1215, %v1219
      %v1222 = vshrl.u32 %v1079, 16
      %v1224 = vrot.slane %v1222, 4
      %v1225 = vshll.u32 %v1079, 16
      %v1227 = vrot.slane %v1225, 5
      %v1228 = vor.u32 %v1224, %v1227
      %v1229 = vrot.slane %v1228, 4
      %v1231 = vshll.u32 %v1080, 16
      %v1233 = vrot.slane %v1231, 5
      %v1234 = vsel %vm367, %v1229, %v1233
      %v1236 = vshrl.u32 %v1081, 16
      %v1238 = vrot.slane %v1236, 4
      %v1239 = vshll.u32 %v1081, 16
      %v1241 = vrot.slane %v1239, 5
      %v1242 = vor.u32 %v1238, %v1241
      %v1243 = vrot.slane %v1242, 4
      %v1245 = vshll.u32 %v1082, 16
      %v1247 = vrot.slane %v1245, 5
      %v1248 = vsel %vm367, %v1243, %v1247
      %v1250 = vshrl.u32 %v1083, 16
      %v1252 = vrot.slane %v1250, 4
      %v1253 = vshll.u32 %v1083, 16
      %v1255 = vrot.slane %v1253, 5
      %v1256 = vor.u32 %v1252, %v1255
      %v1257 = vrot.slane %v1256, 4
      %v1259 = vshll.u32 %v1084, 16
      %v1261 = vrot.slane %v1259, 5
      %v1262 = vsel %vm367, %v1257, %v1261
      %v1264 = vshrl.u32 %v1085, 16
      %v1266 = vrot.slane %v1264, 4
      %v1267 = vshll.u32 %v1085, 16
      %v1269 = vrot.slane %v1267, 5
      %v1270 = vor.u32 %v1266, %v1269
      %v1271 = vrot.slane %v1270, 4
      %v1273 = vshll.u32 %v1086, 16
      %v1275 = vrot.slane %v1273, 5
      %v1276 = vsel %vm367, %v1271, %v1275
      %s1277 = scalar_lea.vmem %s3, 40
      %v1278 = vld [vmem:[%s1277] sm:$0xf]
      %v1279 = vunpack.c.l.b16 %v1178
      %v1280 = vunpack.c.l.b16 %v1192
      %v1281 = vunpack.c.l.b16 %v1206
      %v1282 = vunpack.c.l.b16 %v1220
      %v1283 = vunpack.c.l.b16 %v1234
      %v1284 = vunpack.c.l.b16 %v1248
      %v1285 = vunpack.c.l.b16 %v1262
      %v1286 = vunpack.c.l.b16 %v1276
      %v1287 = vpack.c.b16 %v1280, %v1279
      %v1288 = vpack.c.b16 %v1282, %v1281
      %v1289 = vpack.c.b16 %v1284, %v1283
      %v1290 = vpack.c.b16 %v1286, %v1285
      %v1292 = vsel %vm494, %v1287, 0
      %v1295 = vsel %vm494, %v1288, 0
      %v1298 = vsel %vm494, %v1289, 0
      %v1301 = vsel %vm494, %v1290, 0
      %v1304 = vsel %vm507, %v1278, 0
      %1306 = vmatpush.bf16.msra.mxu0 0
      %1307 = vmatpush.bf16.msra.mxu0 0
      %1308 = vmatpush.bf16.msra.mxu0 0
      %1309 = vmatpush.bf16.msra.mxu0 0
      %1310 = vmatpush.bf16.msra.mxu0 0
      %1311 = vmatpush.bf16.msra.mxu0 0
      %1312 = vmatpush.bf16.msra.mxu0 0
      %1313 = vmatpush.bf16.msra.mxu0 %v1304
      %1314 = vmatmul.bf16.gmra.mxu0 %v1292
      %v1315 = vpop.f32.mrf.mxu0
      %v1316 = vadd.f32 0.0, %v1315
      %v1317 = vpop.f32.mrf.mxu0
      %v1318 = vadd.f32 0.0, %v1317
      %1319 = vmatmul.bf16.gmra.mxu0 %v1295
      %v1320 = vpop.f32.mrf.mxu0
      %v1321 = vadd.f32 0.0, %v1320
      %v1322 = vpop.f32.mrf.mxu0
      %v1323 = vadd.f32 0.0, %v1322
      %1324 = vmatmul.bf16.gmra.mxu0 %v1298
      %v1325 = vpop.f32.mrf.mxu0
      %v1326 = vadd.f32 0.0, %v1325
      %v1327 = vpop.f32.mrf.mxu0
      %v1328 = vadd.f32 0.0, %v1327
      %1329 = vmatmul.bf16.gmra.mxu0 %v1301
      %v1330 = vpop.f32.mrf.mxu0
      %v1331 = vadd.f32 0.0, %v1330
      %v1332 = vpop.f32.mrf.mxu0
      %v1333 = vadd.f32 0.0, %v1332
      %1334 = vdwg.mxu0
      %v1335 = vadd.f32 %v1157, %v1316
      %v1336 = vadd.f32 %v1158, %v1318
      %v1337 = vadd.f32 %v1159, %v1321
      %v1338 = vadd.f32 %v1160, %v1323
      %v1339 = vadd.f32 %v1161, %v1326
      %v1340 = vadd.f32 %v1162, %v1328
      %v1341 = vadd.f32 %v1163, %v1331
      %v1342 = vadd.f32 %v1164, %v1333
      %v1351 = vrot.slane %v1071, 5
      %v1352 = vrot.slane %v1351, 4
      %v1353 = vrot.slane %v1072, 5
      %v1354 = vsel %vm614, %v1352, %v1353
      %v1355 = vrot.slane %v1073, 5
      %v1356 = vrot.slane %v1355, 4
      %v1357 = vrot.slane %v1074, 5
      %v1358 = vsel %vm614, %v1356, %v1357
      %v1359 = vrot.slane %v1075, 5
      %v1360 = vrot.slane %v1359, 4
      %v1361 = vrot.slane %v1076, 5
      %v1362 = vsel %vm614, %v1360, %v1361
      %v1363 = vrot.slane %v1077, 5
      %v1364 = vrot.slane %v1363, 4
      %v1365 = vrot.slane %v1078, 5
      %v1366 = vsel %vm614, %v1364, %v1365
      %v1367 = vrot.slane %v1079, 5
      %v1368 = vrot.slane %v1367, 4
      %v1369 = vrot.slane %v1080, 5
      %v1370 = vsel %vm614, %v1368, %v1369
      %v1371 = vrot.slane %v1081, 5
      %v1372 = vrot.slane %v1371, 4
      %v1373 = vrot.slane %v1082, 5
      %v1374 = vsel %vm614, %v1372, %v1373
      %v1375 = vrot.slane %v1083, 5
      %v1376 = vrot.slane %v1375, 4
      %v1377 = vrot.slane %v1084, 5
      %v1378 = vsel %vm614, %v1376, %v1377
      %v1379 = vrot.slane %v1085, 5
      %v1380 = vrot.slane %v1379, 4
      %v1381 = vrot.slane %v1086, 5
      %v1382 = vsel %vm614, %v1380, %v1381
      %s1383 = scalar_lea.vmem %s3, 44
      %v1384 = vld [vmem:[%s1383] sm:$0xf]
      %v1385 = vunpack.c.l.b16 %v1354
      %v1386 = vunpack.c.l.b16 %v1358
      %v1387 = vunpack.c.l.b16 %v1362
      %v1388 = vunpack.c.l.b16 %v1366
      %v1389 = vunpack.c.l.b16 %v1370
      %v1390 = vunpack.c.l.b16 %v1374
      %v1391 = vunpack.c.l.b16 %v1378
      %v1392 = vunpack.c.l.b16 %v1382
      %v1393 = vpack.c.b16 %v1386, %v1385
      %v1394 = vpack.c.b16 %v1388, %v1387
      %v1395 = vpack.c.b16 %v1390, %v1389
      %v1396 = vpack.c.b16 %v1392, %v1391
      %v1398 = vsel %vm494, %v1393, 0
      %v1401 = vsel %vm494, %v1394, 0
      %v1404 = vsel %vm494, %v1395, 0
      %v1407 = vsel %vm494, %v1396, 0
      %v1410 = vsel %vm507, %v1384, 0
      %1412 = vmatpush.bf16.msra.mxu0 0
      %1413 = vmatpush.bf16.msra.mxu0 0
      %1414 = vmatpush.bf16.msra.mxu0 0
      %1415 = vmatpush.bf16.msra.mxu0 0
      %1416 = vmatpush.bf16.msra.mxu0 0
      %1417 = vmatpush.bf16.msra.mxu0 0
      %1418 = vmatpush.bf16.msra.mxu0 0
      %1419 = vmatpush.bf16.msra.mxu0 %v1410
      %1420 = vmatmul.bf16.gmra.mxu0 %v1398
      %v1421 = vpop.f32.mrf.mxu0
      %v1422 = vadd.f32 0.0, %v1421
      %v1423 = vpop.f32.mrf.mxu0
      %v1424 = vadd.f32 0.0, %v1423
      %1425 = vmatmul.bf16.gmra.mxu0 %v1401
      %v1426 = vpop.f32.mrf.mxu0
      %v1427 = vadd.f32 0.0, %v1426
      %v1428 = vpop.f32.mrf.mxu0
      %v1429 = vadd.f32 0.0, %v1428
      %1430 = vmatmul.bf16.gmra.mxu0 %v1404
      %v1431 = vpop.f32.mrf.mxu0
      %v1432 = vadd.f32 0.0, %v1431
      %v1433 = vpop.f32.mrf.mxu0
      %v1434 = vadd.f32 0.0, %v1433
      %1435 = vmatmul.bf16.gmra.mxu0 %v1407
      %v1436 = vpop.f32.mrf.mxu0
      %v1437 = vadd.f32 0.0, %v1436
      %v1438 = vpop.f32.mrf.mxu0
      %v1439 = vadd.f32 0.0, %v1438
      %1440 = vdwg.mxu0
      %v1441 = vadd.f32 %v1335, %v1422
      %v1442 = vadd.f32 %v1336, %v1424
      %v1443 = vadd.f32 %v1337, %v1427
      %v1444 = vadd.f32 %v1338, %v1429
      %v1445 = vadd.f32 %v1339, %v1432
      %v1446 = vadd.f32 %v1340, %v1434
      %v1447 = vadd.f32 %v1341, %v1437
      %v1448 = vadd.f32 %v1342, %v1439
      %s1449 = scalar_lea.vmem %s3, 48
      %v1450 = vld [vmem:[%s1449] sm:$0xf]
      %v1452 = vunpack.c.l.b16 %v1087
      %v1453 = vpack.c.b16 %v1103, %v1102
      %v1454 = vpack.c.b16 %v1105, %v1104
      %v1455 = vpack.c.b16 %v1107, %v1106
      %v1456 = vpack.c.b16 %v1452, %v1108
      %v1458 = vsel %vm494, %v1453, 0
      %v1461 = vsel %vm494, %v1454, 0
      %v1464 = vsel %vm494, %v1455, 0
      %v1467 = vsel %vm494, %v1456, 0
      %v1470 = vsel %vm507, %v1450, 0
      %1472 = vmatpush.bf16.msra.mxu0 0
      %1473 = vmatpush.bf16.msra.mxu0 0
      %1474 = vmatpush.bf16.msra.mxu0 0
      %1475 = vmatpush.bf16.msra.mxu0 0
      %1476 = vmatpush.bf16.msra.mxu0 0
      %1477 = vmatpush.bf16.msra.mxu0 0
      %1478 = vmatpush.bf16.msra.mxu0 0
      %1479 = vmatpush.bf16.msra.mxu0 %v1470
      %1480 = vmatmul.bf16.gmra.mxu0 %v1458
      %v1481 = vpop.f32.mrf.mxu0
      %v1482 = vadd.f32 0.0, %v1481
      %v1483 = vpop.f32.mrf.mxu0
      %v1484 = vadd.f32 0.0, %v1483
      %1485 = vmatmul.bf16.gmra.mxu0 %v1461
      %v1486 = vpop.f32.mrf.mxu0
      %v1487 = vadd.f32 0.0, %v1486
      %v1488 = vpop.f32.mrf.mxu0
      %v1489 = vadd.f32 0.0, %v1488
      %1490 = vmatmul.bf16.gmra.mxu0 %v1464
      %v1491 = vpop.f32.mrf.mxu0
      %v1492 = vadd.f32 0.0, %v1491
      %v1493 = vpop.f32.mrf.mxu0
      %v1494 = vadd.f32 0.0, %v1493
      %1495 = vmatmul.bf16.gmra.mxu0 %v1467
      %v1496 = vpop.f32.mrf.mxu0
      %v1497 = vadd.f32 0.0, %v1496
      %v1498 = vpop.f32.mrf.mxu0
      %v1499 = vadd.f32 0.0, %v1498
      %1500 = vdwg.mxu0
      %v1501 = vadd.f32 %v1441, %v1482
      %v1502 = vadd.f32 %v1442, %v1484
      %v1503 = vadd.f32 %v1443, %v1487
      %v1504 = vadd.f32 %v1444, %v1489
      %v1505 = vadd.f32 %v1445, %v1492
      %v1506 = vadd.f32 %v1446, %v1494
      %v1507 = vadd.f32 %v1447, %v1497
      %v1508 = vadd.f32 %v1448, %v1499
      %v1510 = vshrl.u32 %v1087, 16
      %v1512 = vrot.slane %v1510, 4
      %v1513 = vshll.u32 %v1087, 16
      %v1515 = vrot.slane %v1513, 5
      %v1516 = vor.u32 %v1512, %v1515
      %v1517 = vrot.slane %v1516, 4
      %v1519 = vshll.u32 %v1088, 16
      %v1521 = vrot.slane %v1519, 5
      %v1522 = vsel %vm367, %v1517, %v1521
      %s1523 = scalar_lea.vmem %s3, 52
      %v1524 = vld [vmem:[%s1523] sm:$0xf]
      %v1525 = vunpack.c.l.b16 %v1522
      %v1526 = vpack.c.b16 %v1281, %v1280
      %v1527 = vpack.c.b16 %v1283, %v1282
      %v1528 = vpack.c.b16 %v1285, %v1284
      %v1529 = vpack.c.b16 %v1525, %v1286
      %v1531 = vsel %vm494, %v1526, 0
      %v1534 = vsel %vm494, %v1527, 0
      %v1537 = vsel %vm494, %v1528, 0
      %v1540 = vsel %vm494, %v1529, 0
      %v1543 = vsel %vm507, %v1524, 0
      %1545 = vmatpush.bf16.msra.mxu0 0
      %1546 = vmatpush.bf16.msra.mxu0 0
      %1547 = vmatpush.bf16.msra.mxu0 0
      %1548 = vmatpush.bf16.msra.mxu0 0
      %1549 = vmatpush.bf16.msra.mxu0 0
      %1550 = vmatpush.bf16.msra.mxu0 0
      %1551 = vmatpush.bf16.msra.mxu0 0
      %1552 = vmatpush.bf16.msra.mxu0 %v1543
      %1553 = vmatmul.bf16.gmra.mxu0 %v1531
      %v1554 = vpop.f32.mrf.mxu0
      %v1555 = vadd.f32 0.0, %v1554
      %v1556 = vpop.f32.mrf.mxu0
      %v1557 = vadd.f32 0.0, %v1556
      %1558 = vmatmul.bf16.gmra.mxu0 %v1534
      %v1559 = vpop.f32.mrf.mxu0
      %v1560 = vadd.f32 0.0, %v1559
      %v1561 = vpop.f32.mrf.mxu0
      %v1562 = vadd.f32 0.0, %v1561
      %1563 = vmatmul.bf16.gmra.mxu0 %v1537
      %v1564 = vpop.f32.mrf.mxu0
      %v1565 = vadd.f32 0.0, %v1564
      %v1566 = vpop.f32.mrf.mxu0
      %v1567 = vadd.f32 0.0, %v1566
      %1568 = vmatmul.bf16.gmra.mxu0 %v1540
      %v1569 = vpop.f32.mrf.mxu0
      %v1570 = vadd.f32 0.0, %v1569
      %v1571 = vpop.f32.mrf.mxu0
      %v1572 = vadd.f32 0.0, %v1571
      %1573 = vdwg.mxu0
      %v1574 = vadd.f32 %v1501, %v1555
      %v1575 = vadd.f32 %v1502, %v1557
      %v1576 = vadd.f32 %v1503, %v1560
      %v1577 = vadd.f32 %v1504, %v1562
      %v1578 = vadd.f32 %v1505, %v1565
      %v1579 = vadd.f32 %v1506, %v1567
      %v1580 = vadd.f32 %v1507, %v1570
      %v1581 = vadd.f32 %v1508, %v1572
      %v1583 = vrot.slane %v1087, 5
      %v1584 = vrot.slane %v1583, 4
      %v1585 = vrot.slane %v1088, 5
      %v1586 = vsel %vm614, %v1584, %v1585
      %s1587 = scalar_lea.vmem %s3, 56
      %v1588 = vld [vmem:[%s1587] sm:$0xf]
      %v1589 = vunpack.c.l.b16 %v1586
      %v1590 = vpack.c.b16 %v1387, %v1386
      %v1591 = vpack.c.b16 %v1389, %v1388
      %v1592 = vpack.c.b16 %v1391, %v1390
      %v1593 = vpack.c.b16 %v1589, %v1392
      %v1595 = vsel %vm494, %v1590, 0
      %v1598 = vsel %vm494, %v1591, 0
      %v1601 = vsel %vm494, %v1592, 0
      %v1604 = vsel %vm494, %v1593, 0
      %v1607 = vsel %vm507, %v1588, 0
      %1609 = vmatpush.bf16.msra.mxu0 0
      %1610 = vmatpush.bf16.msra.mxu0 0
      %1611 = vmatpush.bf16.msra.mxu0 0
      %1612 = vmatpush.bf16.msra.mxu0 0
      %1613 = vmatpush.bf16.msra.mxu0 0
      %1614 = vmatpush.bf16.msra.mxu0 0
      %1615 = vmatpush.bf16.msra.mxu0 0
      %1616 = vmatpush.bf16.msra.mxu0 %v1607
      %1617 = vmatmul.bf16.gmra.mxu0 %v1595
      %v1618 = vpop.f32.mrf.mxu0
      %v1619 = vadd.f32 0.0, %v1618
      %v1620 = vpop.f32.mrf.mxu0
      %v1621 = vadd.f32 0.0, %v1620
      %1622 = vmatmul.bf16.gmra.mxu0 %v1598
      %v1623 = vpop.f32.mrf.mxu0
      %v1624 = vadd.f32 0.0, %v1623
      %v1625 = vpop.f32.mrf.mxu0
      %v1626 = vadd.f32 0.0, %v1625
      %1627 = vmatmul.bf16.gmra.mxu0 %v1601
      %v1628 = vpop.f32.mrf.mxu0
      %v1629 = vadd.f32 0.0, %v1628
      %v1630 = vpop.f32.mrf.mxu0
      %v1631 = vadd.f32 0.0, %v1630
      %1632 = vmatmul.bf16.gmra.mxu0 %v1604
      %v1633 = vpop.f32.mrf.mxu0
      %v1634 = vadd.f32 0.0, %v1633
      %v1635 = vpop.f32.mrf.mxu0
      %v1636 = vadd.f32 0.0, %v1635
      %1637 = vdwg.mxu0
      %v1638 = vadd.f32 %v1574, %v1619
      %v1639 = vadd.f32 %v1575, %v1621
      %v1640 = vadd.f32 %v1576, %v1624
      %v1641 = vadd.f32 %v1577, %v1626
      %v1642 = vadd.f32 %v1578, %v1629
      %v1643 = vadd.f32 %v1579, %v1631
      %v1644 = vadd.f32 %v1580, %v1634
      %v1645 = vadd.f32 %v1581, %v1636
      %s1646 = scalar_lea.vmem %s3, 60
      %v1647 = vld [vmem:[%s1646] sm:$0xf]
      %v1649 = vunpack.c.l.b16 %v1089
      %v1650 = vpack.c.b16 %v1649, %v1452
      %v1652 = vsel %vm494, %v1650, 0
      %v1655 = vsel %vm507, %v1647, 0
      %1657 = vmatpush.bf16.msra.mxu0 0
      %1658 = vmatpush.bf16.msra.mxu0 0
      %1659 = vmatpush.bf16.msra.mxu0 0
      %1660 = vmatpush.bf16.msra.mxu0 0
      %1661 = vmatpush.bf16.msra.mxu0 0
      %1662 = vmatpush.bf16.msra.mxu0 0
      %1663 = vmatpush.bf16.msra.mxu0 0
      %1664 = vmatpush.bf16.msra.mxu0 %v1655
      %1665 = vmatmul.bf16.gmra.mxu0 %v1117
      %v1666 = vpop.f32.mrf.mxu0
      %v1667 = vadd.f32 0.0, %v1666
      %v1668 = vpop.f32.mrf.mxu0
      %v1669 = vadd.f32 0.0, %v1668
      %1670 = vmatmul.bf16.gmra.mxu0 %v1120
      %v1671 = vpop.f32.mrf.mxu0
      %v1672 = vadd.f32 0.0, %v1671
      %v1673 = vpop.f32.mrf.mxu0
      %v1674 = vadd.f32 0.0, %v1673
      %1675 = vmatmul.bf16.gmra.mxu0 %v1123
      %v1676 = vpop.f32.mrf.mxu0
      %v1677 = vadd.f32 0.0, %v1676
      %v1678 = vpop.f32.mrf.mxu0
      %v1679 = vadd.f32 0.0, %v1678
      %1680 = vmatmul.bf16.gmra.mxu0 %v1652
      %v1681 = vpop.f32.mrf.mxu0
      %v1682 = vadd.f32 0.0, %v1681
      %v1683 = vpop.f32.mrf.mxu0
      %v1684 = vadd.f32 0.0, %v1683
      %1685 = vdwg.mxu0
      %v1686 = vadd.f32 %v1638, %v1667
      %v1687 = vadd.f32 %v1639, %v1669
      %v1688 = vadd.f32 %v1640, %v1672
      %v1689 = vadd.f32 %v1641, %v1674
      %v1690 = vadd.f32 %v1642, %v1677
      %v1691 = vadd.f32 %v1643, %v1679
      %v1692 = vadd.f32 %v1644, %v1682
      %v1693 = vadd.f32 %v1645, %v1684
      %v1695 = vshrl.u32 %v1089, 16
      %v1697 = vrot.slane %v1695, 4
      %v1698 = vshll.u32 %v1089, 16
      %v1700 = vrot.slane %v1698, 5
      %v1701 = vor.u32 %v1697, %v1700
      %v1702 = vrot.slane %v1701, 4
      %v1704 = vshll.u32 %v1090, 16
      %v1706 = vrot.slane %v1704, 5
      %v1707 = vsel %vm367, %v1702, %v1706
      %s1708 = scalar_lea.vmem %s3, 64
      %v1709 = vld [vmem:[%s1708] sm:$0xf]
      %v1710 = vunpack.c.l.b16 %v1707
      %v1711 = vpack.c.b16 %v1710, %v1525
      %v1713 = vsel %vm494, %v1711, 0
      %v1716 = vsel %vm507, %v1709, 0
      %1718 = vmatpush.bf16.msra.mxu0 0
      %1719 = vmatpush.bf16.msra.mxu0 0
      %1720 = vmatpush.bf16.msra.mxu0 0
      %1721 = vmatpush.bf16.msra.mxu0 0
      %1722 = vmatpush.bf16.msra.mxu0 0
      %1723 = vmatpush.bf16.msra.mxu0 0
      %1724 = vmatpush.bf16.msra.mxu0 0
      %1725 = vmatpush.bf16.msra.mxu0 %v1716
      %1726 = vmatmul.bf16.gmra.mxu0 %v1295
      %v1727 = vpop.f32.mrf.mxu0
      %v1728 = vadd.f32 0.0, %v1727
      %v1729 = vpop.f32.mrf.mxu0
      %v1730 = vadd.f32 0.0, %v1729
      %1731 = vmatmul.bf16.gmra.mxu0 %v1298
      %v1732 = vpop.f32.mrf.mxu0
      %v1733 = vadd.f32 0.0, %v1732
      %v1734 = vpop.f32.mrf.mxu0
      %v1735 = vadd.f32 0.0, %v1734
      %1736 = vmatmul.bf16.gmra.mxu0 %v1301
      %v1737 = vpop.f32.mrf.mxu0
      %v1738 = vadd.f32 0.0, %v1737
      %v1739 = vpop.f32.mrf.mxu0
      %v1740 = vadd.f32 0.0, %v1739
      %1741 = vmatmul.bf16.gmra.mxu0 %v1713
      %v1742 = vpop.f32.mrf.mxu0
      %v1743 = vadd.f32 0.0, %v1742
      %v1744 = vpop.f32.mrf.mxu0
      %v1745 = vadd.f32 0.0, %v1744
      %1746 = vdwg.mxu0
      %v1747 = vadd.f32 %v1686, %v1728
      %v1748 = vadd.f32 %v1687, %v1730
      %v1749 = vadd.f32 %v1688, %v1733
      %v1750 = vadd.f32 %v1689, %v1735
      %v1751 = vadd.f32 %v1690, %v1738
      %v1752 = vadd.f32 %v1691, %v1740
      %v1753 = vadd.f32 %v1692, %v1743
      %v1754 = vadd.f32 %v1693, %v1745
      %v1756 = vrot.slane %v1089, 5
      %v1757 = vrot.slane %v1756, 4
      %v1758 = vrot.slane %v1090, 5
      %v1759 = vsel %vm614, %v1757, %v1758
      %s1760 = scalar_lea.vmem %s3, 68
      %v1761 = vld [vmem:[%s1760] sm:$0xf]
      %v1762 = vunpack.c.l.b16 %v1759
      %v1763 = vpack.c.b16 %v1762, %v1589
      %v1765 = vsel %vm494, %v1763, 0
      %v1768 = vsel %vm507, %v1761, 0
      %1770 = vmatpush.bf16.msra.mxu0 0
      %1771 = vmatpush.bf16.msra.mxu0 0
      %1772 = vmatpush.bf16.msra.mxu0 0
      %1773 = vmatpush.bf16.msra.mxu0 0
      %1774 = vmatpush.bf16.msra.mxu0 0
      %1775 = vmatpush.bf16.msra.mxu0 0
      %1776 = vmatpush.bf16.msra.mxu0 0
      %1777 = vmatpush.bf16.msra.mxu0 %v1768
      %1778 = vmatmul.bf16.gmra.mxu0 %v1401
      %v1779 = vpop.f32.mrf.mxu0
      %v1780 = vadd.f32 0.0, %v1779
      %v1781 = vpop.f32.mrf.mxu0
      %v1782 = vadd.f32 0.0, %v1781
      %1783 = vmatmul.bf16.gmra.mxu0 %v1404
      %v1784 = vpop.f32.mrf.mxu0
      %v1785 = vadd.f32 0.0, %v1784
      %v1786 = vpop.f32.mrf.mxu0
      %v1787 = vadd.f32 0.0, %v1786
      %1788 = vmatmul.bf16.gmra.mxu0 %v1407
      %v1789 = vpop.f32.mrf.mxu0
      %v1790 = vadd.f32 0.0, %v1789
      %v1791 = vpop.f32.mrf.mxu0
      %v1792 = vadd.f32 0.0, %v1791
      %1793 = vmatmul.bf16.gmra.mxu0 %v1765
      %v1794 = vpop.f32.mrf.mxu0
      %v1795 = vadd.f32 0.0, %v1794
      %v1796 = vpop.f32.mrf.mxu0
      %v1797 = vadd.f32 0.0, %v1796
      %1798 = vdwg.mxu0
      %v1799 = vadd.f32 %v1747, %v1780
      %v1800 = vadd.f32 %v1748, %v1782
      %v1801 = vadd.f32 %v1749, %v1785
      %v1802 = vadd.f32 %v1750, %v1787
      %v1803 = vadd.f32 %v1751, %v1790
      %v1804 = vadd.f32 %v1752, %v1792
      %v1805 = vadd.f32 %v1753, %v1795
      %v1806 = vadd.f32 %v1754, %v1797
      %v1807 = vld [vmem:[%s332] sm:$0xf]
      %v1808 = vld [vmem:[%s332 + $0x4] sm:$0x1]
      %v1809 = vld [vmem:[%s332 + $0x8] sm:$0xf]
      %v1810 = vld [vmem:[%s332 + $0xc] sm:$0x1]
      %v1811 = vld [vmem:[%s332 + $0x10] sm:$0xf]
      %v1812 = vld [vmem:[%s332 + $0x14] sm:$0x1]
      %v1813 = vld [vmem:[%s332 + $0x18] sm:$0xf]
      %v1814 = vld [vmem:[%s332 + $0x1c] sm:$0x1]
      %v1815 = vld [vmem:[%s332 + $0x20] sm:$0xf]
      %v1816 = vld [vmem:[%s332 + $0x24] sm:$0x1]
      %v1817 = vld [vmem:[%s332 + $0x28] sm:$0xf]
      %v1818 = vld [vmem:[%s332 + $0x2c] sm:$0x1]
      %v1819 = vld [vmem:[%s332 + $0x30] sm:$0xf]
      %v1820 = vld [vmem:[%s332 + $0x34] sm:$0x1]
      %v1821 = vld [vmem:[%s332 + $0x38] sm:$0xf]
      %v1822 = vld [vmem:[%s332 + $0x3c] sm:$0x1]
      %v1823 = vld [vmem:[%s332 + $0x40] sm:$0xf]
      %v1824 = vld [vmem:[%s332 + $0x44] sm:$0x1]
      %v1825 = vld [vmem:[%s332 + $0x48] sm:$0xf]
      %v1826 = vld [vmem:[%s332 + $0x4c] sm:$0x1]
      %s1827 = scalar_lea.vmem %s3, 72
      %v1828 = vld [vmem:[%s1827] sm:$0xf]
      %v1837 = vunpack.c.l.b16 %v1807
      %v1838 = vunpack.c.l.b16 %v1809
      %v1839 = vunpack.c.l.b16 %v1811
      %v1840 = vunpack.c.l.b16 %v1813
      %v1841 = vunpack.c.l.b16 %v1815
      %v1842 = vunpack.c.l.b16 %v1817
      %v1843 = vunpack.c.l.b16 %v1819
      %v1844 = vunpack.c.l.b16 %v1821
      %v1845 = vpack.c.b16 %v1838, %v1837
      %v1846 = vpack.c.b16 %v1840, %v1839
      %v1847 = vpack.c.b16 %v1842, %v1841
      %v1848 = vpack.c.b16 %v1844, %v1843
      %v1850 = vsel %vm494, %v1845, 0
      %v1853 = vsel %vm494, %v1846, 0
      %v1856 = vsel %vm494, %v1847, 0
      %v1859 = vsel %vm494, %v1848, 0
      %v1862 = vsel %vm507, %v1828, 0
      %1864 = vmatpush.bf16.msra.mxu0 0
      %1865 = vmatpush.bf16.msra.mxu0 0
      %1866 = vmatpush.bf16.msra.mxu0 0
      %1867 = vmatpush.bf16.msra.mxu0 0
      %1868 = vmatpush.bf16.msra.mxu0 0
      %1869 = vmatpush.bf16.msra.mxu0 0
      %1870 = vmatpush.bf16.msra.mxu0 0
      %1871 = vmatpush.bf16.msra.mxu0 %v1862
      %1872 = vmatmul.bf16.gmra.mxu0 %v1850
      %v1873 = vpop.f32.mrf.mxu0
      %v1874 = vadd.f32 0.0, %v1873
      %v1875 = vpop.f32.mrf.mxu0
      %v1876 = vadd.f32 0.0, %v1875
      %1877 = vmatmul.bf16.gmra.mxu0 %v1853
      %v1878 = vpop.f32.mrf.mxu0
      %v1879 = vadd.f32 0.0, %v1878
      %v1880 = vpop.f32.mrf.mxu0
      %v1881 = vadd.f32 0.0, %v1880
      %1882 = vmatmul.bf16.gmra.mxu0 %v1856
      %v1883 = vpop.f32.mrf.mxu0
      %v1884 = vadd.f32 0.0, %v1883
      %v1885 = vpop.f32.mrf.mxu0
      %v1886 = vadd.f32 0.0, %v1885
      %1887 = vmatmul.bf16.gmra.mxu0 %v1859
      %v1888 = vpop.f32.mrf.mxu0
      %v1889 = vadd.f32 0.0, %v1888
      %v1890 = vpop.f32.mrf.mxu0
      %v1891 = vadd.f32 0.0, %v1890
      %1892 = vdwg.mxu0
      %v1893 = vadd.f32 %v1799, %v1874
      %v1894 = vadd.f32 %v1800, %v1876
      %v1895 = vadd.f32 %v1801, %v1879
      %v1896 = vadd.f32 %v1802, %v1881
      %v1897 = vadd.f32 %v1803, %v1884
      %v1898 = vadd.f32 %v1804, %v1886
      %v1899 = vadd.f32 %v1805, %v1889
      %v1900 = vadd.f32 %v1806, %v1891
      %v1902 = vshrl.u32 %v1807, 16
      %v1904 = vrot.slane %v1902, 4
      %v1905 = vshll.u32 %v1807, 16
      %v1907 = vrot.slane %v1905, 5
      %v1908 = vor.u32 %v1904, %v1907
      %v1909 = vrot.slane %v1908, 4
      %v1911 = vshll.u32 %v1808, 16
      %v1913 = vrot.slane %v1911, 5
      %v1914 = vsel %vm367, %v1909, %v1913
      %v1916 = vshrl.u32 %v1809, 16
      %v1918 = vrot.slane %v1916, 4
      %v1919 = vshll.u32 %v1809, 16
      %v1921 = vrot.slane %v1919, 5
      %v1922 = vor.u32 %v1918, %v1921
      %v1923 = vrot.slane %v1922, 4
      %v1925 = vshll.u32 %v1810, 16
      %v1927 = vrot.slane %v1925, 5
      %v1928 = vsel %vm367, %v1923, %v1927
      %v1930 = vshrl.u32 %v1811, 16
      %v1932 = vrot.slane %v1930, 4
      %v1933 = vshll.u32 %v1811, 16
      %v1935 = vrot.slane %v1933, 5
      %v1936 = vor.u32 %v1932, %v1935
      %v1937 = vrot.slane %v1936, 4
      %v1939 = vshll.u32 %v1812, 16
      %v1941 = vrot.slane %v1939, 5
      %v1942 = vsel %vm367, %v1937, %v1941
      %v1944 = vshrl.u32 %v1813, 16
      %v1946 = vrot.slane %v1944, 4
      %v1947 = vshll.u32 %v1813, 16
      %v1949 = vrot.slane %v1947, 5
      %v1950 = vor.u32 %v1946, %v1949
      %v1951 = vrot.slane %v1950, 4
      %v1953 = vshll.u32 %v1814, 16
      %v1955 = vrot.slane %v1953, 5
      %v1956 = vsel %vm367, %v1951, %v1955
      %v1958 = vshrl.u32 %v1815, 16
      %v1960 = vrot.slane %v1958, 4
      %v1961 = vshll.u32 %v1815, 16
      %v1963 = vrot.slane %v1961, 5
      %v1964 = vor.u32 %v1960, %v1963
      %v1965 = vrot.slane %v1964, 4
      %v1967 = vshll.u32 %v1816, 16
      %v1969 = vrot.slane %v1967, 5
      %v1970 = vsel %vm367, %v1965, %v1969
      %v1972 = vshrl.u32 %v1817, 16
      %v1974 = vrot.slane %v1972, 4
      %v1975 = vshll.u32 %v1817, 16
      %v1977 = vrot.slane %v1975, 5
      %v1978 = vor.u32 %v1974, %v1977
      %v1979 = vrot.slane %v1978, 4
      %v1981 = vshll.u32 %v1818, 16
      %v1983 = vrot.slane %v1981, 5
      %v1984 = vsel %vm367, %v1979, %v1983
      %v1986 = vshrl.u32 %v1819, 16
      %v1988 = vrot.slane %v1986, 4
      %v1989 = vshll.u32 %v1819, 16
      %v1991 = vrot.slane %v1989, 5
      %v1992 = vor.u32 %v1988, %v1991
      %v1993 = vrot.slane %v1992, 4
      %v1995 = vshll.u32 %v1820, 16
      %v1997 = vrot.slane %v1995, 5
      %v1998 = vsel %vm367, %v1993, %v1997
      %v2000 = vshrl.u32 %v1821, 16
      %v2002 = vrot.slane %v2000, 4
      %v2003 = vshll.u32 %v1821, 16
      %v2005 = vrot.slane %v2003, 5
      %v2006 = vor.u32 %v2002, %v2005
      %v2007 = vrot.slane %v2006, 4
      %v2009 = vshll.u32 %v1822, 16
      %v2011 = vrot.slane %v2009, 5
      %v2012 = vsel %vm367, %v2007, %v2011
      %s2013 = scalar_lea.vmem %s3, 76
      %v2014 = vld [vmem:[%s2013] sm:$0xf]
      %v2015 = vunpack.c.l.b16 %v1914
      %v2016 = vunpack.c.l.b16 %v1928
      %v2017 = vunpack.c.l.b16 %v1942
      %v2018 = vunpack.c.l.b16 %v1956
      %v2019 = vunpack.c.l.b16 %v1970
      %v2020 = vunpack.c.l.b16 %v1984
      %v2021 = vunpack.c.l.b16 %v1998
      %v2022 = vunpack.c.l.b16 %v2012
      %v2023 = vpack.c.b16 %v2016, %v2015
      %v2024 = vpack.c.b16 %v2018, %v2017
      %v2025 = vpack.c.b16 %v2020, %v2019
      %v2026 = vpack.c.b16 %v2022, %v2021
      %v2028 = vsel %vm494, %v2023, 0
      %v2031 = vsel %vm494, %v2024, 0
      %v2034 = vsel %vm494, %v2025, 0
      %v2037 = vsel %vm494, %v2026, 0
      %v2040 = vsel %vm507, %v2014, 0
      %2042 = vmatpush.bf16.msra.mxu0 0
      %2043 = vmatpush.bf16.msra.mxu0 0
      %2044 = vmatpush.bf16.msra.mxu0 0
      %2045 = vmatpush.bf16.msra.mxu0 0
      %2046 = vmatpush.bf16.msra.mxu0 0
      %2047 = vmatpush.bf16.msra.mxu0 0
      %2048 = vmatpush.bf16.msra.mxu0 0
      %2049 = vmatpush.bf16.msra.mxu0 %v2040
      %2050 = vmatmul.bf16.gmra.mxu0 %v2028
      %v2051 = vpop.f32.mrf.mxu0
      %v2052 = vadd.f32 0.0, %v2051
      %v2053 = vpop.f32.mrf.mxu0
      %v2054 = vadd.f32 0.0, %v2053
      %2055 = vmatmul.bf16.gmra.mxu0 %v2031
      %v2056 = vpop.f32.mrf.mxu0
      %v2057 = vadd.f32 0.0, %v2056
      %v2058 = vpop.f32.mrf.mxu0
      %v2059 = vadd.f32 0.0, %v2058
      %2060 = vmatmul.bf16.gmra.mxu0 %v2034
      %v2061 = vpop.f32.mrf.mxu0
      %v2062 = vadd.f32 0.0, %v2061
      %v2063 = vpop.f32.mrf.mxu0
      %v2064 = vadd.f32 0.0, %v2063
      %2065 = vmatmul.bf16.gmra.mxu0 %v2037
      %v2066 = vpop.f32.mrf.mxu0
      %v2067 = vadd.f32 0.0, %v2066
      %v2068 = vpop.f32.mrf.mxu0
      %v2069 = vadd.f32 0.0, %v2068
      %2070 = vdwg.mxu0
      %v2071 = vadd.f32 %v1893, %v2052
      %v2072 = vadd.f32 %v1894, %v2054
      %v2073 = vadd.f32 %v1895, %v2057
      %v2074 = vadd.f32 %v1896, %v2059
      %v2075 = vadd.f32 %v1897, %v2062
      %v2076 = vadd.f32 %v1898, %v2064
      %v2077 = vadd.f32 %v1899, %v2067
      %v2078 = vadd.f32 %v1900, %v2069
      %v2087 = vrot.slane %v1807, 5
      %v2088 = vrot.slane %v2087, 4
      %v2089 = vrot.slane %v1808, 5
      %v2090 = vsel %vm614, %v2088, %v2089
      %v2091 = vrot.slane %v1809, 5
      %v2092 = vrot.slane %v2091, 4
      %v2093 = vrot.slane %v1810, 5
      %v2094 = vsel %vm614, %v2092, %v2093
      %v2095 = vrot.slane %v1811, 5
      %v2096 = vrot.slane %v2095, 4
      %v2097 = vrot.slane %v1812, 5
      %v2098 = vsel %vm614, %v2096, %v2097
      %v2099 = vrot.slane %v1813, 5
      %v2100 = vrot.slane %v2099, 4
      %v2101 = vrot.slane %v1814, 5
      %v2102 = vsel %vm614, %v2100, %v2101
      %v2103 = vrot.slane %v1815, 5
      %v2104 = vrot.slane %v2103, 4
      %v2105 = vrot.slane %v1816, 5
      %v2106 = vsel %vm614, %v2104, %v2105
      %v2107 = vrot.slane %v1817, 5
      %v2108 = vrot.slane %v2107, 4
      %v2109 = vrot.slane %v1818, 5
      %v2110 = vsel %vm614, %v2108, %v2109
      %v2111 = vrot.slane %v1819, 5
      %v2112 = vrot.slane %v2111, 4
      %v2113 = vrot.slane %v1820, 5
      %v2114 = vsel %vm614, %v2112, %v2113
      %v2115 = vrot.slane %v1821, 5
      %v2116 = vrot.slane %v2115, 4
      %v2117 = vrot.slane %v1822, 5
      %v2118 = vsel %vm614, %v2116, %v2117
      %s2119 = scalar_lea.vmem %s3, 80
      %v2120 = vld [vmem:[%s2119] sm:$0xf]
      %v2121 = vunpack.c.l.b16 %v2090
      %v2122 = vunpack.c.l.b16 %v2094
      %v2123 = vunpack.c.l.b16 %v2098
      %v2124 = vunpack.c.l.b16 %v2102
      %v2125 = vunpack.c.l.b16 %v2106
      %v2126 = vunpack.c.l.b16 %v2110
      %v2127 = vunpack.c.l.b16 %v2114
      %v2128 = vunpack.c.l.b16 %v2118
      %v2129 = vpack.c.b16 %v2122, %v2121
      %v2130 = vpack.c.b16 %v2124, %v2123
      %v2131 = vpack.c.b16 %v2126, %v2125
      %v2132 = vpack.c.b16 %v2128, %v2127
      %v2134 = vsel %vm494, %v2129, 0
      %v2137 = vsel %vm494, %v2130, 0
      %v2140 = vsel %vm494, %v2131, 0
      %v2143 = vsel %vm494, %v2132, 0
      %v2146 = vsel %vm507, %v2120, 0
      %2148 = vmatpush.bf16.msra.mxu0 0
      %2149 = vmatpush.bf16.msra.mxu0 0
      %2150 = vmatpush.bf16.msra.mxu0 0
      %2151 = vmatpush.bf16.msra.mxu0 0
      %2152 = vmatpush.bf16.msra.mxu0 0
      %2153 = vmatpush.bf16.msra.mxu0 0
      %2154 = vmatpush.bf16.msra.mxu0 0
      %2155 = vmatpush.bf16.msra.mxu0 %v2146
      %2156 = vmatmul.bf16.gmra.mxu0 %v2134
      %v2157 = vpop.f32.mrf.mxu0
      %v2158 = vadd.f32 0.0, %v2157
      %v2159 = vpop.f32.mrf.mxu0
      %v2160 = vadd.f32 0.0, %v2159
      %2161 = vmatmul.bf16.gmra.mxu0 %v2137
      %v2162 = vpop.f32.mrf.mxu0
      %v2163 = vadd.f32 0.0, %v2162
      %v2164 = vpop.f32.mrf.mxu0
      %v2165 = vadd.f32 0.0, %v2164
      %2166 = vmatmul.bf16.gmra.mxu0 %v2140
      %v2167 = vpop.f32.mrf.mxu0
      %v2168 = vadd.f32 0.0, %v2167
      %v2169 = vpop.f32.mrf.mxu0
      %v2170 = vadd.f32 0.0, %v2169
      %2171 = vmatmul.bf16.gmra.mxu0 %v2143
      %v2172 = vpop.f32.mrf.mxu0
      %v2173 = vadd.f32 0.0, %v2172
      %v2174 = vpop.f32.mrf.mxu0
      %v2175 = vadd.f32 0.0, %v2174
      %2176 = vdwg.mxu0
      %v2177 = vadd.f32 %v2071, %v2158
      %v2178 = vadd.f32 %v2072, %v2160
      %v2179 = vadd.f32 %v2073, %v2163
      %v2180 = vadd.f32 %v2074, %v2165
      %v2181 = vadd.f32 %v2075, %v2168
      %v2182 = vadd.f32 %v2076, %v2170
      %v2183 = vadd.f32 %v2077, %v2173
      %v2184 = vadd.f32 %v2078, %v2175
      %s2185 = scalar_lea.vmem %s3, 84
      %v2186 = vld [vmem:[%s2185] sm:$0xf]
      %v2188 = vunpack.c.l.b16 %v1823
      %v2189 = vpack.c.b16 %v1839, %v1838
      %v2190 = vpack.c.b16 %v1841, %v1840
      %v2191 = vpack.c.b16 %v1843, %v1842
      %v2192 = vpack.c.b16 %v2188, %v1844
      %v2194 = vsel %vm494, %v2189, 0
      %v2197 = vsel %vm494, %v2190, 0
      %v2200 = vsel %vm494, %v2191, 0
      %v2203 = vsel %vm494, %v2192, 0
      %v2206 = vsel %vm507, %v2186, 0
      %2208 = vmatpush.bf16.msra.mxu0 0
      %2209 = vmatpush.bf16.msra.mxu0 0
      %2210 = vmatpush.bf16.msra.mxu0 0
      %2211 = vmatpush.bf16.msra.mxu0 0
      %2212 = vmatpush.bf16.msra.mxu0 0
      %2213 = vmatpush.bf16.msra.mxu0 0
      %2214 = vmatpush.bf16.msra.mxu0 0
      %2215 = vmatpush.bf16.msra.mxu0 %v2206
      %2216 = vmatmul.bf16.gmra.mxu0 %v2194
      %v2217 = vpop.f32.mrf.mxu0
      %v2218 = vadd.f32 0.0, %v2217
      %v2219 = vpop.f32.mrf.mxu0
      %v2220 = vadd.f32 0.0, %v2219
      %2221 = vmatmul.bf16.gmra.mxu0 %v2197
      %v2222 = vpop.f32.mrf.mxu0
      %v2223 = vadd.f32 0.0, %v2222
      %v2224 = vpop.f32.mrf.mxu0
      %v2225 = vadd.f32 0.0, %v2224
      %2226 = vmatmul.bf16.gmra.mxu0 %v2200
      %v2227 = vpop.f32.mrf.mxu0
      %v2228 = vadd.f32 0.0, %v2227
      %v2229 = vpop.f32.mrf.mxu0
      %v2230 = vadd.f32 0.0, %v2229
      %2231 = vmatmul.bf16.gmra.mxu0 %v2203
      %v2232 = vpop.f32.mrf.mxu0
      %v2233 = vadd.f32 0.0, %v2232
      %v2234 = vpop.f32.mrf.mxu0
      %v2235 = vadd.f32 0.0, %v2234
      %2236 = vdwg.mxu0
      %v2237 = vadd.f32 %v2177, %v2218
      %v2238 = vadd.f32 %v2178, %v2220
      %v2239 = vadd.f32 %v2179, %v2223
      %v2240 = vadd.f32 %v2180, %v2225
      %v2241 = vadd.f32 %v2181, %v2228
      %v2242 = vadd.f32 %v2182, %v2230
      %v2243 = vadd.f32 %v2183, %v2233
      %v2244 = vadd.f32 %v2184, %v2235
      %v2246 = vshrl.u32 %v1823, 16
      %v2248 = vrot.slane %v2246, 4
      %v2249 = vshll.u32 %v1823, 16
      %v2251 = vrot.slane %v2249, 5
      %v2252 = vor.u32 %v2248, %v2251
      %v2253 = vrot.slane %v2252, 4
      %v2255 = vshll.u32 %v1824, 16
      %v2257 = vrot.slane %v2255, 5
      %v2258 = vsel %vm367, %v2253, %v2257
      %s2259 = scalar_lea.vmem %s3, 88
      %v2260 = vld [vmem:[%s2259] sm:$0xf]
      %v2261 = vunpack.c.l.b16 %v2258
      %v2262 = vpack.c.b16 %v2017, %v2016
      %v2263 = vpack.c.b16 %v2019, %v2018
      %v2264 = vpack.c.b16 %v2021, %v2020
      %v2265 = vpack.c.b16 %v2261, %v2022
      %v2267 = vsel %vm494, %v2262, 0
      %v2270 = vsel %vm494, %v2263, 0
      %v2273 = vsel %vm494, %v2264, 0
      %v2276 = vsel %vm494, %v2265, 0
      %v2279 = vsel %vm507, %v2260, 0
      %2281 = vmatpush.bf16.msra.mxu0 0
      %2282 = vmatpush.bf16.msra.mxu0 0
      %2283 = vmatpush.bf16.msra.mxu0 0
      %2284 = vmatpush.bf16.msra.mxu0 0
      %2285 = vmatpush.bf16.msra.mxu0 0
      %2286 = vmatpush.bf16.msra.mxu0 0
      %2287 = vmatpush.bf16.msra.mxu0 0
      %2288 = vmatpush.bf16.msra.mxu0 %v2279
      %2289 = vmatmul.bf16.gmra.mxu0 %v2267
      %v2290 = vpop.f32.mrf.mxu0
      %v2291 = vadd.f32 0.0, %v2290
      %v2292 = vpop.f32.mrf.mxu0
      %v2293 = vadd.f32 0.0, %v2292
      %2294 = vmatmul.bf16.gmra.mxu0 %v2270
      %v2295 = vpop.f32.mrf.mxu0
      %v2296 = vadd.f32 0.0, %v2295
      %v2297 = vpop.f32.mrf.mxu0
      %v2298 = vadd.f32 0.0, %v2297
      %2299 = vmatmul.bf16.gmra.mxu0 %v2273
      %v2300 = vpop.f32.mrf.mxu0
      %v2301 = vadd.f32 0.0, %v2300
      %v2302 = vpop.f32.mrf.mxu0
      %v2303 = vadd.f32 0.0, %v2302
      %2304 = vmatmul.bf16.gmra.mxu0 %v2276
      %v2305 = vpop.f32.mrf.mxu0
      %v2306 = vadd.f32 0.0, %v2305
      %v2307 = vpop.f32.mrf.mxu0
      %v2308 = vadd.f32 0.0, %v2307
      %2309 = vdwg.mxu0
      %v2310 = vadd.f32 %v2237, %v2291
      %v2311 = vadd.f32 %v2238, %v2293
      %v2312 = vadd.f32 %v2239, %v2296
      %v2313 = vadd.f32 %v2240, %v2298
      %v2314 = vadd.f32 %v2241, %v2301
      %v2315 = vadd.f32 %v2242, %v2303
      %v2316 = vadd.f32 %v2243, %v2306
      %v2317 = vadd.f32 %v2244, %v2308
      %v2319 = vrot.slane %v1823, 5
      %v2320 = vrot.slane %v2319, 4
      %v2321 = vrot.slane %v1824, 5
      %v2322 = vsel %vm614, %v2320, %v2321
      %s2323 = scalar_lea.vmem %s3, 92
      %v2324 = vld [vmem:[%s2323] sm:$0xf]
      %v2325 = vunpack.c.l.b16 %v2322
      %v2326 = vpack.c.b16 %v2123, %v2122
      %v2327 = vpack.c.b16 %v2125, %v2124
      %v2328 = vpack.c.b16 %v2127, %v2126
      %v2329 = vpack.c.b16 %v2325, %v2128
      %v2331 = vsel %vm494, %v2326, 0
      %v2334 = vsel %vm494, %v2327, 0
      %v2337 = vsel %vm494, %v2328, 0
      %v2340 = vsel %vm494, %v2329, 0
      %v2343 = vsel %vm507, %v2324, 0
      %2345 = vmatpush.bf16.msra.mxu0 0
      %2346 = vmatpush.bf16.msra.mxu0 0
      %2347 = vmatpush.bf16.msra.mxu0 0
      %2348 = vmatpush.bf16.msra.mxu0 0
      %2349 = vmatpush.bf16.msra.mxu0 0
      %2350 = vmatpush.bf16.msra.mxu0 0
      %2351 = vmatpush.bf16.msra.mxu0 0
      %2352 = vmatpush.bf16.msra.mxu0 %v2343
      %2353 = vmatmul.bf16.gmra.mxu0 %v2331
      %v2354 = vpop.f32.mrf.mxu0
      %v2355 = vadd.f32 0.0, %v2354
      %v2356 = vpop.f32.mrf.mxu0
      %v2357 = vadd.f32 0.0, %v2356
      %2358 = vmatmul.bf16.gmra.mxu0 %v2334
      %v2359 = vpop.f32.mrf.mxu0
      %v2360 = vadd.f32 0.0, %v2359
      %v2361 = vpop.f32.mrf.mxu0
      %v2362 = vadd.f32 0.0, %v2361
      %2363 = vmatmul.bf16.gmra.mxu0 %v2337
      %v2364 = vpop.f32.mrf.mxu0
      %v2365 = vadd.f32 0.0, %v2364
      %v2366 = vpop.f32.mrf.mxu0
      %v2367 = vadd.f32 0.0, %v2366
      %2368 = vmatmul.bf16.gmra.mxu0 %v2340
      %v2369 = vpop.f32.mrf.mxu0
      %v2370 = vadd.f32 0.0, %v2369
      %v2371 = vpop.f32.mrf.mxu0
      %v2372 = vadd.f32 0.0, %v2371
      %2373 = vdwg.mxu0
      %v2374 = vadd.f32 %v2310, %v2355
      %v2375 = vadd.f32 %v2311, %v2357
      %v2376 = vadd.f32 %v2312, %v2360
      %v2377 = vadd.f32 %v2313, %v2362
      %v2378 = vadd.f32 %v2314, %v2365
      %v2379 = vadd.f32 %v2315, %v2367
      %v2380 = vadd.f32 %v2316, %v2370
      %v2381 = vadd.f32 %v2317, %v2372
      %s2382 = scalar_lea.vmem %s3, 96
      %v2383 = vld [vmem:[%s2382] sm:$0xf]
      %v2385 = vunpack.c.l.b16 %v1825
      %v2386 = vpack.c.b16 %v2385, %v2188
      %v2388 = vsel %vm494, %v2386, 0
      %v2391 = vsel %vm507, %v2383, 0
      %2393 = vmatpush.bf16.msra.mxu0 0
      %2394 = vmatpush.bf16.msra.mxu0 0
      %2395 = vmatpush.bf16.msra.mxu0 0
      %2396 = vmatpush.bf16.msra.mxu0 0
      %2397 = vmatpush.bf16.msra.mxu0 0
      %2398 = vmatpush.bf16.msra.mxu0 0
      %2399 = vmatpush.bf16.msra.mxu0 0
      %2400 = vmatpush.bf16.msra.mxu0 %v2391
      %2401 = vmatmul.bf16.gmra.mxu0 %v1853
      %v2402 = vpop.f32.mrf.mxu0
      %v2403 = vadd.f32 0.0, %v2402
      %v2404 = vpop.f32.mrf.mxu0
      %v2405 = vadd.f32 0.0, %v2404
      %2406 = vmatmul.bf16.gmra.mxu0 %v1856
      %v2407 = vpop.f32.mrf.mxu0
      %v2408 = vadd.f32 0.0, %v2407
      %v2409 = vpop.f32.mrf.mxu0
      %v2410 = vadd.f32 0.0, %v2409
      %2411 = vmatmul.bf16.gmra.mxu0 %v1859
      %v2412 = vpop.f32.mrf.mxu0
      %v2413 = vadd.f32 0.0, %v2412
      %v2414 = vpop.f32.mrf.mxu0
      %v2415 = vadd.f32 0.0, %v2414
      %2416 = vmatmul.bf16.gmra.mxu0 %v2388
      %v2417 = vpop.f32.mrf.mxu0
      %v2418 = vadd.f32 0.0, %v2417
      %v2419 = vpop.f32.mrf.mxu0
      %v2420 = vadd.f32 0.0, %v2419
      %2421 = vdwg.mxu0
      %v2422 = vadd.f32 %v2374, %v2403
      %v2423 = vadd.f32 %v2375, %v2405
      %v2424 = vadd.f32 %v2376, %v2408
      %v2425 = vadd.f32 %v2377, %v2410
      %v2426 = vadd.f32 %v2378, %v2413
      %v2427 = vadd.f32 %v2379, %v2415
      %v2428 = vadd.f32 %v2380, %v2418
      %v2429 = vadd.f32 %v2381, %v2420
      %v2431 = vshrl.u32 %v1825, 16
      %v2433 = vrot.slane %v2431, 4
      %v2434 = vshll.u32 %v1825, 16
      %v2436 = vrot.slane %v2434, 5
      %v2437 = vor.u32 %v2433, %v2436
      %v2438 = vrot.slane %v2437, 4
      %v2440 = vshll.u32 %v1826, 16
      %v2442 = vrot.slane %v2440, 5
      %v2443 = vsel %vm367, %v2438, %v2442
      %s2444 = scalar_lea.vmem %s3, 100
      %v2445 = vld [vmem:[%s2444] sm:$0xf]
      %v2446 = vunpack.c.l.b16 %v2443
      %v2447 = vpack.c.b16 %v2446, %v2261
      %v2449 = vsel %vm494, %v2447, 0
      %v2452 = vsel %vm507, %v2445, 0
      %2454 = vmatpush.bf16.msra.mxu0 0
      %2455 = vmatpush.bf16.msra.mxu0 0
      %2456 = vmatpush.bf16.msra.mxu0 0
      %2457 = vmatpush.bf16.msra.mxu0 0
      %2458 = vmatpush.bf16.msra.mxu0 0
      %2459 = vmatpush.bf16.msra.mxu0 0
      %2460 = vmatpush.bf16.msra.mxu0 0
      %2461 = vmatpush.bf16.msra.mxu0 %v2452
      %2462 = vmatmul.bf16.gmra.mxu0 %v2031
      %v2463 = vpop.f32.mrf.mxu0
      %v2464 = vadd.f32 0.0, %v2463
      %v2465 = vpop.f32.mrf.mxu0
      %v2466 = vadd.f32 0.0, %v2465
      %2467 = vmatmul.bf16.gmra.mxu0 %v2034
      %v2468 = vpop.f32.mrf.mxu0
      %v2469 = vadd.f32 0.0, %v2468
      %v2470 = vpop.f32.mrf.mxu0
      %v2471 = vadd.f32 0.0, %v2470
      %2472 = vmatmul.bf16.gmra.mxu0 %v2037
      %v2473 = vpop.f32.mrf.mxu0
      %v2474 = vadd.f32 0.0, %v2473
      %v2475 = vpop.f32.mrf.mxu0
      %v2476 = vadd.f32 0.0, %v2475
      %2477 = vmatmul.bf16.gmra.mxu0 %v2449
      %v2478 = vpop.f32.mrf.mxu0
      %v2479 = vadd.f32 0.0, %v2478
      %v2480 = vpop.f32.mrf.mxu0
      %v2481 = vadd.f32 0.0, %v2480
      %2482 = vdwg.mxu0
      %v2483 = vadd.f32 %v2422, %v2464
      %v2484 = vadd.f32 %v2423, %v2466
      %v2485 = vadd.f32 %v2424, %v2469
      %v2486 = vadd.f32 %v2425, %v2471
      %v2487 = vadd.f32 %v2426, %v2474
      %v2488 = vadd.f32 %v2427, %v2476
      %v2489 = vadd.f32 %v2428, %v2479
      %v2490 = vadd.f32 %v2429, %v2481
      %v2492 = vrot.slane %v1825, 5
      %v2493 = vrot.slane %v2492, 4
      %v2494 = vrot.slane %v1826, 5
      %v2495 = vsel %vm614, %v2493, %v2494
      %s2496 = scalar_lea.vmem %s3, 104
      %v2497 = vld [vmem:[%s2496] sm:$0xf]
      %v2498 = vunpack.c.l.b16 %v2495
      %v2499 = vpack.c.b16 %v2498, %v2325
      %v2501 = vsel %vm494, %v2499, 0
      %v2504 = vsel %vm507, %v2497, 0
      %2506 = vmatpush.bf16.msra.mxu0 0
      %2507 = vmatpush.bf16.msra.mxu0 0
      %2508 = vmatpush.bf16.msra.mxu0 0
      %2509 = vmatpush.bf16.msra.mxu0 0
      %2510 = vmatpush.bf16.msra.mxu0 0
      %2511 = vmatpush.bf16.msra.mxu0 0
      %2512 = vmatpush.bf16.msra.mxu0 0
      %2513 = vmatpush.bf16.msra.mxu0 %v2504
      %2514 = vmatmul.bf16.gmra.mxu0 %v2137
      %v2515 = vpop.f32.mrf.mxu0
      %v2516 = vadd.f32 0.0, %v2515
      %v2517 = vpop.f32.mrf.mxu0
      %v2518 = vadd.f32 0.0, %v2517
      %2519 = vmatmul.bf16.gmra.mxu0 %v2140
      %v2520 = vpop.f32.mrf.mxu0
      %v2521 = vadd.f32 0.0, %v2520
      %v2522 = vpop.f32.mrf.mxu0
      %v2523 = vadd.f32 0.0, %v2522
      %2524 = vmatmul.bf16.gmra.mxu0 %v2143
      %v2525 = vpop.f32.mrf.mxu0
      %v2526 = vadd.f32 0.0, %v2525
      %v2527 = vpop.f32.mrf.mxu0
      %v2528 = vadd.f32 0.0, %v2527
      %2529 = vmatmul.bf16.gmra.mxu0 %v2501
      %v2530 = vpop.f32.mrf.mxu0
      %v2531 = vadd.f32 0.0, %v2530
      %v2532 = vpop.f32.mrf.mxu0
      %v2533 = vadd.f32 0.0, %v2532
      %2534 = vdwg.mxu0
      %v2535 = vadd.f32 %v2483, %v2516
      %v2536 = vadd.f32 %v2484, %v2518
      %v2537 = vadd.f32 %v2485, %v2521
      %v2538 = vadd.f32 %v2486, %v2523
      %v2539 = vadd.f32 %v2487, %v2526
      %v2540 = vadd.f32 %v2488, %v2528
      %v2541 = vadd.f32 %v2489, %v2531
      %v2542 = vadd.f32 %v2490, %v2533
      %v2543 = vld [vmem:[%s4] sm:$0x1]
      %v2545 = vperm.slane %v2543, 0
      %v2547 = vadd.f32 %v2535, %v2545
      %v2548 = vadd.f32 %v2536, %v2545
      %v2549 = vadd.f32 %v2537, %v2545
      %v2550 = vadd.f32 %v2538, %v2545
      %v2551 = vadd.f32 %v2539, %v2545
      %v2552 = vadd.f32 %v2540, %v2545
      %v2553 = vadd.f32 %v2541, %v2545
      %v2554 = vadd.f32 %v2542, %v2545
      %v2555 = vmax.f32 %v2547, 0.0
      %v2556 = vmax.f32 %v2548, 0.0
      %v2557 = vmax.f32 %v2549, 0.0
      %v2558 = vmax.f32 %v2550, 0.0
      %v2559 = vmax.f32 %v2551, 0.0
      %v2560 = vmax.f32 %v2552, 0.0
      %v2561 = vmax.f32 %v2553, 0.0
      %v2562 = vmax.f32 %v2554, 0.0
      %vm2563 = vcmask 130048
      %2564 = vst.msk [vmem:[%s342] sm:$0xff] %vm2563, %v2555
      %2565 = vst.msk [vmem:[%s342 + $0x8] sm:$0xff] %vm2563, %v2556
      %2566 = vst.msk [vmem:[%s342 + $0x10] sm:$0xff] %vm2563, %v2557
      %2567 = vst.msk [vmem:[%s342 + $0x18] sm:$0xff] %vm2563, %v2558
      %2568 = vst.msk [vmem:[%s342 + $0x20] sm:$0xff] %vm2563, %v2559
      %2569 = vst.msk [vmem:[%s342 + $0x28] sm:$0xff] %vm2563, %v2560
      %2570 = vst.msk [vmem:[%s342 + $0x30] sm:$0xff] %vm2563, %v2561
      %2571 = vst.msk [vmem:[%s342 + $0x38] sm:$0xff] %vm2563, %v2562
      %p2572 = scmp.lt.s32.totalorder %s20, 1
      %s2573 = scalar_select %p2572, %s20, 1
      %p2574 = scmp.lt.s32.totalorder %s21, 3
      %s2575 = scalar_select %p2574, %s21, 3
      %s2576 = smul.addr %s2575, 8
      %s2577 = smul.addr %s2573, 32
      %s2578 = sadd.s32 %s2576, %s2577
      %s2579 = smul.addr %s2578, 8
      %s2580 = scalar_lea.vmem %s5, %s2579
      // Predicated region
      $region41: #{inception_forward.6} parent=39 // pred_check
        %p2581 = pneg %p178
      $region42: #{inception_forward.6} parent=39 // pred_check_branch
        %2583 = sbr.rel (%p2581) target = $region44
      $region43: #{inception_forward.6} parent=39 // pred_region
        _
      $region44: #{inception_forward.6} parent=39 // pred_fallthru
        _
    $region40: #{inception_forward.6} parent=5 // pred_fallthru
      _
    %p2584 = scmp.le.s32.totalorder 2, %s11
    // Predicated region
    $region45: #{inception_forward.6} parent=5 // pred_check
      %p2585 = pneg %p2584
    $region46: #{inception_forward.6} parent=5 // pred_check_branch
      %2587 = sbr.rel (%p2585) target = $region48
    $region47: #{inception_forward.6} parent=5 // pred_region
      %s2588 = ssub.s32 %s11, 2
      // Predicated region
      $region49: #{inception_forward.6} parent=47 // pred_check
        %p2589 = pneg %p184
      $region50: #{inception_forward.6} parent=47 // pred_check_branch
        %2591 = sbr.rel (%p2589) target = $region52
      $region51: #{inception_forward.6} parent=47 // pred_region
        %p2592 = scmp.lt.s32.totalorder %s22, 1
        %s2593 = scalar_select %p2592, %s22, 1
        %p2594 = scmp.lt.s32.totalorder %s23, 3
        %s2595 = scalar_select %p2594, %s23, 3
        %s2596 = smul.addr %s2595, 8
        %s2597 = smul.addr %s2593, 32
        %s2598 = sadd.s32 %s2596, %s2597
        %s2599 = smul.addr %s2598, 8
        %s2600 = scalar_lea.vmem %s5, %s2599
      $region52: #{inception_forward.6} parent=47 // pred_fallthru
        _
    $region48: #{inception_forward.6} parent=5 // pred_fallthru
      _
  $region6: #{inception_forward.6} parent=0 // loop_footer
    %s15 = sadd.s32 1, %s11
  $region7: #{inception_forward.6} parent=0 // loop_footer_branch
    %10 = sbr.rel target = $region3
  $region8: #{inception_forward.6} parent=0 // loop_exit
    _

// kernel: inception_forward.9
$region0: #{inception_forward.9}
  #allocation0 [shape = 'u32[]', space=smem, size = 0x4, offset = 0x4, fixed_abs, tag = 'smem constant byte address 0x4 - core index']
  #allocation1 [shape = 'u32[72,128]{1,0:T(1,128)}', space=vmem, size = 0x9000, scoped, tag = 'internal scratch']
  %s0 = inlined_call_operand.vmem [shape: bf16[2,6,10,10,8], index: 0, kind: input, shape index: {}, may-alias: {0,1,2}]
  %s1 = inlined_call_operand.vmem [shape: bf16[2,6,10,10,8], index: 1, kind: input, shape index: {}, may-alias: {0,1,2}]
  %s2 = inlined_call_operand.vmem [shape: bf16[2,6,10,10,8], index: 2, kind: input, shape index: {}, may-alias: {0,1,2}]
  %s3 = inlined_call_operand.vmem [shape: bf16[8,8], index: 3, kind: input, shape index: {}]
  %s4 = inlined_call_operand.vmem [shape: f32[1,8], index: 4, kind: input, shape index: {}]
  %s5 = inlined_call_operand.vmem [shape: f32[2,4,64,8], index: 5, kind: output, shape index: {}]
  %s6 = sld [smem:[#allocation0]]
  $region53: #{inception_forward.9} parent=0
    _
  %s8 = ssub.s32 1, %s6
  %s9 = scalar_select 0, %s8, %s6
  loop: start=0, step=1, limit=10
  $region2: #{inception_forward.9} parent=0 // loop_pre_header
    _
  $region3: #{inception_forward.9} parent=0 // loop_header
    %s11 = sphi 0, %s15
    %p12 = scmp.ge.s32.totalorder %s11, 10
    %s18 = sphi 0, %s30
    %s19 = sphi 0, %s26
    %s20 = sphi 0, %s18
    %s21 = sphi 0, %s19
    %s22 = sphi 0, %s20
    %s23 = sphi 0, %s21
    %s35 = sphi 0, %s37
    %s38 = sphi 0, %s35
    %s39 = sphi 0, %s38
    %s55 = sphi 0, %s39
    %s65 = sphi 0, %s67
    %s68 = sphi 0, %s65
    %s69 = sphi 0, %s68
    %s85 = sphi 0, %s69
    %s95 = sphi 0, %s97
    %s98 = sphi 0, %s95
    %s99 = sphi 0, %s98
    %s115 = sphi 0, %s99
    %s119 = sphi 0, %s119
    %s121 = sphi 0, %s119
    %s122 = sphi 0, %s121
    %s136 = sphi 0, %s122
    %s140 = sphi 0, %s140
    %s142 = sphi 0, %s140
    %s143 = sphi 0, %s142
    %s157 = sphi 0, %s143
    %s165 = sphi 0, %s167
    %s168 = sphi 0, %s165
    %s169 = sphi 0, %s168
    %s185 = sphi 0, %s169
  $region4: #{inception_forward.9} parent=0 // loop_header_branch
    %14 = sbr.rel (%p12) target = $region8
  $region5: #{inception_forward.9} parent=0 // loop_body
    %s16 = ssub.s32 %s11, 1
    %s17 = ssub.s32 %s11, 2
    %s24 = sadd.s32 1, %s19
    %p25 = scmp.ge.s32.totalorder %s24, 4
    %s26 = scalar_select %p25, 0, %s24
    %s27 = sadd.s32 1, %s18
    %s28 = scalar_select %p25, %s27, %s18
    %p29 = scmp.ge.s32.totalorder %s28, 2
    %s30 = scalar_select %p29, 0, %s28
    %s31 = ssub.s32 %s18, %s30
    %s32 = ssub.s32 %s19, %s26
    %s33 = sor.u32 %s31, %s32
    %p34 = scmp.eq.s32.totalorder %s33, 0
    %s36 = sadd.s32 %s35, 1
    %s37 = scalar_select %p34, %s35, %s36
    %p40 = pneg %p34
    %p41 = scmp.eq.s32.totalorder %s11, 7
    %p42 = por %p40, %p41
    %p43 = scmp.ne.s32.totalorder %s35, %s38
    %p44 = scmp.eq.s32.totalorder %s11, 0
    %p45 = por %p43, %p44
    %p46 = scmp.ne.s32.totalorder %s35, %s38
    %p47 = scmp.eq.s32.totalorder %s16, 7
    %p48 = por %p46, %p47
    %p49 = scmp.ne.s32.totalorder %s38, %s39
    %p50 = scmp.eq.s32.totalorder %s16, 0
    %p51 = por %p49, %p50
    %p52 = scmp.ne.s32.totalorder %s38, %s39
    %p53 = scmp.eq.s32.totalorder %s17, 7
    %p54 = por %p52, %p53
    %p56 = scmp.ne.s32.totalorder %s39, %s55
    %p57 = scmp.eq.s32.totalorder %s17, 0
    %p58 = por %p56, %p57
    %s59 = sadd.s32 %s19, 1
    %s60 = sadd.s32 %s26, 1
    %s61 = ssub.s32 %s18, %s30
    %s62 = ssub.s32 %s59, %s60
    %s63 = sor.u32 %s61, %s62
    %p64 = scmp.eq.s32.totalorder %s63, 0
    %s66 = sadd.s32 %s65, 1
    %s67 = scalar_select %p64, %s65, %s66
    %p70 = pneg %p64
    %p71 = scmp.eq.s32.totalorder %s11, 7
    %p72 = por %p70, %p71
    %p73 = scmp.ne.s32.totalorder %s65, %s68
    %p74 = scmp.eq.s32.totalorder %s11, 0
    %p75 = por %p73, %p74
    %p76 = scmp.ne.s32.totalorder %s65, %s68
    %p77 = scmp.eq.s32.totalorder %s16, 7
    %p78 = por %p76, %p77
    %p79 = scmp.ne.s32.totalorder %s68, %s69
    %p80 = scmp.eq.s32.totalorder %s16, 0
    %p81 = por %p79, %p80
    %p82 = scmp.ne.s32.totalorder %s68, %s69
    %p83 = scmp.eq.s32.totalorder %s17, 7
    %p84 = por %p82, %p83
    %p86 = scmp.ne.s32.totalorder %s69, %s85
    %p87 = scmp.eq.s32.totalorder %s17, 0
    %p88 = por %p86, %p87
    %s89 = sadd.s32 %s19, 2
    %s90 = sadd.s32 %s26, 2
    %s91 = ssub.s32 %s18, %s30
    %s92 = ssub.s32 %s89, %s90
    %s93 = sor.u32 %s91, %s92
    %p94 = scmp.eq.s32.totalorder %s93, 0
    %s96 = sadd.s32 %s95, 1
    %s97 = scalar_select %p94, %s95, %s96
    %p100 = pneg %p94
    %p101 = scmp.eq.s32.totalorder %s11, 7
    %p102 = por %p100, %p101
    %p103 = scmp.ne.s32.totalorder %s95, %s98
    %p104 = scmp.eq.s32.totalorder %s11, 0
    %p105 = por %p103, %p104
    %p106 = scmp.ne.s32.totalorder %s95, %s98
    %p107 = scmp.eq.s32.totalorder %s16, 7
    %p108 = por %p106, %p107
    %p109 = scmp.ne.s32.totalorder %s98, %s99
    %p110 = scmp.eq.s32.totalorder %s16, 0
    %p111 = por %p109, %p110
    %p112 = scmp.ne.s32.totalorder %s98, %s99
    %p113 = scmp.eq.s32.totalorder %s17, 7
    %p114 = por %p112, %p113
    %p116 = scmp.ne.s32.totalorder %s99, %s115
    %p117 = scmp.eq.s32.totalorder %s17, 0
    %p118 = por %p116, %p117
    %s120 = sadd.s32 %s119, 1
    %p123 = scmp.eq.s32.totalorder %s11, 7
    %p124 = scmp.ne.s32.totalorder %s119, %s121
    %p125 = scmp.eq.s32.totalorder %s11, 0
    %p126 = por %p124, %p125
    %p127 = scmp.ne.s32.totalorder %s119, %s121
    %p128 = scmp.eq.s32.totalorder %s16, 7
    %p129 = por %p127, %p128
    %p130 = scmp.ne.s32.totalorder %s121, %s122
    %p131 = scmp.eq.s32.totalorder %s16, 0
    %p132 = por %p130, %p131
    %p133 = scmp.ne.s32.totalorder %s121, %s122
    %p134 = scmp.eq.s32.totalorder %s17, 7
    %p135 = por %p133, %p134
    %p137 = scmp.ne.s32.totalorder %s122, %s136
    %p138 = scmp.eq.s32.totalorder %s17, 0
    %p139 = por %p137, %p138
    %s141 = sadd.s32 %s140, 1
    %p144 = scmp.eq.s32.totalorder %s11, 7
    %p145 = scmp.ne.s32.totalorder %s140, %s142
    %p146 = scmp.eq.s32.totalorder %s11, 0
    %p147 = por %p145, %p146
    %p148 = scmp.ne.s32.totalorder %s140, %s142
    %p149 = scmp.eq.s32.totalorder %s16, 7
    %p150 = por %p148, %p149
    %p151 = scmp.ne.s32.totalorder %s142, %s143
    %p152 = scmp.eq.s32.totalorder %s16, 0
    %p153 = por %p151, %p152
    %p154 = scmp.ne.s32.totalorder %s142, %s143
    %p155 = scmp.eq.s32.totalorder %s17, 7
    %p156 = por %p154, %p155
    %p158 = scmp.ne.s32.totalorder %s143, %s157
    %p159 = scmp.eq.s32.totalorder %s17, 0
    %p160 = por %p158, %p159
    %s161 = ssub.s32 %s18, %s30
    %s162 = ssub.s32 %s19, %s26
    %s163 = sor.u32 %s161, %s162
    %p164 = scmp.eq.s32.totalorder %s163, 0
    %s166 = sadd.s32 %s165, 1
    %s167 = scalar_select %p164, %s165, %s166
    %p170 = pneg %p164
    %p171 = scmp.eq.s32.totalorder %s11, 7
    %p172 = por %p170, %p171
    %p173 = scmp.ne.s32.totalorder %s165, %s168
    %p174 = scmp.eq.s32.totalorder %s11, 0
    %p175 = por %p173, %p174
    %p176 = scmp.ne.s32.totalorder %s165, %s168
    %p177 = scmp.eq.s32.totalorder %s16, 7
    %p178 = por %p176, %p177
    %p179 = scmp.ne.s32.totalorder %s168, %s169
    %p180 = scmp.eq.s32.totalorder %s16, 0
    %p181 = por %p179, %p180
    %p182 = scmp.ne.s32.totalorder %s168, %s169
    %p183 = scmp.eq.s32.totalorder %s17, 7
    %p184 = por %p182, %p183
    %p186 = scmp.ne.s32.totalorder %s169, %s185
    %p187 = scmp.eq.s32.totalorder %s17, 0
    %p188 = por %p186, %p187
    %p189 = scmp.le.s32.totalorder 1, %s11
    %p190 = scmp.lt.s32.totalorder %s11, 9
    %p191 = pnand %p189, %p190
    %p192 = pneg %p191
    // Predicated region
    $region9: #{inception_forward.9} parent=5 // pred_check
      _
    $region10: #{inception_forward.9} parent=5 // pred_check_branch
      %194 = sbr.rel (%p191) target = $region12
    $region11: #{inception_forward.9} parent=5 // pred_region
      %s195 = ssub.s32 %s11, 1
      // Predicated region
      $region13: #{inception_forward.9} parent=11 // pred_check
        %p196 = pneg %p132
      $region14: #{inception_forward.9} parent=11 // pred_check_branch
        %198 = sbr.rel (%p196) target = $region16
      $region15: #{inception_forward.9} parent=11 // pred_region
        _
      $region16: #{inception_forward.9} parent=11 // pred_fallthru
        _
      // Predicated region
      $region17: #{inception_forward.9} parent=11 // pred_check
        %p199 = pneg %p153
      $region18: #{inception_forward.9} parent=11 // pred_check_branch
        %201 = sbr.rel (%p199) target = $region20
      $region19: #{inception_forward.9} parent=11 // pred_region
        _
      $region20: #{inception_forward.9} parent=11 // pred_fallthru
        _
    $region12: #{inception_forward.9} parent=5 // pred_fallthru
      _
    %p202 = scmp.lt.s32.totalorder %s11, 8
    // Predicated region
    $region21: #{inception_forward.9} parent=5 // pred_check
      %p203 = pneg %p202
    $region22: #{inception_forward.9} parent=5 // pred_check_branch
      %205 = sbr.rel (%p203) target = $region24
    $region23: #{inception_forward.9} parent=5 // pred_region
      // Predicated region
      $region25: #{inception_forward.9} parent=23 // pred_check
        %p206 = pneg %p45
      $region26: #{inception_forward.9} parent=23 // pred_check_branch
        %208 = sbr.rel (%p206) target = $region28
      $region27: #{inception_forward.9} parent=23 // pred_region
        %p209 = scmp.lt.s32.totalorder %s18, 1
        %s210 = scalar_select %p209, %s18, 1
        %p211 = scmp.lt.s32.totalorder %s19, 5
        %s212 = scalar_select %p211, %s19, 5
        %s213 = smul.addr %s212, 20
        %s214 = smul.addr %s210, 120
        %s215 = sadd.s32 %s213, %s214
        %s216 = smul.addr %s215, 4
        %s217 = scalar_lea.vmem %s0, %s216
      $region28: #{inception_forward.9} parent=23 // pred_fallthru
        _
      // Predicated region
      $region29: #{inception_forward.9} parent=23 // pred_check
        %p218 = pneg %p75
      $region30: #{inception_forward.9} parent=23 // pred_check_branch
        %220 = sbr.rel (%p218) target = $region32
      $region31: #{inception_forward.9} parent=23 // pred_region
        %s221 = sadd.s32 %s19, 1
        %p222 = scmp.lt.s32.totalorder %s18, 1
        %s223 = scalar_select %p222, %s18, 1
        %p224 = scmp.lt.s32.totalorder %s221, 5
        %s225 = scalar_select %p224, %s221, 5
        %s226 = smul.addr %s225, 20
        %s227 = smul.addr %s223, 120
        %s228 = sadd.s32 %s226, %s227
        %s229 = smul.addr %s228, 4
        %s230 = scalar_lea.vmem %s1, %s229
        %s231 = sadd.s32 %s19, 1
      $region32: #{inception_forward.9} parent=23 // pred_fallthru
        _
      // Predicated region
      $region33: #{inception_forward.9} parent=23 // pred_check
        %p232 = pneg %p105
      $region34: #{inception_forward.9} parent=23 // pred_check_branch
        %234 = sbr.rel (%p232) target = $region36
      $region35: #{inception_forward.9} parent=23 // pred_region
        %s235 = sadd.s32 %s19, 2
        %p236 = scmp.lt.s32.totalorder %s18, 1
        %s237 = scalar_select %p236, %s18, 1
        %p238 = scmp.lt.s32.totalorder %s235, 5
        %s239 = scalar_select %p238, %s235, 5
        %s240 = smul.addr %s239, 20
        %s241 = smul.addr %s237, 120
        %s242 = sadd.s32 %s240, %s241
        %s243 = smul.addr %s242, 4
        %s244 = scalar_lea.vmem %s2, %s243
        %s245 = sadd.s32 %s19, 2
      $region36: #{inception_forward.9} parent=23 // pred_fallthru
        _
    $region24: #{inception_forward.9} parent=5 // pred_fallthru
      _
    %p246 = scmp.le.s32.totalorder 1, %s11
    %p247 = scmp.lt.s32.totalorder %s11, 9
    %p248 = pnand %p246, %p247
    %p249 = pneg %p248
    // Predicated region
    $region37: #{inception_forward.9} parent=5 // pred_check
      _
    $region38: #{inception_forward.9} parent=5 // pred_check_branch
      %251 = sbr.rel (%p248) target = $region40
    $region39: #{inception_forward.9} parent=5 // pred_region
      %s252 = ssub.s32 %s11, 1
      %p253 = scmp.lt.s32.totalorder %s20, 1
      %s254 = scalar_select %p253, %s20, 1
      %p255 = scmp.lt.s32.totalorder %s21, 5
      %s256 = scalar_select %p255, %s21, 5
      %s257 = smul.addr %s256, 20
      %s258 = smul.addr %s254, 120
      %s259 = sadd.s32 %s257, %s258
      %s260 = smul.addr %s259, 4
      %s261 = scalar_lea.vmem %s0, %s260
      %p262 = pneg %p51
      %p263 = pneg %p48
      %s264 = sadd.s32 %s21, 1
      %p265 = scmp.lt.s32.totalorder %s20, 1
      %s266 = scalar_select %p265, %s20, 1
      %p267 = scmp.lt.s32.totalorder %s264, 5
      %s268 = scalar_select %p267, %s264, 5
      %s269 = smul.addr %s268, 20
      %s270 = smul.addr %s266, 120
      %s271 = sadd.s32 %s269, %s270
      %s272 = smul.addr %s271, 4
      %s273 = scalar_lea.vmem %s1, %s272
      %p274 = pneg %p81
      %p275 = pneg %p78
      %s276 = sadd.s32 %s21, 2
      %p277 = scmp.lt.s32.totalorder %s20, 1
      %s278 = scalar_select %p277, %s20, 1
      %p279 = scmp.lt.s32.totalorder %s276, 5
      %s280 = scalar_select %p279, %s276, 5
      %s281 = smul.addr %s280, 20
      %s282 = smul.addr %s278, 120
      %s283 = sadd.s32 %s281, %s282
      %s284 = smul.addr %s283, 4
      %s285 = scalar_lea.vmem %s2, %s284
      %p286 = pneg %p111
      %p287 = pneg %p108
      %p288 = pneg %p132
      %p289 = pneg %p129
      %p290 = pneg %p153
      %p291 = pneg %p150
      %p292 = pneg %p181
      %p293 = pneg %p178
      %p294 = scmp.lt.s32.totalorder %s20, 1
      %s295 = scalar_select %p294, %s20, 1
      %p296 = scmp.lt.s32.totalorder %s21, 3
      %s297 = scalar_select %p296, %s21, 3
      %s298 = smul.addr %s297, 8
      %s299 = smul.addr %s295, 32
      %s300 = sadd.s32 %s298, %s299
      %s301 = smul.addr %s300, 8
      %s302 = scalar_lea.vmem %s5, %s301
      %p303 = scmp.lt.s32.totalorder %s20, 1
      %s304 = scalar_select %p303, %s20, 1
      %p305 = scmp.lt.s32.totalorder %s21, 5
      %s306 = scalar_select %p305, %s21, 5
      %s307 = smul.addr %s306, 20
      %s308 = smul.addr %s304, 120
      %s309 = sadd.s32 %s307, %s308
      %s310 = smul.addr %s309, 4
      %s311 = scalar_lea.vmem %s0, %s310
      %s312 = sadd.s32 %s21, 1
      %p313 = scmp.lt.s32.totalorder %s20, 1
      %s314 = scalar_select %p313, %s20, 1
      %p315 = scmp.lt.s32.totalorder %s312, 5
      %s316 = scalar_select %p315, %s312, 5
      %s317 = smul.addr %s316, 20
      %s318 = smul.addr %s314, 120
      %s319 = sadd.s32 %s317, %s318
      %s320 = smul.addr %s319, 4
      %s321 = scalar_lea.vmem %s1, %s320
      %s322 = sadd.s32 %s21, 1
      %s323 = sadd.s32 %s21, 2
      %p324 = scmp.lt.s32.totalorder %s20, 1
      %s325 = scalar_select %p324, %s20, 1
      %p326 = scmp.lt.s32.totalorder %s323, 5
      %s327 = scalar_select %p326, %s323, 5
      %s328 = smul.addr %s327, 20
      %s329 = smul.addr %s325, 120
      %s330 = sadd.s32 %s328, %s329
      %s331 = smul.addr %s330, 4
      %s332 = scalar_lea.vmem %s2, %s331
      %s333 = sadd.s32 %s21, 2
      %p334 = scmp.lt.s32.totalorder %s20, 1
      %s335 = scalar_select %p334, %s20, 1
      %p336 = scmp.lt.s32.totalorder %s21, 3
      %s337 = scalar_select %p336, %s21, 3
      %s338 = smul.addr %s337, 8
      %s339 = smul.addr %s335, 32
      %s340 = sadd.s32 %s338, %s339
      %s341 = smul.addr %s340, 8
      %s342 = scalar_lea.vmem %s5, %s341
      %v344 = vld [vmem:[%s311] sm:$0xf]
      %v345 = vld [vmem:[%s311 + $0x4] sm:$0x1]
      %v346 = vld [vmem:[%s311 + $0x8] sm:$0xf]
      %v347 = vld [vmem:[%s311 + $0xc] sm:$0x1]
      %v348 = vld [vmem:[%s311 + $0x10] sm:$0xf]
      %v349 = vld [vmem:[%s311 + $0x14] sm:$0x1]
      %v350 = vld [vmem:[%s311 + $0x18] sm:$0xf]
      %v351 = vld [vmem:[%s311 + $0x1c] sm:$0x1]
      %v352 = vld [vmem:[%s311 + $0x20] sm:$0xf]
      %v353 = vld [vmem:[%s311 + $0x24] sm:$0x1]
      %v354 = vld [vmem:[%s311 + $0x28] sm:$0xf]
      %v355 = vld [vmem:[%s311 + $0x2c] sm:$0x1]
      %v356 = vld [vmem:[%s311 + $0x30] sm:$0xf]
      %v357 = vld [vmem:[%s311 + $0x34] sm:$0x1]
      %v358 = vld [vmem:[%s311 + $0x38] sm:$0xf]
      %v359 = vld [vmem:[%s311 + $0x3c] sm:$0x1]
      %v360 = vld [vmem:[%s311 + $0x40] sm:$0xf]
      %v361 = vld [vmem:[%s311 + $0x44] sm:$0x1]
      %v362 = vld [vmem:[%s311 + $0x48] sm:$0xf]
      %v363 = vld [vmem:[%s311 + $0x4c] sm:$0x1]
      %v364 = vunpack.c.l.bf16 %v344
      %v365 = vunpack.c.l.bf16 %v346
      %v366 = vunpack.c.l.bf16 %v348
      %v367 = vunpack.c.l.bf16 %v350
      %v368 = vunpack.c.l.bf16 %v352
      %v369 = vunpack.c.l.bf16 %v354
      %v370 = vunpack.c.l.bf16 %v356
      %v371 = vunpack.c.l.bf16 %v358
      %v372 = vunpack.c.l.bf16 %v345
      %v373 = vunpack.c.l.bf16 %v347
      %v374 = vunpack.c.l.bf16 %v349
      %v375 = vunpack.c.l.bf16 %v351
      %v376 = vunpack.c.l.bf16 %v353
      %v377 = vunpack.c.l.bf16 %v355
      %v378 = vunpack.c.l.bf16 %v357
      %v379 = vunpack.c.l.bf16 %v359
      %vm396 = vcmask 1046528
      %v397 = vrot.slane %v364, 1
      %v398 = vrot.slane %v372, 1
      %v399 = vsel %vm396, %v397, %v398
      %v400 = vrot.slane %v365, 1
      %v401 = vrot.slane %v373, 1
      %v402 = vsel %vm396, %v400, %v401
      %v403 = vrot.slane %v366, 1
      %v404 = vrot.slane %v374, 1
      %v405 = vsel %vm396, %v403, %v404
      %v406 = vrot.slane %v367, 1
      %v407 = vrot.slane %v375, 1
      %v408 = vsel %vm396, %v406, %v407
      %v409 = vrot.slane %v368, 1
      %v410 = vrot.slane %v376, 1
      %v411 = vsel %vm396, %v409, %v410
      %v412 = vrot.slane %v369, 1
      %v413 = vrot.slane %v377, 1
      %v414 = vsel %vm396, %v412, %v413
      %v415 = vrot.slane %v370, 1
      %v416 = vrot.slane %v378, 1
      %v417 = vsel %vm396, %v415, %v416
      %v418 = vrot.slane %v371, 1
      %v419 = vrot.slane %v379, 1
      %v420 = vsel %vm396, %v418, %v419
      %v429 = vmax.f32 %v364, %v399
      %v430 = vmax.f32 %v365, %v402
      %v431 = vmax.f32 %v366, %v405
      %v432 = vmax.f32 %v367, %v408
      %v433 = vmax.f32 %v368, %v411
      %v434 = vmax.f32 %v369, %v414
      %v435 = vmax.f32 %v370, %v417
      %v436 = vmax.f32 %v371, %v420
      %v437 = vpack.c.bf16 %v429, %v429
      %v438 = vpack.c.bf16 %v430, %v430
      %v439 = vpack.c.bf16 %v431, %v431
      %v440 = vpack.c.bf16 %v432, %v432
      %v441 = vpack.c.bf16 %v433, %v433
      %v442 = vpack.c.bf16 %v434, %v434
      %v443 = vpack.c.bf16 %v435, %v435
      %v444 = vpack.c.bf16 %v436, %v436
      %v445 = vunpack.c.l.bf16 %v437
      %v446 = vunpack.c.l.bf16 %v438
      %v447 = vunpack.c.l.bf16 %v439
      %v448 = vunpack.c.l.bf16 %v440
      %v449 = vunpack.c.l.bf16 %v441
      %v450 = vunpack.c.l.bf16 %v442
      %v451 = vunpack.c.l.bf16 %v443
      %v452 = vunpack.c.l.bf16 %v444
      %vm453 = vcmask 1045504
      %v454 = vrot.slane %v364, 2
      %v455 = vrot.slane %v372, 2
      %v456 = vsel %vm453, %v454, %v455
      %v457 = vrot.slane %v365, 2
      %v458 = vrot.slane %v373, 2
      %v459 = vsel %vm453, %v457, %v458
      %v460 = vrot.slane %v366, 2
      %v461 = vrot.slane %v374, 2
      %v462 = vsel %vm453, %v460, %v461
      %v463 = vrot.slane %v367, 2
      %v464 = vrot.slane %v375, 2
      %v465 = vsel %vm453, %v463, %v464
      %v466 = vrot.slane %v368, 2
      %v467 = vrot.slane %v376, 2
      %v468 = vsel %vm453, %v466, %v467
      %v469 = vrot.slane %v369, 2
      %v470 = vrot.slane %v377, 2
      %v471 = vsel %vm453, %v469, %v470
      %v472 = vrot.slane %v370, 2
      %v473 = vrot.slane %v378, 2
      %v474 = vsel %vm453, %v472, %v473
      %v475 = vrot.slane %v371, 2
      %v476 = vrot.slane %v379, 2
      %v477 = vsel %vm453, %v475, %v476
      %v486 = vmax.f32 %v445, %v456
      %v487 = vmax.f32 %v446, %v459
      %v488 = vmax.f32 %v447, %v462
      %v489 = vmax.f32 %v448, %v465
      %v490 = vmax.f32 %v449, %v468
      %v491 = vmax.f32 %v450, %v471
      %v492 = vmax.f32 %v451, %v474
      %v493 = vmax.f32 %v452, %v477
      %v494 = vpack.c.bf16 %v486, %v486
      %v495 = vpack.c.bf16 %v487, %v487
      %v496 = vpack.c.bf16 %v488, %v488
      %v497 = vpack.c.bf16 %v489, %v489
      %v498 = vpack.c.bf16 %v490, %v490
      %v499 = vpack.c.bf16 %v491, %v491
      %v500 = vpack.c.bf16 %v492, %v492
      %v501 = vpack.c.bf16 %v493, %v493
      %v502 = vunpack.c.l.bf16 %v494
      %v503 = vunpack.c.l.bf16 %v495
      %v504 = vunpack.c.l.bf16 %v496
      %v505 = vunpack.c.l.bf16 %v497
      %v506 = vunpack.c.l.bf16 %v498
      %v507 = vunpack.c.l.bf16 %v499
      %v508 = vunpack.c.l.bf16 %v500
      %v509 = vunpack.c.l.bf16 %v501
      %v510 = vunpack.c.l.bf16 %v360
      %v511 = vmax.f32 %v502, %v365
      %v512 = vmax.f32 %v503, %v366
      %v513 = vmax.f32 %v504, %v367
      %v514 = vmax.f32 %v505, %v368
      %v515 = vmax.f32 %v506, %v369
      %v516 = vmax.f32 %v507, %v370
      %v517 = vmax.f32 %v508, %v371
      %v518 = vmax.f32 %v509, %v510
      %v519 = vpack.c.bf16 %v511, %v511
      %v520 = vpack.c.bf16 %v512, %v512
      %v521 = vpack.c.bf16 %v513, %v513
      %v522 = vpack.c.bf16 %v514, %v514
      %v523 = vpack.c.bf16 %v515, %v515
      %v524 = vpack.c.bf16 %v516, %v516
      %v525 = vpack.c.bf16 %v517, %v517
      %v526 = vpack.c.bf16 %v518, %v518
      %v527 = vunpack.c.l.bf16 %v519
      %v528 = vunpack.c.l.bf16 %v520
      %v529 = vunpack.c.l.bf16 %v521
      %v530 = vunpack.c.l.bf16 %v522
      %v531 = vunpack.c.l.bf16 %v523
      %v532 = vunpack.c.l.bf16 %v524
      %v533 = vunpack.c.l.bf16 %v525
      %v534 = vunpack.c.l.bf16 %v526
      %v535 = vunpack.c.l.bf16 %v361
      %v538 = vrot.slane %v510, 1
      %v539 = vrot.slane %v535, 1
      %v540 = vsel %vm396, %v538, %v539
      %v542 = vmax.f32 %v527, %v402
      %v543 = vmax.f32 %v528, %v405
      %v544 = vmax.f32 %v529, %v408
      %v545 = vmax.f32 %v530, %v411
      %v546 = vmax.f32 %v531, %v414
      %v547 = vmax.f32 %v532, %v417
      %v548 = vmax.f32 %v533, %v420
      %v549 = vmax.f32 %v534, %v540
      %v550 = vpack.c.bf16 %v542, %v542
      %v551 = vpack.c.bf16 %v543, %v543
      %v552 = vpack.c.bf16 %v544, %v544
      %v553 = vpack.c.bf16 %v545, %v545
      %v554 = vpack.c.bf16 %v546, %v546
      %v555 = vpack.c.bf16 %v547, %v547
      %v556 = vpack.c.bf16 %v548, %v548
      %v557 = vpack.c.bf16 %v549, %v549
      %v558 = vunpack.c.l.bf16 %v550
      %v559 = vunpack.c.l.bf16 %v551
      %v560 = vunpack.c.l.bf16 %v552
      %v561 = vunpack.c.l.bf16 %v553
      %v562 = vunpack.c.l.bf16 %v554
      %v563 = vunpack.c.l.bf16 %v555
      %v564 = vunpack.c.l.bf16 %v556
      %v565 = vunpack.c.l.bf16 %v557
      %v566 = vrot.slane %v510, 2
      %v567 = vrot.slane %v535, 2
      %v568 = vsel %vm453, %v566, %v567
      %v570 = vmax.f32 %v558, %v459
      %v571 = vmax.f32 %v559, %v462
      %v572 = vmax.f32 %v560, %v465
      %v573 = vmax.f32 %v561, %v468
      %v574 = vmax.f32 %v562, %v471
      %v575 = vmax.f32 %v563, %v474
      %v576 = vmax.f32 %v564, %v477
      %v577 = vmax.f32 %v565, %v568
      %v578 = vpack.c.bf16 %v570, %v570
      %v579 = vpack.c.bf16 %v571, %v571
      %v580 = vpack.c.bf16 %v572, %v572
      %v581 = vpack.c.bf16 %v573, %v573
      %v582 = vpack.c.bf16 %v574, %v574
      %v583 = vpack.c.bf16 %v575, %v575
      %v584 = vpack.c.bf16 %v576, %v576
      %v585 = vpack.c.bf16 %v577, %v577
      %v586 = vunpack.c.l.bf16 %v578
      %v587 = vunpack.c.l.bf16 %v579
      %v588 = vunpack.c.l.bf16 %v580
      %v589 = vunpack.c.l.bf16 %v581
      %v590 = vunpack.c.l.bf16 %v582
      %v591 = vunpack.c.l.bf16 %v583
      %v592 = vunpack.c.l.bf16 %v584
      %v593 = vunpack.c.l.bf16 %v585
      %v594 = vunpack.c.l.bf16 %v362
      %v595 = vmax.f32 %v586, %v366
      %v596 = vmax.f32 %v587, %v367
      %v597 = vmax.f32 %v588, %v368
      %v598 = vmax.f32 %v589, %v369
      %v599 = vmax.f32 %v590, %v370
      %v600 = vmax.f32 %v591, %v371
      %v601 = vmax.f32 %v592, %v510
      %v602 = vmax.f32 %v593, %v594
      %v603 = vpack.c.bf16 %v595, %v595
      %v604 = vpack.c.bf16 %v596, %v596
      %v605 = vpack.c.bf16 %v597, %v597
      %v606 = vpack.c.bf16 %v598, %v598
      %v607 = vpack.c.bf16 %v599, %v599
      %v608 = vpack.c.bf16 %v600, %v600
      %v609 = vpack.c.bf16 %v601, %v601
      %v610 = vpack.c.bf16 %v602, %v602
      %v611 = vunpack.c.l.bf16 %v603
      %v612 = vunpack.c.l.bf16 %v604
      %v613 = vunpack.c.l.bf16 %v605
      %v614 = vunpack.c.l.bf16 %v606
      %v615 = vunpack.c.l.bf16 %v607
      %v616 = vunpack.c.l.bf16 %v608
      %v617 = vunpack.c.l.bf16 %v609
      %v618 = vunpack.c.l.bf16 %v610
      %v619 = vunpack.c.l.bf16 %v363
      %v622 = vrot.slane %v594, 1
      %v623 = vrot.slane %v619, 1
      %v624 = vsel %vm396, %v622, %v623
      %v626 = vmax.f32 %v611, %v405
      %v627 = vmax.f32 %v612, %v408
      %v628 = vmax.f32 %v613, %v411
      %v629 = vmax.f32 %v614, %v414
      %v630 = vmax.f32 %v615, %v417
      %v631 = vmax.f32 %v616, %v420
      %v632 = vmax.f32 %v617, %v540
      %v633 = vmax.f32 %v618, %v624
      %v634 = vpack.c.bf16 %v626, %v626
      %v635 = vpack.c.bf16 %v627, %v627
      %v636 = vpack.c.bf16 %v628, %v628
      %v637 = vpack.c.bf16 %v629, %v629
      %v638 = vpack.c.bf16 %v630, %v630
      %v639 = vpack.c.bf16 %v631, %v631
      %v640 = vpack.c.bf16 %v632, %v632
      %v641 = vpack.c.bf16 %v633, %v633
      %v642 = vunpack.c.l.bf16 %v634
      %v643 = vunpack.c.l.bf16 %v635
      %v644 = vunpack.c.l.bf16 %v636
      %v645 = vunpack.c.l.bf16 %v637
      %v646 = vunpack.c.l.bf16 %v638
      %v647 = vunpack.c.l.bf16 %v639
      %v648 = vunpack.c.l.bf16 %v640
      %v649 = vunpack.c.l.bf16 %v641
      %v650 = vrot.slane %v594, 2
      %v651 = vrot.slane %v619, 2
      %v652 = vsel %vm453, %v650, %v651
      %v654 = vmax.f32 %v642, %v462
      %v655 = vmax.f32 %v643, %v465
      %v656 = vmax.f32 %v644, %v468
      %v657 = vmax.f32 %v645, %v471
      %v658 = vmax.f32 %v646, %v474
      %v659 = vmax.f32 %v647, %v477
      %v660 = vmax.f32 %v648, %v568
      %v661 = vmax.f32 %v649, %v652
      %v662 = vpack.c.bf16 %v654, %v654
      %v663 = vpack.c.bf16 %v655, %v655
      %v664 = vpack.c.bf16 %v656, %v656
      %v665 = vpack.c.bf16 %v657, %v657
      %v666 = vpack.c.bf16 %v658, %v658
      %v667 = vpack.c.bf16 %v659, %v659
      %v668 = vpack.c.bf16 %v660, %v660
      %v669 = vpack.c.bf16 %v661, %v661
      %v670 = vld [vmem:[%s321] sm:$0xf]
      %v671 = vld [vmem:[%s321 + $0x4] sm:$0x1]
      %v672 = vld [vmem:[%s321 + $0x8] sm:$0xf]
      %v673 = vld [vmem:[%s321 + $0xc] sm:$0x1]
      %v674 = vld [vmem:[%s321 + $0x10] sm:$0xf]
      %v675 = vld [vmem:[%s321 + $0x14] sm:$0x1]
      %v676 = vld [vmem:[%s321 + $0x18] sm:$0xf]
      %v677 = vld [vmem:[%s321 + $0x1c] sm:$0x1]
      %v678 = vld [vmem:[%s321 + $0x20] sm:$0xf]
      %v679 = vld [vmem:[%s321 + $0x24] sm:$0x1]
      %v680 = vld [vmem:[%s321 + $0x28] sm:$0xf]
      %v681 = vld [vmem:[%s321 + $0x2c] sm:$0x1]
      %v682 = vld [vmem:[%s321 + $0x30] sm:$0xf]
      %v683 = vld [vmem:[%s321 + $0x34] sm:$0x1]
      %v684 = vld [vmem:[%s321 + $0x38] sm:$0xf]
      %v685 = vld [vmem:[%s321 + $0x3c] sm:$0x1]
      %v686 = vld [vmem:[%s321 + $0x40] sm:$0xf]
      %v687 = vld [vmem:[%s321 + $0x44] sm:$0x1]
      %v688 = vld [vmem:[%s321 + $0x48] sm:$0xf]
      %v689 = vld [vmem:[%s321 + $0x4c] sm:$0x1]
      %v690 = vunpack.c.l.bf16 %v662
      %v691 = vunpack.c.l.bf16 %v663
      %v692 = vunpack.c.l.bf16 %v664
      %v693 = vunpack.c.l.bf16 %v665
      %v694 = vunpack.c.l.bf16 %v666
      %v695 = vunpack.c.l.bf16 %v667
      %v696 = vunpack.c.l.bf16 %v668
      %v697 = vunpack.c.l.bf16 %v669
      %v698 = vunpack.c.l.bf16 %v670
      %v699 = vunpack.c.l.bf16 %v672
      %v700 = vunpack.c.l.bf16 %v674
      %v701 = vunpack.c.l.bf16 %v676
      %v702 = vunpack.c.l.bf16 %v678
      %v703 = vunpack.c.l.bf16 %v680
      %v704 = vunpack.c.l.bf16 %v682
      %v705 = vunpack.c.l.bf16 %v684
      %v706 = vmax.f32 %v690, %v698
      %v707 = vmax.f32 %v691, %v699
      %v708 = vmax.f32 %v692, %v700
      %v709 = vmax.f32 %v693, %v701
      %v710 = vmax.f32 %v694, %v702
      %v711 = vmax.f32 %v695, %v703
      %v712 = vmax.f32 %v696, %v704
      %v713 = vmax.f32 %v697, %v705
      %v714 = vpack.c.bf16 %v706, %v706
      %v715 = vpack.c.bf16 %v707, %v707
      %v716 = vpack.c.bf16 %v708, %v708
      %v717 = vpack.c.bf16 %v709, %v709
      %v718 = vpack.c.bf16 %v710, %v710
      %v719 = vpack.c.bf16 %v711, %v711
      %v720 = vpack.c.bf16 %v712, %v712
      %v721 = vpack.c.bf16 %v713, %v713
      %v722 = vunpack.c.l.bf16 %v714
      %v723 = vunpack.c.l.bf16 %v715
      %v724 = vunpack.c.l.bf16 %v716
      %v725 = vunpack.c.l.bf16 %v717
      %v726 = vunpack.c.l.bf16 %v718
      %v727 = vunpack.c.l.bf16 %v719
      %v728 = vunpack.c.l.bf16 %v720
      %v729 = vunpack.c.l.bf16 %v721
      %v730 = vunpack.c.l.bf16 %v671
      %v731 = vunpack.c.l.bf16 %v673
      %v732 = vunpack.c.l.bf16 %v675
      %v733 = vunpack.c.l.bf16 %v677
      %v734 = vunpack.c.l.bf16 %v679
      %v735 = vunpack.c.l.bf16 %v681
      %v736 = vunpack.c.l.bf16 %v683
      %v737 = vunpack.c.l.bf16 %v685
      %v754 = vrot.slane %v698, 1
      %v755 = vrot.slane %v730, 1
      %v756 = vsel %vm396, %v754, %v755
      %v757 = vrot.slane %v699, 1
      %v758 = vrot.slane %v731, 1
      %v759 = vsel %vm396, %v757, %v758
      %v760 = vrot.slane %v700, 1
      %v761 = vrot.slane %v732, 1
      %v762 = vsel %vm396, %v760, %v761
      %v763 = vrot.slane %v701, 1
      %v764 = vrot.slane %v733, 1
      %v765 = vsel %vm396, %v763, %v764
      %v766 = vrot.slane %v702, 1
      %v767 = vrot.slane %v734, 1
      %v768 = vsel %vm396, %v766, %v767
      %v769 = vrot.slane %v703, 1
      %v770 = vrot.slane %v735, 1
      %v771 = vsel %vm396, %v769, %v770
      %v772 = vrot.slane %v704, 1
      %v773 = vrot.slane %v736, 1
      %v774 = vsel %vm396, %v772, %v773
      %v775 = vrot.slane %v705, 1
      %v776 = vrot.slane %v737, 1
      %v777 = vsel %vm396, %v775, %v776
      %v786 = vmax.f32 %v722, %v756
      %v787 = vmax.f32 %v723, %v759
      %v788 = vmax.f32 %v724, %v762
      %v789 = vmax.f32 %v725, %v765
      %v790 = vmax.f32 %v726, %v768
      %v791 = vmax.f32 %v727, %v771
      %v792 = vmax.f32 %v728, %v774
      %v793 = vmax.f32 %v729, %v777
      %v794 = vpack.c.bf16 %v786, %v786
      %v795 = vpack.c.bf16 %v787, %v787
      %v796 = vpack.c.bf16 %v788, %v788
      %v797 = vpack.c.bf16 %v789, %v789
      %v798 = vpack.c.bf16 %v790, %v790
      %v799 = vpack.c.bf16 %v791, %v791
      %v800 = vpack.c.bf16 %v792, %v792
      %v801 = vpack.c.bf16 %v793, %v793
      %v802 = vunpack.c.l.bf16 %v794
      %v803 = vunpack.c.l.bf16 %v795
      %v804 = vunpack.c.l.bf16 %v796
      %v805 = vunpack.c.l.bf16 %v797
      %v806 = vunpack.c.l.bf16 %v798
      %v807 = vunpack.c.l.bf16 %v799
      %v808 = vunpack.c.l.bf16 %v800
      %v809 = vunpack.c.l.bf16 %v801
      %v810 = vrot.slane %v698, 2
      %v811 = vrot.slane %v730, 2
      %v812 = vsel %vm453, %v810, %v811
      %v813 = vrot.slane %v699, 2
      %v814 = vrot.slane %v731, 2
      %v815 = vsel %vm453, %v813, %v814
      %v816 = vrot.slane %v700, 2
      %v817 = vrot.slane %v732, 2
      %v818 = vsel %vm453, %v816, %v817
      %v819 = vrot.slane %v701, 2
      %v820 = vrot.slane %v733, 2
      %v821 = vsel %vm453, %v819, %v820
      %v822 = vrot.slane %v702, 2
      %v823 = vrot.slane %v734, 2
      %v824 = vsel %vm453, %v822, %v823
      %v825 = vrot.slane %v703, 2
      %v826 = vrot.slane %v735, 2
      %v827 = vsel %vm453, %v825, %v826
      %v828 = vrot.slane %v704, 2
      %v829 = vrot.slane %v736, 2
      %v830 = vsel %vm453, %v828, %v829
      %v831 = vrot.slane %v705, 2
      %v832 = vrot.slane %v737, 2
      %v833 = vsel %vm453, %v831, %v832
      %v842 = vmax.f32 %v802, %v812
      %v843 = vmax.f32 %v803, %v815
      %v844 = vmax.f32 %v804, %v818
      %v845 = vmax.f32 %v805, %v821
      %v846 = vmax.f32 %v806, %v824
      %v847 = vmax.f32 %v807, %v827
      %v848 = vmax.f32 %v808, %v830
      %v849 = vmax.f32 %v809, %v833
      %v850 = vpack.c.bf16 %v842, %v842
      %v851 = vpack.c.bf16 %v843, %v843
      %v852 = vpack.c.bf16 %v844, %v844
      %v853 = vpack.c.bf16 %v845, %v845
      %v854 = vpack.c.bf16 %v846, %v846
      %v855 = vpack.c.bf16 %v847, %v847
      %v856 = vpack.c.bf16 %v848, %v848
      %v857 = vpack.c.bf16 %v849, %v849
      %v858 = vunpack.c.l.bf16 %v850
      %v859 = vunpack.c.l.bf16 %v851
      %v860 = vunpack.c.l.bf16 %v852
      %v861 = vunpack.c.l.bf16 %v853
      %v862 = vunpack.c.l.bf16 %v854
      %v863 = vunpack.c.l.bf16 %v855
      %v864 = vunpack.c.l.bf16 %v856
      %v865 = vunpack.c.l.bf16 %v857
      %v866 = vunpack.c.l.bf16 %v686
      %v867 = vmax.f32 %v858, %v699
      %v868 = vmax.f32 %v859, %v700
      %v869 = vmax.f32 %v860, %v701
      %v870 = vmax.f32 %v861, %v702
      %v871 = vmax.f32 %v862, %v703
      %v872 = vmax.f32 %v863, %v704
      %v873 = vmax.f32 %v864, %v705
      %v874 = vmax.f32 %v865, %v866
      %v875 = vpack.c.bf16 %v867, %v867
      %v876 = vpack.c.bf16 %v868, %v868
      %v877 = vpack.c.bf16 %v869, %v869
      %v878 = vpack.c.bf16 %v870, %v870
      %v879 = vpack.c.bf16 %v871, %v871
      %v880 = vpack.c.bf16 %v872, %v872
      %v881 = vpack.c.bf16 %v873, %v873
      %v882 = vpack.c.bf16 %v874, %v874
      %v883 = vunpack.c.l.bf16 %v875
      %v884 = vunpack.c.l.bf16 %v876
      %v885 = vunpack.c.l.bf16 %v877
      %v886 = vunpack.c.l.bf16 %v878
      %v887 = vunpack.c.l.bf16 %v879
      %v888 = vunpack.c.l.bf16 %v880
      %v889 = vunpack.c.l.bf16 %v881
      %v890 = vunpack.c.l.bf16 %v882
      %v891 = vunpack.c.l.bf16 %v687
      %v894 = vrot.slane %v866, 1
      %v895 = vrot.slane %v891, 1
      %v896 = vsel %vm396, %v894, %v895
      %v898 = vmax.f32 %v883, %v759
      %v899 = vmax.f32 %v884, %v762
      %v900 = vmax.f32 %v885, %v765
      %v901 = vmax.f32 %v886, %v768
      %v902 = vmax.f32 %v887, %v771
      %v903 = vmax.f32 %v888, %v774
      %v904 = vmax.f32 %v889, %v777
      %v905 = vmax.f32 %v890, %v896
      %v906 = vpack.c.bf16 %v898, %v898
      %v907 = vpack.c.bf16 %v899, %v899
      %v908 = vpack.c.bf16 %v900, %v900
      %v909 = vpack.c.bf16 %v901, %v901
      %v910 = vpack.c.bf16 %v902, %v902
      %v911 = vpack.c.bf16 %v903, %v903
      %v912 = vpack.c.bf16 %v904, %v904
      %v913 = vpack.c.bf16 %v905, %v905
      %v914 = vunpack.c.l.bf16 %v906
      %v915 = vunpack.c.l.bf16 %v907
      %v916 = vunpack.c.l.bf16 %v908
      %v917 = vunpack.c.l.bf16 %v909
      %v918 = vunpack.c.l.bf16 %v910
      %v919 = vunpack.c.l.bf16 %v911
      %v920 = vunpack.c.l.bf16 %v912
      %v921 = vunpack.c.l.bf16 %v913
      %v922 = vrot.slane %v866, 2
      %v923 = vrot.slane %v891, 2
      %v924 = vsel %vm453, %v922, %v923
      %v926 = vmax.f32 %v914, %v815
      %v927 = vmax.f32 %v915, %v818
      %v928 = vmax.f32 %v916, %v821
      %v929 = vmax.f32 %v917, %v824
      %v930 = vmax.f32 %v918, %v827
      %v931 = vmax.f32 %v919, %v830
      %v932 = vmax.f32 %v920, %v833
      %v933 = vmax.f32 %v921, %v924
      %v934 = vpack.c.bf16 %v926, %v926
      %v935 = vpack.c.bf16 %v927, %v927
      %v936 = vpack.c.bf16 %v928, %v928
      %v937 = vpack.c.bf16 %v929, %v929
      %v938 = vpack.c.bf16 %v930, %v930
      %v939 = vpack.c.bf16 %v931, %v931
      %v940 = vpack.c.bf16 %v932, %v932
      %v941 = vpack.c.bf16 %v933, %v933
      %v942 = vunpack.c.l.bf16 %v934
      %v943 = vunpack.c.l.bf16 %v935
      %v944 = vunpack.c.l.bf16 %v936
      %v945 = vunpack.c.l.bf16 %v937
      %v946 = vunpack.c.l.bf16 %v938
      %v947 = vunpack.c.l.bf16 %v939
      %v948 = vunpack.c.l.bf16 %v940
      %v949 = vunpack.c.l.bf16 %v941
      %v950 = vunpack.c.l.bf16 %v688
      %v951 = vmax.f32 %v942, %v700
      %v952 = vmax.f32 %v943, %v701
      %v953 = vmax.f32 %v944, %v702
      %v954 = vmax.f32 %v945, %v703
      %v955 = vmax.f32 %v946, %v704
      %v956 = vmax.f32 %v947, %v705
      %v957 = vmax.f32 %v948, %v866
      %v958 = vmax.f32 %v949, %v950
      %v959 = vpack.c.bf16 %v951, %v951
      %v960 = vpack.c.bf16 %v952, %v952
      %v961 = vpack.c.bf16 %v953, %v953
      %v962 = vpack.c.bf16 %v954, %v954
      %v963 = vpack.c.bf16 %v955, %v955
      %v964 = vpack.c.bf16 %v956, %v956
      %v965 = vpack.c.bf16 %v957, %v957
      %v966 = vpack.c.bf16 %v958, %v958
      %v967 = vunpack.c.l.bf16 %v959
      %v968 = vunpack.c.l.bf16 %v960
      %v969 = vunpack.c.l.bf16 %v961
      %v970 = vunpack.c.l.bf16 %v962
      %v971 = vunpack.c.l.bf16 %v963
      %v972 = vunpack.c.l.bf16 %v964
      %v973 = vunpack.c.l.bf16 %v965
      %v974 = vunpack.c.l.bf16 %v966
      %v975 = vunpack.c.l.bf16 %v689
      %v978 = vrot.slane %v950, 1
      %v979 = vrot.slane %v975, 1
      %v980 = vsel %vm396, %v978, %v979
      %v982 = vmax.f32 %v967, %v762
      %v983 = vmax.f32 %v968, %v765
      %v984 = vmax.f32 %v969, %v768
      %v985 = vmax.f32 %v970, %v771
      %v986 = vmax.f32 %v971, %v774
      %v987 = vmax.f32 %v972, %v777
      %v988 = vmax.f32 %v973, %v896
      %v989 = vmax.f32 %v974, %v980
      %v990 = vpack.c.bf16 %v982, %v982
      %v991 = vpack.c.bf16 %v983, %v983
      %v992 = vpack.c.bf16 %v984, %v984
      %v993 = vpack.c.bf16 %v985, %v985
      %v994 = vpack.c.bf16 %v986, %v986
      %v995 = vpack.c.bf16 %v987, %v987
      %v996 = vpack.c.bf16 %v988, %v988
      %v997 = vpack.c.bf16 %v989, %v989
      %v998 = vunpack.c.l.bf16 %v990
      %v999 = vunpack.c.l.bf16 %v991
      %v1000 = vunpack.c.l.bf16 %v992
      %v1001 = vunpack.c.l.bf16 %v993
      %v1002 = vunpack.c.l.bf16 %v994
      %v1003 = vunpack.c.l.bf16 %v995
      %v1004 = vunpack.c.l.bf16 %v996
      %v1005 = vunpack.c.l.bf16 %v997
      %v1006 = vrot.slane %v950, 2
      %v1007 = vrot.slane %v975, 2
      %v1008 = vsel %vm453, %v1006, %v1007
      %v1010 = vmax.f32 %v998, %v818
      %v1011 = vmax.f32 %v999, %v821
      %v1012 = vmax.f32 %v1000, %v824
      %v1013 = vmax.f32 %v1001, %v827
      %v1014 = vmax.f32 %v1002, %v830
      %v1015 = vmax.f32 %v1003, %v833
      %v1016 = vmax.f32 %v1004, %v924
      %v1017 = vmax.f32 %v1005, %v1008
      %v1018 = vpack.c.bf16 %v1010, %v1010
      %v1019 = vpack.c.bf16 %v1011, %v1011
      %v1020 = vpack.c.bf16 %v1012, %v1012
      %v1021 = vpack.c.bf16 %v1013, %v1013
      %v1022 = vpack.c.bf16 %v1014, %v1014
      %v1023 = vpack.c.bf16 %v1015, %v1015
      %v1024 = vpack.c.bf16 %v1016, %v1016
      %v1025 = vpack.c.bf16 %v1017, %v1017
      %v1026 = vld [vmem:[%s332] sm:$0xf]
      %v1027 = vld [vmem:[%s332 + $0x4] sm:$0x1]
      %v1028 = vld [vmem:[%s332 + $0x8] sm:$0xf]
      %v1029 = vld [vmem:[%s332 + $0xc] sm:$0x1]
      %v1030 = vld [vmem:[%s332 + $0x10] sm:$0xf]
      %v1031 = vld [vmem:[%s332 + $0x14] sm:$0x1]
      %v1032 = vld [vmem:[%s332 + $0x18] sm:$0xf]
      %v1033 = vld [vmem:[%s332 + $0x1c] sm:$0x1]
      %v1034 = vld [vmem:[%s332 + $0x20] sm:$0xf]
      %v1035 = vld [vmem:[%s332 + $0x24] sm:$0x1]
      %v1036 = vld [vmem:[%s332 + $0x28] sm:$0xf]
      %v1037 = vld [vmem:[%s332 + $0x2c] sm:$0x1]
      %v1038 = vld [vmem:[%s332 + $0x30] sm:$0xf]
      %v1039 = vld [vmem:[%s332 + $0x34] sm:$0x1]
      %v1040 = vld [vmem:[%s332 + $0x38] sm:$0xf]
      %v1041 = vld [vmem:[%s332 + $0x3c] sm:$0x1]
      %v1042 = vld [vmem:[%s332 + $0x40] sm:$0xf]
      %v1043 = vld [vmem:[%s332 + $0x44] sm:$0x1]
      %v1044 = vld [vmem:[%s332 + $0x48] sm:$0xf]
      %v1045 = vld [vmem:[%s332 + $0x4c] sm:$0x1]
      %v1046 = vunpack.c.l.bf16 %v1018
      %v1047 = vunpack.c.l.bf16 %v1019
      %v1048 = vunpack.c.l.bf16 %v1020
      %v1049 = vunpack.c.l.bf16 %v1021
      %v1050 = vunpack.c.l.bf16 %v1022
      %v1051 = vunpack.c.l.bf16 %v1023
      %v1052 = vunpack.c.l.bf16 %v1024
      %v1053 = vunpack.c.l.bf16 %v1025
      %v1054 = vunpack.c.l.bf16 %v1026
      %v1055 = vunpack.c.l.bf16 %v1028
      %v1056 = vunpack.c.l.bf16 %v1030
      %v1057 = vunpack.c.l.bf16 %v1032
      %v1058 = vunpack.c.l.bf16 %v1034
      %v1059 = vunpack.c.l.bf16 %v1036
      %v1060 = vunpack.c.l.bf16 %v1038
      %v1061 = vunpack.c.l.bf16 %v1040
      %v1062 = vmax.f32 %v1046, %v1054
      %v1063 = vmax.f32 %v1047, %v1055
      %v1064 = vmax.f32 %v1048, %v1056
      %v1065 = vmax.f32 %v1049, %v1057
      %v1066 = vmax.f32 %v1050, %v1058
      %v1067 = vmax.f32 %v1051, %v1059
      %v1068 = vmax.f32 %v1052, %v1060
      %v1069 = vmax.f32 %v1053, %v1061
      %v1070 = vpack.c.bf16 %v1062, %v1062
      %v1071 = vpack.c.bf16 %v1063, %v1063
      %v1072 = vpack.c.bf16 %v1064, %v1064
      %v1073 = vpack.c.bf16 %v1065, %v1065
      %v1074 = vpack.c.bf16 %v1066, %v1066
      %v1075 = vpack.c.bf16 %v1067, %v1067
      %v1076 = vpack.c.bf16 %v1068, %v1068
      %v1077 = vpack.c.bf16 %v1069, %v1069
      %v1078 = vunpack.c.l.bf16 %v1070
      %v1079 = vunpack.c.l.bf16 %v1071
      %v1080 = vunpack.c.l.bf16 %v1072
      %v1081 = vunpack.c.l.bf16 %v1073
      %v1082 = vunpack.c.l.bf16 %v1074
      %v1083 = vunpack.c.l.bf16 %v1075
      %v1084 = vunpack.c.l.bf16 %v1076
      %v1085 = vunpack.c.l.bf16 %v1077
      %v1086 = vunpack.c.l.bf16 %v1027
      %v1087 = vunpack.c.l.bf16 %v1029
      %v1088 = vunpack.c.l.bf16 %v1031
      %v1089 = vunpack.c.l.bf16 %v1033
      %v1090 = vunpack.c.l.bf16 %v1035
      %v1091 = vunpack.c.l.bf16 %v1037
      %v1092 = vunpack.c.l.bf16 %v1039
      %v1093 = vunpack.c.l.bf16 %v1041
      %v1110 = vrot.slane %v1054, 1
      %v1111 = vrot.slane %v1086, 1
      %v1112 = vsel %vm396, %v1110, %v1111
      %v1113 = vrot.slane %v1055, 1
      %v1114 = vrot.slane %v1087, 1
      %v1115 = vsel %vm396, %v1113, %v1114
      %v1116 = vrot.slane %v1056, 1
      %v1117 = vrot.slane %v1088, 1
      %v1118 = vsel %vm396, %v1116, %v1117
      %v1119 = vrot.slane %v1057, 1
      %v1120 = vrot.slane %v1089, 1
      %v1121 = vsel %vm396, %v1119, %v1120
      %v1122 = vrot.slane %v1058, 1
      %v1123 = vrot.slane %v1090, 1
      %v1124 = vsel %vm396, %v1122, %v1123
      %v1125 = vrot.slane %v1059, 1
      %v1126 = vrot.slane %v1091, 1
      %v1127 = vsel %vm396, %v1125, %v1126
      %v1128 = vrot.slane %v1060, 1
      %v1129 = vrot.slane %v1092, 1
      %v1130 = vsel %vm396, %v1128, %v1129
      %v1131 = vrot.slane %v1061, 1
      %v1132 = vrot.slane %v1093, 1
      %v1133 = vsel %vm396, %v1131, %v1132
      %v1142 = vmax.f32 %v1078, %v1112
      %v1143 = vmax.f32 %v1079, %v1115
      %v1144 = vmax.f32 %v1080, %v1118
      %v1145 = vmax.f32 %v1081, %v1121
      %v1146 = vmax.f32 %v1082, %v1124
      %v1147 = vmax.f32 %v1083, %v1127
      %v1148 = vmax.f32 %v1084, %v1130
      %v1149 = vmax.f32 %v1085, %v1133
      %v1150 = vpack.c.bf16 %v1142, %v1142
      %v1151 = vpack.c.bf16 %v1143, %v1143
      %v1152 = vpack.c.bf16 %v1144, %v1144
      %v1153 = vpack.c.bf16 %v1145, %v1145
      %v1154 = vpack.c.bf16 %v1146, %v1146
      %v1155 = vpack.c.bf16 %v1147, %v1147
      %v1156 = vpack.c.bf16 %v1148, %v1148
      %v1157 = vpack.c.bf16 %v1149, %v1149
      %v1158 = vunpack.c.l.bf16 %v1150
      %v1159 = vunpack.c.l.bf16 %v1151
      %v1160 = vunpack.c.l.bf16 %v1152
      %v1161 = vunpack.c.l.bf16 %v1153
      %v1162 = vunpack.c.l.bf16 %v1154
      %v1163 = vunpack.c.l.bf16 %v1155
      %v1164 = vunpack.c.l.bf16 %v1156
      %v1165 = vunpack.c.l.bf16 %v1157
      %v1166 = vrot.slane %v1054, 2
      %v1167 = vrot.slane %v1086, 2
      %v1168 = vsel %vm453, %v1166, %v1167
      %v1169 = vrot.slane %v1055, 2
      %v1170 = vrot.slane %v1087, 2
      %v1171 = vsel %vm453, %v1169, %v1170
      %v1172 = vrot.slane %v1056, 2
      %v1173 = vrot.slane %v1088, 2
      %v1174 = vsel %vm453, %v1172, %v1173
      %v1175 = vrot.slane %v1057, 2
      %v1176 = vrot.slane %v1089, 2
      %v1177 = vsel %vm453, %v1175, %v1176
      %v1178 = vrot.slane %v1058, 2
      %v1179 = vrot.slane %v1090, 2
      %v1180 = vsel %vm453, %v1178, %v1179
      %v1181 = vrot.slane %v1059, 2
      %v1182 = vrot.slane %v1091, 2
      %v1183 = vsel %vm453, %v1181, %v1182
      %v1184 = vrot.slane %v1060, 2
      %v1185 = vrot.slane %v1092, 2
      %v1186 = vsel %vm453, %v1184, %v1185
      %v1187 = vrot.slane %v1061, 2
      %v1188 = vrot.slane %v1093, 2
      %v1189 = vsel %vm453, %v1187, %v1188
      %v1198 = vmax.f32 %v1158, %v1168
      %v1199 = vmax.f32 %v1159, %v1171
      %v1200 = vmax.f32 %v1160, %v1174
      %v1201 = vmax.f32 %v1161, %v1177
      %v1202 = vmax.f32 %v1162, %v1180
      %v1203 = vmax.f32 %v1163, %v1183
      %v1204 = vmax.f32 %v1164, %v1186
      %v1205 = vmax.f32 %v1165, %v1189
      %v1206 = vpack.c.bf16 %v1198, %v1198
      %v1207 = vpack.c.bf16 %v1199, %v1199
      %v1208 = vpack.c.bf16 %v1200, %v1200
      %v1209 = vpack.c.bf16 %v1201, %v1201
      %v1210 = vpack.c.bf16 %v1202, %v1202
      %v1211 = vpack.c.bf16 %v1203, %v1203
      %v1212 = vpack.c.bf16 %v1204, %v1204
      %v1213 = vpack.c.bf16 %v1205, %v1205
      %v1214 = vunpack.c.l.bf16 %v1206
      %v1215 = vunpack.c.l.bf16 %v1207
      %v1216 = vunpack.c.l.bf16 %v1208
      %v1217 = vunpack.c.l.bf16 %v1209
      %v1218 = vunpack.c.l.bf16 %v1210
      %v1219 = vunpack.c.l.bf16 %v1211
      %v1220 = vunpack.c.l.bf16 %v1212
      %v1221 = vunpack.c.l.bf16 %v1213
      %v1222 = vunpack.c.l.bf16 %v1042
      %v1223 = vmax.f32 %v1214, %v1055
      %v1224 = vmax.f32 %v1215, %v1056
      %v1225 = vmax.f32 %v1216, %v1057
      %v1226 = vmax.f32 %v1217, %v1058
      %v1227 = vmax.f32 %v1218, %v1059
      %v1228 = vmax.f32 %v1219, %v1060
      %v1229 = vmax.f32 %v1220, %v1061
      %v1230 = vmax.f32 %v1221, %v1222
      %v1231 = vpack.c.bf16 %v1223, %v1223
      %v1232 = vpack.c.bf16 %v1224, %v1224
      %v1233 = vpack.c.bf16 %v1225, %v1225
      %v1234 = vpack.c.bf16 %v1226, %v1226
      %v1235 = vpack.c.bf16 %v1227, %v1227
      %v1236 = vpack.c.bf16 %v1228, %v1228
      %v1237 = vpack.c.bf16 %v1229, %v1229
      %v1238 = vpack.c.bf16 %v1230, %v1230
      %v1239 = vunpack.c.l.bf16 %v1231
      %v1240 = vunpack.c.l.bf16 %v1232
      %v1241 = vunpack.c.l.bf16 %v1233
      %v1242 = vunpack.c.l.bf16 %v1234
      %v1243 = vunpack.c.l.bf16 %v1235
      %v1244 = vunpack.c.l.bf16 %v1236
      %v1245 = vunpack.c.l.bf16 %v1237
      %v1246 = vunpack.c.l.bf16 %v1238
      %v1247 = vunpack.c.l.bf16 %v1043
      %v1250 = vrot.slane %v1222, 1
      %v1251 = vrot.slane %v1247, 1
      %v1252 = vsel %vm396, %v1250, %v1251
      %v1254 = vmax.f32 %v1239, %v1115
      %v1255 = vmax.f32 %v1240, %v1118
      %v1256 = vmax.f32 %v1241, %v1121
      %v1257 = vmax.f32 %v1242, %v1124
      %v1258 = vmax.f32 %v1243, %v1127
      %v1259 = vmax.f32 %v1244, %v1130
      %v1260 = vmax.f32 %v1245, %v1133
      %v1261 = vmax.f32 %v1246, %v1252
      %v1262 = vpack.c.bf16 %v1254, %v1254
      %v1263 = vpack.c.bf16 %v1255, %v1255
      %v1264 = vpack.c.bf16 %v1256, %v1256
      %v1265 = vpack.c.bf16 %v1257, %v1257
      %v1266 = vpack.c.bf16 %v1258, %v1258
      %v1267 = vpack.c.bf16 %v1259, %v1259
      %v1268 = vpack.c.bf16 %v1260, %v1260
      %v1269 = vpack.c.bf16 %v1261, %v1261
      %v1270 = vunpack.c.l.bf16 %v1262
      %v1271 = vunpack.c.l.bf16 %v1263
      %v1272 = vunpack.c.l.bf16 %v1264
      %v1273 = vunpack.c.l.bf16 %v1265
      %v1274 = vunpack.c.l.bf16 %v1266
      %v1275 = vunpack.c.l.bf16 %v1267
      %v1276 = vunpack.c.l.bf16 %v1268
      %v1277 = vunpack.c.l.bf16 %v1269
      %v1278 = vrot.slane %v1222, 2
      %v1279 = vrot.slane %v1247, 2
      %v1280 = vsel %vm453, %v1278, %v1279
      %v1282 = vmax.f32 %v1270, %v1171
      %v1283 = vmax.f32 %v1271, %v1174
      %v1284 = vmax.f32 %v1272, %v1177
      %v1285 = vmax.f32 %v1273, %v1180
      %v1286 = vmax.f32 %v1274, %v1183
      %v1287 = vmax.f32 %v1275, %v1186
      %v1288 = vmax.f32 %v1276, %v1189
      %v1289 = vmax.f32 %v1277, %v1280
      %v1290 = vpack.c.bf16 %v1282, %v1282
      %v1291 = vpack.c.bf16 %v1283, %v1283
      %v1292 = vpack.c.bf16 %v1284, %v1284
      %v1293 = vpack.c.bf16 %v1285, %v1285
      %v1294 = vpack.c.bf16 %v1286, %v1286
      %v1295 = vpack.c.bf16 %v1287, %v1287
      %v1296 = vpack.c.bf16 %v1288, %v1288
      %v1297 = vpack.c.bf16 %v1289, %v1289
      %v1298 = vunpack.c.l.bf16 %v1290
      %v1299 = vunpack.c.l.bf16 %v1291
      %v1300 = vunpack.c.l.bf16 %v1292
      %v1301 = vunpack.c.l.bf16 %v1293
      %v1302 = vunpack.c.l.bf16 %v1294
      %v1303 = vunpack.c.l.bf16 %v1295
      %v1304 = vunpack.c.l.bf16 %v1296
      %v1305 = vunpack.c.l.bf16 %v1297
      %v1306 = vunpack.c.l.bf16 %v1044
      %v1307 = vmax.f32 %v1298, %v1056
      %v1308 = vmax.f32 %v1299, %v1057
      %v1309 = vmax.f32 %v1300, %v1058
      %v1310 = vmax.f32 %v1301, %v1059
      %v1311 = vmax.f32 %v1302, %v1060
      %v1312 = vmax.f32 %v1303, %v1061
      %v1313 = vmax.f32 %v1304, %v1222
      %v1314 = vmax.f32 %v1305, %v1306
      %v1315 = vpack.c.bf16 %v1307, %v1307
      %v1316 = vpack.c.bf16 %v1308, %v1308
      %v1317 = vpack.c.bf16 %v1309, %v1309
      %v1318 = vpack.c.bf16 %v1310, %v1310
      %v1319 = vpack.c.bf16 %v1311, %v1311
      %v1320 = vpack.c.bf16 %v1312, %v1312
      %v1321 = vpack.c.bf16 %v1313, %v1313
      %v1322 = vpack.c.bf16 %v1314, %v1314
      %v1323 = vunpack.c.l.bf16 %v1315
      %v1324 = vunpack.c.l.bf16 %v1316
      %v1325 = vunpack.c.l.bf16 %v1317
      %v1326 = vunpack.c.l.bf16 %v1318
      %v1327 = vunpack.c.l.bf16 %v1319
      %v1328 = vunpack.c.l.bf16 %v1320
      %v1329 = vunpack.c.l.bf16 %v1321
      %v1330 = vunpack.c.l.bf16 %v1322
      %v1331 = vunpack.c.l.bf16 %v1045
      %v1334 = vrot.slane %v1306, 1
      %v1335 = vrot.slane %v1331, 1
      %v1336 = vsel %vm396, %v1334, %v1335
      %v1338 = vmax.f32 %v1323, %v1118
      %v1339 = vmax.f32 %v1324, %v1121
      %v1340 = vmax.f32 %v1325, %v1124
      %v1341 = vmax.f32 %v1326, %v1127
      %v1342 = vmax.f32 %v1327, %v1130
      %v1343 = vmax.f32 %v1328, %v1133
      %v1344 = vmax.f32 %v1329, %v1252
      %v1345 = vmax.f32 %v1330, %v1336
      %v1346 = vpack.c.bf16 %v1338, %v1338
      %v1347 = vpack.c.bf16 %v1339, %v1339
      %v1348 = vpack.c.bf16 %v1340, %v1340
      %v1349 = vpack.c.bf16 %v1341, %v1341
      %v1350 = vpack.c.bf16 %v1342, %v1342
      %v1351 = vpack.c.bf16 %v1343, %v1343
      %v1352 = vpack.c.bf16 %v1344, %v1344
      %v1353 = vpack.c.bf16 %v1345, %v1345
      %v1354 = vunpack.c.l.bf16 %v1346
      %v1355 = vunpack.c.l.bf16 %v1347
      %v1356 = vunpack.c.l.bf16 %v1348
      %v1357 = vunpack.c.l.bf16 %v1349
      %v1358 = vunpack.c.l.bf16 %v1350
      %v1359 = vunpack.c.l.bf16 %v1351
      %v1360 = vunpack.c.l.bf16 %v1352
      %v1361 = vunpack.c.l.bf16 %v1353
      %v1362 = vrot.slane %v1306, 2
      %v1363 = vrot.slane %v1331, 2
      %v1364 = vsel %vm453, %v1362, %v1363
      %v1366 = vmax.f32 %v1354, %v1174
      %v1367 = vmax.f32 %v1355, %v1177
      %v1368 = vmax.f32 %v1356, %v1180
      %v1369 = vmax.f32 %v1357, %v1183
      %v1370 = vmax.f32 %v1358, %v1186
      %v1371 = vmax.f32 %v1359, %v1189
      %v1372 = vmax.f32 %v1360, %v1280
      %v1373 = vmax.f32 %v1361, %v1364
      %v1374 = vpack.c.bf16 %v1366, %v1366
      %v1375 = vpack.c.bf16 %v1367, %v1367
      %v1376 = vpack.c.bf16 %v1368, %v1368
      %v1377 = vpack.c.bf16 %v1369, %v1369
      %v1378 = vpack.c.bf16 %v1370, %v1370
      %v1379 = vpack.c.bf16 %v1371, %v1371
      %v1380 = vpack.c.bf16 %v1372, %v1372
      %v1381 = vpack.c.bf16 %v1373, %v1373
      %v1382 = vld [vmem:[%s3] sm:$0xf]
      %v1383 = vld [vmem:[%s4] sm:$0x1]
      %v1385 = vperm.slane %v1383, 0
      %v1395 = vunpack.c.l.b16 %v1374
      %v1396 = vunpack.c.l.b16 %v1375
      %v1397 = vunpack.c.l.b16 %v1376
      %v1398 = vunpack.c.l.b16 %v1377
      %v1399 = vunpack.c.l.b16 %v1378
      %v1400 = vunpack.c.l.b16 %v1379
      %v1401 = vunpack.c.l.b16 %v1380
      %v1402 = vunpack.c.l.b16 %v1381
      %v1403 = vpack.c.b16 %v1396, %v1395
      %v1404 = vpack.c.b16 %v1398, %v1397
      %v1405 = vpack.c.b16 %v1400, %v1399
      %v1406 = vpack.c.b16 %v1402, %v1401
      %vm1407 = vcmask 64512
      %v1409 = vsel %vm1407, %v1403, 0
      %v1412 = vsel %vm1407, %v1404, 0
      %v1415 = vsel %vm1407, %v1405, 0
      %v1418 = vsel %vm1407, %v1406, 0
      %vm1420 = vcmask 1043456
      %v1422 = vsel %vm1420, %v1382, 0
      %1424 = vmatpush.bf16.msra.mxu0 0
      %1425 = vmatpush.bf16.msra.mxu0 0
      %1426 = vmatpush.bf16.msra.mxu0 0
      %1427 = vmatpush.bf16.msra.mxu0 0
      %1428 = vmatpush.bf16.msra.mxu0 0
      %1429 = vmatpush.bf16.msra.mxu0 0
      %1430 = vmatpush.bf16.msra.mxu0 0
      %1431 = vmatpush.bf16.msra.mxu0 %v1422
      %1432 = vmatmul.bf16.gmra.mxu0 %v1409
      %v1433 = vpop.f32.mrf.mxu0
      %v1434 = vadd.f32 %v1385, %v1433
      %v1435 = vpop.f32.mrf.mxu0
      %v1436 = vadd.f32 %v1385, %v1435
      %1437 = vmatmul.bf16.gmra.mxu0 %v1412
      %v1438 = vpop.f32.mrf.mxu0
      %v1439 = vadd.f32 %v1385, %v1438
      %v1440 = vpop.f32.mrf.mxu0
      %v1441 = vadd.f32 %v1385, %v1440
      %1442 = vmatmul.bf16.gmra.mxu0 %v1415
      %v1443 = vpop.f32.mrf.mxu0
      %v1444 = vadd.f32 %v1385, %v1443
      %v1445 = vpop.f32.mrf.mxu0
      %v1446 = vadd.f32 %v1385, %v1445
      %1447 = vmatmul.bf16.gmra.mxu0 %v1418
      %v1448 = vpop.f32.mrf.mxu0
      %v1449 = vadd.f32 %v1385, %v1448
      %v1450 = vpop.f32.mrf.mxu0
      %v1451 = vadd.f32 %v1385, %v1450
      %1452 = vdwg.mxu0
      %v1453 = vmax.f32 %v1434, 0.0
      %v1454 = vmax.f32 %v1436, 0.0
      %v1455 = vmax.f32 %v1439, 0.0
      %v1456 = vmax.f32 %v1441, 0.0
      %v1457 = vmax.f32 %v1444, 0.0
      %v1458 = vmax.f32 %v1446, 0.0
      %v1459 = vmax.f32 %v1449, 0.0
      %v1460 = vmax.f32 %v1451, 0.0
      %1461 = vst.msk [vmem:[%s342] sm:$0xff] %vm1407, %v1453
      %1462 = vst.msk [vmem:[%s342 + $0x8] sm:$0xff] %vm1407, %v1454
      %1463 = vst.msk [vmem:[%s342 + $0x10] sm:$0xff] %vm1407, %v1455
      %1464 = vst.msk [vmem:[%s342 + $0x18] sm:$0xff] %vm1407, %v1456
      %1465 = vst.msk [vmem:[%s342 + $0x20] sm:$0xff] %vm1407, %v1457
      %1466 = vst.msk [vmem:[%s342 + $0x28] sm:$0xff] %vm1407, %v1458
      %1467 = vst.msk [vmem:[%s342 + $0x30] sm:$0xff] %vm1407, %v1459
      %1468 = vst.msk [vmem:[%s342 + $0x38] sm:$0xff] %vm1407, %v1460
      %p1469 = scmp.lt.s32.totalorder %s20, 1
      %s1470 = scalar_select %p1469, %s20, 1
      %p1471 = scmp.lt.s32.totalorder %s21, 3
      %s1472 = scalar_select %p1471, %s21, 3
      %s1473 = smul.addr %s1472, 8
      %s1474 = smul.addr %s1470, 32
      %s1475 = sadd.s32 %s1473, %s1474
      %s1476 = smul.addr %s1475, 8
      %s1477 = scalar_lea.vmem %s5, %s1476
      // Predicated region
      $region41: #{inception_forward.9} parent=39 // pred_check
        %p1478 = pneg %p178
      $region42: #{inception_forward.9} parent=39 // pred_check_branch
        %1480 = sbr.rel (%p1478) target = $region44
      $region43: #{inception_forward.9} parent=39 // pred_region
        _
      $region44: #{inception_forward.9} parent=39 // pred_fallthru
        _
    $region40: #{inception_forward.9} parent=5 // pred_fallthru
      _
    %p1481 = scmp.le.s32.totalorder 2, %s11
    // Predicated region
    $region45: #{inception_forward.9} parent=5 // pred_check
      %p1482 = pneg %p1481
    $region46: #{inception_forward.9} parent=5 // pred_check_branch
      %1484 = sbr.rel (%p1482) target = $region48
    $region47: #{inception_forward.9} parent=5 // pred_region
      %s1485 = ssub.s32 %s11, 2
      // Predicated region
      $region49: #{inception_forward.9} parent=47 // pred_check
        %p1486 = pneg %p184
      $region50: #{inception_forward.9} parent=47 // pred_check_branch
        %1488 = sbr.rel (%p1486) target = $region52
      $region51: #{inception_forward.9} parent=47 // pred_region
        %p1489 = scmp.lt.s32.totalorder %s22, 1
        %s1490 = scalar_select %p1489, %s22, 1
        %p1491 = scmp.lt.s32.totalorder %s23, 3
        %s1492 = scalar_select %p1491, %s23, 3
        %s1493 = smul.addr %s1492, 8
        %s1494 = smul.addr %s1490, 32
        %s1495 = sadd.s32 %s1493, %s1494
        %s1496 = smul.addr %s1495, 8
        %s1497 = scalar_lea.vmem %s5, %s1496
      $region52: #{inception_forward.9} parent=47 // pred_fallthru
        _
    $region48: #{inception_forward.9} parent=5 // pred_fallthru
      _
  $region6: #{inception_forward.9} parent=0 // loop_footer
    %s15 = sadd.s32 1, %s11
  $region7: #{inception_forward.9} parent=0 // loop_footer_branch
    %10 = sbr.rel target = $region3
  $region8: #{inception_forward.9} parent=0 // loop_exit
    _

</llo_original>
